<compile_context>
chip_gen: v6e
topology: v6e:2x2x1
jax: 0.10.0
libtpu: 0.0.40
codegen_flags: <defaults>
</compile_context>

<pallas_src>
import functools

import numpy as np
import jax
import jax.numpy as jnp
from jax import lax
from jax.experimental import pallas as pl
from jax.experimental.pallas import tpu as pltpu

CONFIG = dict(
    num_layers=5,
    in_channels=[2, 8, 16, 32, 64],
    out_channels=[8, 16, 32, 64, 128],
    kernels=[(4, 13), (4, 10), (3, 3), (3, 3), (3, 3)],
    strides=[(1, 4), (1, 2), (1, 1), (1, 1), (1, 1)],
    paddings=[(2, 0), (2, 0), (2, 0), (2, 0), (2, 0)],
    pooling=[(1, 2), (1, 2), (1, 2), (2, 2), (2, 2)],
    relu_params=[0.2, 0.2, 0.2, 0.2, 0.2],
)
BN_EPS = 1e-5


def compute_conv_output_dim(h, w, kernel, padding, stride):
    kh, kw = kernel
    sh, sw = stride
    ph, pw = padding
    return (h - kh + 2 * ph) // sh + 1, (w - kw + 2 * pw) // sw + 1


# ------------------------------- Pallas kernel -------------------------------

def _disc_layer_kernel(*refs, eps, neg_slope, m_total, num_taps, has_rem, head):
    """Fused Conv2d (im2col MXU matmul) + BatchNorm2d (training-mode batch stats) +
    AvgPool2d (mean over per-tap matmuls) + LeakyReLU; optionally (head=True) also the
    Linear + Sigmoid classifier head.  Layout is (channels, spatial) with the large
    spatial axis on lanes.
    """
    idx = 0
    pp_ref = refs[idx]; idx += 1            # (P, K, Mp)  pool-grouped im2col patches
    rem_ref = None
    if has_rem:
        rem_ref = refs[idx]; idx += 1       # (K, Mrem)   cols dropped by floor pooling
    wt_ref = refs[idx]; idx += 1            # (Cout, K)
    b_ref = refs[idx]; idx += 1             # (Cout, 1)
    g_ref = refs[idx]; idx += 1             # (Cout, 1)   BN gamma
    bt_ref = refs[idx]; idx += 1            # (Cout, 1)   BN beta
    if head:
        lw_ref = refs[idx]; idx += 1        # (Cout, N*S) linear weight tiled over batch
        sel_ref = refs[idx]; idx += 1       # (N*S, N)    batch-selection matrix
        lb_ref = refs[idx]; idx += 1        # (1, 1)      linear bias
    out_ref = refs[idx]

    wt = wt_ref[...]
    bias = b_ref[...]

    # Conv2d: one (Cout,K)x(K,Mp) MXU matmul per position inside the pooling window.
    ys = [jnp.dot(wt, pp_ref[t], preferred_element_type=jnp.float32) + bias
          for t in range(num_taps)]
    all_ys = list(ys)
    if rem_ref is not None:
        all_ys.append(jnp.dot(wt, rem_ref[...], preferred_element_type=jnp.float32) + bias)

    # BatchNorm2d training-mode statistics (biased variance) over all N*OH*OW conv
    # outputs per channel — two-pass lane reductions.
    inv_m = 1.0 / m_total
    s1 = jnp.sum(all_ys[0], axis=1, keepdims=True)
    for y in all_ys[1:]:
        s1 = s1 + jnp.sum(y, axis=1, keepdims=True)
    mean = s1 * inv_m
    s2 = jnp.sum((all_ys[0] - mean) ** 2, axis=1, keepdims=True)
    for y in all_ys[1:]:
        s2 = s2 + jnp.sum((y - mean) ** 2, axis=1, keepdims=True)
    var = s2 * inv_m

    # AvgPool(BN(y)) == AvgPool(y) * scale + shift (BN is a per-channel affine map).
    scale = g_ref[...] * lax.rsqrt(var + eps)
    shift = bt_ref[...] - mean * scale
    pooled = ys[0]
    for y in ys[1:]:
        pooled = pooled + y
    z = pooled * (1.0 / num_taps) * scale + shift

    # LeakyReLU.
    act = jnp.where(z > 0, z, neg_slope * z)

    if not head:
        out_ref[...] = act                                   # (Cout, N*PH*PW)
    else:
        # Linear(out_dim -> 1) + Sigmoid.  act columns are ordered (n, spatial) and
        # lw_ref carries the matching linear weight for each column.
        prod = act * lw_ref[...]                             # (Cout, N*S)
        per_n = jnp.dot(prod, sel_ref[...],
                        preferred_element_type=jnp.float32)  # (Cout, N)
        logit = jnp.sum(per_n, axis=0, keepdims=True) + lb_ref[...]   # (1, N)
        out_ref[...] = 1.0 / (1.0 + jnp.exp(-logit))


# ----------------------------- host-side layout glue -----------------------------

def _build_patches(xc, kernel, stride, padding, pooling):
    """xc: (Cin, N, H, W) -> pool-grouped im2col patches (pure XLA layout glue).

    Returns:
      pool_patches: (P, K, N*PH*PW), P = p0*p1, K = Cin*KH*KW; columns ordered (n, i, j);
                    slab t holds the patch whose conv output sits at offset t inside its
                    pooling window.
      rem:          (K, Mrem) patches for conv outputs dropped by floor-mode pooling
                    (still needed for the BatchNorm statistics), or None.
    """
    cin, n, h, w = xc.shape
    kh, kw = kernel
    sh, sw = stride
    ph, pw = padding
    p0, p1 = pooling
    xp = jnp.pad(xc, ((0, 0), (0, 0), (ph, ph), (pw, pw)))
    oh = (h + 2 * ph - kh) // sh + 1
    ow = (w + 2 * pw - kw) // sw + 1
    k = cin * kh * kw
    taps = []
    for i in range(kh):
        for j in range(kw):
            taps.append(xp[:, :, i:i + sh * (oh - 1) + 1:sh,
                               j:j + sw * (ow - 1) + 1:sw])        # (Cin, N, OH, OW)
    t = jnp.stack(taps, axis=1).reshape(k, n, oh, ow)              # K order = (cin,kh,kw)
    ph_, pw_ = oh // p0, ow // p1
    groups = [t[:, :, a:ph_ * p0:p0, b:pw_ * p1:p1].reshape(k, n * ph_ * pw_)
              for a in range(p0) for b in range(p1)]
    pool_patches = jnp.stack(groups, axis=0)                       # (P, K, N*PH*PW)
    rems = []
    if ow > pw_ * p1:
        rems.append(t[:, :, :ph_ * p0, pw_ * p1:].reshape(k, -1))
    if oh > ph_ * p0:
        rems.append(t[:, :, ph_ * p0:, :].reshape(k, -1))
    rem = jnp.concatenate(rems, axis=1) if rems else None
    return pool_patches, rem, oh, ow, ph_, pw_


def _conv_layer(xc, w, b, gamma, beta, kernel, stride, padding, pooling, neg_slope,
                head=None):
    """xc: (Cin, N, H, W) -> (Cout, N, PH, PW); with head=(lin_w, lin_b) -> (N, 1)."""
    cout = w.shape[0]
    n = xc.shape[1]
    p0, p1 = pooling
    pool_patches, rem, oh, ow, ph_, pw_ = _build_patches(xc, kernel, stride, padding,
                                                         pooling)
    m_total = n * oh * ow
    num_taps = p0 * p1

    args = [pool_patches]
    if rem is not None:
        args.append(rem)
    args += [w.reshape(cout, -1), b.reshape(cout, 1),
             gamma.reshape(cout, 1), beta.reshape(cout, 1)]

    if head is None:
        out_shape = jax.ShapeDtypeStruct((cout, n * ph_ * pw_), jnp.float32)
    else:
        lin_w, lin_b = head
        s = ph_ * pw_
        lw_tiled = jnp.tile(lin_w.reshape(cout, s), (1, n))        # (Cout, N*S)
        sel = np.zeros((n * s, n), np.float32)
        for bidx in range(n):
            sel[bidx * s:(bidx + 1) * s, bidx] = 1.0
        args += [lw_tiled, jnp.asarray(sel), lin_b.reshape(1, 1)]
        out_shape = jax.ShapeDtypeStruct((1, n), jnp.float32)

    out = pl.pallas_call(
        functools.partial(
            _disc_layer_kernel, eps=BN_EPS, neg_slope=neg_slope, m_total=m_total,
            num_taps=num_taps, has_rem=rem is not None, head=head is not None),
        out_shape=out_shape,
        in_specs=[pl.BlockSpec(memory_space=pltpu.MemorySpace.VMEM)] * len(args),
        out_specs=pl.BlockSpec(memory_space=pltpu.MemorySpace.VMEM),
    )(*args)

    if head is None:
        return out.reshape(cout, n, ph_, pw_)       # CNHW-flat: next layer's input layout
    return out.T                                    # (N, 1) probabilities


def discriminator_forward(x, conv_params, lin_w, lin_b):
    cfg = CONFIG
    nl = cfg['num_layers']
    xc = jnp.transpose(x, (1, 0, 2, 3))             # NCHW -> CNHW once, at the input
    for i, (w, b, g, bt) in enumerate(conv_params):
        head = (lin_w, lin_b) if i == nl - 1 else None
        xc = _conv_layer(xc, w, b, g, bt, cfg['kernels'][i], cfg['strides'][i],
                         cfg['paddings'][i], cfg['pooling'][i], cfg['relu_params'][i],
                         head=head)
    return xc                                        # (N, 1)


# ------------------------- deterministic parameters -------------------------

def init_params(key, input_h, input_w):
    cfg = CONFIG
    conv_params = []
    h, w = input_h, input_w
    for i in range(cfg['num_layers']):
        cin, cout = cfg['in_channels'][i], cfg['out_channels'][i]
        kh, kw = cfg['kernels'][i]
        key, k1, k2, k3, k4 = jax.random.split(key, 5)
        bound = 1.0 / np.sqrt(cin * kh * kw)
        wt = jax.random.uniform(k1, (cout, cin, kh, kw), jnp.float32, -bound, bound)
        bs = jax.random.uniform(k2, (cout,), jnp.float32, -bound, bound)
        gamma = 1.0 + 0.1 * jax.random.normal(k3, (cout,), dtype=jnp.float32)
        beta = 0.1 * jax.random.normal(k4, (cout,), dtype=jnp.float32)
        conv_params.append((wt, bs, gamma, beta))
        h, w = compute_conv_output_dim(h, w, cfg['kernels'][i],
                                       cfg['paddings'][i], cfg['strides'][i])
        h, w = h // cfg['pooling'][i][0], w // cfg['pooling'][i][1]
    out_dim = h * w * cfg['out_channels'][-1]
    key, k1, k2 = jax.random.split(key, 3)
    lb = 1.0 / np.sqrt(out_dim)
    lin_w = jax.random.uniform(k1, (out_dim, 1), jnp.float32, -lb, lb)
    lin_b = jax.random.uniform(k2, (1,), jnp.float32, -lb, lb)
    return conv_params, lin_w, lin_b


# --------------------------- pure-JAX reference ---------------------------

def reference_forward(x, conv_params, lin_w, lin_b):
    cfg = CONFIG
    for i, (w, b, g, bt) in enumerate(conv_params):
        sh, sw = cfg['strides'][i]
        ph, pw = cfg['paddings'][i]
        p0, p1 = cfg['pooling'][i]
        ns = cfg['relu_params'][i]
        y = lax.conv_general_dilated(
            x, w, window_strides=(sh, sw), padding=((ph, ph), (pw, pw)),
            dimension_numbers=('NCHW', 'OIHW', 'NCHW'),
            precision=lax.Precision.HIGHEST)
        y = y + b.reshape(1, -1, 1, 1)
        mean = jnp.mean(y, axis=(0, 2, 3), keepdims=True)
        var = jnp.mean((y - mean) ** 2, axis=(0, 2, 3), keepdims=True)
        y = (y - mean) * lax.rsqrt(var + BN_EPS) * g.reshape(1, -1, 1, 1) + bt.reshape(1, -1, 1, 1)
        y = lax.reduce_window(y, 0.0, lax.add, (1, 1, p0, p1), (1, 1, p0, p1), 'VALID') / (p0 * p1)
        x = jnp.where(y > 0, y, ns * y)
    feat = x.reshape(x.shape[0], -1)
    return jax.nn.sigmoid(feat @ lin_w + lin_b.reshape(1, 1))


# ----------------------------------- main -----------------------------------

if __name__ == "__main__":
    # Smallest spatial dims the 5-layer stack supports (kernel_w=13/stride 4, etc.):
    # 4x784x2 -> 5x96x8 -> 6x22x16 -> 8x10x32 -> 5x4x64 -> 3x1x128 -> Linear(384,1).
    BATCH, INPUT_H, INPUT_W = 2, 4, 784

    key = jax.random.PRNGKey(0)
    pkey, xkey = jax.random.split(key)
    conv_params, lin_w, lin_b = init_params(pkey, INPUT_H, INPUT_W)
    x = jax.random.normal(xkey, (BATCH, CONFIG['in_channels'][0], INPUT_H, INPUT_W),
                          dtype=jnp.float32)

    fwd = jax.jit(lambda xin: discriminator_forward(xin, conv_params, lin_w, lin_b))
    out = jax.block_until_ready(fwd(x))

    ref = reference_forward(x, conv_params, lin_w, lin_b)
    assert out.shape == (BATCH, 1)
    # Kernel matmuls use default MXU precision (bf16 passes, f32 accumulation) vs. the
    # HIGHEST-precision reference, hence the slightly wider tolerance.
    np.testing.assert_allclose(np.asarray(out), np.asarray(ref), rtol=2e-2, atol=2e-2)

    # TODO(synk): training-only pieces (SGD optimizer, BCELoss, load_state_dict) are
    # not part of the forward pass and are intentionally not implemented.
    print("KERNEL_OK")
</pallas_src>

<mosaic_0001>
module attributes {stable_mosaic.version = 11 : i64} {
  func.func @_disc_layer_kernel(%arg0: memref<2x104x960xf32, #tpu.memory_space<vmem>>, %arg1: memref<104x10xf32, #tpu.memory_space<vmem>>, %arg2: memref<8x104xf32, #tpu.memory_space<vmem>>, %arg3: memref<8x1xf32, #tpu.memory_space<vmem>>, %arg4: memref<8x1xf32, #tpu.memory_space<vmem>>, %arg5: memref<8x1xf32, #tpu.memory_space<vmem>>, %arg6: memref<8x960xf32, #tpu.memory_space<vmem>>) attributes {dimension_semantics = [], scalar_prefetch = 0 : i64, scratch_operands = 0 : i64, tpu.core_type = #tpu.core_type<tc>} {
    %c0 = arith.constant 0 : index
    %c0_0 = arith.constant 0 : index
    %0 = vector.load %arg2[%c0, %c0_0] : memref<8x104xf32, #tpu.memory_space<vmem>>, vector<8x104xf32>
    %c0_1 = arith.constant 0 : index
    %c0_2 = arith.constant 0 : index
    %1 = vector.load %arg3[%c0_1, %c0_2] : memref<8x1xf32, #tpu.memory_space<vmem>>, vector<8x1xf32>
    %c0_3 = arith.constant 0 : index
    %c0_4 = arith.constant 0 : index
    %c0_5 = arith.constant 0 : index
    %2 = vector.load %arg0[%c0_3, %c0_4, %c0_5] : memref<2x104x960xf32, #tpu.memory_space<vmem>>, vector<1x104x960xf32>
    %3 = vector.shape_cast %2 : vector<1x104x960xf32> to vector<104x960xf32>
    %cst = arith.constant dense<0.000000e+00> : vector<8x960xf32>
    %4 = tpu.matmul %0, %3, %cst {dimension_numbers = #tpu.dot_dimension_numbers<[1], [0], [0], [1], [0, 0, 1, 1], [], []>} : vector<8x104xf32>, vector<104x960xf32>, vector<8x960xf32> -> vector<8x960xf32>
    %5 = vector.broadcast %1 : vector<8x1xf32> to vector<8x960xf32>
    %6 = arith.addf %4, %5 : vector<8x960xf32>
    %c1 = arith.constant 1 : index
    %c0_6 = arith.constant 0 : index
    %c0_7 = arith.constant 0 : index
    %7 = vector.load %arg0[%c1, %c0_6, %c0_7] : memref<2x104x960xf32, #tpu.memory_space<vmem>>, vector<1x104x960xf32>
    %8 = vector.shape_cast %7 : vector<1x104x960xf32> to vector<104x960xf32>
    %cst_8 = arith.constant dense<0.000000e+00> : vector<8x960xf32>
    %9 = tpu.matmul %0, %8, %cst_8 {dimension_numbers = #tpu.dot_dimension_numbers<[1], [0], [0], [1], [0, 0, 1, 1], [], []>} : vector<8x104xf32>, vector<104x960xf32>, vector<8x960xf32> -> vector<8x960xf32>
    %10 = vector.broadcast %1 : vector<8x1xf32> to vector<8x960xf32>
    %11 = arith.addf %9, %10 : vector<8x960xf32>
    %c0_9 = arith.constant 0 : index
    %c0_10 = arith.constant 0 : index
    %12 = vector.load %arg1[%c0_9, %c0_10] : memref<104x10xf32, #tpu.memory_space<vmem>>, vector<104x10xf32>
    %cst_11 = arith.constant dense<0.000000e+00> : vector<8x10xf32>
    %13 = tpu.matmul %0, %12, %cst_11 {dimension_numbers = #tpu.dot_dimension_numbers<[1], [0], [0], [1], [0, 0, 1, 1], [], []>} : vector<8x104xf32>, vector<104x10xf32>, vector<8x10xf32> -> vector<8x10xf32>
    %14 = vector.broadcast %1 : vector<8x1xf32> to vector<8x10xf32>
    %15 = arith.addf %13, %14 : vector<8x10xf32>
    %cst_12 = arith.constant dense<0.000000e+00> : vector<8xf32>
    %16 = vector.multi_reduction <add>, %6, %cst_12 [1] : vector<8x960xf32> to vector<8xf32>
    %17 = vector.shape_cast %16 : vector<8xf32> to vector<8x1xf32>
    %cst_13 = arith.constant dense<0.000000e+00> : vector<8xf32>
    %18 = vector.multi_reduction <add>, %11, %cst_13 [1] : vector<8x960xf32> to vector<8xf32>
    %19 = vector.shape_cast %18 : vector<8xf32> to vector<8x1xf32>
    %20 = arith.addf %17, %19 : vector<8x1xf32>
    %cst_14 = arith.constant dense<0.000000e+00> : vector<8xf32>
    %21 = vector.multi_reduction <add>, %15, %cst_14 [1] : vector<8x10xf32> to vector<8xf32>
    %22 = vector.shape_cast %21 : vector<8xf32> to vector<8x1xf32>
    %23 = arith.addf %20, %22 : vector<8x1xf32>
    %cst_15 = arith.constant 5.18134737E-4 : f32
    %24 = vector.broadcast %cst_15 : f32 to vector<8x1xf32>
    %25 = arith.mulf %23, %24 : vector<8x1xf32>
    %26 = vector.broadcast %25 : vector<8x1xf32> to vector<8x960xf32>
    %27 = arith.subf %6, %26 : vector<8x960xf32>
    %28 = arith.mulf %27, %27 : vector<8x960xf32>
    %cst_16 = arith.constant dense<0.000000e+00> : vector<8xf32>
    %29 = vector.multi_reduction <add>, %28, %cst_16 [1] : vector<8x960xf32> to vector<8xf32>
    %30 = vector.shape_cast %29 : vector<8xf32> to vector<8x1xf32>
    %31 = vector.broadcast %25 : vector<8x1xf32> to vector<8x960xf32>
    %32 = arith.subf %11, %31 : vector<8x960xf32>
    %33 = arith.mulf %32, %32 : vector<8x960xf32>
    %cst_17 = arith.constant dense<0.000000e+00> : vector<8xf32>
    %34 = vector.multi_reduction <add>, %33, %cst_17 [1] : vector<8x960xf32> to vector<8xf32>
    %35 = vector.shape_cast %34 : vector<8xf32> to vector<8x1xf32>
    %36 = arith.addf %30, %35 : vector<8x1xf32>
    %37 = vector.broadcast %25 : vector<8x1xf32> to vector<8x10xf32>
    %38 = arith.subf %15, %37 : vector<8x10xf32>
    %39 = arith.mulf %38, %38 : vector<8x10xf32>
    %cst_18 = arith.constant dense<0.000000e+00> : vector<8xf32>
    %40 = vector.multi_reduction <add>, %39, %cst_18 [1] : vector<8x10xf32> to vector<8xf32>
    %41 = vector.shape_cast %40 : vector<8xf32> to vector<8x1xf32>
    %42 = arith.addf %36, %41 : vector<8x1xf32>
    %cst_19 = arith.constant 5.18134737E-4 : f32
    %43 = vector.broadcast %cst_19 : f32 to vector<8x1xf32>
    %44 = arith.mulf %42, %43 : vector<8x1xf32>
    %c0_20 = arith.constant 0 : index
    %c0_21 = arith.constant 0 : index
    %45 = vector.load %arg4[%c0_20, %c0_21] : memref<8x1xf32, #tpu.memory_space<vmem>>, vector<8x1xf32>
    %cst_22 = arith.constant 9.99999974E-6 : f32
    %46 = vector.broadcast %cst_22 : f32 to vector<8x1xf32>
    %47 = arith.addf %44, %46 : vector<8x1xf32>
    %48 = math.rsqrt %47 : vector<8x1xf32>
    %49 = arith.mulf %45, %48 : vector<8x1xf32>
    %c0_23 = arith.constant 0 : index
    %c0_24 = arith.constant 0 : index
    %50 = vector.load %arg5[%c0_23, %c0_24] : memref<8x1xf32, #tpu.memory_space<vmem>>, vector<8x1xf32>
    %51 = arith.mulf %25, %49 : vector<8x1xf32>
    %52 = arith.subf %50, %51 : vector<8x1xf32>
    %53 = arith.addf %6, %11 : vector<8x960xf32>
    %cst_25 = arith.constant 5.000000e-01 : f32
    %54 = vector.broadcast %cst_25 : f32 to vector<8x960xf32>
    %55 = arith.mulf %53, %54 : vector<8x960xf32>
    %56 = vector.broadcast %49 : vector<8x1xf32> to vector<8x960xf32>
    %57 = arith.mulf %55, %56 : vector<8x960xf32>
    %58 = vector.broadcast %52 : vector<8x1xf32> to vector<8x960xf32>
    %59 = arith.addf %57, %58 : vector<8x960xf32>
    %cst_26 = arith.constant 0.000000e+00 : f32
    %60 = vector.broadcast %cst_26 : f32 to vector<8x960xf32>
    %61 = arith.cmpf ogt, %59, %60 : vector<8x960xf32>
    %cst_27 = arith.constant 2.000000e-01 : f32
    %62 = vector.broadcast %cst_27 : f32 to vector<8x960xf32>
    %63 = arith.mulf %62, %59 : vector<8x960xf32>
    %64 = arith.select %61, %59, %63 : vector<8x960xi1>, vector<8x960xf32>
    %c0_28 = arith.constant 0 : index
    %c0_29 = arith.constant 0 : index
    %65 = vector.load %arg6[%c0_28, %c0_29] : memref<8x960xf32, #tpu.memory_space<vmem>>, vector<8x960xf32>
    tpu.vector_store %arg6[%c0_28, %c0_29], %64 {strides = array<i32>} : memref<8x960xf32, #tpu.memory_space<vmem>>, vector<8x960xf32>,
    return
  }
}

module attributes {stable_mosaic.version = 11 : i64} {
  func.func @_disc_layer_kernel(%arg0: memref<2x320x264xf32, #tpu.memory_space<vmem>>, %arg1: memref<16x320xf32, #tpu.memory_space<vmem>>, %arg2: memref<16x1xf32, #tpu.memory_space<vmem>>, %arg3: memref<16x1xf32, #tpu.memory_space<vmem>>, %arg4: memref<16x1xf32, #tpu.memory_space<vmem>>, %arg5: memref<16x264xf32, #tpu.memory_space<vmem>>) attributes {dimension_semantics = [], scalar_prefetch = 0 : i64, scratch_operands = 0 : i64, tpu.core_type = #tpu.core_type<tc>} {
    %c0 = arith.constant 0 : index
    %c0_0 = arith.constant 0 : index
    %0 = vector.load %arg1[%c0, %c0_0] : memref<16x320xf32, #tpu.memory_space<vmem>>, vector<16x320xf32>
    %c0_1 = arith.constant 0 : index
    %c0_2 = arith.constant 0 : index
    %1 = vector.load %arg2[%c0_1, %c0_2] : memref<16x1xf32, #tpu.memory_space<vmem>>, vector<16x1xf32>
    %c0_3 = arith.constant 0 : index
    %c0_4 = arith.constant 0 : index
    %c0_5 = arith.constant 0 : index
    %2 = vector.load %arg0[%c0_3, %c0_4, %c0_5] : memref<2x320x264xf32, #tpu.memory_space<vmem>>, vector<1x320x264xf32>
    %3 = vector.shape_cast %2 : vector<1x320x264xf32> to vector<320x264xf32>
    %cst = arith.constant dense<0.000000e+00> : vector<16x264xf32>
    %4 = tpu.matmul %0, %3, %cst {dimension_numbers = #tpu.dot_dimension_numbers<[1], [0], [0], [1], [0, 0, 1, 1], [], []>} : vector<16x320xf32>, vector<320x264xf32>, vector<16x264xf32> -> vector<16x264xf32>
    %5 = vector.broadcast %1 : vector<16x1xf32> to vector<16x264xf32>
    %6 = arith.addf %4, %5 : vector<16x264xf32>
    %c1 = arith.constant 1 : index
    %c0_6 = arith.constant 0 : index
    %c0_7 = arith.constant 0 : index
    %7 = vector.load %arg0[%c1, %c0_6, %c0_7] : memref<2x320x264xf32, #tpu.memory_space<vmem>>, vector<1x320x264xf32>
    %8 = vector.shape_cast %7 : vector<1x320x264xf32> to vector<320x264xf32>
    %cst_8 = arith.constant dense<0.000000e+00> : vector<16x264xf32>
    %9 = tpu.matmul %0, %8, %cst_8 {dimension_numbers = #tpu.dot_dimension_numbers<[1], [0], [0], [1], [0, 0, 1, 1], [], []>} : vector<16x320xf32>, vector<320x264xf32>, vector<16x264xf32> -> vector<16x264xf32>
    %10 = vector.broadcast %1 : vector<16x1xf32> to vector<16x264xf32>
    %11 = arith.addf %9, %10 : vector<16x264xf32>
    %cst_9 = arith.constant dense<0.000000e+00> : vector<16xf32>
    %12 = vector.multi_reduction <add>, %6, %cst_9 [1] : vector<16x264xf32> to vector<16xf32>
    %13 = vector.shape_cast %12 : vector<16xf32> to vector<16x1xf32>
    %cst_10 = arith.constant dense<0.000000e+00> : vector<16xf32>
    %14 = vector.multi_reduction <add>, %11, %cst_10 [1] : vector<16x264xf32> to vector<16xf32>
    %15 = vector.shape_cast %14 : vector<16xf32> to vector<16x1xf32>
    %16 = arith.addf %13, %15 : vector<16x1xf32>
    %cst_11 = arith.constant 0.00189393945 : f32
    %17 = vector.broadcast %cst_11 : f32 to vector<16x1xf32>
    %18 = arith.mulf %16, %17 : vector<16x1xf32>
    %19 = vector.broadcast %18 : vector<16x1xf32> to vector<16x264xf32>
    %20 = arith.subf %6, %19 : vector<16x264xf32>
    %21 = arith.mulf %20, %20 : vector<16x264xf32>
    %cst_12 = arith.constant dense<0.000000e+00> : vector<16xf32>
    %22 = vector.multi_reduction <add>, %21, %cst_12 [1] : vector<16x264xf32> to vector<16xf32>
    %23 = vector.shape_cast %22 : vector<16xf32> to vector<16x1xf32>
    %24 = vector.broadcast %18 : vector<16x1xf32> to vector<16x264xf32>
    %25 = arith.subf %11, %24 : vector<16x264xf32>
    %26 = arith.mulf %25, %25 : vector<16x264xf32>
    %cst_13 = arith.constant dense<0.000000e+00> : vector<16xf32>
    %27 = vector.multi_reduction <add>, %26, %cst_13 [1] : vector<16x264xf32> to vector<16xf32>
    %28 = vector.shape_cast %27 : vector<16xf32> to vector<16x1xf32>
    %29 = arith.addf %23, %28 : vector<16x1xf32>
    %cst_14 = arith.constant 0.00189393945 : f32
    %30 = vector.broadcast %cst_14 : f32 to vector<16x1xf32>
    %31 = arith.mulf %29, %30 : vector<16x1xf32>
    %c0_15 = arith.constant 0 : index
    %c0_16 = arith.constant 0 : index
    %32 = vector.load %arg3[%c0_15, %c0_16] : memref<16x1xf32, #tpu.memory_space<vmem>>, vector<16x1xf32>
    %cst_17 = arith.constant 9.99999974E-6 : f32
    %33 = vector.broadcast %cst_17 : f32 to vector<16x1xf32>
    %34 = arith.addf %31, %33 : vector<16x1xf32>
    %35 = math.rsqrt %34 : vector<16x1xf32>
    %36 = arith.mulf %32, %35 : vector<16x1xf32>
    %c0_18 = arith.constant 0 : index
    %c0_19 = arith.constant 0 : index
    %37 = vector.load %arg4[%c0_18, %c0_19] : memref<16x1xf32, #tpu.memory_space<vmem>>, vector<16x1xf32>
    %38 = arith.mulf %18, %36 : vector<16x1xf32>
    %39 = arith.subf %37, %38 : vector<16x1xf32>
    %40 = arith.addf %6, %11 : vector<16x264xf32>
    %cst_20 = arith.constant 5.000000e-01 : f32
    %41 = vector.broadcast %cst_20 : f32 to vector<16x264xf32>
    %42 = arith.mulf %40, %41 : vector<16x264xf32>
    %43 = vector.broadcast %36 : vector<16x1xf32> to vector<16x264xf32>
    %44 = arith.mulf %42, %43 : vector<16x264xf32>
    %45 = vector.broadcast %39 : vector<16x1xf32> to vector<16x264xf32>
    %46 = arith.addf %44, %45 : vector<16x264xf32>
    %cst_21 = arith.constant 0.000000e+00 : f32
    %47 = vector.broadcast %cst_21 : f32 to vector<16x264xf32>
    %48 = arith.cmpf ogt, %46, %47 : vector<16x264xf32>
    %cst_22 = arith.constant 2.000000e-01 : f32
    %49 = vector.broadcast %cst_22 : f32 to vector<16x264xf32>
    %50 = arith.mulf %49, %46 : vector<16x264xf32>
    %51 = arith.select %48, %46, %50 : vector<16x264xi1>, vector<16x264xf32>
    %c0_23 = arith.constant 0 : index
    %c0_24 = arith.constant 0 : index
    %52 = vector.load %arg5[%c0_23, %c0_24] : memref<16x264xf32, #tpu.memory_space<vmem>>, vector<16x264xf32>
    tpu.vector_store %arg5[%c0_23, %c0_24], %51 {strides = array<i32>} : memref<16x264xf32, #tpu.memory_space<vmem>>, vector<16x264xf32>,
    return
  }
}

module attributes {stable_mosaic.version = 11 : i64} {
  func.func @_disc_layer_kernel(%arg0: memref<2x144x160xf32, #tpu.memory_space<vmem>>, %arg1: memref<32x144xf32, #tpu.memory_space<vmem>>, %arg2: memref<32x1xf32, #tpu.memory_space<vmem>>, %arg3: memref<32x1xf32, #tpu.memory_space<vmem>>, %arg4: memref<32x1xf32, #tpu.memory_space<vmem>>, %arg5: memref<32x160xf32, #tpu.memory_space<vmem>>) attributes {dimension_semantics = [], scalar_prefetch = 0 : i64, scratch_operands = 0 : i64, tpu.core_type = #tpu.core_type<tc>} {
    %c0 = arith.constant 0 : index
    %c0_0 = arith.constant 0 : index
    %0 = vector.load %arg1[%c0, %c0_0] : memref<32x144xf32, #tpu.memory_space<vmem>>, vector<32x144xf32>
    %c0_1 = arith.constant 0 : index
    %c0_2 = arith.constant 0 : index
    %1 = vector.load %arg2[%c0_1, %c0_2] : memref<32x1xf32, #tpu.memory_space<vmem>>, vector<32x1xf32>
    %c0_3 = arith.constant 0 : index
    %c0_4 = arith.constant 0 : index
    %c0_5 = arith.constant 0 : index
    %2 = vector.load %arg0[%c0_3, %c0_4, %c0_5] : memref<2x144x160xf32, #tpu.memory_space<vmem>>, vector<1x144x160xf32>
    %3 = vector.shape_cast %2 : vector<1x144x160xf32> to vector<144x160xf32>
    %cst = arith.constant dense<0.000000e+00> : vector<32x160xf32>
    %4 = tpu.matmul %0, %3, %cst {dimension_numbers = #tpu.dot_dimension_numbers<[1], [0], [0], [1], [0, 0, 1, 1], [], []>} : vector<32x144xf32>, vector<144x160xf32>, vector<32x160xf32> -> vector<32x160xf32>
    %5 = vector.broadcast %1 : vector<32x1xf32> to vector<32x160xf32>
    %6 = arith.addf %4, %5 : vector<32x160xf32>
    %c1 = arith.constant 1 : index
    %c0_6 = arith.constant 0 : index
    %c0_7 = arith.constant 0 : index
    %7 = vector.load %arg0[%c1, %c0_6, %c0_7] : memref<2x144x160xf32, #tpu.memory_space<vmem>>, vector<1x144x160xf32>
    %8 = vector.shape_cast %7 : vector<1x144x160xf32> to vector<144x160xf32>
    %cst_8 = arith.constant dense<0.000000e+00> : vector<32x160xf32>
    %9 = tpu.matmul %0, %8, %cst_8 {dimension_numbers = #tpu.dot_dimension_numbers<[1], [0], [0], [1], [0, 0, 1, 1], [], []>} : vector<32x144xf32>, vector<144x160xf32>, vector<32x160xf32> -> vector<32x160xf32>
    %10 = vector.broadcast %1 : vector<32x1xf32> to vector<32x160xf32>
    %11 = arith.addf %9, %10 : vector<32x160xf32>
    %cst_9 = arith.constant dense<0.000000e+00> : vector<32xf32>
    %12 = vector.multi_reduction <add>, %6, %cst_9 [1] : vector<32x160xf32> to vector<32xf32>
    %13 = vector.shape_cast %12 : vector<32xf32> to vector<32x1xf32>
    %cst_10 = arith.constant dense<0.000000e+00> : vector<32xf32>
    %14 = vector.multi_reduction <add>, %11, %cst_10 [1] : vector<32x160xf32> to vector<32xf32>
    %15 = vector.shape_cast %14 : vector<32xf32> to vector<32x1xf32>
    %16 = arith.addf %13, %15 : vector<32x1xf32>
    %cst_11 = arith.constant 3.125000e-03 : f32
    %17 = vector.broadcast %cst_11 : f32 to vector<32x1xf32>
    %18 = arith.mulf %16, %17 : vector<32x1xf32>
    %19 = vector.broadcast %18 : vector<32x1xf32> to vector<32x160xf32>
    %20 = arith.subf %6, %19 : vector<32x160xf32>
    %21 = arith.mulf %20, %20 : vector<32x160xf32>
    %cst_12 = arith.constant dense<0.000000e+00> : vector<32xf32>
    %22 = vector.multi_reduction <add>, %21, %cst_12 [1] : vector<32x160xf32> to vector<32xf32>
    %23 = vector.shape_cast %22 : vector<32xf32> to vector<32x1xf32>
    %24 = vector.broadcast %18 : vector<32x1xf32> to vector<32x160xf32>
    %25 = arith.subf %11, %24 : vector<32x160xf32>
    %26 = arith.mulf %25, %25 : vector<32x160xf32>
    %cst_13 = arith.constant dense<0.000000e+00> : vector<32xf32>
    %27 = vector.multi_reduction <add>, %26, %cst_13 [1] : vector<32x160xf32> to vector<32xf32>
    %28 = vector.shape_cast %27 : vector<32xf32> to vector<32x1xf32>
    %29 = arith.addf %23, %28 : vector<32x1xf32>
    %cst_14 = arith.constant 3.125000e-03 : f32
    %30 = vector.broadcast %cst_14 : f32 to vector<32x1xf32>
    %31 = arith.mulf %29, %30 : vector<32x1xf32>
    %c0_15 = arith.constant 0 : index
    %c0_16 = arith.constant 0 : index
    %32 = vector.load %arg3[%c0_15, %c0_16] : memref<32x1xf32, #tpu.memory_space<vmem>>, vector<32x1xf32>
    %cst_17 = arith.constant 9.99999974E-6 : f32
    %33 = vector.broadcast %cst_17 : f32 to vector<32x1xf32>
    %34 = arith.addf %31, %33 : vector<32x1xf32>
    %35 = math.rsqrt %34 : vector<32x1xf32>
    %36 = arith.mulf %32, %35 : vector<32x1xf32>
    %c0_18 = arith.constant 0 : index
    %c0_19 = arith.constant 0 : index
    %37 = vector.load %arg4[%c0_18, %c0_19] : memref<32x1xf32, #tpu.memory_space<vmem>>, vector<32x1xf32>
    %38 = arith.mulf %18, %36 : vector<32x1xf32>
    %39 = arith.subf %37, %38 : vector<32x1xf32>
    %40 = arith.addf %6, %11 : vector<32x160xf32>
    %cst_20 = arith.constant 5.000000e-01 : f32
    %41 = vector.broadcast %cst_20 : f32 to vector<32x160xf32>
    %42 = arith.mulf %40, %41 : vector<32x160xf32>
    %43 = vector.broadcast %36 : vector<32x1xf32> to vector<32x160xf32>
    %44 = arith.mulf %42, %43 : vector<32x160xf32>
    %45 = vector.broadcast %39 : vector<32x1xf32> to vector<32x160xf32>
    %46 = arith.addf %44, %45 : vector<32x160xf32>
    %cst_21 = arith.constant 0.000000e+00 : f32
    %47 = vector.broadcast %cst_21 : f32 to vector<32x160xf32>
    %48 = arith.cmpf ogt, %46, %47 : vector<32x160xf32>
    %cst_22 = arith.constant 2.000000e-01 : f32
    %49 = vector.broadcast %cst_22 : f32 to vector<32x160xf32>
    %50 = arith.mulf %49, %46 : vector<32x160xf32>
    %51 = arith.select %48, %46, %50 : vector<32x160xi1>, vector<32x160xf32>
    %c0_23 = arith.constant 0 : index
    %c0_24 = arith.constant 0 : index
    %52 = vector.load %arg5[%c0_23, %c0_24] : memref<32x160xf32, #tpu.memory_space<vmem>>, vector<32x160xf32>
    tpu.vector_store %arg5[%c0_23, %c0_24], %51 {strides = array<i32>} : memref<32x160xf32, #tpu.memory_space<vmem>>, vector<32x160xf32>,
    return
  }
}

module attributes {stable_mosaic.version = 11 : i64} {
  func.func @_disc_layer_kernel(%arg0: memref<4x288x40xf32, #tpu.memory_space<vmem>>, %arg1: memref<64x288xf32, #tpu.memory_space<vmem>>, %arg2: memref<64x1xf32, #tpu.memory_space<vmem>>, %arg3: memref<64x1xf32, #tpu.memory_space<vmem>>, %arg4: memref<64x1xf32, #tpu.memory_space<vmem>>, %arg5: memref<64x40xf32, #tpu.memory_space<vmem>>) attributes {dimension_semantics = [], scalar_prefetch = 0 : i64, scratch_operands = 0 : i64, tpu.core_type = #tpu.core_type<tc>} {
    %c0 = arith.constant 0 : index
    %c0_0 = arith.constant 0 : index
    %0 = vector.load %arg1[%c0, %c0_0] : memref<64x288xf32, #tpu.memory_space<vmem>>, vector<64x288xf32>
    %c0_1 = arith.constant 0 : index
    %c0_2 = arith.constant 0 : index
    %1 = vector.load %arg2[%c0_1, %c0_2] : memref<64x1xf32, #tpu.memory_space<vmem>>, vector<64x1xf32>
    %c0_3 = arith.constant 0 : index
    %c0_4 = arith.constant 0 : index
    %c0_5 = arith.constant 0 : index
    %2 = vector.load %arg0[%c0_3, %c0_4, %c0_5] : memref<4x288x40xf32, #tpu.memory_space<vmem>>, vector<1x288x40xf32>
    %3 = vector.shape_cast %2 : vector<1x288x40xf32> to vector<288x40xf32>
    %cst = arith.constant dense<0.000000e+00> : vector<64x40xf32>
    %4 = tpu.matmul %0, %3, %cst {dimension_numbers = #tpu.dot_dimension_numbers<[1], [0], [0], [1], [0, 0, 1, 1], [], []>} : vector<64x288xf32>, vector<288x40xf32>, vector<64x40xf32> -> vector<64x40xf32>
    %5 = vector.broadcast %1 : vector<64x1xf32> to vector<64x40xf32>
    %6 = arith.addf %4, %5 : vector<64x40xf32>
    %c1 = arith.constant 1 : index
    %c0_6 = arith.constant 0 : index
    %c0_7 = arith.constant 0 : index
    %7 = vector.load %arg0[%c1, %c0_6, %c0_7] : memref<4x288x40xf32, #tpu.memory_space<vmem>>, vector<1x288x40xf32>
    %8 = vector.shape_cast %7 : vector<1x288x40xf32> to vector<288x40xf32>
    %cst_8 = arith.constant dense<0.000000e+00> : vector<64x40xf32>
    %9 = tpu.matmul %0, %8, %cst_8 {dimension_numbers = #tpu.dot_dimension_numbers<[1], [0], [0], [1], [0, 0, 1, 1], [], []>} : vector<64x288xf32>, vector<288x40xf32>, vector<64x40xf32> -> vector<64x40xf32>
    %10 = vector.broadcast %1 : vector<64x1xf32> to vector<64x40xf32>
    %11 = arith.addf %9, %10 : vector<64x40xf32>
    %c2 = arith.constant 2 : index
    %c0_9 = arith.constant 0 : index
    %c0_10 = arith.constant 0 : index
    %12 = vector.load %arg0[%c2, %c0_9, %c0_10] : memref<4x288x40xf32, #tpu.memory_space<vmem>>, vector<1x288x40xf32>
    %13 = vector.shape_cast %12 : vector<1x288x40xf32> to vector<288x40xf32>
    %cst_11 = arith.constant dense<0.000000e+00> : vector<64x40xf32>
    %14 = tpu.matmul %0, %13, %cst_11 {dimension_numbers = #tpu.dot_dimension_numbers<[1], [0], [0], [1], [0, 0, 1, 1], [], []>} : vector<64x288xf32>, vector<288x40xf32>, vector<64x40xf32> -> vector<64x40xf32>
    %15 = vector.broadcast %1 : vector<64x1xf32> to vector<64x40xf32>
    %16 = arith.addf %14, %15 : vector<64x40xf32>
    %c3 = arith.constant 3 : index
    %c0_12 = arith.constant 0 : index
    %c0_13 = arith.constant 0 : index
    %17 = vector.load %arg0[%c3, %c0_12, %c0_13] : memref<4x288x40xf32, #tpu.memory_space<vmem>>, vector<1x288x40xf32>
    %18 = vector.shape_cast %17 : vector<1x288x40xf32> to vector<288x40xf32>
    %cst_14 = arith.constant dense<0.000000e+00> : vector<64x40xf32>
    %19 = tpu.matmul %0, %18, %cst_14 {dimension_numbers = #tpu.dot_dimension_numbers<[1], [0], [0], [1], [0, 0, 1, 1], [], []>} : vector<64x288xf32>, vector<288x40xf32>, vector<64x40xf32> -> vector<64x40xf32>
    %20 = vector.broadcast %1 : vector<64x1xf32> to vector<64x40xf32>
    %21 = arith.addf %19, %20 : vector<64x40xf32>
    %cst_15 = arith.constant dense<0.000000e+00> : vector<64xf32>
    %22 = vector.multi_reduction <add>, %6, %cst_15 [1] : vector<64x40xf32> to vector<64xf32>
    %23 = vector.shape_cast %22 : vector<64xf32> to vector<64x1xf32>
    %cst_16 = arith.constant dense<0.000000e+00> : vector<64xf32>
    %24 = vector.multi_reduction <add>, %11, %cst_16 [1] : vector<64x40xf32> to vector<64xf32>
    %25 = vector.shape_cast %24 : vector<64xf32> to vector<64x1xf32>
    %26 = arith.addf %23, %25 : vector<64x1xf32>
    %cst_17 = arith.constant dense<0.000000e+00> : vector<64xf32>
    %27 = vector.multi_reduction <add>, %16, %cst_17 [1] : vector<64x40xf32> to vector<64xf32>
    %28 = vector.shape_cast %27 : vector<64xf32> to vector<64x1xf32>
    %29 = arith.addf %26, %28 : vector<64x1xf32>
    %cst_18 = arith.constant dense<0.000000e+00> : vector<64xf32>
    %30 = vector.multi_reduction <add>, %21, %cst_18 [1] : vector<64x40xf32> to vector<64xf32>
    %31 = vector.shape_cast %30 : vector<64xf32> to vector<64x1xf32>
    %32 = arith.addf %29, %31 : vector<64x1xf32>
    %cst_19 = arith.constant 6.250000e-03 : f32
    %33 = vector.broadcast %cst_19 : f32 to vector<64x1xf32>
    %34 = arith.mulf %32, %33 : vector<64x1xf32>
    %35 = vector.broadcast %34 : vector<64x1xf32> to vector<64x40xf32>
    %36 = arith.subf %6, %35 : vector<64x40xf32>
    %37 = arith.mulf %36, %36 : vector<64x40xf32>
    %cst_20 = arith.constant dense<0.000000e+00> : vector<64xf32>
    %38 = vector.multi_reduction <add>, %37, %cst_20 [1] : vector<64x40xf32> to vector<64xf32>
    %39 = vector.shape_cast %38 : vector<64xf32> to vector<64x1xf32>
    %40 = vector.broadcast %34 : vector<64x1xf32> to vector<64x40xf32>
    %41 = arith.subf %11, %40 : vector<64x40xf32>
    %42 = arith.mulf %41, %41 : vector<64x40xf32>
    %cst_21 = arith.constant dense<0.000000e+00> : vector<64xf32>
    %43 = vector.multi_reduction <add>, %42, %cst_21 [1] : vector<64x40xf32> to vector<64xf32>
    %44 = vector.shape_cast %43 : vector<64xf32> to vector<64x1xf32>
    %45 = arith.addf %39, %44 : vector<64x1xf32>
    %46 = vector.broadcast %34 : vector<64x1xf32> to vector<64x40xf32>
    %47 = arith.subf %16, %46 : vector<64x40xf32>
    %48 = arith.mulf %47, %47 : vector<64x40xf32>
    %cst_22 = arith.constant dense<0.000000e+00> : vector<64xf32>
    %49 = vector.multi_reduction <add>, %48, %cst_22 [1] : vector<64x40xf32> to vector<64xf32>
    %50 = vector.shape_cast %49 : vector<64xf32> to vector<64x1xf32>
    %51 = arith.addf %45, %50 : vector<64x1xf32>
    %52 = vector.broadcast %34 : vector<64x1xf32> to vector<64x40xf32>
    %53 = arith.subf %21, %52 : vector<64x40xf32>
    %54 = arith.mulf %53, %53 : vector<64x40xf32>
    %cst_23 = arith.constant dense<0.000000e+00> : vector<64xf32>
    %55 = vector.multi_reduction <add>, %54, %cst_23 [1] : vector<64x40xf32> to vector<64xf32>
    %56 = vector.shape_cast %55 : vector<64xf32> to vector<64x1xf32>
    %57 = arith.addf %51, %56 : vector<64x1xf32>
    %cst_24 = arith.constant 6.250000e-03 : f32
    %58 = vector.broadcast %cst_24 : f32 to vector<64x1xf32>
    %59 = arith.mulf %57, %58 : vector<64x1xf32>
    %c0_25 = arith.constant 0 : index
    %c0_26 = arith.constant 0 : index
    %60 = vector.load %arg3[%c0_25, %c0_26] : memref<64x1xf32, #tpu.memory_space<vmem>>, vector<64x1xf32>
    %cst_27 = arith.constant 9.99999974E-6 : f32
    %61 = vector.broadcast %cst_27 : f32 to vector<64x1xf32>
    %62 = arith.addf %59, %61 : vector<64x1xf32>
    %63 = math.rsqrt %62 : vector<64x1xf32>
    %64 = arith.mulf %60, %63 : vector<64x1xf32>
    %c0_28 = arith.constant 0 : index
    %c0_29 = arith.constant 0 : index
    %65 = vector.load %arg4[%c0_28, %c0_29] : memref<64x1xf32, #tpu.memory_space<vmem>>, vector<64x1xf32>
    %66 = arith.mulf %34, %64 : vector<64x1xf32>
    %67 = arith.subf %65, %66 : vector<64x1xf32>
    %68 = arith.addf %6, %11 : vector<64x40xf32>
    %69 = arith.addf %68, %16 : vector<64x40xf32>
    %70 = arith.addf %69, %21 : vector<64x40xf32>
    %cst_30 = arith.constant 2.500000e-01 : f32
    %71 = vector.broadcast %cst_30 : f32 to vector<64x40xf32>
    %72 = arith.mulf %70, %71 : vector<64x40xf32>
    %73 = vector.broadcast %64 : vector<64x1xf32> to vector<64x40xf32>
    %74 = arith.mulf %72, %73 : vector<64x40xf32>
    %75 = vector.broadcast %67 : vector<64x1xf32> to vector<64x40xf32>
    %76 = arith.addf %74, %75 : vector<64x40xf32>
    %cst_31 = arith.constant 0.000000e+00 : f32
    %77 = vector.broadcast %cst_31 : f32 to vector<64x40xf32>
    %78 = arith.cmpf ogt, %76, %77 : vector<64x40xf32>
    %cst_32 = arith.constant 2.000000e-01 : f32
    %79 = vector.broadcast %cst_32 : f32 to vector<64x40xf32>
    %80 = arith.mulf %79, %76 : vector<64x40xf32>
    %81 = arith.select %78, %76, %80 : vector<64x40xi1>, vector<64x40xf32>
    %c0_33 = arith.constant 0 : index
    %c0_34 = arith.constant 0 : index
    %82 = vector.load %arg5[%c0_33, %c0_34] : memref<64x40xf32, #tpu.memory_space<vmem>>, vector<64x40xf32>
    tpu.vector_store %arg5[%c0_33, %c0_34], %81 {strides = array<i32>} : memref<64x40xf32, #tpu.memory_space<vmem>>, vector<64x40xf32>,
    return
  }
}

module attributes {stable_mosaic.version = 11 : i64} {
  func.func @_disc_layer_kernel(%arg0: memref<4x576x6xf32, #tpu.memory_space<vmem>>, %arg1: memref<576x4xf32, #tpu.memory_space<vmem>>, %arg2: memref<128x576xf32, #tpu.memory_space<vmem>>, %arg3: memref<128x1xf32, #tpu.memory_space<vmem>>, %arg4: memref<128x1xf32, #tpu.memory_space<vmem>>, %arg5: memref<128x1xf32, #tpu.memory_space<vmem>>, %arg6: memref<128x6xf32, #tpu.memory_space<vmem>>, %arg7: memref<6x2xf32, #tpu.memory_space<vmem>>, %arg8: memref<1x1xf32, #tpu.memory_space<vmem>>, %arg9: memref<1x2xf32, #tpu.memory_space<vmem>>) attributes {dimension_semantics = [], scalar_prefetch = 0 : i64, scratch_operands = 0 : i64, tpu.core_type = #tpu.core_type<tc>} {
    %c0 = arith.constant 0 : index
    %c0_0 = arith.constant 0 : index
    %0 = vector.load %arg2[%c0, %c0_0] : memref<128x576xf32, #tpu.memory_space<vmem>>, vector<128x576xf32>
    %c0_1 = arith.constant 0 : index
    %c0_2 = arith.constant 0 : index
    %1 = vector.load %arg3[%c0_1, %c0_2] : memref<128x1xf32, #tpu.memory_space<vmem>>, vector<128x1xf32>
    %c0_3 = arith.constant 0 : index
    %c0_4 = arith.constant 0 : index
    %c0_5 = arith.constant 0 : index
    %2 = vector.load %arg0[%c0_3, %c0_4, %c0_5] : memref<4x576x6xf32, #tpu.memory_space<vmem>>, vector<1x576x6xf32>
    %3 = vector.shape_cast %2 : vector<1x576x6xf32> to vector<576x6xf32>
    %cst = arith.constant dense<0.000000e+00> : vector<128x6xf32>
    %4 = tpu.matmul %0, %3, %cst {dimension_numbers = #tpu.dot_dimension_numbers<[1], [0], [0], [1], [0, 0, 1, 1], [], []>} : vector<128x576xf32>, vector<576x6xf32>, vector<128x6xf32> -> vector<128x6xf32>
    %5 = vector.broadcast %1 : vector<128x1xf32> to vector<128x6xf32>
    %6 = arith.addf %4, %5 : vector<128x6xf32>
    %c1 = arith.constant 1 : index
    %c0_6 = arith.constant 0 : index
    %c0_7 = arith.constant 0 : index
    %7 = vector.load %arg0[%c1, %c0_6, %c0_7] : memref<4x576x6xf32, #tpu.memory_space<vmem>>, vector<1x576x6xf32>
    %8 = vector.shape_cast %7 : vector<1x576x6xf32> to vector<576x6xf32>
    %cst_8 = arith.constant dense<0.000000e+00> : vector<128x6xf32>
    %9 = tpu.matmul %0, %8, %cst_8 {dimension_numbers = #tpu.dot_dimension_numbers<[1], [0], [0], [1], [0, 0, 1, 1], [], []>} : vector<128x576xf32>, vector<576x6xf32>, vector<128x6xf32> -> vector<128x6xf32>
    %10 = vector.broadcast %1 : vector<128x1xf32> to vector<128x6xf32>
    %11 = arith.addf %9, %10 : vector<128x6xf32>
    %c2 = arith.constant 2 : index
    %c0_9 = arith.constant 0 : index
    %c0_10 = arith.constant 0 : index
    %12 = vector.load %arg0[%c2, %c0_9, %c0_10] : memref<4x576x6xf32, #tpu.memory_space<vmem>>, vector<1x576x6xf32>
    %13 = vector.shape_cast %12 : vector<1x576x6xf32> to vector<576x6xf32>
    %cst_11 = arith.constant dense<0.000000e+00> : vector<128x6xf32>
    %14 = tpu.matmul %0, %13, %cst_11 {dimension_numbers = #tpu.dot_dimension_numbers<[1], [0], [0], [1], [0, 0, 1, 1], [], []>} : vector<128x576xf32>, vector<576x6xf32>, vector<128x6xf32> -> vector<128x6xf32>
    %15 = vector.broadcast %1 : vector<128x1xf32> to vector<128x6xf32>
    %16 = arith.addf %14, %15 : vector<128x6xf32>
    %c3 = arith.constant 3 : index
    %c0_12 = arith.constant 0 : index
    %c0_13 = arith.constant 0 : index
    %17 = vector.load %arg0[%c3, %c0_12, %c0_13] : memref<4x576x6xf32, #tpu.memory_space<vmem>>, vector<1x576x6xf32>
    %18 = vector.shape_cast %17 : vector<1x576x6xf32> to vector<576x6xf32>
    %cst_14 = arith.constant dense<0.000000e+00> : vector<128x6xf32>
    %19 = tpu.matmul %0, %18, %cst_14 {dimension_numbers = #tpu.dot_dimension_numbers<[1], [0], [0], [1], [0, 0, 1, 1], [], []>} : vector<128x576xf32>, vector<576x6xf32>, vector<128x6xf32> -> vector<128x6xf32>
    %20 = vector.broadcast %1 : vector<128x1xf32> to vector<128x6xf32>
    %21 = arith.addf %19, %20 : vector<128x6xf32>
    %c0_15 = arith.constant 0 : index
    %c0_16 = arith.constant 0 : index
    %22 = vector.load %arg1[%c0_15, %c0_16] : memref<576x4xf32, #tpu.memory_space<vmem>>, vector<576x4xf32>
    %cst_17 = arith.constant dense<0.000000e+00> : vector<128x4xf32>
    %23 = tpu.matmul %0, %22, %cst_17 {dimension_numbers = #tpu.dot_dimension_numbers<[1], [0], [0], [1], [0, 0, 1, 1], [], []>} : vector<128x576xf32>, vector<576x4xf32>, vector<128x4xf32> -> vector<128x4xf32>
    %24 = vector.broadcast %1 : vector<128x1xf32> to vector<128x4xf32>
    %25 = arith.addf %23, %24 : vector<128x4xf32>
    %cst_18 = arith.constant dense<0.000000e+00> : vector<128xf32>
    %26 = vector.multi_reduction <add>, %6, %cst_18 [1] : vector<128x6xf32> to vector<128xf32>
    %27 = vector.shape_cast %26 : vector<128xf32> to vector<128x1xf32>
    %cst_19 = arith.constant dense<0.000000e+00> : vector<128xf32>
    %28 = vector.multi_reduction <add>, %11, %cst_19 [1] : vector<128x6xf32> to vector<128xf32>
    %29 = vector.shape_cast %28 : vector<128xf32> to vector<128x1xf32>
    %30 = arith.addf %27, %29 : vector<128x1xf32>
    %cst_20 = arith.constant dense<0.000000e+00> : vector<128xf32>
    %31 = vector.multi_reduction <add>, %16, %cst_20 [1] : vector<128x6xf32> to vector<128xf32>
    %32 = vector.shape_cast %31 : vector<128xf32> to vector<128x1xf32>
    %33 = arith.addf %30, %32 : vector<128x1xf32>
    %cst_21 = arith.constant dense<0.000000e+00> : vector<128xf32>
    %34 = vector.multi_reduction <add>, %21, %cst_21 [1] : vector<128x6xf32> to vector<128xf32>
    %35 = vector.shape_cast %34 : vector<128xf32> to vector<128x1xf32>
    %36 = arith.addf %33, %35 : vector<128x1xf32>
    %cst_22 = arith.constant dense<0.000000e+00> : vector<128xf32>
    %37 = vector.multi_reduction <add>, %25, %cst_22 [1] : vector<128x4xf32> to vector<128xf32>
    %38 = vector.shape_cast %37 : vector<128xf32> to vector<128x1xf32>
    %39 = arith.addf %36, %38 : vector<128x1xf32>
    %cst_23 = arith.constant 0.0357142873 : f32
    %40 = vector.broadcast %cst_23 : f32 to vector<128x1xf32>
    %41 = arith.mulf %39, %40 : vector<128x1xf32>
    %42 = vector.broadcast %41 : vector<128x1xf32> to vector<128x6xf32>
    %43 = arith.subf %6, %42 : vector<128x6xf32>
    %44 = arith.mulf %43, %43 : vector<128x6xf32>
    %cst_24 = arith.constant dense<0.000000e+00> : vector<128xf32>
    %45 = vector.multi_reduction <add>, %44, %cst_24 [1] : vector<128x6xf32> to vector<128xf32>
    %46 = vector.shape_cast %45 : vector<128xf32> to vector<128x1xf32>
    %47 = vector.broadcast %41 : vector<128x1xf32> to vector<128x6xf32>
    %48 = arith.subf %11, %47 : vector<128x6xf32>
    %49 = arith.mulf %48, %48 : vector<128x6xf32>
    %cst_25 = arith.constant dense<0.000000e+00> : vector<128xf32>
    %50 = vector.multi_reduction <add>, %49, %cst_25 [1] : vector<128x6xf32> to vector<128xf32>
    %51 = vector.shape_cast %50 : vector<128xf32> to vector<128x1xf32>
    %52 = arith.addf %46, %51 : vector<128x1xf32>
    %53 = vector.broadcast %41 : vector<128x1xf32> to vector<128x6xf32>
    %54 = arith.subf %16, %53 : vector<128x6xf32>
    %55 = arith.mulf %54, %54 : vector<128x6xf32>
    %cst_26 = arith.constant dense<0.000000e+00> : vector<128xf32>
    %56 = vector.multi_reduction <add>, %55, %cst_26 [1] : vector<128x6xf32> to vector<128xf32>
    %57 = vector.shape_cast %56 : vector<128xf32> to vector<128x1xf32>
    %58 = arith.addf %52, %57 : vector<128x1xf32>
    %59 = vector.broadcast %41 : vector<128x1xf32> to vector<128x6xf32>
    %60 = arith.subf %21, %59 : vector<128x6xf32>
    %61 = arith.mulf %60, %60 : vector<128x6xf32>
    %cst_27 = arith.constant dense<0.000000e+00> : vector<128xf32>
    %62 = vector.multi_reduction <add>, %61, %cst_27 [1] : vector<128x6xf32> to vector<128xf32>
    %63 = vector.shape_cast %62 : vector<128xf32> to vector<128x1xf32>
    %64 = arith.addf %58, %63 : vector<128x1xf32>
    %65 = vector.broadcast %41 : vector<128x1xf32> to vector<128x4xf32>
    %66 = arith.subf %25, %65 : vector<128x4xf32>
    %67 = arith.mulf %66, %66 : vector<128x4xf32>
    %cst_28 = arith.constant dense<0.000000e+00> : vector<128xf32>
    %68 = vector.multi_reduction <add>, %67, %cst_28 [1] : vector<128x4xf32> to vector<128xf32>
    %69 = vector.shape_cast %68 : vector<128xf32> to vector<128x1xf32>
    %70 = arith.addf %64, %69 : vector<128x1xf32>
    %cst_29 = arith.constant 0.0357142873 : f32
    %71 = vector.broadcast %cst_29 : f32 to vector<128x1xf32>
    %72 = arith.mulf %70, %71 : vector<128x1xf32>
    %c0_30 = arith.constant 0 : index
    %c0_31 = arith.constant 0 : index
    %73 = vector.load %arg4[%c0_30, %c0_31] : memref<128x1xf32, #tpu.memory_space<vmem>>, vector<128x1xf32>
    %cst_32 = arith.constant 9.99999974E-6 : f32
    %74 = vector.broadcast %cst_32 : f32 to vector<128x1xf32>
    %75 = arith.addf %72, %74 : vector<128x1xf32>
    %76 = math.rsqrt %75 : vector<128x1xf32>
    %77 = arith.mulf %73, %76 : vector<128x1xf32>
    %c0_33 = arith.constant 0 : index
    %c0_34 = arith.constant 0 : index
    %78 = vector.load %arg5[%c0_33, %c0_34] : memref<128x1xf32, #tpu.memory_space<vmem>>, vector<128x1xf32>
    %79 = arith.mulf %41, %77 : vector<128x1xf32>
    %80 = arith.subf %78, %79 : vector<128x1xf32>
    %81 = arith.addf %6, %11 : vector<128x6xf32>
    %82 = arith.addf %81, %16 : vector<128x6xf32>
    %83 = arith.addf %82, %21 : vector<128x6xf32>
    %cst_35 = arith.constant 2.500000e-01 : f32
    %84 = vector.broadcast %cst_35 : f32 to vector<128x6xf32>
    %85 = arith.mulf %83, %84 : vector<128x6xf32>
    %86 = vector.broadcast %77 : vector<128x1xf32> to vector<128x6xf32>
    %87 = arith.mulf %85, %86 : vector<128x6xf32>
    %88 = vector.broadcast %80 : vector<128x1xf32> to vector<128x6xf32>
    %89 = arith.addf %87, %88 : vector<128x6xf32>
    %cst_36 = arith.constant 0.000000e+00 : f32
    %90 = vector.broadcast %cst_36 : f32 to vector<128x6xf32>
    %91 = arith.cmpf ogt, %89, %90 : vector<128x6xf32>
    %cst_37 = arith.constant 2.000000e-01 : f32
    %92 = vector.broadcast %cst_37 : f32 to vector<128x6xf32>
    %93 = arith.mulf %92, %89 : vector<128x6xf32>
    %94 = arith.select %91, %89, %93 : vector<128x6xi1>, vector<128x6xf32>
    %c0_38 = arith.constant 0 : index
    %c0_39 = arith.constant 0 : index
    %95 = vector.load %arg6[%c0_38, %c0_39] : memref<128x6xf32, #tpu.memory_space<vmem>>, vector<128x6xf32>
    %96 = arith.mulf %94, %95 : vector<128x6xf32>
    %c0_40 = arith.constant 0 : index
    %c0_41 = arith.constant 0 : index
    %97 = vector.load %arg7[%c0_40, %c0_41] : memref<6x2xf32, #tpu.memory_space<vmem>>, vector<6x2xf32>
    %cst_42 = arith.constant dense<0.000000e+00> : vector<128x2xf32>
    %98 = tpu.matmul %96, %97, %cst_42 {dimension_numbers = #tpu.dot_dimension_numbers<[1], [0], [0], [1], [0, 0, 1, 1], [], []>} : vector<128x6xf32>, vector<6x2xf32>, vector<128x2xf32> -> vector<128x2xf32>
    %cst_43 = arith.constant dense<0.000000e+00> : vector<2xf32>
    %99 = vector.multi_reduction <add>, %98, %cst_43 [0] : vector<128x2xf32> to vector<2xf32>
    %100 = vector.shape_cast %99 : vector<2xf32> to vector<1x2xf32>
    %c0_44 = arith.constant 0 : index
    %c0_45 = arith.constant 0 : index
    %101 = vector.load %arg8[%c0_44, %c0_45] : memref<1x1xf32, #tpu.memory_space<vmem>>, vector<1x1xf32>
    %102 = vector.broadcast %101 : vector<1x1xf32> to vector<1x2xf32>
    %103 = arith.addf %100, %102 : vector<1x2xf32>
    %cst_46 = arith.constant 0.000000e+00 : f32
    %104 = vector.broadcast %cst_46 : f32 to vector<1x2xf32>
    %105 = arith.subf %104, %103 : vector<1x2xf32>
    %106 = math.exp %105 : vector<1x2xf32>
    %cst_47 = arith.constant 1.000000e+00 : f32
    %107 = vector.broadcast %cst_47 : f32 to vector<1x2xf32>
    %108 = arith.addf %107, %106 : vector<1x2xf32>
    %cst_48 = arith.constant 1.000000e+00 : f32
    %109 = vector.broadcast %cst_48 : f32 to vector<1x2xf32>
    %110 = arith.divf %109, %108 : vector<1x2xf32>
    %c0_49 = arith.constant 0 : index
    %c0_50 = arith.constant 0 : index
    %111 = vector.load %arg9[%c0_49, %c0_50] : memref<1x2xf32, #tpu.memory_space<vmem>>, vector<1x2xf32>
    tpu.vector_store %arg9[%c0_49, %c0_50], %110 {strides = array<i32>} : memref<1x2xf32, #tpu.memory_space<vmem>>, vector<1x2xf32>,
    return
  }
}

</mosaic_0001>

<llo_original>
// kernel: _lambda_.5
$region0: #{_lambda_.5}
  #allocation0 [shape = 'u32[]', space=smem, size = 0x4, offset = 0x4, fixed_abs, tag = 'smem constant byte address 0x4 - core index']
  #allocation1 [shape = 'u32[144,128]{1,0:T(1,128)}', space=vmem, size = 0x12000, scoped, tag = 'internal scratch']
  %s0 = inlined_call_operand.vmem [shape: f32[2,104,960], index: 0, kind: input, shape index: {}]
  %s1 = inlined_call_operand.vmem [shape: f32[104,10], index: 1, kind: input, shape index: {}]
  %s2 = inlined_call_operand.vmem [shape: f32[8,104], index: 2, kind: input, shape index: {}]
  %s3 = inlined_call_operand.vmem [shape: f32[8,1], index: 3, kind: input, shape index: {}]
  %s4 = inlined_call_operand.vmem [shape: f32[8,1], index: 4, kind: input, shape index: {}]
  %s5 = inlined_call_operand.vmem [shape: f32[8,1], index: 5, kind: input, shape index: {}]
  %s6 = inlined_call_operand.vmem [shape: f32[8,960], index: 6, kind: output, shape index: {}]
  %s7 = sld [smem:[#allocation0]]
  $region34: #{_lambda_.5} parent=0
    _
  %s9 = ssub.s32 1, %s7
  %s10 = scalar_select 0, %s9, %s7
  // Predicated region
  $region2: #{_lambda_.5} parent=0 // pred_check
    _
  $region3: #{_lambda_.5} parent=0 // pred_check_branch
    %12 = sbr.rel (0) target = $region5
  $region4: #{_lambda_.5} parent=0 // pred_region
    _
  $region5: #{_lambda_.5} parent=0 // pred_fallthru
    _
  // Predicated region
  $region6: #{_lambda_.5} parent=0 // pred_check
    _
  $region7: #{_lambda_.5} parent=0 // pred_check_branch
    %14 = sbr.rel (0) target = $region9
  $region8: #{_lambda_.5} parent=0 // pred_region
    _
  $region9: #{_lambda_.5} parent=0 // pred_fallthru
    _
  // Predicated region
  $region10: #{_lambda_.5} parent=0 // pred_check
    _
  $region11: #{_lambda_.5} parent=0 // pred_check_branch
    %16 = sbr.rel (0) target = $region13
  $region12: #{_lambda_.5} parent=0 // pred_region
    _
  $region13: #{_lambda_.5} parent=0 // pred_fallthru
    _
  // Predicated region
  $region14: #{_lambda_.5} parent=0 // pred_check
    _
  $region15: #{_lambda_.5} parent=0 // pred_check_branch
    %18 = sbr.rel (0) target = $region17
  $region16: #{_lambda_.5} parent=0 // pred_region
    _
  $region17: #{_lambda_.5} parent=0 // pred_fallthru
    _
  // Predicated region
  $region18: #{_lambda_.5} parent=0 // pred_check
    _
  $region19: #{_lambda_.5} parent=0 // pred_check_branch
    %20 = sbr.rel (0) target = $region21
  $region20: #{_lambda_.5} parent=0 // pred_region
    _
  $region21: #{_lambda_.5} parent=0 // pred_fallthru
    _
  // Predicated region
  $region22: #{_lambda_.5} parent=0 // pred_check
    _
  $region23: #{_lambda_.5} parent=0 // pred_check_branch
    %22 = sbr.rel (0) target = $region25
  $region24: #{_lambda_.5} parent=0 // pred_region
    _
  $region25: #{_lambda_.5} parent=0 // pred_fallthru
    _
  %v23 = vld [vmem:[%s2] sm:$0xff]
  %v24 = vld [vmem:[%s3] sm:$0xff]
  %v25 = vld [vmem:[%s0] sm:$0xff]
  %v26 = vld [vmem:[%s0 + $0x8] sm:$0xff]
  %v27 = vld [vmem:[%s0 + $0x10] sm:$0xff]
  %v28 = vld [vmem:[%s0 + $0x18] sm:$0xff]
  %v29 = vld [vmem:[%s0 + $0x20] sm:$0xff]
  %v30 = vld [vmem:[%s0 + $0x28] sm:$0xff]
  %v31 = vld [vmem:[%s0 + $0x30] sm:$0xff]
  %v32 = vld [vmem:[%s0 + $0x38] sm:$0xff]
  %v33 = vld [vmem:[%s0 + $0x40] sm:$0xff]
  %v34 = vld [vmem:[%s0 + $0x48] sm:$0xff]
  %v35 = vld [vmem:[%s0 + $0x50] sm:$0xff]
  %v36 = vld [vmem:[%s0 + $0x58] sm:$0xff]
  %v37 = vld [vmem:[%s0 + $0x60] sm:$0xff]
  %v38 = vld [vmem:[%s0 + $0x68] sm:$0xff]
  %v39 = vld [vmem:[%s0 + $0x70] sm:$0xff]
  %v40 = vld [vmem:[%s0 + $0x78] sm:$0xff]
  %v41 = vld [vmem:[%s0 + $0x80] sm:$0xff]
  %v42 = vld [vmem:[%s0 + $0x88] sm:$0xff]
  %v43 = vld [vmem:[%s0 + $0x90] sm:$0xff]
  %v44 = vld [vmem:[%s0 + $0x98] sm:$0xff]
  %v45 = vld [vmem:[%s0 + $0xa0] sm:$0xff]
  %v46 = vld [vmem:[%s0 + $0xa8] sm:$0xff]
  %v47 = vld [vmem:[%s0 + $0xb0] sm:$0xff]
  %v48 = vld [vmem:[%s0 + $0xb8] sm:$0xff]
  %v49 = vld [vmem:[%s0 + $0xc0] sm:$0xff]
  %v50 = vld [vmem:[%s0 + $0xc8] sm:$0xff]
  %v51 = vld [vmem:[%s0 + $0xd0] sm:$0xff]
  %v52 = vld [vmem:[%s0 + $0xd8] sm:$0xff]
  %v53 = vld [vmem:[%s0 + $0xe0] sm:$0xff]
  %v54 = vld [vmem:[%s0 + $0xe8] sm:$0xff]
  %v55 = vld [vmem:[%s0 + $0xf0] sm:$0xff]
  %v56 = vld [vmem:[%s0 + $0xf8] sm:$0xff]
  %v57 = vld [vmem:[%s0 + $0x100] sm:$0xff]
  %v58 = vld [vmem:[%s0 + $0x108] sm:$0xff]
  %v59 = vld [vmem:[%s0 + $0x110] sm:$0xff]
  %v60 = vld [vmem:[%s0 + $0x118] sm:$0xff]
  %v61 = vld [vmem:[%s0 + $0x120] sm:$0xff]
  %v62 = vld [vmem:[%s0 + $0x128] sm:$0xff]
  %v63 = vld [vmem:[%s0 + $0x130] sm:$0xff]
  %v64 = vld [vmem:[%s0 + $0x138] sm:$0xff]
  %v65 = vld [vmem:[%s0 + $0x140] sm:$0xff]
  %v66 = vld [vmem:[%s0 + $0x148] sm:$0xff]
  %v67 = vld [vmem:[%s0 + $0x150] sm:$0xff]
  %v68 = vld [vmem:[%s0 + $0x158] sm:$0xff]
  %v69 = vld [vmem:[%s0 + $0x160] sm:$0xff]
  %v70 = vld [vmem:[%s0 + $0x168] sm:$0xff]
  %v71 = vld [vmem:[%s0 + $0x170] sm:$0xff]
  %v72 = vld [vmem:[%s0 + $0x178] sm:$0xff]
  %v73 = vld [vmem:[%s0 + $0x180] sm:$0xff]
  %v74 = vld [vmem:[%s0 + $0x188] sm:$0xff]
  %v75 = vld [vmem:[%s0 + $0x190] sm:$0xff]
  %v76 = vld [vmem:[%s0 + $0x198] sm:$0xff]
  %v77 = vld [vmem:[%s0 + $0x1a0] sm:$0xff]
  %v78 = vld [vmem:[%s0 + $0x1a8] sm:$0xff]
  %v79 = vld [vmem:[%s0 + $0x1b0] sm:$0xff]
  %v80 = vld [vmem:[%s0 + $0x1b8] sm:$0xff]
  %v81 = vld [vmem:[%s0 + $0x1c0] sm:$0xff]
  %v82 = vld [vmem:[%s0 + $0x1c8] sm:$0xff]
  %v83 = vld [vmem:[%s0 + $0x1d0] sm:$0xff]
  %v84 = vld [vmem:[%s0 + $0x1d8] sm:$0xff]
  %v85 = vld [vmem:[%s0 + $0x1e0] sm:$0xff]
  %v86 = vld [vmem:[%s0 + $0x1e8] sm:$0xff]
  %v87 = vld [vmem:[%s0 + $0x1f0] sm:$0xff]
  %v88 = vld [vmem:[%s0 + $0x1f8] sm:$0xff]
  %v89 = vld [vmem:[%s0 + $0x200] sm:$0xff]
  %v90 = vld [vmem:[%s0 + $0x208] sm:$0xff]
  %v91 = vld [vmem:[%s0 + $0x210] sm:$0xff]
  %v92 = vld [vmem:[%s0 + $0x218] sm:$0xff]
  %v93 = vld [vmem:[%s0 + $0x220] sm:$0xff]
  %v94 = vld [vmem:[%s0 + $0x228] sm:$0xff]
  %v95 = vld [vmem:[%s0 + $0x230] sm:$0xff]
  %v96 = vld [vmem:[%s0 + $0x238] sm:$0xff]
  %v97 = vld [vmem:[%s0 + $0x240] sm:$0xff]
  %v98 = vld [vmem:[%s0 + $0x248] sm:$0xff]
  %v99 = vld [vmem:[%s0 + $0x250] sm:$0xff]
  %v100 = vld [vmem:[%s0 + $0x258] sm:$0xff]
  %v101 = vld [vmem:[%s0 + $0x260] sm:$0xff]
  %v102 = vld [vmem:[%s0 + $0x268] sm:$0xff]
  %v103 = vld [vmem:[%s0 + $0x270] sm:$0xff]
  %v104 = vld [vmem:[%s0 + $0x278] sm:$0xff]
  %v105 = vld [vmem:[%s0 + $0x280] sm:$0xff]
  %v106 = vld [vmem:[%s0 + $0x288] sm:$0xff]
  %v107 = vld [vmem:[%s0 + $0x290] sm:$0xff]
  %v108 = vld [vmem:[%s0 + $0x298] sm:$0xff]
  %v109 = vld [vmem:[%s0 + $0x2a0] sm:$0xff]
  %v110 = vld [vmem:[%s0 + $0x2a8] sm:$0xff]
  %v111 = vld [vmem:[%s0 + $0x2b0] sm:$0xff]
  %v112 = vld [vmem:[%s0 + $0x2b8] sm:$0xff]
  %v113 = vld [vmem:[%s0 + $0x2c0] sm:$0xff]
  %v114 = vld [vmem:[%s0 + $0x2c8] sm:$0xff]
  %v115 = vld [vmem:[%s0 + $0x2d0] sm:$0xff]
  %v116 = vld [vmem:[%s0 + $0x2d8] sm:$0xff]
  %v117 = vld [vmem:[%s0 + $0x2e0] sm:$0xff]
  %v118 = vld [vmem:[%s0 + $0x2e8] sm:$0xff]
  %v119 = vld [vmem:[%s0 + $0x2f0] sm:$0xff]
  %v120 = vld [vmem:[%s0 + $0x2f8] sm:$0xff]
  %v121 = vld [vmem:[%s0 + $0x300] sm:$0xff]
  %v122 = vld [vmem:[%s0 + $0x308] sm:$0xff]
  %v123 = vld [vmem:[%s0 + $0x310] sm:$0xff]
  %v124 = vld [vmem:[%s0 + $0x318] sm:$0xff]
  %v125 = vld [vmem:[%s0 + $0x320] sm:$0xff]
  %v126 = vld [vmem:[%s0 + $0x328] sm:$0xff]
  %v127 = vld [vmem:[%s0 + $0x330] sm:$0xff]
  %v128 = vld [vmem:[%s0 + $0x338] sm:$0xff]
  %130 = vset.pattern.permute.xlu0 0
  %131 = vperm.xlu0 %130, %v24
  %v132 = vpop.permute.xlu0 %131
  %vm134 = vcmask 850944
  %v136 = vsel %vm134, %v23, 0
  %138 = vmatprep.subr.mxu0 0.0
  %139 = vmatpush1.msra.mxu0 0.0
  %140 = vmatprep.subr.mxu0 0.0
  %141 = vmatpush1.msra.mxu0 0.0
  %142 = vmatprep.subr.mxu0 0.0
  %143 = vmatpush1.msra.mxu0 0.0
  %144 = vmatprep.subr.mxu0 %v122
  %145 = vmatpush1.msra.mxu0 %v121
  %146 = vmatprep.subr.mxu0 %v114
  %147 = vmatpush1.msra.mxu0 %v113
  %148 = vmatprep.subr.mxu0 %v106
  %149 = vmatpush1.msra.mxu0 %v105
  %150 = vmatprep.subr.mxu0 %v98
  %151 = vmatpush1.msra.mxu0 %v97
  %152 = vmatprep.subr.mxu0 %v90
  %153 = vmatpush1.msra.mxu0 %v89
  %154 = vmatprep.subr.mxu0 %v82
  %155 = vmatpush1.msra.mxu0 %v81
  %156 = vmatprep.subr.mxu0 %v74
  %157 = vmatpush1.msra.mxu0 %v73
  %158 = vmatprep.subr.mxu0 %v66
  %159 = vmatpush1.msra.mxu0 %v65
  %160 = vmatprep.subr.mxu0 %v58
  %161 = vmatpush1.msra.mxu0 %v57
  %162 = vmatprep.subr.mxu0 %v50
  %163 = vmatpush1.msra.mxu0 %v49
  %164 = vmatprep.subr.mxu0 %v42
  %165 = vmatpush1.msra.mxu0 %v41
  %166 = vmatprep.subr.mxu0 %v34
  %167 = vmatpush1.msra.mxu0 %v33
  %168 = vmatprep.subr.mxu0 %v26
  %169 = vmatpush1.msra.mxu0 %v25
  %170 = vmatprep.subr.mxu0 0.0
  %171 = vmatpush2.msra.mxu0 0.0
  %172 = vmatprep.subr.mxu0 0.0
  %173 = vmatpush2.msra.mxu0 0.0
  %174 = vmatprep.subr.mxu0 0.0
  %175 = vmatpush2.msra.mxu0 0.0
  %176 = vmatprep.subr.mxu0 0.0
  %177 = vmatpush2.msra.mxu0 0.0
  %178 = vmatprep.subr.mxu0 0.0
  %179 = vmatpush2.msra.mxu0 0.0
  %180 = vmatprep.subr.mxu0 0.0
  %181 = vmatpush2.msra.mxu0 0.0
  %182 = vmatprep.subr.mxu0 0.0
  %183 = vmatpush2.msra.mxu0 0.0
  %184 = vmatprep.subr.mxu0 0.0
  %185 = vmatpush2.msra.mxu0 0.0
  %186 = vmatprep.subr.mxu0 0.0
  %187 = vmatpush2.msra.mxu0 0.0
  %188 = vmatprep.subr.mxu0 0.0
  %189 = vmatpush2.msra.mxu0 0.0
  %190 = vmatprep.subr.mxu0 0.0
  %191 = vmatpush2.msra.mxu0 0.0
  %192 = vmatprep.subr.mxu0 0.0
  %193 = vmatpush2.msra.mxu0 0.0
  %194 = vmatprep.subr.mxu0 0.0
  %195 = vmatpush2.msra.mxu0 0.0
  %196 = vmatprep.subr.mxu0 0.0
  %197 = vmatpush2.msra.mxu0 0.0
  %198 = vmatprep.subr.mxu0 0.0
  %199 = vmatpush2.msra.mxu0 0.0
  %200 = vmatprep.subr.mxu0 0.0
  %201 = vmatpush2.msra.mxu0 0.0
  %202 = vmatprep.mubr.f32.mxu0 0.0
  %203 = vmatmul.mubr.f32.gmra.mxu0 %v136
  %v204 = vpop.f32.mrf.mxu0
  %v205 = vadd.f32 %v132, %v204
  %v206 = vpop.f32.mrf.mxu0
  %v207 = vadd.f32 %v132, %v206
  %208 = vdwg.mxu0
  %209 = vmatprep.subr.mxu0 0.0
  %210 = vmatpush1.msra.mxu0 0.0
  %211 = vmatprep.subr.mxu0 0.0
  %212 = vmatpush1.msra.mxu0 0.0
  %213 = vmatprep.subr.mxu0 0.0
  %214 = vmatpush1.msra.mxu0 0.0
  %215 = vmatprep.subr.mxu0 %v124
  %216 = vmatpush1.msra.mxu0 %v123
  %217 = vmatprep.subr.mxu0 %v116
  %218 = vmatpush1.msra.mxu0 %v115
  %219 = vmatprep.subr.mxu0 %v108
  %220 = vmatpush1.msra.mxu0 %v107
  %221 = vmatprep.subr.mxu0 %v100
  %222 = vmatpush1.msra.mxu0 %v99
  %223 = vmatprep.subr.mxu0 %v92
  %224 = vmatpush1.msra.mxu0 %v91
  %225 = vmatprep.subr.mxu0 %v84
  %226 = vmatpush1.msra.mxu0 %v83
  %227 = vmatprep.subr.mxu0 %v76
  %228 = vmatpush1.msra.mxu0 %v75
  %229 = vmatprep.subr.mxu0 %v68
  %230 = vmatpush1.msra.mxu0 %v67
  %231 = vmatprep.subr.mxu0 %v60
  %232 = vmatpush1.msra.mxu0 %v59
  %233 = vmatprep.subr.mxu0 %v52
  %234 = vmatpush1.msra.mxu0 %v51
  %235 = vmatprep.subr.mxu0 %v44
  %236 = vmatpush1.msra.mxu0 %v43
  %237 = vmatprep.subr.mxu0 %v36
  %238 = vmatpush1.msra.mxu0 %v35
  %239 = vmatprep.subr.mxu0 %v28
  %240 = vmatpush1.msra.mxu0 %v27
  %241 = vmatprep.subr.mxu0 0.0
  %242 = vmatpush2.msra.mxu0 0.0
  %243 = vmatprep.subr.mxu0 0.0
  %244 = vmatpush2.msra.mxu0 0.0
  %245 = vmatprep.subr.mxu0 0.0
  %246 = vmatpush2.msra.mxu0 0.0
  %247 = vmatprep.subr.mxu0 0.0
  %248 = vmatpush2.msra.mxu0 0.0
  %249 = vmatprep.subr.mxu0 0.0
  %250 = vmatpush2.msra.mxu0 0.0
  %251 = vmatprep.subr.mxu0 0.0
  %252 = vmatpush2.msra.mxu0 0.0
  %253 = vmatprep.subr.mxu0 0.0
  %254 = vmatpush2.msra.mxu0 0.0
  %255 = vmatprep.subr.mxu0 0.0
  %256 = vmatpush2.msra.mxu0 0.0
  %257 = vmatprep.subr.mxu0 0.0
  %258 = vmatpush2.msra.mxu0 0.0
  %259 = vmatprep.subr.mxu0 0.0
  %260 = vmatpush2.msra.mxu0 0.0
  %261 = vmatprep.subr.mxu0 0.0
  %262 = vmatpush2.msra.mxu0 0.0
  %263 = vmatprep.subr.mxu0 0.0
  %264 = vmatpush2.msra.mxu0 0.0
  %265 = vmatprep.subr.mxu0 0.0
  %266 = vmatpush2.msra.mxu0 0.0
  %267 = vmatprep.subr.mxu0 0.0
  %268 = vmatpush2.msra.mxu0 0.0
  %269 = vmatprep.subr.mxu0 0.0
  %270 = vmatpush2.msra.mxu0 0.0
  %271 = vmatprep.subr.mxu0 0.0
  %272 = vmatpush2.msra.mxu0 0.0
  %273 = vmatprep.mubr.f32.mxu0 0.0
  %274 = vmatmul.mubr.f32.gmra.mxu0 %v136
  %v275 = vpop.f32.mrf.mxu0
  %v276 = vadd.f32 %v132, %v275
  %v277 = vpop.f32.mrf.mxu0
  %v278 = vadd.f32 %v132, %v277
  %279 = vdwg.mxu0
  %280 = vmatprep.subr.mxu0 0.0
  %281 = vmatpush1.msra.mxu0 0.0
  %282 = vmatprep.subr.mxu0 0.0
  %283 = vmatpush1.msra.mxu0 0.0
  %284 = vmatprep.subr.mxu0 0.0
  %285 = vmatpush1.msra.mxu0 0.0
  %286 = vmatprep.subr.mxu0 %v126
  %287 = vmatpush1.msra.mxu0 %v125
  %288 = vmatprep.subr.mxu0 %v118
  %289 = vmatpush1.msra.mxu0 %v117
  %290 = vmatprep.subr.mxu0 %v110
  %291 = vmatpush1.msra.mxu0 %v109
  %292 = vmatprep.subr.mxu0 %v102
  %293 = vmatpush1.msra.mxu0 %v101
  %294 = vmatprep.subr.mxu0 %v94
  %295 = vmatpush1.msra.mxu0 %v93
  %296 = vmatprep.subr.mxu0 %v86
  %297 = vmatpush1.msra.mxu0 %v85
  %298 = vmatprep.subr.mxu0 %v78
  %299 = vmatpush1.msra.mxu0 %v77
  %300 = vmatprep.subr.mxu0 %v70
  %301 = vmatpush1.msra.mxu0 %v69
  %302 = vmatprep.subr.mxu0 %v62
  %303 = vmatpush1.msra.mxu0 %v61
  %304 = vmatprep.subr.mxu0 %v54
  %305 = vmatpush1.msra.mxu0 %v53
  %306 = vmatprep.subr.mxu0 %v46
  %307 = vmatpush1.msra.mxu0 %v45
  %308 = vmatprep.subr.mxu0 %v38
  %309 = vmatpush1.msra.mxu0 %v37
  %310 = vmatprep.subr.mxu0 %v30
  %311 = vmatpush1.msra.mxu0 %v29
  %312 = vmatprep.subr.mxu0 0.0
  %313 = vmatpush2.msra.mxu0 0.0
  %314 = vmatprep.subr.mxu0 0.0
  %315 = vmatpush2.msra.mxu0 0.0
  %316 = vmatprep.subr.mxu0 0.0
  %317 = vmatpush2.msra.mxu0 0.0
  %318 = vmatprep.subr.mxu0 0.0
  %319 = vmatpush2.msra.mxu0 0.0
  %320 = vmatprep.subr.mxu0 0.0
  %321 = vmatpush2.msra.mxu0 0.0
  %322 = vmatprep.subr.mxu0 0.0
  %323 = vmatpush2.msra.mxu0 0.0
  %324 = vmatprep.subr.mxu0 0.0
  %325 = vmatpush2.msra.mxu0 0.0
  %326 = vmatprep.subr.mxu0 0.0
  %327 = vmatpush2.msra.mxu0 0.0
  %328 = vmatprep.subr.mxu0 0.0
  %329 = vmatpush2.msra.mxu0 0.0
  %330 = vmatprep.subr.mxu0 0.0
  %331 = vmatpush2.msra.mxu0 0.0
  %332 = vmatprep.subr.mxu0 0.0
  %333 = vmatpush2.msra.mxu0 0.0
  %334 = vmatprep.subr.mxu0 0.0
  %335 = vmatpush2.msra.mxu0 0.0
  %336 = vmatprep.subr.mxu0 0.0
  %337 = vmatpush2.msra.mxu0 0.0
  %338 = vmatprep.subr.mxu0 0.0
  %339 = vmatpush2.msra.mxu0 0.0
  %340 = vmatprep.subr.mxu0 0.0
  %341 = vmatpush2.msra.mxu0 0.0
  %342 = vmatprep.subr.mxu0 0.0
  %343 = vmatpush2.msra.mxu0 0.0
  %344 = vmatprep.mubr.f32.mxu0 0.0
  %345 = vmatmul.mubr.f32.gmra.mxu0 %v136
  %v346 = vpop.f32.mrf.mxu0
  %v347 = vadd.f32 %v132, %v346
  %v348 = vpop.f32.mrf.mxu0
  %v349 = vadd.f32 %v132, %v348
  %350 = vdwg.mxu0
  %351 = vmatprep.subr.mxu0 0.0
  %352 = vmatpush1.msra.mxu0 0.0
  %353 = vmatprep.subr.mxu0 0.0
  %354 = vmatpush1.msra.mxu0 0.0
  %355 = vmatprep.subr.mxu0 0.0
  %356 = vmatpush1.msra.mxu0 0.0
  %357 = vmatprep.subr.mxu0 %v128
  %358 = vmatpush1.msra.mxu0 %v127
  %359 = vmatprep.subr.mxu0 %v120
  %360 = vmatpush1.msra.mxu0 %v119
  %361 = vmatprep.subr.mxu0 %v112
  %362 = vmatpush1.msra.mxu0 %v111
  %363 = vmatprep.subr.mxu0 %v104
  %364 = vmatpush1.msra.mxu0 %v103
  %365 = vmatprep.subr.mxu0 %v96
  %366 = vmatpush1.msra.mxu0 %v95
  %367 = vmatprep.subr.mxu0 %v88
  %368 = vmatpush1.msra.mxu0 %v87
  %369 = vmatprep.subr.mxu0 %v80
  %370 = vmatpush1.msra.mxu0 %v79
  %371 = vmatprep.subr.mxu0 %v72
  %372 = vmatpush1.msra.mxu0 %v71
  %373 = vmatprep.subr.mxu0 %v64
  %374 = vmatpush1.msra.mxu0 %v63
  %375 = vmatprep.subr.mxu0 %v56
  %376 = vmatpush1.msra.mxu0 %v55
  %377 = vmatprep.subr.mxu0 %v48
  %378 = vmatpush1.msra.mxu0 %v47
  %379 = vmatprep.subr.mxu0 %v40
  %380 = vmatpush1.msra.mxu0 %v39
  %381 = vmatprep.subr.mxu0 %v32
  %382 = vmatpush1.msra.mxu0 %v31
  %383 = vmatprep.subr.mxu0 0.0
  %384 = vmatpush2.msra.mxu0 0.0
  %385 = vmatprep.subr.mxu0 0.0
  %386 = vmatpush2.msra.mxu0 0.0
  %387 = vmatprep.subr.mxu0 0.0
  %388 = vmatpush2.msra.mxu0 0.0
  %389 = vmatprep.subr.mxu0 0.0
  %390 = vmatpush2.msra.mxu0 0.0
  %391 = vmatprep.subr.mxu0 0.0
  %392 = vmatpush2.msra.mxu0 0.0
  %393 = vmatprep.subr.mxu0 0.0
  %394 = vmatpush2.msra.mxu0 0.0
  %395 = vmatprep.subr.mxu0 0.0
  %396 = vmatpush2.msra.mxu0 0.0
  %397 = vmatprep.subr.mxu0 0.0
  %398 = vmatpush2.msra.mxu0 0.0
  %399 = vmatprep.subr.mxu0 0.0
  %400 = vmatpush2.msra.mxu0 0.0
  %401 = vmatprep.subr.mxu0 0.0
  %402 = vmatpush2.msra.mxu0 0.0
  %403 = vmatprep.subr.mxu0 0.0
  %404 = vmatpush2.msra.mxu0 0.0
  %405 = vmatprep.subr.mxu0 0.0
  %406 = vmatpush2.msra.mxu0 0.0
  %407 = vmatprep.subr.mxu0 0.0
  %408 = vmatpush2.msra.mxu0 0.0
  %409 = vmatprep.subr.mxu0 0.0
  %410 = vmatpush2.msra.mxu0 0.0
  %411 = vmatprep.subr.mxu0 0.0
  %412 = vmatpush2.msra.mxu0 0.0
  %413 = vmatprep.subr.mxu0 0.0
  %414 = vmatpush2.msra.mxu0 0.0
  %415 = vmatprep.mubr.f32.mxu0 0.0
  %416 = vmatmul.mubr.f32.gmra.mxu0 %v136
  %v417 = vpop.f32.mrf.mxu0
  %v418 = vadd.f32 %v132, %v417
  %v419 = vpop.f32.mrf.mxu0
  %v420 = vadd.f32 %v132, %v419
  %421 = vdwg.mxu0
  %s422 = scalar_lea.vmem %s0, 832
  %v423 = vld [vmem:[%s422] sm:$0xff]
  %v424 = vld [vmem:[%s422 + $0x8] sm:$0xff]
  %v425 = vld [vmem:[%s422 + $0x10] sm:$0xff]
  %v426 = vld [vmem:[%s422 + $0x18] sm:$0xff]
  %v427 = vld [vmem:[%s422 + $0x20] sm:$0xff]
  %v428 = vld [vmem:[%s422 + $0x28] sm:$0xff]
  %v429 = vld [vmem:[%s422 + $0x30] sm:$0xff]
  %v430 = vld [vmem:[%s422 + $0x38] sm:$0xff]
  %v431 = vld [vmem:[%s422 + $0x40] sm:$0xff]
  %v432 = vld [vmem:[%s422 + $0x48] sm:$0xff]
  %v433 = vld [vmem:[%s422 + $0x50] sm:$0xff]
  %v434 = vld [vmem:[%s422 + $0x58] sm:$0xff]
  %v435 = vld [vmem:[%s422 + $0x60] sm:$0xff]
  %v436 = vld [vmem:[%s422 + $0x68] sm:$0xff]
  %v437 = vld [vmem:[%s422 + $0x70] sm:$0xff]
  %v438 = vld [vmem:[%s422 + $0x78] sm:$0xff]
  %v439 = vld [vmem:[%s422 + $0x80] sm:$0xff]
  %v440 = vld [vmem:[%s422 + $0x88] sm:$0xff]
  %v441 = vld [vmem:[%s422 + $0x90] sm:$0xff]
  %v442 = vld [vmem:[%s422 + $0x98] sm:$0xff]
  %v443 = vld [vmem:[%s422 + $0xa0] sm:$0xff]
  %v444 = vld [vmem:[%s422 + $0xa8] sm:$0xff]
  %v445 = vld [vmem:[%s422 + $0xb0] sm:$0xff]
  %v446 = vld [vmem:[%s422 + $0xb8] sm:$0xff]
  %v447 = vld [vmem:[%s422 + $0xc0] sm:$0xff]
  %v448 = vld [vmem:[%s422 + $0xc8] sm:$0xff]
  %v449 = vld [vmem:[%s422 + $0xd0] sm:$0xff]
  %v450 = vld [vmem:[%s422 + $0xd8] sm:$0xff]
  %v451 = vld [vmem:[%s422 + $0xe0] sm:$0xff]
  %v452 = vld [vmem:[%s422 + $0xe8] sm:$0xff]
  %v453 = vld [vmem:[%s422 + $0xf0] sm:$0xff]
  %v454 = vld [vmem:[%s422 + $0xf8] sm:$0xff]
  %v455 = vld [vmem:[%s422 + $0x100] sm:$0xff]
  %v456 = vld [vmem:[%s422 + $0x108] sm:$0xff]
  %v457 = vld [vmem:[%s422 + $0x110] sm:$0xff]
  %v458 = vld [vmem:[%s422 + $0x118] sm:$0xff]
  %v459 = vld [vmem:[%s422 + $0x120] sm:$0xff]
  %v460 = vld [vmem:[%s422 + $0x128] sm:$0xff]
  %v461 = vld [vmem:[%s422 + $0x130] sm:$0xff]
  %v462 = vld [vmem:[%s422 + $0x138] sm:$0xff]
  %v463 = vld [vmem:[%s422 + $0x140] sm:$0xff]
  %v464 = vld [vmem:[%s422 + $0x148] sm:$0xff]
  %v465 = vld [vmem:[%s422 + $0x150] sm:$0xff]
  %v466 = vld [vmem:[%s422 + $0x158] sm:$0xff]
  %v467 = vld [vmem:[%s422 + $0x160] sm:$0xff]
  %v468 = vld [vmem:[%s422 + $0x168] sm:$0xff]
  %v469 = vld [vmem:[%s422 + $0x170] sm:$0xff]
  %v470 = vld [vmem:[%s422 + $0x178] sm:$0xff]
  %v471 = vld [vmem:[%s422 + $0x180] sm:$0xff]
  %v472 = vld [vmem:[%s422 + $0x188] sm:$0xff]
  %v473 = vld [vmem:[%s422 + $0x190] sm:$0xff]
  %v474 = vld [vmem:[%s422 + $0x198] sm:$0xff]
  %v475 = vld [vmem:[%s422 + $0x1a0] sm:$0xff]
  %v476 = vld [vmem:[%s422 + $0x1a8] sm:$0xff]
  %v477 = vld [vmem:[%s422 + $0x1b0] sm:$0xff]
  %v478 = vld [vmem:[%s422 + $0x1b8] sm:$0xff]
  %v479 = vld [vmem:[%s422 + $0x1c0] sm:$0xff]
  %v480 = vld [vmem:[%s422 + $0x1c8] sm:$0xff]
  %v481 = vld [vmem:[%s422 + $0x1d0] sm:$0xff]
  %v482 = vld [vmem:[%s422 + $0x1d8] sm:$0xff]
  %v483 = vld [vmem:[%s422 + $0x1e0] sm:$0xff]
  %v484 = vld [vmem:[%s422 + $0x1e8] sm:$0xff]
  %v485 = vld [vmem:[%s422 + $0x1f0] sm:$0xff]
  %v486 = vld [vmem:[%s422 + $0x1f8] sm:$0xff]
  %v487 = vld [vmem:[%s422 + $0x200] sm:$0xff]
  %v488 = vld [vmem:[%s422 + $0x208] sm:$0xff]
  %v489 = vld [vmem:[%s422 + $0x210] sm:$0xff]
  %v490 = vld [vmem:[%s422 + $0x218] sm:$0xff]
  %v491 = vld [vmem:[%s422 + $0x220] sm:$0xff]
  %v492 = vld [vmem:[%s422 + $0x228] sm:$0xff]
  %v493 = vld [vmem:[%s422 + $0x230] sm:$0xff]
  %v494 = vld [vmem:[%s422 + $0x238] sm:$0xff]
  %v495 = vld [vmem:[%s422 + $0x240] sm:$0xff]
  %v496 = vld [vmem:[%s422 + $0x248] sm:$0xff]
  %v497 = vld [vmem:[%s422 + $0x250] sm:$0xff]
  %v498 = vld [vmem:[%s422 + $0x258] sm:$0xff]
  %v499 = vld [vmem:[%s422 + $0x260] sm:$0xff]
  %v500 = vld [vmem:[%s422 + $0x268] sm:$0xff]
  %v501 = vld [vmem:[%s422 + $0x270] sm:$0xff]
  %v502 = vld [vmem:[%s422 + $0x278] sm:$0xff]
  %v503 = vld [vmem:[%s422 + $0x280] sm:$0xff]
  %v504 = vld [vmem:[%s422 + $0x288] sm:$0xff]
  %v505 = vld [vmem:[%s422 + $0x290] sm:$0xff]
  %v506 = vld [vmem:[%s422 + $0x298] sm:$0xff]
  %v507 = vld [vmem:[%s422 + $0x2a0] sm:$0xff]
  %v508 = vld [vmem:[%s422 + $0x2a8] sm:$0xff]
  %v509 = vld [vmem:[%s422 + $0x2b0] sm:$0xff]
  %v510 = vld [vmem:[%s422 + $0x2b8] sm:$0xff]
  %v511 = vld [vmem:[%s422 + $0x2c0] sm:$0xff]
  %v512 = vld [vmem:[%s422 + $0x2c8] sm:$0xff]
  %v513 = vld [vmem:[%s422 + $0x2d0] sm:$0xff]
  %v514 = vld [vmem:[%s422 + $0x2d8] sm:$0xff]
  %v515 = vld [vmem:[%s422 + $0x2e0] sm:$0xff]
  %v516 = vld [vmem:[%s422 + $0x2e8] sm:$0xff]
  %v517 = vld [vmem:[%s422 + $0x2f0] sm:$0xff]
  %v518 = vld [vmem:[%s422 + $0x2f8] sm:$0xff]
  %v519 = vld [vmem:[%s422 + $0x300] sm:$0xff]
  %v520 = vld [vmem:[%s422 + $0x308] sm:$0xff]
  %v521 = vld [vmem:[%s422 + $0x310] sm:$0xff]
  %v522 = vld [vmem:[%s422 + $0x318] sm:$0xff]
  %v523 = vld [vmem:[%s422 + $0x320] sm:$0xff]
  %v524 = vld [vmem:[%s422 + $0x328] sm:$0xff]
  %v525 = vld [vmem:[%s422 + $0x330] sm:$0xff]
  %v526 = vld [vmem:[%s422 + $0x338] sm:$0xff]
  %527 = vmatprep.subr.mxu0 0.0
  %528 = vmatpush1.msra.mxu0 0.0
  %529 = vmatprep.subr.mxu0 0.0
  %530 = vmatpush1.msra.mxu0 0.0
  %531 = vmatprep.subr.mxu0 0.0
  %532 = vmatpush1.msra.mxu0 0.0
  %533 = vmatprep.subr.mxu0 %v520
  %534 = vmatpush1.msra.mxu0 %v519
  %535 = vmatprep.subr.mxu0 %v512
  %536 = vmatpush1.msra.mxu0 %v511
  %537 = vmatprep.subr.mxu0 %v504
  %538 = vmatpush1.msra.mxu0 %v503
  %539 = vmatprep.subr.mxu0 %v496
  %540 = vmatpush1.msra.mxu0 %v495
  %541 = vmatprep.subr.mxu0 %v488
  %542 = vmatpush1.msra.mxu0 %v487
  %543 = vmatprep.subr.mxu0 %v480
  %544 = vmatpush1.msra.mxu0 %v479
  %545 = vmatprep.subr.mxu0 %v472
  %546 = vmatpush1.msra.mxu0 %v471
  %547 = vmatprep.subr.mxu0 %v464
  %548 = vmatpush1.msra.mxu0 %v463
  %549 = vmatprep.subr.mxu0 %v456
  %550 = vmatpush1.msra.mxu0 %v455
  %551 = vmatprep.subr.mxu0 %v448
  %552 = vmatpush1.msra.mxu0 %v447
  %553 = vmatprep.subr.mxu0 %v440
  %554 = vmatpush1.msra.mxu0 %v439
  %555 = vmatprep.subr.mxu0 %v432
  %556 = vmatpush1.msra.mxu0 %v431
  %557 = vmatprep.subr.mxu0 %v424
  %558 = vmatpush1.msra.mxu0 %v423
  %559 = vmatprep.subr.mxu0 0.0
  %560 = vmatpush2.msra.mxu0 0.0
  %561 = vmatprep.subr.mxu0 0.0
  %562 = vmatpush2.msra.mxu0 0.0
  %563 = vmatprep.subr.mxu0 0.0
  %564 = vmatpush2.msra.mxu0 0.0
  %565 = vmatprep.subr.mxu0 0.0
  %566 = vmatpush2.msra.mxu0 0.0
  %567 = vmatprep.subr.mxu0 0.0
  %568 = vmatpush2.msra.mxu0 0.0
  %569 = vmatprep.subr.mxu0 0.0
  %570 = vmatpush2.msra.mxu0 0.0
  %571 = vmatprep.subr.mxu0 0.0
  %572 = vmatpush2.msra.mxu0 0.0
  %573 = vmatprep.subr.mxu0 0.0
  %574 = vmatpush2.msra.mxu0 0.0
  %575 = vmatprep.subr.mxu0 0.0
  %576 = vmatpush2.msra.mxu0 0.0
  %577 = vmatprep.subr.mxu0 0.0
  %578 = vmatpush2.msra.mxu0 0.0
  %579 = vmatprep.subr.mxu0 0.0
  %580 = vmatpush2.msra.mxu0 0.0
  %581 = vmatprep.subr.mxu0 0.0
  %582 = vmatpush2.msra.mxu0 0.0
  %583 = vmatprep.subr.mxu0 0.0
  %584 = vmatpush2.msra.mxu0 0.0
  %585 = vmatprep.subr.mxu0 0.0
  %586 = vmatpush2.msra.mxu0 0.0
  %587 = vmatprep.subr.mxu0 0.0
  %588 = vmatpush2.msra.mxu0 0.0
  %589 = vmatprep.subr.mxu0 0.0
  %590 = vmatpush2.msra.mxu0 0.0
  %591 = vmatprep.mubr.f32.mxu0 0.0
  %592 = vmatmul.mubr.f32.gmra.mxu0 %v136
  %v593 = vpop.f32.mrf.mxu0
  %v594 = vadd.f32 %v132, %v593
  %v595 = vpop.f32.mrf.mxu0
  %v596 = vadd.f32 %v132, %v595
  %597 = vdwg.mxu0
  %598 = vmatprep.subr.mxu0 0.0
  %599 = vmatpush1.msra.mxu0 0.0
  %600 = vmatprep.subr.mxu0 0.0
  %601 = vmatpush1.msra.mxu0 0.0
  %602 = vmatprep.subr.mxu0 0.0
  %603 = vmatpush1.msra.mxu0 0.0
  %604 = vmatprep.subr.mxu0 %v522
  %605 = vmatpush1.msra.mxu0 %v521
  %606 = vmatprep.subr.mxu0 %v514
  %607 = vmatpush1.msra.mxu0 %v513
  %608 = vmatprep.subr.mxu0 %v506
  %609 = vmatpush1.msra.mxu0 %v505
  %610 = vmatprep.subr.mxu0 %v498
  %611 = vmatpush1.msra.mxu0 %v497
  %612 = vmatprep.subr.mxu0 %v490
  %613 = vmatpush1.msra.mxu0 %v489
  %614 = vmatprep.subr.mxu0 %v482
  %615 = vmatpush1.msra.mxu0 %v481
  %616 = vmatprep.subr.mxu0 %v474
  %617 = vmatpush1.msra.mxu0 %v473
  %618 = vmatprep.subr.mxu0 %v466
  %619 = vmatpush1.msra.mxu0 %v465
  %620 = vmatprep.subr.mxu0 %v458
  %621 = vmatpush1.msra.mxu0 %v457
  %622 = vmatprep.subr.mxu0 %v450
  %623 = vmatpush1.msra.mxu0 %v449
  %624 = vmatprep.subr.mxu0 %v442
  %625 = vmatpush1.msra.mxu0 %v441
  %626 = vmatprep.subr.mxu0 %v434
  %627 = vmatpush1.msra.mxu0 %v433
  %628 = vmatprep.subr.mxu0 %v426
  %629 = vmatpush1.msra.mxu0 %v425
  %630 = vmatprep.subr.mxu0 0.0
  %631 = vmatpush2.msra.mxu0 0.0
  %632 = vmatprep.subr.mxu0 0.0
  %633 = vmatpush2.msra.mxu0 0.0
  %634 = vmatprep.subr.mxu0 0.0
  %635 = vmatpush2.msra.mxu0 0.0
  %636 = vmatprep.subr.mxu0 0.0
  %637 = vmatpush2.msra.mxu0 0.0
  %638 = vmatprep.subr.mxu0 0.0
  %639 = vmatpush2.msra.mxu0 0.0
  %640 = vmatprep.subr.mxu0 0.0
  %641 = vmatpush2.msra.mxu0 0.0
  %642 = vmatprep.subr.mxu0 0.0
  %643 = vmatpush2.msra.mxu0 0.0
  %644 = vmatprep.subr.mxu0 0.0
  %645 = vmatpush2.msra.mxu0 0.0
  %646 = vmatprep.subr.mxu0 0.0
  %647 = vmatpush2.msra.mxu0 0.0
  %648 = vmatprep.subr.mxu0 0.0
  %649 = vmatpush2.msra.mxu0 0.0
  %650 = vmatprep.subr.mxu0 0.0
  %651 = vmatpush2.msra.mxu0 0.0
  %652 = vmatprep.subr.mxu0 0.0
  %653 = vmatpush2.msra.mxu0 0.0
  %654 = vmatprep.subr.mxu0 0.0
  %655 = vmatpush2.msra.mxu0 0.0
  %656 = vmatprep.subr.mxu0 0.0
  %657 = vmatpush2.msra.mxu0 0.0
  %658 = vmatprep.subr.mxu0 0.0
  %659 = vmatpush2.msra.mxu0 0.0
  %660 = vmatprep.subr.mxu0 0.0
  %661 = vmatpush2.msra.mxu0 0.0
  %662 = vmatprep.mubr.f32.mxu0 0.0
  %663 = vmatmul.mubr.f32.gmra.mxu0 %v136
  %v664 = vpop.f32.mrf.mxu0
  %v665 = vadd.f32 %v132, %v664
  %v666 = vpop.f32.mrf.mxu0
  %v667 = vadd.f32 %v132, %v666
  %668 = vdwg.mxu0
  %669 = vmatprep.subr.mxu0 0.0
  %670 = vmatpush1.msra.mxu0 0.0
  %671 = vmatprep.subr.mxu0 0.0
  %672 = vmatpush1.msra.mxu0 0.0
  %673 = vmatprep.subr.mxu0 0.0
  %674 = vmatpush1.msra.mxu0 0.0
  %675 = vmatprep.subr.mxu0 %v524
  %676 = vmatpush1.msra.mxu0 %v523
  %677 = vmatprep.subr.mxu0 %v516
  %678 = vmatpush1.msra.mxu0 %v515
  %679 = vmatprep.subr.mxu0 %v508
  %680 = vmatpush1.msra.mxu0 %v507
  %681 = vmatprep.subr.mxu0 %v500
  %682 = vmatpush1.msra.mxu0 %v499
  %683 = vmatprep.subr.mxu0 %v492
  %684 = vmatpush1.msra.mxu0 %v491
  %685 = vmatprep.subr.mxu0 %v484
  %686 = vmatpush1.msra.mxu0 %v483
  %687 = vmatprep.subr.mxu0 %v476
  %688 = vmatpush1.msra.mxu0 %v475
  %689 = vmatprep.subr.mxu0 %v468
  %690 = vmatpush1.msra.mxu0 %v467
  %691 = vmatprep.subr.mxu0 %v460
  %692 = vmatpush1.msra.mxu0 %v459
  %693 = vmatprep.subr.mxu0 %v452
  %694 = vmatpush1.msra.mxu0 %v451
  %695 = vmatprep.subr.mxu0 %v444
  %696 = vmatpush1.msra.mxu0 %v443
  %697 = vmatprep.subr.mxu0 %v436
  %698 = vmatpush1.msra.mxu0 %v435
  %699 = vmatprep.subr.mxu0 %v428
  %700 = vmatpush1.msra.mxu0 %v427
  %701 = vmatprep.subr.mxu0 0.0
  %702 = vmatpush2.msra.mxu0 0.0
  %703 = vmatprep.subr.mxu0 0.0
  %704 = vmatpush2.msra.mxu0 0.0
  %705 = vmatprep.subr.mxu0 0.0
  %706 = vmatpush2.msra.mxu0 0.0
  %707 = vmatprep.subr.mxu0 0.0
  %708 = vmatpush2.msra.mxu0 0.0
  %709 = vmatprep.subr.mxu0 0.0
  %710 = vmatpush2.msra.mxu0 0.0
  %711 = vmatprep.subr.mxu0 0.0
  %712 = vmatpush2.msra.mxu0 0.0
  %713 = vmatprep.subr.mxu0 0.0
  %714 = vmatpush2.msra.mxu0 0.0
  %715 = vmatprep.subr.mxu0 0.0
  %716 = vmatpush2.msra.mxu0 0.0
  %717 = vmatprep.subr.mxu0 0.0
  %718 = vmatpush2.msra.mxu0 0.0
  %719 = vmatprep.subr.mxu0 0.0
  %720 = vmatpush2.msra.mxu0 0.0
  %721 = vmatprep.subr.mxu0 0.0
  %722 = vmatpush2.msra.mxu0 0.0
  %723 = vmatprep.subr.mxu0 0.0
  %724 = vmatpush2.msra.mxu0 0.0
  %725 = vmatprep.subr.mxu0 0.0
  %726 = vmatpush2.msra.mxu0 0.0
  %727 = vmatprep.subr.mxu0 0.0
  %728 = vmatpush2.msra.mxu0 0.0
  %729 = vmatprep.subr.mxu0 0.0
  %730 = vmatpush2.msra.mxu0 0.0
  %731 = vmatprep.subr.mxu0 0.0
  %732 = vmatpush2.msra.mxu0 0.0
  %733 = vmatprep.mubr.f32.mxu0 0.0
  %734 = vmatmul.mubr.f32.gmra.mxu0 %v136
  %v735 = vpop.f32.mrf.mxu0
  %v736 = vadd.f32 %v132, %v735
  %v737 = vpop.f32.mrf.mxu0
  %v738 = vadd.f32 %v132, %v737
  %739 = vdwg.mxu0
  %740 = vmatprep.subr.mxu0 0.0
  %741 = vmatpush1.msra.mxu0 0.0
  %742 = vmatprep.subr.mxu0 0.0
  %743 = vmatpush1.msra.mxu0 0.0
  %744 = vmatprep.subr.mxu0 0.0
  %745 = vmatpush1.msra.mxu0 0.0
  %746 = vmatprep.subr.mxu0 %v526
  %747 = vmatpush1.msra.mxu0 %v525
  %748 = vmatprep.subr.mxu0 %v518
  %749 = vmatpush1.msra.mxu0 %v517
  %750 = vmatprep.subr.mxu0 %v510
  %751 = vmatpush1.msra.mxu0 %v509
  %752 = vmatprep.subr.mxu0 %v502
  %753 = vmatpush1.msra.mxu0 %v501
  %754 = vmatprep.subr.mxu0 %v494
  %755 = vmatpush1.msra.mxu0 %v493
  %756 = vmatprep.subr.mxu0 %v486
  %757 = vmatpush1.msra.mxu0 %v485
  %758 = vmatprep.subr.mxu0 %v478
  %759 = vmatpush1.msra.mxu0 %v477
  %760 = vmatprep.subr.mxu0 %v470
  %761 = vmatpush1.msra.mxu0 %v469
  %762 = vmatprep.subr.mxu0 %v462
  %763 = vmatpush1.msra.mxu0 %v461
  %764 = vmatprep.subr.mxu0 %v454
  %765 = vmatpush1.msra.mxu0 %v453
  %766 = vmatprep.subr.mxu0 %v446
  %767 = vmatpush1.msra.mxu0 %v445
  %768 = vmatprep.subr.mxu0 %v438
  %769 = vmatpush1.msra.mxu0 %v437
  %770 = vmatprep.subr.mxu0 %v430
  %771 = vmatpush1.msra.mxu0 %v429
  %772 = vmatprep.subr.mxu0 0.0
  %773 = vmatpush2.msra.mxu0 0.0
  %774 = vmatprep.subr.mxu0 0.0
  %775 = vmatpush2.msra.mxu0 0.0
  %776 = vmatprep.subr.mxu0 0.0
  %777 = vmatpush2.msra.mxu0 0.0
  %778 = vmatprep.subr.mxu0 0.0
  %779 = vmatpush2.msra.mxu0 0.0
  %780 = vmatprep.subr.mxu0 0.0
  %781 = vmatpush2.msra.mxu0 0.0
  %782 = vmatprep.subr.mxu0 0.0
  %783 = vmatpush2.msra.mxu0 0.0
  %784 = vmatprep.subr.mxu0 0.0
  %785 = vmatpush2.msra.mxu0 0.0
  %786 = vmatprep.subr.mxu0 0.0
  %787 = vmatpush2.msra.mxu0 0.0
  %788 = vmatprep.subr.mxu0 0.0
  %789 = vmatpush2.msra.mxu0 0.0
  %790 = vmatprep.subr.mxu0 0.0
  %791 = vmatpush2.msra.mxu0 0.0
  %792 = vmatprep.subr.mxu0 0.0
  %793 = vmatpush2.msra.mxu0 0.0
  %794 = vmatprep.subr.mxu0 0.0
  %795 = vmatpush2.msra.mxu0 0.0
  %796 = vmatprep.subr.mxu0 0.0
  %797 = vmatpush2.msra.mxu0 0.0
  %798 = vmatprep.subr.mxu0 0.0
  %799 = vmatpush2.msra.mxu0 0.0
  %800 = vmatprep.subr.mxu0 0.0
  %801 = vmatpush2.msra.mxu0 0.0
  %802 = vmatprep.subr.mxu0 0.0
  %803 = vmatpush2.msra.mxu0 0.0
  %804 = vmatprep.mubr.f32.mxu0 0.0
  %805 = vmatmul.mubr.f32.gmra.mxu0 %v136
  %v806 = vpop.f32.mrf.mxu0
  %v807 = vadd.f32 %v132, %v806
  %v808 = vpop.f32.mrf.mxu0
  %v809 = vadd.f32 %v132, %v808
  %810 = vdwg.mxu0
  %v811 = vld [vmem:[%s1] sm:$0xff]
  %v812 = vld [vmem:[%s1 + $0x8] sm:$0xff]
  %v813 = vld [vmem:[%s1 + $0x10] sm:$0xff]
  %v814 = vld [vmem:[%s1 + $0x18] sm:$0xff]
  %v815 = vld [vmem:[%s1 + $0x20] sm:$0xff]
  %v816 = vld [vmem:[%s1 + $0x28] sm:$0xff]
  %v817 = vld [vmem:[%s1 + $0x30] sm:$0xff]
  %v818 = vld [vmem:[%s1 + $0x38] sm:$0xff]
  %v819 = vld [vmem:[%s1 + $0x40] sm:$0xff]
  %v820 = vld [vmem:[%s1 + $0x48] sm:$0xff]
  %v821 = vld [vmem:[%s1 + $0x50] sm:$0xff]
  %v822 = vld [vmem:[%s1 + $0x58] sm:$0xff]
  %v823 = vld [vmem:[%s1 + $0x60] sm:$0xff]
  %824 = vmatprep.subr.mxu0 0.0
  %825 = vmatpush1.msra.mxu0 0.0
  %826 = vmatprep.subr.mxu0 0.0
  %827 = vmatpush1.msra.mxu0 0.0
  %828 = vmatprep.subr.mxu0 0.0
  %829 = vmatpush1.msra.mxu0 0.0
  %830 = vmatprep.subr.mxu0 0.0
  %831 = vmatpush1.msra.mxu0 %v823
  %832 = vmatprep.subr.mxu0 0.0
  %833 = vmatpush1.msra.mxu0 %v822
  %834 = vmatprep.subr.mxu0 0.0
  %835 = vmatpush1.msra.mxu0 %v821
  %836 = vmatprep.subr.mxu0 0.0
  %837 = vmatpush1.msra.mxu0 %v820
  %838 = vmatprep.subr.mxu0 0.0
  %839 = vmatpush1.msra.mxu0 %v819
  %840 = vmatprep.subr.mxu0 0.0
  %841 = vmatpush1.msra.mxu0 %v818
  %842 = vmatprep.subr.mxu0 0.0
  %843 = vmatpush1.msra.mxu0 %v817
  %844 = vmatprep.subr.mxu0 0.0
  %845 = vmatpush1.msra.mxu0 %v816
  %846 = vmatprep.subr.mxu0 0.0
  %847 = vmatpush1.msra.mxu0 %v815
  %848 = vmatprep.subr.mxu0 0.0
  %849 = vmatpush1.msra.mxu0 %v814
  %850 = vmatprep.subr.mxu0 0.0
  %851 = vmatpush1.msra.mxu0 %v813
  %852 = vmatprep.subr.mxu0 0.0
  %853 = vmatpush1.msra.mxu0 %v812
  %854 = vmatprep.subr.mxu0 0.0
  %855 = vmatpush1.msra.mxu0 %v811
  %856 = vmatprep.subr.mxu0 0.0
  %857 = vmatpush2.msra.mxu0 0.0
  %858 = vmatprep.subr.mxu0 0.0
  %859 = vmatpush2.msra.mxu0 0.0
  %860 = vmatprep.subr.mxu0 0.0
  %861 = vmatpush2.msra.mxu0 0.0
  %862 = vmatprep.subr.mxu0 0.0
  %863 = vmatpush2.msra.mxu0 0.0
  %864 = vmatprep.subr.mxu0 0.0
  %865 = vmatpush2.msra.mxu0 0.0
  %866 = vmatprep.subr.mxu0 0.0
  %867 = vmatpush2.msra.mxu0 0.0
  %868 = vmatprep.subr.mxu0 0.0
  %869 = vmatpush2.msra.mxu0 0.0
  %870 = vmatprep.subr.mxu0 0.0
  %871 = vmatpush2.msra.mxu0 0.0
  %872 = vmatprep.subr.mxu0 0.0
  %873 = vmatpush2.msra.mxu0 0.0
  %874 = vmatprep.subr.mxu0 0.0
  %875 = vmatpush2.msra.mxu0 0.0
  %876 = vmatprep.subr.mxu0 0.0
  %877 = vmatpush2.msra.mxu0 0.0
  %878 = vmatprep.subr.mxu0 0.0
  %879 = vmatpush2.msra.mxu0 0.0
  %880 = vmatprep.subr.mxu0 0.0
  %881 = vmatpush2.msra.mxu0 0.0
  %882 = vmatprep.subr.mxu0 0.0
  %883 = vmatpush2.msra.mxu0 0.0
  %884 = vmatprep.subr.mxu0 0.0
  %885 = vmatpush2.msra.mxu0 0.0
  %886 = vmatprep.subr.mxu0 0.0
  %887 = vmatpush2.msra.mxu0 0.0
  %888 = vmatprep.mubr.f32.mxu0 0.0
  %889 = vmatmul.mubr.f32.gmra.mxu0 %v136
  %v890 = vpop.f32.mrf.mxu0
  %v891 = vadd.f32 %v132, %v890
  %v892 = vpop.f32.mrf.mxu0
  %893 = vdwg.mxu0
  %v894 = vadd.f32 %v205, %v207
  %v895 = vadd.f32 %v894, %v276
  %v896 = vadd.f32 %v895, %v278
  %v897 = vadd.f32 %v896, %v347
  %v898 = vadd.f32 %v897, %v349
  %v899 = vadd.f32 %v898, %v418
  %vm900 = vcmask 523264
  %v901 = vsel %vm900, %v420, 0.0
  %v902 = vadd.f32 %v899, %v901
  %903 = vadd.xlane.f32.xlu0 %v902
  %v904 = vpop.xlane.xlu0 %903
  %v905 = vadd.f32 %v594, %v596
  %v906 = vadd.f32 %v905, %v665
  %v907 = vadd.f32 %v906, %v667
  %v908 = vadd.f32 %v907, %v736
  %v909 = vadd.f32 %v908, %v738
  %v910 = vadd.f32 %v909, %v807
  %v911 = vsel %vm900, %v809, 0.0
  %v912 = vadd.f32 %v910, %v911
  %913 = vadd.xlane.f32.xlu0 %v912
  %v914 = vpop.xlane.xlu0 %913
  %v915 = vadd.f32 %v904, %v914
  %vm916 = vcmask 80896
  %v917 = vsel %vm916, %v891, 0.0
  %918 = vadd.xlane.f32.xlu0 %v917
  %v919 = vpop.xlane.xlu0 %918
  %v920 = vadd.f32 %v915, %v919
  %v921 = vmul.f32 %v920, 0.00051813474
  %v922 = vsub.f32 %v205, %v921
  %v923 = vsub.f32 %v207, %v921
  %v924 = vsub.f32 %v276, %v921
  %v925 = vsub.f32 %v278, %v921
  %v926 = vsub.f32 %v347, %v921
  %v927 = vsub.f32 %v349, %v921
  %v928 = vsub.f32 %v418, %v921
  %v929 = vsub.f32 %v420, %v921
  %v930 = vmul.f32 %v922, %v922
  %v931 = vmul.f32 %v923, %v923
  %v932 = vmul.f32 %v924, %v924
  %v933 = vmul.f32 %v925, %v925
  %v934 = vmul.f32 %v926, %v926
  %v935 = vmul.f32 %v927, %v927
  %v936 = vmul.f32 %v928, %v928
  %v937 = vmul.f32 %v929, %v929
  %v938 = vadd.f32 %v930, %v931
  %v939 = vadd.f32 %v938, %v932
  %v940 = vadd.f32 %v939, %v933
  %v941 = vadd.f32 %v940, %v934
  %v942 = vadd.f32 %v941, %v935
  %v943 = vadd.f32 %v942, %v936
  %v944 = vsel %vm900, %v937, 0.0
  %v945 = vadd.f32 %v943, %v944
  %946 = vadd.xlane.f32.xlu0 %v945
  %v947 = vpop.xlane.xlu0 %946
  %v948 = vsub.f32 %v594, %v921
  %v949 = vsub.f32 %v596, %v921
  %v950 = vsub.f32 %v665, %v921
  %v951 = vsub.f32 %v667, %v921
  %v952 = vsub.f32 %v736, %v921
  %v953 = vsub.f32 %v738, %v921
  %v954 = vsub.f32 %v807, %v921
  %v955 = vsub.f32 %v809, %v921
  %v956 = vmul.f32 %v948, %v948
  %v957 = vmul.f32 %v949, %v949
  %v958 = vmul.f32 %v950, %v950
  %v959 = vmul.f32 %v951, %v951
  %v960 = vmul.f32 %v952, %v952
  %v961 = vmul.f32 %v953, %v953
  %v962 = vmul.f32 %v954, %v954
  %v963 = vmul.f32 %v955, %v955
  %v964 = vadd.f32 %v956, %v957
  %v965 = vadd.f32 %v964, %v958
  %v966 = vadd.f32 %v965, %v959
  %v967 = vadd.f32 %v966, %v960
  %v968 = vadd.f32 %v967, %v961
  %v969 = vadd.f32 %v968, %v962
  %v970 = vsel %vm900, %v963, 0.0
  %v971 = vadd.f32 %v969, %v970
  %972 = vadd.xlane.f32.xlu0 %v971
  %v973 = vpop.xlane.xlu0 %972
  %v974 = vadd.f32 %v947, %v973
  %v975 = vsub.f32 %v891, %v921
  %v976 = vmul.f32 %v975, %v975
  %v977 = vsel %vm916, %v976, 0.0
  %978 = vadd.xlane.f32.xlu0 %v977
  %v979 = vpop.xlane.xlu0 %978
  %v980 = vadd.f32 %v974, %v979
  %v981 = vmul.f32 %v980, 0.00051813474
  %v982 = vld [vmem:[%s4] sm:$0xff]
  %v983 = vadd.f32 %v981, 1e-05
  %v984 = vrsqrt.pop %v983
  %v985 = vmul.f32 %v982, %v984
  %v986 = vld [vmem:[%s5] sm:$0xff]
  %v987 = vmul.f32 %v921, %v985
  %v988 = vsub.f32 %v986, %v987
  %v989 = vadd.f32 %v205, %v594
  %v990 = vadd.f32 %v207, %v596
  %v991 = vadd.f32 %v276, %v665
  %v992 = vadd.f32 %v278, %v667
  %v993 = vadd.f32 %v347, %v736
  %v994 = vadd.f32 %v349, %v738
  %v995 = vadd.f32 %v418, %v807
  %v996 = vadd.f32 %v420, %v809
  %v997 = vmul.f32 %v989, 0.5
  %v998 = vmul.f32 %v990, 0.5
  %v999 = vmul.f32 %v991, 0.5
  %v1000 = vmul.f32 %v992, 0.5
  %v1001 = vmul.f32 %v993, 0.5
  %v1002 = vmul.f32 %v994, 0.5
  %v1003 = vmul.f32 %v995, 0.5
  %v1004 = vmul.f32 %v996, 0.5
  %1006 = vset.pattern.permute.xlu0 0
  %1007 = vperm.xlu0 %1006, %v985
  %v1008 = vpop.permute.xlu0 %1007
  %v1010 = vmul.f32 %v997, %v1008
  %v1011 = vmul.f32 %v998, %v1008
  %v1012 = vmul.f32 %v999, %v1008
  %v1013 = vmul.f32 %v1000, %v1008
  %v1014 = vmul.f32 %v1001, %v1008
  %v1015 = vmul.f32 %v1002, %v1008
  %v1016 = vmul.f32 %v1003, %v1008
  %v1017 = vmul.f32 %v1004, %v1008
  %1019 = vset.pattern.permute.xlu0 0
  %1020 = vperm.xlu0 %1019, %v988
  %v1021 = vpop.permute.xlu0 %1020
  %v1023 = vadd.f32 %v1010, %v1021
  %v1024 = vadd.f32 %v1011, %v1021
  %v1025 = vadd.f32 %v1012, %v1021
  %v1026 = vadd.f32 %v1013, %v1021
  %v1027 = vadd.f32 %v1014, %v1021
  %v1028 = vadd.f32 %v1015, %v1021
  %v1029 = vadd.f32 %v1016, %v1021
  %v1030 = vadd.f32 %v1017, %v1021
  %vm1031 = vcmp.gt.f32.partialorder %v1023, 0.0
  %vm1032 = vcmp.gt.f32.partialorder %v1024, 0.0
  %vm1033 = vcmp.gt.f32.partialorder %v1025, 0.0
  %vm1034 = vcmp.gt.f32.partialorder %v1026, 0.0
  %vm1035 = vcmp.gt.f32.partialorder %v1027, 0.0
  %vm1036 = vcmp.gt.f32.partialorder %v1028, 0.0
  %vm1037 = vcmp.gt.f32.partialorder %v1029, 0.0
  %vm1038 = vcmp.gt.f32.partialorder %v1030, 0.0
  %v1039 = vmul.f32 %v1023, 0.2
  %v1040 = vmul.f32 %v1024, 0.2
  %v1041 = vmul.f32 %v1025, 0.2
  %v1042 = vmul.f32 %v1026, 0.2
  %v1043 = vmul.f32 %v1027, 0.2
  %v1044 = vmul.f32 %v1028, 0.2
  %v1045 = vmul.f32 %v1029, 0.2
  %v1046 = vmul.f32 %v1030, 0.2
  %v1047 = vsel %vm1031, %v1023, %v1039
  %v1048 = vsel %vm1032, %v1024, %v1040
  %v1049 = vsel %vm1033, %v1025, %v1041
  %v1050 = vsel %vm1034, %v1026, %v1042
  %v1051 = vsel %vm1035, %v1027, %v1043
  %v1052 = vsel %vm1036, %v1028, %v1044
  %v1053 = vsel %vm1037, %v1029, %v1045
  %v1054 = vsel %vm1038, %v1030, %v1046
  %1055 = vst [vmem:[%s6] sm:$0xff] %v1047
  %1056 = vst [vmem:[%s6 + $0x8] sm:$0xff] %v1048
  %1057 = vst [vmem:[%s6 + $0x10] sm:$0xff] %v1049
  %1058 = vst [vmem:[%s6 + $0x18] sm:$0xff] %v1050
  %1059 = vst [vmem:[%s6 + $0x20] sm:$0xff] %v1051
  %1060 = vst [vmem:[%s6 + $0x28] sm:$0xff] %v1052
  %1061 = vst [vmem:[%s6 + $0x30] sm:$0xff] %v1053
  %1062 = vst.msk [vmem:[%s6 + $0x38] sm:$0xff] %vm900, %v1054
  // Predicated region
  $region26: #{_lambda_.5} parent=0 // pred_check
    _
  $region27: #{_lambda_.5} parent=0 // pred_check_branch
    %1064 = sbr.rel (0) target = $region29
  $region28: #{_lambda_.5} parent=0 // pred_region
    _
  $region29: #{_lambda_.5} parent=0 // pred_fallthru
    _
  // Predicated region
  $region30: #{_lambda_.5} parent=0 // pred_check
    _
  $region31: #{_lambda_.5} parent=0 // pred_check_branch
    %1066 = sbr.rel (0) target = $region33
  $region32: #{_lambda_.5} parent=0 // pred_region
    _
  $region33: #{_lambda_.5} parent=0 // pred_fallthru
    _

// kernel: _lambda_.6
$region0: #{_lambda_.6}
  #allocation0 [shape = 'u32[]', space=smem, size = 0x4, offset = 0x4, fixed_abs, tag = 'smem constant byte address 0x4 - core index']
  #allocation1 [shape = 'u32[144,128]{1,0:T(1,128)}', space=vmem, size = 0x12000, scoped, tag = 'internal scratch']
  %s0 = inlined_call_operand.vmem [shape: f32[2,320,264], index: 0, kind: input, shape index: {}]
  %s1 = inlined_call_operand.vmem [shape: f32[16,320], index: 1, kind: input, shape index: {}]
  %s2 = inlined_call_operand.vmem [shape: f32[16,1], index: 2, kind: input, shape index: {}]
  %s3 = inlined_call_operand.vmem [shape: f32[16,1], index: 3, kind: input, shape index: {}]
  %s4 = inlined_call_operand.vmem [shape: f32[16,1], index: 4, kind: input, shape index: {}]
  %s5 = inlined_call_operand.vmem [shape: f32[16,264], index: 5, kind: output, shape index: {}]
  %s6 = sld [smem:[#allocation0]]
  $region30: #{_lambda_.6} parent=0
    _
  %s8 = ssub.s32 1, %s6
  %s9 = scalar_select 0, %s8, %s6
  // Predicated region
  $region2: #{_lambda_.6} parent=0 // pred_check
    _
  $region3: #{_lambda_.6} parent=0 // pred_check_branch
    %11 = sbr.rel (0) target = $region5
  $region4: #{_lambda_.6} parent=0 // pred_region
    _
  $region5: #{_lambda_.6} parent=0 // pred_fallthru
    _
  // Predicated region
  $region6: #{_lambda_.6} parent=0 // pred_check
    _
  $region7: #{_lambda_.6} parent=0 // pred_check_branch
    %13 = sbr.rel (0) target = $region9
  $region8: #{_lambda_.6} parent=0 // pred_region
    _
  $region9: #{_lambda_.6} parent=0 // pred_fallthru
    _
  // Predicated region
  $region10: #{_lambda_.6} parent=0 // pred_check
    _
  $region11: #{_lambda_.6} parent=0 // pred_check_branch
    %15 = sbr.rel (0) target = $region13
  $region12: #{_lambda_.6} parent=0 // pred_region
    _
  $region13: #{_lambda_.6} parent=0 // pred_fallthru
    _
  // Predicated region
  $region14: #{_lambda_.6} parent=0 // pred_check
    _
  $region15: #{_lambda_.6} parent=0 // pred_check_branch
    %17 = sbr.rel (0) target = $region17
  $region16: #{_lambda_.6} parent=0 // pred_region
    _
  $region17: #{_lambda_.6} parent=0 // pred_fallthru
    _
  // Predicated region
  $region18: #{_lambda_.6} parent=0 // pred_check
    _
  $region19: #{_lambda_.6} parent=0 // pred_check_branch
    %19 = sbr.rel (0) target = $region21
  $region20: #{_lambda_.6} parent=0 // pred_region
    _
  $region21: #{_lambda_.6} parent=0 // pred_fallthru
    _
  %v20 = vld [vmem:[%s1] sm:$0xff]
  %v21 = vld [vmem:[%s1 + $0x8] sm:$0xff]
  %v22 = vld [vmem:[%s1 + $0x10] sm:$0xff]
  %v23 = vld [vmem:[%s1 + $0x18] sm:$0xff]
  %v24 = vld [vmem:[%s1 + $0x20] sm:$0xff]
  %v25 = vld [vmem:[%s1 + $0x28] sm:$0xff]
  %v26 = vld [vmem:[%s2] sm:$0xff]
  %v27 = vld [vmem:[%s2 + $0x8] sm:$0xff]
  %v28 = vld [vmem:[%s0] sm:$0xff]
  %v29 = vld [vmem:[%s0 + $0x8] sm:$0xff]
  %v30 = vld [vmem:[%s0 + $0x10] sm:$0xff]
  %v31 = vld [vmem:[%s0 + $0x18] sm:$0xff]
  %v32 = vld [vmem:[%s0 + $0x20] sm:$0xff]
  %v33 = vld [vmem:[%s0 + $0x28] sm:$0xff]
  %v34 = vld [vmem:[%s0 + $0x30] sm:$0xff]
  %v35 = vld [vmem:[%s0 + $0x38] sm:$0xff]
  %v36 = vld [vmem:[%s0 + $0x40] sm:$0xff]
  %v37 = vld [vmem:[%s0 + $0x48] sm:$0xff]
  %v38 = vld [vmem:[%s0 + $0x50] sm:$0xff]
  %v39 = vld [vmem:[%s0 + $0x58] sm:$0xff]
  %v40 = vld [vmem:[%s0 + $0x60] sm:$0xff]
  %v41 = vld [vmem:[%s0 + $0x68] sm:$0xff]
  %v42 = vld [vmem:[%s0 + $0x70] sm:$0xff]
  %v43 = vld [vmem:[%s0 + $0x78] sm:$0xff]
  %v44 = vld [vmem:[%s0 + $0x80] sm:$0xff]
  %v45 = vld [vmem:[%s0 + $0x88] sm:$0xff]
  %v46 = vld [vmem:[%s0 + $0x90] sm:$0xff]
  %v47 = vld [vmem:[%s0 + $0x98] sm:$0xff]
  %v48 = vld [vmem:[%s0 + $0xa0] sm:$0xff]
  %v49 = vld [vmem:[%s0 + $0xa8] sm:$0xff]
  %v50 = vld [vmem:[%s0 + $0xb0] sm:$0xff]
  %v51 = vld [vmem:[%s0 + $0xb8] sm:$0xff]
  %v52 = vld [vmem:[%s0 + $0xc0] sm:$0xff]
  %v53 = vld [vmem:[%s0 + $0xc8] sm:$0xff]
  %v54 = vld [vmem:[%s0 + $0xd0] sm:$0xff]
  %v55 = vld [vmem:[%s0 + $0xd8] sm:$0xff]
  %v56 = vld [vmem:[%s0 + $0xe0] sm:$0xff]
  %v57 = vld [vmem:[%s0 + $0xe8] sm:$0xff]
  %v58 = vld [vmem:[%s0 + $0xf0] sm:$0xff]
  %v59 = vld [vmem:[%s0 + $0xf8] sm:$0xff]
  %v60 = vld [vmem:[%s0 + $0x100] sm:$0xff]
  %v61 = vld [vmem:[%s0 + $0x108] sm:$0xff]
  %v62 = vld [vmem:[%s0 + $0x110] sm:$0xff]
  %v63 = vld [vmem:[%s0 + $0x118] sm:$0xff]
  %v64 = vld [vmem:[%s0 + $0x120] sm:$0xff]
  %v65 = vld [vmem:[%s0 + $0x128] sm:$0xff]
  %v66 = vld [vmem:[%s0 + $0x130] sm:$0xff]
  %v67 = vld [vmem:[%s0 + $0x138] sm:$0xff]
  %v68 = vld [vmem:[%s0 + $0x140] sm:$0xff]
  %v69 = vld [vmem:[%s0 + $0x148] sm:$0xff]
  %v70 = vld [vmem:[%s0 + $0x150] sm:$0xff]
  %v71 = vld [vmem:[%s0 + $0x158] sm:$0xff]
  %v72 = vld [vmem:[%s0 + $0x160] sm:$0xff]
  %v73 = vld [vmem:[%s0 + $0x168] sm:$0xff]
  %v74 = vld [vmem:[%s0 + $0x170] sm:$0xff]
  %v75 = vld [vmem:[%s0 + $0x178] sm:$0xff]
  %v76 = vld [vmem:[%s0 + $0x180] sm:$0xff]
  %v77 = vld [vmem:[%s0 + $0x188] sm:$0xff]
  %v78 = vld [vmem:[%s0 + $0x190] sm:$0xff]
  %v79 = vld [vmem:[%s0 + $0x198] sm:$0xff]
  %v80 = vld [vmem:[%s0 + $0x1a0] sm:$0xff]
  %v81 = vld [vmem:[%s0 + $0x1a8] sm:$0xff]
  %v82 = vld [vmem:[%s0 + $0x1b0] sm:$0xff]
  %v83 = vld [vmem:[%s0 + $0x1b8] sm:$0xff]
  %v84 = vld [vmem:[%s0 + $0x1c0] sm:$0xff]
  %v85 = vld [vmem:[%s0 + $0x1c8] sm:$0xff]
  %v86 = vld [vmem:[%s0 + $0x1d0] sm:$0xff]
  %v87 = vld [vmem:[%s0 + $0x1d8] sm:$0xff]
  %v88 = vld [vmem:[%s0 + $0x1e0] sm:$0xff]
  %v89 = vld [vmem:[%s0 + $0x1e8] sm:$0xff]
  %v90 = vld [vmem:[%s0 + $0x1f0] sm:$0xff]
  %v91 = vld [vmem:[%s0 + $0x1f8] sm:$0xff]
  %v92 = vld [vmem:[%s0 + $0x200] sm:$0xff]
  %v93 = vld [vmem:[%s0 + $0x208] sm:$0xff]
  %v94 = vld [vmem:[%s0 + $0x210] sm:$0xff]
  %v95 = vld [vmem:[%s0 + $0x218] sm:$0xff]
  %v96 = vld [vmem:[%s0 + $0x220] sm:$0xff]
  %v97 = vld [vmem:[%s0 + $0x228] sm:$0xff]
  %v98 = vld [vmem:[%s0 + $0x230] sm:$0xff]
  %v99 = vld [vmem:[%s0 + $0x238] sm:$0xff]
  %v100 = vld [vmem:[%s0 + $0x240] sm:$0xff]
  %v101 = vld [vmem:[%s0 + $0x248] sm:$0xff]
  %v102 = vld [vmem:[%s0 + $0x250] sm:$0xff]
  %v103 = vld [vmem:[%s0 + $0x258] sm:$0xff]
  %v104 = vld [vmem:[%s0 + $0x260] sm:$0xff]
  %v105 = vld [vmem:[%s0 + $0x268] sm:$0xff]
  %v106 = vld [vmem:[%s0 + $0x270] sm:$0xff]
  %v107 = vld [vmem:[%s0 + $0x278] sm:$0xff]
  %v108 = vld [vmem:[%s0 + $0x280] sm:$0xff]
  %v109 = vld [vmem:[%s0 + $0x288] sm:$0xff]
  %v110 = vld [vmem:[%s0 + $0x290] sm:$0xff]
  %v111 = vld [vmem:[%s0 + $0x298] sm:$0xff]
  %v112 = vld [vmem:[%s0 + $0x2a0] sm:$0xff]
  %v113 = vld [vmem:[%s0 + $0x2a8] sm:$0xff]
  %v114 = vld [vmem:[%s0 + $0x2b0] sm:$0xff]
  %v115 = vld [vmem:[%s0 + $0x2b8] sm:$0xff]
  %v116 = vld [vmem:[%s0 + $0x2c0] sm:$0xff]
  %v117 = vld [vmem:[%s0 + $0x2c8] sm:$0xff]
  %v118 = vld [vmem:[%s0 + $0x2d0] sm:$0xff]
  %v119 = vld [vmem:[%s0 + $0x2d8] sm:$0xff]
  %v120 = vld [vmem:[%s0 + $0x2e0] sm:$0xff]
  %v121 = vld [vmem:[%s0 + $0x2e8] sm:$0xff]
  %v122 = vld [vmem:[%s0 + $0x2f0] sm:$0xff]
  %v123 = vld [vmem:[%s0 + $0x2f8] sm:$0xff]
  %v124 = vld [vmem:[%s0 + $0x300] sm:$0xff]
  %v125 = vld [vmem:[%s0 + $0x308] sm:$0xff]
  %v126 = vld [vmem:[%s0 + $0x310] sm:$0xff]
  %v127 = vld [vmem:[%s0 + $0x318] sm:$0xff]
  %v128 = vld [vmem:[%s0 + $0x320] sm:$0xff]
  %v129 = vld [vmem:[%s0 + $0x328] sm:$0xff]
  %v130 = vld [vmem:[%s0 + $0x330] sm:$0xff]
  %v131 = vld [vmem:[%s0 + $0x338] sm:$0xff]
  %v132 = vld [vmem:[%s0 + $0x340] sm:$0xff]
  %v133 = vld [vmem:[%s0 + $0x348] sm:$0xff]
  %v134 = vld [vmem:[%s0 + $0x350] sm:$0xff]
  %v135 = vld [vmem:[%s0 + $0x358] sm:$0xff]
  %v136 = vld [vmem:[%s0 + $0x360] sm:$0xff]
  %v137 = vld [vmem:[%s0 + $0x368] sm:$0xff]
  %v138 = vld [vmem:[%s0 + $0x370] sm:$0xff]
  %v139 = vld [vmem:[%s0 + $0x378] sm:$0xff]
  %v140 = vld [vmem:[%s0 + $0x380] sm:$0xff]
  %v141 = vld [vmem:[%s0 + $0x388] sm:$0xff]
  %v142 = vld [vmem:[%s0 + $0x390] sm:$0xff]
  %v143 = vld [vmem:[%s0 + $0x398] sm:$0xff]
  %v144 = vld [vmem:[%s0 + $0x3a0] sm:$0xff]
  %v145 = vld [vmem:[%s0 + $0x3a8] sm:$0xff]
  %v146 = vld [vmem:[%s0 + $0x3b0] sm:$0xff]
  %v147 = vld [vmem:[%s0 + $0x3b8] sm:$0xff]
  %149 = vset.pattern.permute.xlu0 0
  %150 = vperm.xlu0 %149, %v26
  %v151 = vpop.permute.xlu0 %150
  %154 = vset.pattern.permute.xlu0 0
  %155 = vperm.xlu0 %154, %v27
  %v156 = vpop.permute.xlu0 %155
  %vm158 = vcmask 523264
  %v160 = vsel %vm158, %v22, 0
  %v163 = vsel %vm158, %v25, 0
  %165 = vmatprep.subr.mxu0 %v74
  %166 = vmatpush1.msra.mxu0 %v73
  %167 = vmatprep.subr.mxu0 %v71
  %168 = vmatpush1.msra.mxu0 %v70
  %169 = vmatprep.subr.mxu0 %v68
  %170 = vmatpush1.msra.mxu0 %v67
  %171 = vmatprep.subr.mxu0 %v65
  %172 = vmatpush1.msra.mxu0 %v64
  %173 = vmatprep.subr.mxu0 %v62
  %174 = vmatpush1.msra.mxu0 %v61
  %175 = vmatprep.subr.mxu0 %v59
  %176 = vmatpush1.msra.mxu0 %v58
  %177 = vmatprep.subr.mxu0 %v56
  %178 = vmatpush1.msra.mxu0 %v55
  %179 = vmatprep.subr.mxu0 %v53
  %180 = vmatpush1.msra.mxu0 %v52
  %181 = vmatprep.subr.mxu0 %v50
  %182 = vmatpush1.msra.mxu0 %v49
  %183 = vmatprep.subr.mxu0 %v47
  %184 = vmatpush1.msra.mxu0 %v46
  %185 = vmatprep.subr.mxu0 %v44
  %186 = vmatpush1.msra.mxu0 %v43
  %187 = vmatprep.subr.mxu0 %v41
  %188 = vmatpush1.msra.mxu0 %v40
  %189 = vmatprep.subr.mxu0 %v38
  %190 = vmatpush1.msra.mxu0 %v37
  %191 = vmatprep.subr.mxu0 %v35
  %192 = vmatpush1.msra.mxu0 %v34
  %193 = vmatprep.subr.mxu0 %v32
  %194 = vmatpush1.msra.mxu0 %v31
  %195 = vmatprep.subr.mxu0 %v29
  %196 = vmatpush1.msra.mxu0 %v28
  %197 = vmatprep.subr.mxu0 %v122
  %198 = vmatpush2.msra.mxu0 %v121
  %199 = vmatprep.subr.mxu0 %v119
  %200 = vmatpush2.msra.mxu0 %v118
  %201 = vmatprep.subr.mxu0 %v116
  %202 = vmatpush2.msra.mxu0 %v115
  %203 = vmatprep.subr.mxu0 %v113
  %204 = vmatpush2.msra.mxu0 %v112
  %205 = vmatprep.subr.mxu0 %v110
  %206 = vmatpush2.msra.mxu0 %v109
  %207 = vmatprep.subr.mxu0 %v107
  %208 = vmatpush2.msra.mxu0 %v106
  %209 = vmatprep.subr.mxu0 %v104
  %210 = vmatpush2.msra.mxu0 %v103
  %211 = vmatprep.subr.mxu0 %v101
  %212 = vmatpush2.msra.mxu0 %v100
  %213 = vmatprep.subr.mxu0 %v98
  %214 = vmatpush2.msra.mxu0 %v97
  %215 = vmatprep.subr.mxu0 %v95
  %216 = vmatpush2.msra.mxu0 %v94
  %217 = vmatprep.subr.mxu0 %v92
  %218 = vmatpush2.msra.mxu0 %v91
  %219 = vmatprep.subr.mxu0 %v89
  %220 = vmatpush2.msra.mxu0 %v88
  %221 = vmatprep.subr.mxu0 %v86
  %222 = vmatpush2.msra.mxu0 %v85
  %223 = vmatprep.subr.mxu0 %v83
  %224 = vmatpush2.msra.mxu0 %v82
  %225 = vmatprep.subr.mxu0 %v80
  %226 = vmatpush2.msra.mxu0 %v79
  %227 = vmatprep.subr.mxu0 %v77
  %228 = vmatpush2.msra.mxu0 %v76
  %229 = vmatprep.mubr.f32.mxu0 %v21
  %230 = vmatmul.mubr.f32.gmra.mxu0 %v20
  %v231 = vpop.f32.mrf.mxu0
  %v232 = vadd.f32 %v151, %v231
  %v233 = vpop.f32.mrf.mxu0
  %v234 = vadd.f32 %v151, %v233
  %235 = vmatprep.mubr.f32.mxu0 %v24
  %236 = vmatmul.mubr.f32.gmra.mxu0 %v23
  %v237 = vpop.f32.mrf.mxu0
  %v238 = vadd.f32 %v156, %v237
  %v239 = vpop.f32.mrf.mxu0
  %v240 = vadd.f32 %v156, %v239
  %241 = vdwg.mxu0
  %242 = vmatprep.subr.mxu0 0.0
  %243 = vmatpush1.msra.mxu0 0.0
  %244 = vmatprep.subr.mxu0 0.0
  %245 = vmatpush1.msra.mxu0 0.0
  %246 = vmatprep.subr.mxu0 0.0
  %247 = vmatpush1.msra.mxu0 0.0
  %248 = vmatprep.subr.mxu0 0.0
  %249 = vmatpush1.msra.mxu0 0.0
  %250 = vmatprep.subr.mxu0 0.0
  %251 = vmatpush1.msra.mxu0 0.0
  %252 = vmatprep.subr.mxu0 0.0
  %253 = vmatpush1.msra.mxu0 0.0
  %254 = vmatprep.subr.mxu0 0.0
  %255 = vmatpush1.msra.mxu0 0.0
  %256 = vmatprep.subr.mxu0 0.0
  %257 = vmatpush1.msra.mxu0 0.0
  %258 = vmatprep.subr.mxu0 %v146
  %259 = vmatpush1.msra.mxu0 %v145
  %260 = vmatprep.subr.mxu0 %v143
  %261 = vmatpush1.msra.mxu0 %v142
  %262 = vmatprep.subr.mxu0 %v140
  %263 = vmatpush1.msra.mxu0 %v139
  %264 = vmatprep.subr.mxu0 %v137
  %265 = vmatpush1.msra.mxu0 %v136
  %266 = vmatprep.subr.mxu0 %v134
  %267 = vmatpush1.msra.mxu0 %v133
  %268 = vmatprep.subr.mxu0 %v131
  %269 = vmatpush1.msra.mxu0 %v130
  %270 = vmatprep.subr.mxu0 %v128
  %271 = vmatpush1.msra.mxu0 %v127
  %272 = vmatprep.subr.mxu0 %v125
  %273 = vmatpush1.msra.mxu0 %v124
  %274 = vmatprep.subr.mxu0 0.0
  %275 = vmatpush2.msra.mxu0 0.0
  %276 = vmatprep.subr.mxu0 0.0
  %277 = vmatpush2.msra.mxu0 0.0
  %278 = vmatprep.subr.mxu0 0.0
  %279 = vmatpush2.msra.mxu0 0.0
  %280 = vmatprep.subr.mxu0 0.0
  %281 = vmatpush2.msra.mxu0 0.0
  %282 = vmatprep.subr.mxu0 0.0
  %283 = vmatpush2.msra.mxu0 0.0
  %284 = vmatprep.subr.mxu0 0.0
  %285 = vmatpush2.msra.mxu0 0.0
  %286 = vmatprep.subr.mxu0 0.0
  %287 = vmatpush2.msra.mxu0 0.0
  %288 = vmatprep.subr.mxu0 0.0
  %289 = vmatpush2.msra.mxu0 0.0
  %290 = vmatprep.subr.mxu0 0.0
  %291 = vmatpush2.msra.mxu0 0.0
  %292 = vmatprep.subr.mxu0 0.0
  %293 = vmatpush2.msra.mxu0 0.0
  %294 = vmatprep.subr.mxu0 0.0
  %295 = vmatpush2.msra.mxu0 0.0
  %296 = vmatprep.subr.mxu0 0.0
  %297 = vmatpush2.msra.mxu0 0.0
  %298 = vmatprep.subr.mxu0 0.0
  %299 = vmatpush2.msra.mxu0 0.0
  %300 = vmatprep.subr.mxu0 0.0
  %301 = vmatpush2.msra.mxu0 0.0
  %302 = vmatprep.subr.mxu0 0.0
  %303 = vmatpush2.msra.mxu0 0.0
  %304 = vmatprep.subr.mxu0 0.0
  %305 = vmatpush2.msra.mxu0 0.0
  %306 = vmatprep.mubr.f32.mxu0 0.0
  %307 = vmatmul.mubr.f32.gmra.mxu0 %v160
  %v308 = vpop.f32.mrf.mxu0
  %v309 = vadd.f32 %v232, %v308
  %v310 = vpop.f32.mrf.mxu0
  %v311 = vadd.f32 %v234, %v310
  %312 = vmatprep.mubr.f32.mxu0 0.0
  %313 = vmatmul.mubr.f32.gmra.mxu0 %v163
  %v314 = vpop.f32.mrf.mxu0
  %v315 = vadd.f32 %v238, %v314
  %v316 = vpop.f32.mrf.mxu0
  %v317 = vadd.f32 %v240, %v316
  %318 = vdwg.mxu0
  %319 = vmatprep.subr.mxu0 0.0
  %320 = vmatpush1.msra.mxu0 %v75
  %321 = vmatprep.subr.mxu0 0.0
  %322 = vmatpush1.msra.mxu0 %v72
  %323 = vmatprep.subr.mxu0 0.0
  %324 = vmatpush1.msra.mxu0 %v69
  %325 = vmatprep.subr.mxu0 0.0
  %326 = vmatpush1.msra.mxu0 %v66
  %327 = vmatprep.subr.mxu0 0.0
  %328 = vmatpush1.msra.mxu0 %v63
  %329 = vmatprep.subr.mxu0 0.0
  %330 = vmatpush1.msra.mxu0 %v60
  %331 = vmatprep.subr.mxu0 0.0
  %332 = vmatpush1.msra.mxu0 %v57
  %333 = vmatprep.subr.mxu0 0.0
  %334 = vmatpush1.msra.mxu0 %v54
  %335 = vmatprep.subr.mxu0 0.0
  %336 = vmatpush1.msra.mxu0 %v51
  %337 = vmatprep.subr.mxu0 0.0
  %338 = vmatpush1.msra.mxu0 %v48
  %339 = vmatprep.subr.mxu0 0.0
  %340 = vmatpush1.msra.mxu0 %v45
  %341 = vmatprep.subr.mxu0 0.0
  %342 = vmatpush1.msra.mxu0 %v42
  %343 = vmatprep.subr.mxu0 0.0
  %344 = vmatpush1.msra.mxu0 %v39
  %345 = vmatprep.subr.mxu0 0.0
  %346 = vmatpush1.msra.mxu0 %v36
  %347 = vmatprep.subr.mxu0 0.0
  %348 = vmatpush1.msra.mxu0 %v33
  %349 = vmatprep.subr.mxu0 0.0
  %350 = vmatpush1.msra.mxu0 %v30
  %351 = vmatprep.subr.mxu0 0.0
  %352 = vmatpush2.msra.mxu0 %v123
  %353 = vmatprep.subr.mxu0 0.0
  %354 = vmatpush2.msra.mxu0 %v120
  %355 = vmatprep.subr.mxu0 0.0
  %356 = vmatpush2.msra.mxu0 %v117
  %357 = vmatprep.subr.mxu0 0.0
  %358 = vmatpush2.msra.mxu0 %v114
  %359 = vmatprep.subr.mxu0 0.0
  %360 = vmatpush2.msra.mxu0 %v111
  %361 = vmatprep.subr.mxu0 0.0
  %362 = vmatpush2.msra.mxu0 %v108
  %363 = vmatprep.subr.mxu0 0.0
  %364 = vmatpush2.msra.mxu0 %v105
  %365 = vmatprep.subr.mxu0 0.0
  %366 = vmatpush2.msra.mxu0 %v102
  %367 = vmatprep.subr.mxu0 0.0
  %368 = vmatpush2.msra.mxu0 %v99
  %369 = vmatprep.subr.mxu0 0.0
  %370 = vmatpush2.msra.mxu0 %v96
  %371 = vmatprep.subr.mxu0 0.0
  %372 = vmatpush2.msra.mxu0 %v93
  %373 = vmatprep.subr.mxu0 0.0
  %374 = vmatpush2.msra.mxu0 %v90
  %375 = vmatprep.subr.mxu0 0.0
  %376 = vmatpush2.msra.mxu0 %v87
  %377 = vmatprep.subr.mxu0 0.0
  %378 = vmatpush2.msra.mxu0 %v84
  %379 = vmatprep.subr.mxu0 0.0
  %380 = vmatpush2.msra.mxu0 %v81
  %381 = vmatprep.subr.mxu0 0.0
  %382 = vmatpush2.msra.mxu0 %v78
  %383 = vmatprep.mubr.f32.mxu0 %v21
  %384 = vmatmul.mubr.f32.gmra.mxu0 %v20
  %v385 = vpop.f32.mrf.mxu0
  %v386 = vadd.f32 %v151, %v385
  %v387 = vpop.f32.mrf.mxu0
  %388 = vmatprep.mubr.f32.mxu0 %v24
  %389 = vmatmul.mubr.f32.gmra.mxu0 %v23
  %v390 = vpop.f32.mrf.mxu0
  %v391 = vadd.f32 %v156, %v390
  %v392 = vpop.f32.mrf.mxu0
  %393 = vdwg.mxu0
  %394 = vmatprep.subr.mxu0 0.0
  %395 = vmatpush1.msra.mxu0 0.0
  %396 = vmatprep.subr.mxu0 0.0
  %397 = vmatpush1.msra.mxu0 0.0
  %398 = vmatprep.subr.mxu0 0.0
  %399 = vmatpush1.msra.mxu0 0.0
  %400 = vmatprep.subr.mxu0 0.0
  %401 = vmatpush1.msra.mxu0 0.0
  %402 = vmatprep.subr.mxu0 0.0
  %403 = vmatpush1.msra.mxu0 0.0
  %404 = vmatprep.subr.mxu0 0.0
  %405 = vmatpush1.msra.mxu0 0.0
  %406 = vmatprep.subr.mxu0 0.0
  %407 = vmatpush1.msra.mxu0 0.0
  %408 = vmatprep.subr.mxu0 0.0
  %409 = vmatpush1.msra.mxu0 0.0
  %410 = vmatprep.subr.mxu0 0.0
  %411 = vmatpush1.msra.mxu0 %v147
  %412 = vmatprep.subr.mxu0 0.0
  %413 = vmatpush1.msra.mxu0 %v144
  %414 = vmatprep.subr.mxu0 0.0
  %415 = vmatpush1.msra.mxu0 %v141
  %416 = vmatprep.subr.mxu0 0.0
  %417 = vmatpush1.msra.mxu0 %v138
  %418 = vmatprep.subr.mxu0 0.0
  %419 = vmatpush1.msra.mxu0 %v135
  %420 = vmatprep.subr.mxu0 0.0
  %421 = vmatpush1.msra.mxu0 %v132
  %422 = vmatprep.subr.mxu0 0.0
  %423 = vmatpush1.msra.mxu0 %v129
  %424 = vmatprep.subr.mxu0 0.0
  %425 = vmatpush1.msra.mxu0 %v126
  %426 = vmatprep.subr.mxu0 0.0
  %427 = vmatpush2.msra.mxu0 0.0
  %428 = vmatprep.subr.mxu0 0.0
  %429 = vmatpush2.msra.mxu0 0.0
  %430 = vmatprep.subr.mxu0 0.0
  %431 = vmatpush2.msra.mxu0 0.0
  %432 = vmatprep.subr.mxu0 0.0
  %433 = vmatpush2.msra.mxu0 0.0
  %434 = vmatprep.subr.mxu0 0.0
  %435 = vmatpush2.msra.mxu0 0.0
  %436 = vmatprep.subr.mxu0 0.0
  %437 = vmatpush2.msra.mxu0 0.0
  %438 = vmatprep.subr.mxu0 0.0
  %439 = vmatpush2.msra.mxu0 0.0
  %440 = vmatprep.subr.mxu0 0.0
  %441 = vmatpush2.msra.mxu0 0.0
  %442 = vmatprep.subr.mxu0 0.0
  %443 = vmatpush2.msra.mxu0 0.0
  %444 = vmatprep.subr.mxu0 0.0
  %445 = vmatpush2.msra.mxu0 0.0
  %446 = vmatprep.subr.mxu0 0.0
  %447 = vmatpush2.msra.mxu0 0.0
  %448 = vmatprep.subr.mxu0 0.0
  %449 = vmatpush2.msra.mxu0 0.0
  %450 = vmatprep.subr.mxu0 0.0
  %451 = vmatpush2.msra.mxu0 0.0
  %452 = vmatprep.subr.mxu0 0.0
  %453 = vmatpush2.msra.mxu0 0.0
  %454 = vmatprep.subr.mxu0 0.0
  %455 = vmatpush2.msra.mxu0 0.0
  %456 = vmatprep.subr.mxu0 0.0
  %457 = vmatpush2.msra.mxu0 0.0
  %458 = vmatprep.mubr.f32.mxu0 0.0
  %459 = vmatmul.mubr.f32.gmra.mxu0 %v160
  %v460 = vpop.f32.mrf.mxu0
  %v461 = vadd.f32 %v386, %v460
  %v462 = vpop.f32.mrf.mxu0
  %463 = vmatprep.mubr.f32.mxu0 0.0
  %464 = vmatmul.mubr.f32.gmra.mxu0 %v163
  %v465 = vpop.f32.mrf.mxu0
  %v466 = vadd.f32 %v391, %v465
  %v467 = vpop.f32.mrf.mxu0
  %468 = vdwg.mxu0
  %s469 = scalar_lea.vmem %s0, 960
  %v470 = vld [vmem:[%s469] sm:$0xff]
  %v471 = vld [vmem:[%s469 + $0x8] sm:$0xff]
  %v472 = vld [vmem:[%s469 + $0x10] sm:$0xff]
  %v473 = vld [vmem:[%s469 + $0x18] sm:$0xff]
  %v474 = vld [vmem:[%s469 + $0x20] sm:$0xff]
  %v475 = vld [vmem:[%s469 + $0x28] sm:$0xff]
  %v476 = vld [vmem:[%s469 + $0x30] sm:$0xff]
  %v477 = vld [vmem:[%s469 + $0x38] sm:$0xff]
  %v478 = vld [vmem:[%s469 + $0x40] sm:$0xff]
  %v479 = vld [vmem:[%s469 + $0x48] sm:$0xff]
  %v480 = vld [vmem:[%s469 + $0x50] sm:$0xff]
  %v481 = vld [vmem:[%s469 + $0x58] sm:$0xff]
  %v482 = vld [vmem:[%s469 + $0x60] sm:$0xff]
  %v483 = vld [vmem:[%s469 + $0x68] sm:$0xff]
  %v484 = vld [vmem:[%s469 + $0x70] sm:$0xff]
  %v485 = vld [vmem:[%s469 + $0x78] sm:$0xff]
  %v486 = vld [vmem:[%s469 + $0x80] sm:$0xff]
  %v487 = vld [vmem:[%s469 + $0x88] sm:$0xff]
  %v488 = vld [vmem:[%s469 + $0x90] sm:$0xff]
  %v489 = vld [vmem:[%s469 + $0x98] sm:$0xff]
  %v490 = vld [vmem:[%s469 + $0xa0] sm:$0xff]
  %v491 = vld [vmem:[%s469 + $0xa8] sm:$0xff]
  %v492 = vld [vmem:[%s469 + $0xb0] sm:$0xff]
  %v493 = vld [vmem:[%s469 + $0xb8] sm:$0xff]
  %v494 = vld [vmem:[%s469 + $0xc0] sm:$0xff]
  %v495 = vld [vmem:[%s469 + $0xc8] sm:$0xff]
  %v496 = vld [vmem:[%s469 + $0xd0] sm:$0xff]
  %v497 = vld [vmem:[%s469 + $0xd8] sm:$0xff]
  %v498 = vld [vmem:[%s469 + $0xe0] sm:$0xff]
  %v499 = vld [vmem:[%s469 + $0xe8] sm:$0xff]
  %v500 = vld [vmem:[%s469 + $0xf0] sm:$0xff]
  %v501 = vld [vmem:[%s469 + $0xf8] sm:$0xff]
  %v502 = vld [vmem:[%s469 + $0x100] sm:$0xff]
  %v503 = vld [vmem:[%s469 + $0x108] sm:$0xff]
  %v504 = vld [vmem:[%s469 + $0x110] sm:$0xff]
  %v505 = vld [vmem:[%s469 + $0x118] sm:$0xff]
  %v506 = vld [vmem:[%s469 + $0x120] sm:$0xff]
  %v507 = vld [vmem:[%s469 + $0x128] sm:$0xff]
  %v508 = vld [vmem:[%s469 + $0x130] sm:$0xff]
  %v509 = vld [vmem:[%s469 + $0x138] sm:$0xff]
  %v510 = vld [vmem:[%s469 + $0x140] sm:$0xff]
  %v511 = vld [vmem:[%s469 + $0x148] sm:$0xff]
  %v512 = vld [vmem:[%s469 + $0x150] sm:$0xff]
  %v513 = vld [vmem:[%s469 + $0x158] sm:$0xff]
  %v514 = vld [vmem:[%s469 + $0x160] sm:$0xff]
  %v515 = vld [vmem:[%s469 + $0x168] sm:$0xff]
  %v516 = vld [vmem:[%s469 + $0x170] sm:$0xff]
  %v517 = vld [vmem:[%s469 + $0x178] sm:$0xff]
  %v518 = vld [vmem:[%s469 + $0x180] sm:$0xff]
  %v519 = vld [vmem:[%s469 + $0x188] sm:$0xff]
  %v520 = vld [vmem:[%s469 + $0x190] sm:$0xff]
  %v521 = vld [vmem:[%s469 + $0x198] sm:$0xff]
  %v522 = vld [vmem:[%s469 + $0x1a0] sm:$0xff]
  %v523 = vld [vmem:[%s469 + $0x1a8] sm:$0xff]
  %v524 = vld [vmem:[%s469 + $0x1b0] sm:$0xff]
  %v525 = vld [vmem:[%s469 + $0x1b8] sm:$0xff]
  %v526 = vld [vmem:[%s469 + $0x1c0] sm:$0xff]
  %v527 = vld [vmem:[%s469 + $0x1c8] sm:$0xff]
  %v528 = vld [vmem:[%s469 + $0x1d0] sm:$0xff]
  %v529 = vld [vmem:[%s469 + $0x1d8] sm:$0xff]
  %v530 = vld [vmem:[%s469 + $0x1e0] sm:$0xff]
  %v531 = vld [vmem:[%s469 + $0x1e8] sm:$0xff]
  %v532 = vld [vmem:[%s469 + $0x1f0] sm:$0xff]
  %v533 = vld [vmem:[%s469 + $0x1f8] sm:$0xff]
  %v534 = vld [vmem:[%s469 + $0x200] sm:$0xff]
  %v535 = vld [vmem:[%s469 + $0x208] sm:$0xff]
  %v536 = vld [vmem:[%s469 + $0x210] sm:$0xff]
  %v537 = vld [vmem:[%s469 + $0x218] sm:$0xff]
  %v538 = vld [vmem:[%s469 + $0x220] sm:$0xff]
  %v539 = vld [vmem:[%s469 + $0x228] sm:$0xff]
  %v540 = vld [vmem:[%s469 + $0x230] sm:$0xff]
  %v541 = vld [vmem:[%s469 + $0x238] sm:$0xff]
  %v542 = vld [vmem:[%s469 + $0x240] sm:$0xff]
  %v543 = vld [vmem:[%s469 + $0x248] sm:$0xff]
  %v544 = vld [vmem:[%s469 + $0x250] sm:$0xff]
  %v545 = vld [vmem:[%s469 + $0x258] sm:$0xff]
  %v546 = vld [vmem:[%s469 + $0x260] sm:$0xff]
  %v547 = vld [vmem:[%s469 + $0x268] sm:$0xff]
  %v548 = vld [vmem:[%s469 + $0x270] sm:$0xff]
  %v549 = vld [vmem:[%s469 + $0x278] sm:$0xff]
  %v550 = vld [vmem:[%s469 + $0x280] sm:$0xff]
  %v551 = vld [vmem:[%s469 + $0x288] sm:$0xff]
  %v552 = vld [vmem:[%s469 + $0x290] sm:$0xff]
  %v553 = vld [vmem:[%s469 + $0x298] sm:$0xff]
  %v554 = vld [vmem:[%s469 + $0x2a0] sm:$0xff]
  %v555 = vld [vmem:[%s469 + $0x2a8] sm:$0xff]
  %v556 = vld [vmem:[%s469 + $0x2b0] sm:$0xff]
  %v557 = vld [vmem:[%s469 + $0x2b8] sm:$0xff]
  %v558 = vld [vmem:[%s469 + $0x2c0] sm:$0xff]
  %v559 = vld [vmem:[%s469 + $0x2c8] sm:$0xff]
  %v560 = vld [vmem:[%s469 + $0x2d0] sm:$0xff]
  %v561 = vld [vmem:[%s469 + $0x2d8] sm:$0xff]
  %v562 = vld [vmem:[%s469 + $0x2e0] sm:$0xff]
  %v563 = vld [vmem:[%s469 + $0x2e8] sm:$0xff]
  %v564 = vld [vmem:[%s469 + $0x2f0] sm:$0xff]
  %v565 = vld [vmem:[%s469 + $0x2f8] sm:$0xff]
  %v566 = vld [vmem:[%s469 + $0x300] sm:$0xff]
  %v567 = vld [vmem:[%s469 + $0x308] sm:$0xff]
  %v568 = vld [vmem:[%s469 + $0x310] sm:$0xff]
  %v569 = vld [vmem:[%s469 + $0x318] sm:$0xff]
  %v570 = vld [vmem:[%s469 + $0x320] sm:$0xff]
  %v571 = vld [vmem:[%s469 + $0x328] sm:$0xff]
  %v572 = vld [vmem:[%s469 + $0x330] sm:$0xff]
  %v573 = vld [vmem:[%s469 + $0x338] sm:$0xff]
  %v574 = vld [vmem:[%s469 + $0x340] sm:$0xff]
  %v575 = vld [vmem:[%s469 + $0x348] sm:$0xff]
  %v576 = vld [vmem:[%s469 + $0x350] sm:$0xff]
  %v577 = vld [vmem:[%s469 + $0x358] sm:$0xff]
  %v578 = vld [vmem:[%s469 + $0x360] sm:$0xff]
  %v579 = vld [vmem:[%s469 + $0x368] sm:$0xff]
  %v580 = vld [vmem:[%s469 + $0x370] sm:$0xff]
  %v581 = vld [vmem:[%s469 + $0x378] sm:$0xff]
  %v582 = vld [vmem:[%s469 + $0x380] sm:$0xff]
  %v583 = vld [vmem:[%s469 + $0x388] sm:$0xff]
  %v584 = vld [vmem:[%s469 + $0x390] sm:$0xff]
  %v585 = vld [vmem:[%s469 + $0x398] sm:$0xff]
  %v586 = vld [vmem:[%s469 + $0x3a0] sm:$0xff]
  %v587 = vld [vmem:[%s469 + $0x3a8] sm:$0xff]
  %v588 = vld [vmem:[%s469 + $0x3b0] sm:$0xff]
  %v589 = vld [vmem:[%s469 + $0x3b8] sm:$0xff]
  %590 = vmatprep.subr.mxu0 %v516
  %591 = vmatpush1.msra.mxu0 %v515
  %592 = vmatprep.subr.mxu0 %v513
  %593 = vmatpush1.msra.mxu0 %v512
  %594 = vmatprep.subr.mxu0 %v510
  %595 = vmatpush1.msra.mxu0 %v509
  %596 = vmatprep.subr.mxu0 %v507
  %597 = vmatpush1.msra.mxu0 %v506
  %598 = vmatprep.subr.mxu0 %v504
  %599 = vmatpush1.msra.mxu0 %v503
  %600 = vmatprep.subr.mxu0 %v501
  %601 = vmatpush1.msra.mxu0 %v500
  %602 = vmatprep.subr.mxu0 %v498
  %603 = vmatpush1.msra.mxu0 %v497
  %604 = vmatprep.subr.mxu0 %v495
  %605 = vmatpush1.msra.mxu0 %v494
  %606 = vmatprep.subr.mxu0 %v492
  %607 = vmatpush1.msra.mxu0 %v491
  %608 = vmatprep.subr.mxu0 %v489
  %609 = vmatpush1.msra.mxu0 %v488
  %610 = vmatprep.subr.mxu0 %v486
  %611 = vmatpush1.msra.mxu0 %v485
  %612 = vmatprep.subr.mxu0 %v483
  %613 = vmatpush1.msra.mxu0 %v482
  %614 = vmatprep.subr.mxu0 %v480
  %615 = vmatpush1.msra.mxu0 %v479
  %616 = vmatprep.subr.mxu0 %v477
  %617 = vmatpush1.msra.mxu0 %v476
  %618 = vmatprep.subr.mxu0 %v474
  %619 = vmatpush1.msra.mxu0 %v473
  %620 = vmatprep.subr.mxu0 %v471
  %621 = vmatpush1.msra.mxu0 %v470
  %622 = vmatprep.subr.mxu0 %v564
  %623 = vmatpush2.msra.mxu0 %v563
  %624 = vmatprep.subr.mxu0 %v561
  %625 = vmatpush2.msra.mxu0 %v560
  %626 = vmatprep.subr.mxu0 %v558
  %627 = vmatpush2.msra.mxu0 %v557
  %628 = vmatprep.subr.mxu0 %v555
  %629 = vmatpush2.msra.mxu0 %v554
  %630 = vmatprep.subr.mxu0 %v552
  %631 = vmatpush2.msra.mxu0 %v551
  %632 = vmatprep.subr.mxu0 %v549
  %633 = vmatpush2.msra.mxu0 %v548
  %634 = vmatprep.subr.mxu0 %v546
  %635 = vmatpush2.msra.mxu0 %v545
  %636 = vmatprep.subr.mxu0 %v543
  %637 = vmatpush2.msra.mxu0 %v542
  %638 = vmatprep.subr.mxu0 %v540
  %639 = vmatpush2.msra.mxu0 %v539
  %640 = vmatprep.subr.mxu0 %v537
  %641 = vmatpush2.msra.mxu0 %v536
  %642 = vmatprep.subr.mxu0 %v534
  %643 = vmatpush2.msra.mxu0 %v533
  %644 = vmatprep.subr.mxu0 %v531
  %645 = vmatpush2.msra.mxu0 %v530
  %646 = vmatprep.subr.mxu0 %v528
  %647 = vmatpush2.msra.mxu0 %v527
  %648 = vmatprep.subr.mxu0 %v525
  %649 = vmatpush2.msra.mxu0 %v524
  %650 = vmatprep.subr.mxu0 %v522
  %651 = vmatpush2.msra.mxu0 %v521
  %652 = vmatprep.subr.mxu0 %v519
  %653 = vmatpush2.msra.mxu0 %v518
  %654 = vmatprep.mubr.f32.mxu0 %v21
  %655 = vmatmul.mubr.f32.gmra.mxu0 %v20
  %v656 = vpop.f32.mrf.mxu0
  %v657 = vadd.f32 %v151, %v656
  %v658 = vpop.f32.mrf.mxu0
  %v659 = vadd.f32 %v151, %v658
  %660 = vmatprep.mubr.f32.mxu0 %v24
  %661 = vmatmul.mubr.f32.gmra.mxu0 %v23
  %v662 = vpop.f32.mrf.mxu0
  %v663 = vadd.f32 %v156, %v662
  %v664 = vpop.f32.mrf.mxu0
  %v665 = vadd.f32 %v156, %v664
  %666 = vdwg.mxu0
  %667 = vmatprep.subr.mxu0 0.0
  %668 = vmatpush1.msra.mxu0 0.0
  %669 = vmatprep.subr.mxu0 0.0
  %670 = vmatpush1.msra.mxu0 0.0
  %671 = vmatprep.subr.mxu0 0.0
  %672 = vmatpush1.msra.mxu0 0.0
  %673 = vmatprep.subr.mxu0 0.0
  %674 = vmatpush1.msra.mxu0 0.0
  %675 = vmatprep.subr.mxu0 0.0
  %676 = vmatpush1.msra.mxu0 0.0
  %677 = vmatprep.subr.mxu0 0.0
  %678 = vmatpush1.msra.mxu0 0.0
  %679 = vmatprep.subr.mxu0 0.0
  %680 = vmatpush1.msra.mxu0 0.0
  %681 = vmatprep.subr.mxu0 0.0
  %682 = vmatpush1.msra.mxu0 0.0
  %683 = vmatprep.subr.mxu0 %v588
  %684 = vmatpush1.msra.mxu0 %v587
  %685 = vmatprep.subr.mxu0 %v585
  %686 = vmatpush1.msra.mxu0 %v584
  %687 = vmatprep.subr.mxu0 %v582
  %688 = vmatpush1.msra.mxu0 %v581
  %689 = vmatprep.subr.mxu0 %v579
  %690 = vmatpush1.msra.mxu0 %v578
  %691 = vmatprep.subr.mxu0 %v576
  %692 = vmatpush1.msra.mxu0 %v575
  %693 = vmatprep.subr.mxu0 %v573
  %694 = vmatpush1.msra.mxu0 %v572
  %695 = vmatprep.subr.mxu0 %v570
  %696 = vmatpush1.msra.mxu0 %v569
  %697 = vmatprep.subr.mxu0 %v567
  %698 = vmatpush1.msra.mxu0 %v566
  %699 = vmatprep.subr.mxu0 0.0
  %700 = vmatpush2.msra.mxu0 0.0
  %701 = vmatprep.subr.mxu0 0.0
  %702 = vmatpush2.msra.mxu0 0.0
  %703 = vmatprep.subr.mxu0 0.0
  %704 = vmatpush2.msra.mxu0 0.0
  %705 = vmatprep.subr.mxu0 0.0
  %706 = vmatpush2.msra.mxu0 0.0
  %707 = vmatprep.subr.mxu0 0.0
  %708 = vmatpush2.msra.mxu0 0.0
  %709 = vmatprep.subr.mxu0 0.0
  %710 = vmatpush2.msra.mxu0 0.0
  %711 = vmatprep.subr.mxu0 0.0
  %712 = vmatpush2.msra.mxu0 0.0
  %713 = vmatprep.subr.mxu0 0.0
  %714 = vmatpush2.msra.mxu0 0.0
  %715 = vmatprep.subr.mxu0 0.0
  %716 = vmatpush2.msra.mxu0 0.0
  %717 = vmatprep.subr.mxu0 0.0
  %718 = vmatpush2.msra.mxu0 0.0
  %719 = vmatprep.subr.mxu0 0.0
  %720 = vmatpush2.msra.mxu0 0.0
  %721 = vmatprep.subr.mxu0 0.0
  %722 = vmatpush2.msra.mxu0 0.0
  %723 = vmatprep.subr.mxu0 0.0
  %724 = vmatpush2.msra.mxu0 0.0
  %725 = vmatprep.subr.mxu0 0.0
  %726 = vmatpush2.msra.mxu0 0.0
  %727 = vmatprep.subr.mxu0 0.0
  %728 = vmatpush2.msra.mxu0 0.0
  %729 = vmatprep.subr.mxu0 0.0
  %730 = vmatpush2.msra.mxu0 0.0
  %731 = vmatprep.mubr.f32.mxu0 0.0
  %732 = vmatmul.mubr.f32.gmra.mxu0 %v160
  %v733 = vpop.f32.mrf.mxu0
  %v734 = vadd.f32 %v657, %v733
  %v735 = vpop.f32.mrf.mxu0
  %v736 = vadd.f32 %v659, %v735
  %737 = vmatprep.mubr.f32.mxu0 0.0
  %738 = vmatmul.mubr.f32.gmra.mxu0 %v163
  %v739 = vpop.f32.mrf.mxu0
  %v740 = vadd.f32 %v663, %v739
  %v741 = vpop.f32.mrf.mxu0
  %v742 = vadd.f32 %v665, %v741
  %743 = vdwg.mxu0
  %744 = vmatprep.subr.mxu0 0.0
  %745 = vmatpush1.msra.mxu0 %v517
  %746 = vmatprep.subr.mxu0 0.0
  %747 = vmatpush1.msra.mxu0 %v514
  %748 = vmatprep.subr.mxu0 0.0
  %749 = vmatpush1.msra.mxu0 %v511
  %750 = vmatprep.subr.mxu0 0.0
  %751 = vmatpush1.msra.mxu0 %v508
  %752 = vmatprep.subr.mxu0 0.0
  %753 = vmatpush1.msra.mxu0 %v505
  %754 = vmatprep.subr.mxu0 0.0
  %755 = vmatpush1.msra.mxu0 %v502
  %756 = vmatprep.subr.mxu0 0.0
  %757 = vmatpush1.msra.mxu0 %v499
  %758 = vmatprep.subr.mxu0 0.0
  %759 = vmatpush1.msra.mxu0 %v496
  %760 = vmatprep.subr.mxu0 0.0
  %761 = vmatpush1.msra.mxu0 %v493
  %762 = vmatprep.subr.mxu0 0.0
  %763 = vmatpush1.msra.mxu0 %v490
  %764 = vmatprep.subr.mxu0 0.0
  %765 = vmatpush1.msra.mxu0 %v487
  %766 = vmatprep.subr.mxu0 0.0
  %767 = vmatpush1.msra.mxu0 %v484
  %768 = vmatprep.subr.mxu0 0.0
  %769 = vmatpush1.msra.mxu0 %v481
  %770 = vmatprep.subr.mxu0 0.0
  %771 = vmatpush1.msra.mxu0 %v478
  %772 = vmatprep.subr.mxu0 0.0
  %773 = vmatpush1.msra.mxu0 %v475
  %774 = vmatprep.subr.mxu0 0.0
  %775 = vmatpush1.msra.mxu0 %v472
  %776 = vmatprep.subr.mxu0 0.0
  %777 = vmatpush2.msra.mxu0 %v565
  %778 = vmatprep.subr.mxu0 0.0
  %779 = vmatpush2.msra.mxu0 %v562
  %780 = vmatprep.subr.mxu0 0.0
  %781 = vmatpush2.msra.mxu0 %v559
  %782 = vmatprep.subr.mxu0 0.0
  %783 = vmatpush2.msra.mxu0 %v556
  %784 = vmatprep.subr.mxu0 0.0
  %785 = vmatpush2.msra.mxu0 %v553
  %786 = vmatprep.subr.mxu0 0.0
  %787 = vmatpush2.msra.mxu0 %v550
  %788 = vmatprep.subr.mxu0 0.0
  %789 = vmatpush2.msra.mxu0 %v547
  %790 = vmatprep.subr.mxu0 0.0
  %791 = vmatpush2.msra.mxu0 %v544
  %792 = vmatprep.subr.mxu0 0.0
  %793 = vmatpush2.msra.mxu0 %v541
  %794 = vmatprep.subr.mxu0 0.0
  %795 = vmatpush2.msra.mxu0 %v538
  %796 = vmatprep.subr.mxu0 0.0
  %797 = vmatpush2.msra.mxu0 %v535
  %798 = vmatprep.subr.mxu0 0.0
  %799 = vmatpush2.msra.mxu0 %v532
  %800 = vmatprep.subr.mxu0 0.0
  %801 = vmatpush2.msra.mxu0 %v529
  %802 = vmatprep.subr.mxu0 0.0
  %803 = vmatpush2.msra.mxu0 %v526
  %804 = vmatprep.subr.mxu0 0.0
  %805 = vmatpush2.msra.mxu0 %v523
  %806 = vmatprep.subr.mxu0 0.0
  %807 = vmatpush2.msra.mxu0 %v520
  %808 = vmatprep.mubr.f32.mxu0 %v21
  %809 = vmatmul.mubr.f32.gmra.mxu0 %v20
  %v810 = vpop.f32.mrf.mxu0
  %v811 = vadd.f32 %v151, %v810
  %v812 = vpop.f32.mrf.mxu0
  %813 = vmatprep.mubr.f32.mxu0 %v24
  %814 = vmatmul.mubr.f32.gmra.mxu0 %v23
  %v815 = vpop.f32.mrf.mxu0
  %v816 = vadd.f32 %v156, %v815
  %v817 = vpop.f32.mrf.mxu0
  %818 = vdwg.mxu0
  %819 = vmatprep.subr.mxu0 0.0
  %820 = vmatpush1.msra.mxu0 0.0
  %821 = vmatprep.subr.mxu0 0.0
  %822 = vmatpush1.msra.mxu0 0.0
  %823 = vmatprep.subr.mxu0 0.0
  %824 = vmatpush1.msra.mxu0 0.0
  %825 = vmatprep.subr.mxu0 0.0
  %826 = vmatpush1.msra.mxu0 0.0
  %827 = vmatprep.subr.mxu0 0.0
  %828 = vmatpush1.msra.mxu0 0.0
  %829 = vmatprep.subr.mxu0 0.0
  %830 = vmatpush1.msra.mxu0 0.0
  %831 = vmatprep.subr.mxu0 0.0
  %832 = vmatpush1.msra.mxu0 0.0
  %833 = vmatprep.subr.mxu0 0.0
  %834 = vmatpush1.msra.mxu0 0.0
  %835 = vmatprep.subr.mxu0 0.0
  %836 = vmatpush1.msra.mxu0 %v589
  %837 = vmatprep.subr.mxu0 0.0
  %838 = vmatpush1.msra.mxu0 %v586
  %839 = vmatprep.subr.mxu0 0.0
  %840 = vmatpush1.msra.mxu0 %v583
  %841 = vmatprep.subr.mxu0 0.0
  %842 = vmatpush1.msra.mxu0 %v580
  %843 = vmatprep.subr.mxu0 0.0
  %844 = vmatpush1.msra.mxu0 %v577
  %845 = vmatprep.subr.mxu0 0.0
  %846 = vmatpush1.msra.mxu0 %v574
  %847 = vmatprep.subr.mxu0 0.0
  %848 = vmatpush1.msra.mxu0 %v571
  %849 = vmatprep.subr.mxu0 0.0
  %850 = vmatpush1.msra.mxu0 %v568
  %851 = vmatprep.subr.mxu0 0.0
  %852 = vmatpush2.msra.mxu0 0.0
  %853 = vmatprep.subr.mxu0 0.0
  %854 = vmatpush2.msra.mxu0 0.0
  %855 = vmatprep.subr.mxu0 0.0
  %856 = vmatpush2.msra.mxu0 0.0
  %857 = vmatprep.subr.mxu0 0.0
  %858 = vmatpush2.msra.mxu0 0.0
  %859 = vmatprep.subr.mxu0 0.0
  %860 = vmatpush2.msra.mxu0 0.0
  %861 = vmatprep.subr.mxu0 0.0
  %862 = vmatpush2.msra.mxu0 0.0
  %863 = vmatprep.subr.mxu0 0.0
  %864 = vmatpush2.msra.mxu0 0.0
  %865 = vmatprep.subr.mxu0 0.0
  %866 = vmatpush2.msra.mxu0 0.0
  %867 = vmatprep.subr.mxu0 0.0
  %868 = vmatpush2.msra.mxu0 0.0
  %869 = vmatprep.subr.mxu0 0.0
  %870 = vmatpush2.msra.mxu0 0.0
  %871 = vmatprep.subr.mxu0 0.0
  %872 = vmatpush2.msra.mxu0 0.0
  %873 = vmatprep.subr.mxu0 0.0
  %874 = vmatpush2.msra.mxu0 0.0
  %875 = vmatprep.subr.mxu0 0.0
  %876 = vmatpush2.msra.mxu0 0.0
  %877 = vmatprep.subr.mxu0 0.0
  %878 = vmatpush2.msra.mxu0 0.0
  %879 = vmatprep.subr.mxu0 0.0
  %880 = vmatpush2.msra.mxu0 0.0
  %881 = vmatprep.subr.mxu0 0.0
  %882 = vmatpush2.msra.mxu0 0.0
  %883 = vmatprep.mubr.f32.mxu0 0.0
  %884 = vmatmul.mubr.f32.gmra.mxu0 %v160
  %v885 = vpop.f32.mrf.mxu0
  %v886 = vadd.f32 %v811, %v885
  %v887 = vpop.f32.mrf.mxu0
  %888 = vmatprep.mubr.f32.mxu0 0.0
  %889 = vmatmul.mubr.f32.gmra.mxu0 %v163
  %v890 = vpop.f32.mrf.mxu0
  %v891 = vadd.f32 %v816, %v890
  %v892 = vpop.f32.mrf.mxu0
  %893 = vdwg.mxu0
  %v894 = vadd.f32 %v309, %v311
  %vm895 = vcmask 64512
  %v896 = vsel %vm895, %v461, 0.0
  %v897 = vadd.f32 %v894, %v896
  %898 = vadd.xlane.f32.xlu0 %v897
  %v899 = vpop.xlane.xlu0 %898
  %v900 = vadd.f32 %v315, %v317
  %v901 = vsel %vm895, %v466, 0.0
  %v902 = vadd.f32 %v900, %v901
  %903 = vadd.xlane.f32.xlu0 %v902
  %v904 = vpop.xlane.xlu0 %903
  %v905 = vadd.f32 %v734, %v736
  %v906 = vsel %vm895, %v886, 0.0
  %v907 = vadd.f32 %v905, %v906
  %908 = vadd.xlane.f32.xlu0 %v907
  %v909 = vpop.xlane.xlu0 %908
  %v910 = vadd.f32 %v740, %v742
  %v911 = vsel %vm895, %v891, 0.0
  %v912 = vadd.f32 %v910, %v911
  %913 = vadd.xlane.f32.xlu0 %v912
  %v914 = vpop.xlane.xlu0 %913
  %v915 = vadd.f32 %v899, %v909
  %v916 = vadd.f32 %v904, %v914
  %v917 = vmul.f32 %v915, 0.0018939395
  %v918 = vmul.f32 %v916, 0.0018939395
  %v919 = vsub.f32 %v309, %v917
  %v920 = vsub.f32 %v311, %v917
  %v921 = vsub.f32 %v461, %v917
  %v922 = vsub.f32 %v315, %v918
  %v923 = vsub.f32 %v317, %v918
  %v924 = vsub.f32 %v466, %v918
  %v925 = vmul.f32 %v919, %v919
  %v926 = vmul.f32 %v920, %v920
  %v927 = vmul.f32 %v921, %v921
  %v928 = vmul.f32 %v922, %v922
  %v929 = vmul.f32 %v923, %v923
  %v930 = vmul.f32 %v924, %v924
  %v931 = vadd.f32 %v925, %v926
  %v932 = vsel %vm895, %v927, 0.0
  %v933 = vadd.f32 %v931, %v932
  %934 = vadd.xlane.f32.xlu0 %v933
  %v935 = vpop.xlane.xlu0 %934
  %v936 = vadd.f32 %v928, %v929
  %v937 = vsel %vm895, %v930, 0.0
  %v938 = vadd.f32 %v936, %v937
  %939 = vadd.xlane.f32.xlu0 %v938
  %v940 = vpop.xlane.xlu0 %939
  %v941 = vsub.f32 %v734, %v917
  %v942 = vsub.f32 %v736, %v917
  %v943 = vsub.f32 %v886, %v917
  %v944 = vsub.f32 %v740, %v918
  %v945 = vsub.f32 %v742, %v918
  %v946 = vsub.f32 %v891, %v918
  %v947 = vmul.f32 %v941, %v941
  %v948 = vmul.f32 %v942, %v942
  %v949 = vmul.f32 %v943, %v943
  %v950 = vmul.f32 %v944, %v944
  %v951 = vmul.f32 %v945, %v945
  %v952 = vmul.f32 %v946, %v946
  %v953 = vadd.f32 %v947, %v948
  %v954 = vsel %vm895, %v949, 0.0
  %v955 = vadd.f32 %v953, %v954
  %956 = vadd.xlane.f32.xlu0 %v955
  %v957 = vpop.xlane.xlu0 %956
  %v958 = vadd.f32 %v950, %v951
  %v959 = vsel %vm895, %v952, 0.0
  %v960 = vadd.f32 %v958, %v959
  %961 = vadd.xlane.f32.xlu0 %v960
  %v962 = vpop.xlane.xlu0 %961
  %v963 = vadd.f32 %v935, %v957
  %v964 = vadd.f32 %v940, %v962
  %v965 = vmul.f32 %v963, 0.0018939395
  %v966 = vmul.f32 %v964, 0.0018939395
  %v967 = vld [vmem:[%s3] sm:$0xff]
  %v968 = vld [vmem:[%s3 + $0x8] sm:$0xff]
  %v969 = vadd.f32 %v965, 1e-05
  %v970 = vadd.f32 %v966, 1e-05
  %v971 = vrsqrt.pop %v969
  %v972 = vrsqrt.pop %v970
  %v973 = vmul.f32 %v967, %v971
  %v974 = vmul.f32 %v968, %v972
  %v975 = vld [vmem:[%s4] sm:$0xff]
  %v976 = vld [vmem:[%s4 + $0x8] sm:$0xff]
  %v977 = vmul.f32 %v917, %v973
  %v978 = vmul.f32 %v918, %v974
  %v979 = vsub.f32 %v975, %v977
  %v980 = vsub.f32 %v976, %v978
  %v981 = vadd.f32 %v309, %v734
  %v982 = vadd.f32 %v311, %v736
  %v983 = vadd.f32 %v461, %v886
  %v984 = vadd.f32 %v315, %v740
  %v985 = vadd.f32 %v317, %v742
  %v986 = vadd.f32 %v466, %v891
  %v987 = vmul.f32 %v981, 0.5
  %v988 = vmul.f32 %v982, 0.5
  %v989 = vmul.f32 %v983, 0.5
  %v990 = vmul.f32 %v984, 0.5
  %v991 = vmul.f32 %v985, 0.5
  %v992 = vmul.f32 %v986, 0.5
  %994 = vset.pattern.permute.xlu0 0
  %995 = vperm.xlu0 %994, %v973
  %v996 = vpop.permute.xlu0 %995
  %999 = vset.pattern.permute.xlu0 0
  %1000 = vperm.xlu0 %999, %v974
  %v1001 = vpop.permute.xlu0 %1000
  %v1003 = vmul.f32 %v987, %v996
  %v1004 = vmul.f32 %v988, %v996
  %v1005 = vmul.f32 %v989, %v996
  %v1006 = vmul.f32 %v990, %v1001
  %v1007 = vmul.f32 %v991, %v1001
  %v1008 = vmul.f32 %v992, %v1001
  %1010 = vset.pattern.permute.xlu0 0
  %1011 = vperm.xlu0 %1010, %v979
  %v1012 = vpop.permute.xlu0 %1011
  %1015 = vset.pattern.permute.xlu0 0
  %1016 = vperm.xlu0 %1015, %v980
  %v1017 = vpop.permute.xlu0 %1016
  %v1019 = vadd.f32 %v1003, %v1012
  %v1020 = vadd.f32 %v1004, %v1012
  %v1021 = vadd.f32 %v1005, %v1012
  %v1022 = vadd.f32 %v1006, %v1017
  %v1023 = vadd.f32 %v1007, %v1017
  %v1024 = vadd.f32 %v1008, %v1017
  %vm1025 = vcmp.gt.f32.partialorder %v1019, 0.0
  %vm1026 = vcmp.gt.f32.partialorder %v1020, 0.0
  %vm1027 = vcmp.gt.f32.partialorder %v1021, 0.0
  %vm1028 = vcmp.gt.f32.partialorder %v1022, 0.0
  %vm1029 = vcmp.gt.f32.partialorder %v1023, 0.0
  %vm1030 = vcmp.gt.f32.partialorder %v1024, 0.0
  %v1031 = vmul.f32 %v1019, 0.2
  %v1032 = vmul.f32 %v1020, 0.2
  %v1033 = vmul.f32 %v1021, 0.2
  %v1034 = vmul.f32 %v1022, 0.2
  %v1035 = vmul.f32 %v1023, 0.2
  %v1036 = vmul.f32 %v1024, 0.2
  %v1037 = vsel %vm1025, %v1019, %v1031
  %v1038 = vsel %vm1026, %v1020, %v1032
  %v1039 = vsel %vm1027, %v1021, %v1033
  %v1040 = vsel %vm1028, %v1022, %v1034
  %v1041 = vsel %vm1029, %v1023, %v1035
  %v1042 = vsel %vm1030, %v1024, %v1036
  %1043 = vst [vmem:[%s5] sm:$0xff] %v1037
  %1044 = vst [vmem:[%s5 + $0x8] sm:$0xff] %v1038
  %1045 = vst.msk [vmem:[%s5 + $0x10] sm:$0xff] %vm895, %v1039
  %1046 = vst [vmem:[%s5 + $0x18] sm:$0xff] %v1040
  %1047 = vst [vmem:[%s5 + $0x20] sm:$0xff] %v1041
  %1048 = vst.msk [vmem:[%s5 + $0x28] sm:$0xff] %vm895, %v1042
  // Predicated region
  $region22: #{_lambda_.6} parent=0 // pred_check
    _
  $region23: #{_lambda_.6} parent=0 // pred_check_branch
    %1050 = sbr.rel (0) target = $region25
  $region24: #{_lambda_.6} parent=0 // pred_region
    _
  $region25: #{_lambda_.6} parent=0 // pred_fallthru
    _
  // Predicated region
  $region26: #{_lambda_.6} parent=0 // pred_check
    _
  $region27: #{_lambda_.6} parent=0 // pred_check_branch
    %1052 = sbr.rel (0) target = $region29
  $region28: #{_lambda_.6} parent=0 // pred_region
    _
  $region29: #{_lambda_.6} parent=0 // pred_fallthru
    _

// kernel: _lambda_.7
$region0: #{_lambda_.7}
  #allocation0 [shape = 'u32[]', space=smem, size = 0x4, offset = 0x4, fixed_abs, tag = 'smem constant byte address 0x4 - core index']
  #allocation1 [shape = 'u32[144,128]{1,0:T(1,128)}', space=vmem, size = 0x12000, scoped, tag = 'internal scratch']
  %s0 = inlined_call_operand.vmem [shape: f32[2,144,160], index: 0, kind: input, shape index: {}]
  %s1 = inlined_call_operand.vmem [shape: f32[32,144], index: 1, kind: input, shape index: {}]
  %s2 = inlined_call_operand.vmem [shape: f32[32,1], index: 2, kind: input, shape index: {}]
  %s3 = inlined_call_operand.vmem [shape: f32[32,1], index: 3, kind: input, shape index: {}]
  %s4 = inlined_call_operand.vmem [shape: f32[32,1], index: 4, kind: input, shape index: {}]
  %s5 = inlined_call_operand.vmem [shape: f32[32,160], index: 5, kind: output, shape index: {}]
  %s6 = sld [smem:[#allocation0]]
  $region30: #{_lambda_.7} parent=0
    _
  %s8 = ssub.s32 1, %s6
  %s9 = scalar_select 0, %s8, %s6
  // Predicated region
  $region2: #{_lambda_.7} parent=0 // pred_check
    _
  $region3: #{_lambda_.7} parent=0 // pred_check_branch
    %11 = sbr.rel (0) target = $region5
  $region4: #{_lambda_.7} parent=0 // pred_region
    _
  $region5: #{_lambda_.7} parent=0 // pred_fallthru
    _
  // Predicated region
  $region6: #{_lambda_.7} parent=0 // pred_check
    _
  $region7: #{_lambda_.7} parent=0 // pred_check_branch
    %13 = sbr.rel (0) target = $region9
  $region8: #{_lambda_.7} parent=0 // pred_region
    _
  $region9: #{_lambda_.7} parent=0 // pred_fallthru
    _
  // Predicated region
  $region10: #{_lambda_.7} parent=0 // pred_check
    _
  $region11: #{_lambda_.7} parent=0 // pred_check_branch
    %15 = sbr.rel (0) target = $region13
  $region12: #{_lambda_.7} parent=0 // pred_region
    _
  $region13: #{_lambda_.7} parent=0 // pred_fallthru
    _
  // Predicated region
  $region14: #{_lambda_.7} parent=0 // pred_check
    _
  $region15: #{_lambda_.7} parent=0 // pred_check_branch
    %17 = sbr.rel (0) target = $region17
  $region16: #{_lambda_.7} parent=0 // pred_region
    _
  $region17: #{_lambda_.7} parent=0 // pred_fallthru
    _
  // Predicated region
  $region18: #{_lambda_.7} parent=0 // pred_check
    _
  $region19: #{_lambda_.7} parent=0 // pred_check_branch
    %19 = sbr.rel (0) target = $region21
  $region20: #{_lambda_.7} parent=0 // pred_region
    _
  $region21: #{_lambda_.7} parent=0 // pred_fallthru
    _
  %v20 = vld [vmem:[%s1] sm:$0xff]
  %v21 = vld [vmem:[%s1 + $0x8] sm:$0xff]
  %v22 = vld [vmem:[%s1 + $0x10] sm:$0xff]
  %v23 = vld [vmem:[%s1 + $0x18] sm:$0xff]
  %v24 = vld [vmem:[%s1 + $0x20] sm:$0xff]
  %v25 = vld [vmem:[%s1 + $0x28] sm:$0xff]
  %v26 = vld [vmem:[%s1 + $0x30] sm:$0xff]
  %v27 = vld [vmem:[%s1 + $0x38] sm:$0xff]
  %v28 = vld [vmem:[%s2] sm:$0xff]
  %v29 = vld [vmem:[%s2 + $0x8] sm:$0xff]
  %v30 = vld [vmem:[%s2 + $0x10] sm:$0xff]
  %v31 = vld [vmem:[%s2 + $0x18] sm:$0xff]
  %v32 = vld [vmem:[%s0] sm:$0xff]
  %v33 = vld [vmem:[%s0 + $0x8] sm:$0xff]
  %v34 = vld [vmem:[%s0 + $0x10] sm:$0xff]
  %v35 = vld [vmem:[%s0 + $0x18] sm:$0xff]
  %v36 = vld [vmem:[%s0 + $0x20] sm:$0xff]
  %v37 = vld [vmem:[%s0 + $0x28] sm:$0xff]
  %v38 = vld [vmem:[%s0 + $0x30] sm:$0xff]
  %v39 = vld [vmem:[%s0 + $0x38] sm:$0xff]
  %v40 = vld [vmem:[%s0 + $0x40] sm:$0xff]
  %v41 = vld [vmem:[%s0 + $0x48] sm:$0xff]
  %v42 = vld [vmem:[%s0 + $0x50] sm:$0xff]
  %v43 = vld [vmem:[%s0 + $0x58] sm:$0xff]
  %v44 = vld [vmem:[%s0 + $0x60] sm:$0xff]
  %v45 = vld [vmem:[%s0 + $0x68] sm:$0xff]
  %v46 = vld [vmem:[%s0 + $0x70] sm:$0xff]
  %v47 = vld [vmem:[%s0 + $0x78] sm:$0xff]
  %v48 = vld [vmem:[%s0 + $0x80] sm:$0xff]
  %v49 = vld [vmem:[%s0 + $0x88] sm:$0xff]
  %v50 = vld [vmem:[%s0 + $0x90] sm:$0xff]
  %v51 = vld [vmem:[%s0 + $0x98] sm:$0xff]
  %v52 = vld [vmem:[%s0 + $0xa0] sm:$0xff]
  %v53 = vld [vmem:[%s0 + $0xa8] sm:$0xff]
  %v54 = vld [vmem:[%s0 + $0xb0] sm:$0xff]
  %v55 = vld [vmem:[%s0 + $0xb8] sm:$0xff]
  %v56 = vld [vmem:[%s0 + $0xc0] sm:$0xff]
  %v57 = vld [vmem:[%s0 + $0xc8] sm:$0xff]
  %v58 = vld [vmem:[%s0 + $0xd0] sm:$0xff]
  %v59 = vld [vmem:[%s0 + $0xd8] sm:$0xff]
  %v60 = vld [vmem:[%s0 + $0xe0] sm:$0xff]
  %v61 = vld [vmem:[%s0 + $0xe8] sm:$0xff]
  %v62 = vld [vmem:[%s0 + $0xf0] sm:$0xff]
  %v63 = vld [vmem:[%s0 + $0xf8] sm:$0xff]
  %v64 = vld [vmem:[%s0 + $0x100] sm:$0xff]
  %v65 = vld [vmem:[%s0 + $0x108] sm:$0xff]
  %v66 = vld [vmem:[%s0 + $0x110] sm:$0xff]
  %v67 = vld [vmem:[%s0 + $0x118] sm:$0xff]
  %69 = vset.pattern.permute.xlu0 0
  %70 = vperm.xlu0 %69, %v28
  %v71 = vpop.permute.xlu0 %70
  %74 = vset.pattern.permute.xlu0 0
  %75 = vperm.xlu0 %74, %v29
  %v76 = vpop.permute.xlu0 %75
  %79 = vset.pattern.permute.xlu0 0
  %80 = vperm.xlu0 %79, %v30
  %v81 = vpop.permute.xlu0 %80
  %84 = vset.pattern.permute.xlu0 0
  %85 = vperm.xlu0 %84, %v31
  %v86 = vpop.permute.xlu0 %85
  %vm88 = vcmask 130048
  %v90 = vsel %vm88, %v21, 0
  %v93 = vsel %vm88, %v23, 0
  %v96 = vsel %vm88, %v25, 0
  %v99 = vsel %vm88, %v27, 0
  %101 = vmatprep.subr.mxu0 %v63
  %102 = vmatpush1.msra.mxu0 %v62
  %103 = vmatprep.subr.mxu0 %v61
  %104 = vmatpush1.msra.mxu0 %v60
  %105 = vmatprep.subr.mxu0 %v59
  %106 = vmatpush1.msra.mxu0 %v58
  %107 = vmatprep.subr.mxu0 %v57
  %108 = vmatpush1.msra.mxu0 %v56
  %109 = vmatprep.subr.mxu0 %v55
  %110 = vmatpush1.msra.mxu0 %v54
  %111 = vmatprep.subr.mxu0 %v53
  %112 = vmatpush1.msra.mxu0 %v52
  %113 = vmatprep.subr.mxu0 %v51
  %114 = vmatpush1.msra.mxu0 %v50
  %115 = vmatprep.subr.mxu0 %v49
  %116 = vmatpush1.msra.mxu0 %v48
  %117 = vmatprep.subr.mxu0 %v47
  %118 = vmatpush1.msra.mxu0 %v46
  %119 = vmatprep.subr.mxu0 %v45
  %120 = vmatpush1.msra.mxu0 %v44
  %121 = vmatprep.subr.mxu0 %v43
  %122 = vmatpush1.msra.mxu0 %v42
  %123 = vmatprep.subr.mxu0 %v41
  %124 = vmatpush1.msra.mxu0 %v40
  %125 = vmatprep.subr.mxu0 %v39
  %126 = vmatpush1.msra.mxu0 %v38
  %127 = vmatprep.subr.mxu0 %v37
  %128 = vmatpush1.msra.mxu0 %v36
  %129 = vmatprep.subr.mxu0 %v35
  %130 = vmatpush1.msra.mxu0 %v34
  %131 = vmatprep.subr.mxu0 %v33
  %132 = vmatpush1.msra.mxu0 %v32
  %133 = vmatprep.subr.mxu0 0.0
  %134 = vmatpush2.msra.mxu0 0.0
  %135 = vmatprep.subr.mxu0 0.0
  %136 = vmatpush2.msra.mxu0 0.0
  %137 = vmatprep.subr.mxu0 0.0
  %138 = vmatpush2.msra.mxu0 0.0
  %139 = vmatprep.subr.mxu0 0.0
  %140 = vmatpush2.msra.mxu0 0.0
  %141 = vmatprep.subr.mxu0 0.0
  %142 = vmatpush2.msra.mxu0 0.0
  %143 = vmatprep.subr.mxu0 0.0
  %144 = vmatpush2.msra.mxu0 0.0
  %145 = vmatprep.subr.mxu0 0.0
  %146 = vmatpush2.msra.mxu0 0.0
  %147 = vmatprep.subr.mxu0 0.0
  %148 = vmatpush2.msra.mxu0 0.0
  %149 = vmatprep.subr.mxu0 0.0
  %150 = vmatpush2.msra.mxu0 0.0
  %151 = vmatprep.subr.mxu0 0.0
  %152 = vmatpush2.msra.mxu0 0.0
  %153 = vmatprep.subr.mxu0 0.0
  %154 = vmatpush2.msra.mxu0 0.0
  %155 = vmatprep.subr.mxu0 0.0
  %156 = vmatpush2.msra.mxu0 0.0
  %157 = vmatprep.subr.mxu0 0.0
  %158 = vmatpush2.msra.mxu0 0.0
  %159 = vmatprep.subr.mxu0 0.0
  %160 = vmatpush2.msra.mxu0 0.0
  %161 = vmatprep.subr.mxu0 %v67
  %162 = vmatpush2.msra.mxu0 %v66
  %163 = vmatprep.subr.mxu0 %v65
  %164 = vmatpush2.msra.mxu0 %v64
  %165 = vmatprep.mubr.f32.mxu0 %v90
  %166 = vmatmul.mubr.f32.gmra.mxu0 %v20
  %v167 = vpop.f32.mrf.mxu0
  %v168 = vadd.f32 %v71, %v167
  %v169 = vpop.f32.mrf.mxu0
  %v170 = vadd.f32 %v71, %v169
  %171 = vmatprep.mubr.f32.mxu0 %v93
  %172 = vmatmul.mubr.f32.gmra.mxu0 %v22
  %v173 = vpop.f32.mrf.mxu0
  %v174 = vadd.f32 %v76, %v173
  %v175 = vpop.f32.mrf.mxu0
  %v176 = vadd.f32 %v76, %v175
  %177 = vmatprep.mubr.f32.mxu0 %v96
  %178 = vmatmul.mubr.f32.gmra.mxu0 %v24
  %v179 = vpop.f32.mrf.mxu0
  %v180 = vadd.f32 %v81, %v179
  %v181 = vpop.f32.mrf.mxu0
  %v182 = vadd.f32 %v81, %v181
  %183 = vmatprep.mubr.f32.mxu0 %v99
  %184 = vmatmul.mubr.f32.gmra.mxu0 %v26
  %v185 = vpop.f32.mrf.mxu0
  %v186 = vadd.f32 %v86, %v185
  %v187 = vpop.f32.mrf.mxu0
  %v188 = vadd.f32 %v86, %v187
  %189 = vdwg.mxu0
  %s190 = scalar_lea.vmem %s0, 288
  %v191 = vld [vmem:[%s190] sm:$0xff]
  %v192 = vld [vmem:[%s190 + $0x8] sm:$0xff]
  %v193 = vld [vmem:[%s190 + $0x10] sm:$0xff]
  %v194 = vld [vmem:[%s190 + $0x18] sm:$0xff]
  %v195 = vld [vmem:[%s190 + $0x20] sm:$0xff]
  %v196 = vld [vmem:[%s190 + $0x28] sm:$0xff]
  %v197 = vld [vmem:[%s190 + $0x30] sm:$0xff]
  %v198 = vld [vmem:[%s190 + $0x38] sm:$0xff]
  %v199 = vld [vmem:[%s190 + $0x40] sm:$0xff]
  %v200 = vld [vmem:[%s190 + $0x48] sm:$0xff]
  %v201 = vld [vmem:[%s190 + $0x50] sm:$0xff]
  %v202 = vld [vmem:[%s190 + $0x58] sm:$0xff]
  %v203 = vld [vmem:[%s190 + $0x60] sm:$0xff]
  %v204 = vld [vmem:[%s190 + $0x68] sm:$0xff]
  %v205 = vld [vmem:[%s190 + $0x70] sm:$0xff]
  %v206 = vld [vmem:[%s190 + $0x78] sm:$0xff]
  %v207 = vld [vmem:[%s190 + $0x80] sm:$0xff]
  %v208 = vld [vmem:[%s190 + $0x88] sm:$0xff]
  %v209 = vld [vmem:[%s190 + $0x90] sm:$0xff]
  %v210 = vld [vmem:[%s190 + $0x98] sm:$0xff]
  %v211 = vld [vmem:[%s190 + $0xa0] sm:$0xff]
  %v212 = vld [vmem:[%s190 + $0xa8] sm:$0xff]
  %v213 = vld [vmem:[%s190 + $0xb0] sm:$0xff]
  %v214 = vld [vmem:[%s190 + $0xb8] sm:$0xff]
  %v215 = vld [vmem:[%s190 + $0xc0] sm:$0xff]
  %v216 = vld [vmem:[%s190 + $0xc8] sm:$0xff]
  %v217 = vld [vmem:[%s190 + $0xd0] sm:$0xff]
  %v218 = vld [vmem:[%s190 + $0xd8] sm:$0xff]
  %v219 = vld [vmem:[%s190 + $0xe0] sm:$0xff]
  %v220 = vld [vmem:[%s190 + $0xe8] sm:$0xff]
  %v221 = vld [vmem:[%s190 + $0xf0] sm:$0xff]
  %v222 = vld [vmem:[%s190 + $0xf8] sm:$0xff]
  %v223 = vld [vmem:[%s190 + $0x100] sm:$0xff]
  %v224 = vld [vmem:[%s190 + $0x108] sm:$0xff]
  %v225 = vld [vmem:[%s190 + $0x110] sm:$0xff]
  %v226 = vld [vmem:[%s190 + $0x118] sm:$0xff]
  %227 = vmatprep.subr.mxu0 %v222
  %228 = vmatpush1.msra.mxu0 %v221
  %229 = vmatprep.subr.mxu0 %v220
  %230 = vmatpush1.msra.mxu0 %v219
  %231 = vmatprep.subr.mxu0 %v218
  %232 = vmatpush1.msra.mxu0 %v217
  %233 = vmatprep.subr.mxu0 %v216
  %234 = vmatpush1.msra.mxu0 %v215
  %235 = vmatprep.subr.mxu0 %v214
  %236 = vmatpush1.msra.mxu0 %v213
  %237 = vmatprep.subr.mxu0 %v212
  %238 = vmatpush1.msra.mxu0 %v211
  %239 = vmatprep.subr.mxu0 %v210
  %240 = vmatpush1.msra.mxu0 %v209
  %241 = vmatprep.subr.mxu0 %v208
  %242 = vmatpush1.msra.mxu0 %v207
  %243 = vmatprep.subr.mxu0 %v206
  %244 = vmatpush1.msra.mxu0 %v205
  %245 = vmatprep.subr.mxu0 %v204
  %246 = vmatpush1.msra.mxu0 %v203
  %247 = vmatprep.subr.mxu0 %v202
  %248 = vmatpush1.msra.mxu0 %v201
  %249 = vmatprep.subr.mxu0 %v200
  %250 = vmatpush1.msra.mxu0 %v199
  %251 = vmatprep.subr.mxu0 %v198
  %252 = vmatpush1.msra.mxu0 %v197
  %253 = vmatprep.subr.mxu0 %v196
  %254 = vmatpush1.msra.mxu0 %v195
  %255 = vmatprep.subr.mxu0 %v194
  %256 = vmatpush1.msra.mxu0 %v193
  %257 = vmatprep.subr.mxu0 %v192
  %258 = vmatpush1.msra.mxu0 %v191
  %259 = vmatprep.subr.mxu0 0.0
  %260 = vmatpush2.msra.mxu0 0.0
  %261 = vmatprep.subr.mxu0 0.0
  %262 = vmatpush2.msra.mxu0 0.0
  %263 = vmatprep.subr.mxu0 0.0
  %264 = vmatpush2.msra.mxu0 0.0
  %265 = vmatprep.subr.mxu0 0.0
  %266 = vmatpush2.msra.mxu0 0.0
  %267 = vmatprep.subr.mxu0 0.0
  %268 = vmatpush2.msra.mxu0 0.0
  %269 = vmatprep.subr.mxu0 0.0
  %270 = vmatpush2.msra.mxu0 0.0
  %271 = vmatprep.subr.mxu0 0.0
  %272 = vmatpush2.msra.mxu0 0.0
  %273 = vmatprep.subr.mxu0 0.0
  %274 = vmatpush2.msra.mxu0 0.0
  %275 = vmatprep.subr.mxu0 0.0
  %276 = vmatpush2.msra.mxu0 0.0
  %277 = vmatprep.subr.mxu0 0.0
  %278 = vmatpush2.msra.mxu0 0.0
  %279 = vmatprep.subr.mxu0 0.0
  %280 = vmatpush2.msra.mxu0 0.0
  %281 = vmatprep.subr.mxu0 0.0
  %282 = vmatpush2.msra.mxu0 0.0
  %283 = vmatprep.subr.mxu0 0.0
  %284 = vmatpush2.msra.mxu0 0.0
  %285 = vmatprep.subr.mxu0 0.0
  %286 = vmatpush2.msra.mxu0 0.0
  %287 = vmatprep.subr.mxu0 %v226
  %288 = vmatpush2.msra.mxu0 %v225
  %289 = vmatprep.subr.mxu0 %v224
  %290 = vmatpush2.msra.mxu0 %v223
  %291 = vmatprep.mubr.f32.mxu0 %v90
  %292 = vmatmul.mubr.f32.gmra.mxu0 %v20
  %v293 = vpop.f32.mrf.mxu0
  %v294 = vadd.f32 %v71, %v293
  %v295 = vpop.f32.mrf.mxu0
  %v296 = vadd.f32 %v71, %v295
  %297 = vmatprep.mubr.f32.mxu0 %v93
  %298 = vmatmul.mubr.f32.gmra.mxu0 %v22
  %v299 = vpop.f32.mrf.mxu0
  %v300 = vadd.f32 %v76, %v299
  %v301 = vpop.f32.mrf.mxu0
  %v302 = vadd.f32 %v76, %v301
  %303 = vmatprep.mubr.f32.mxu0 %v96
  %304 = vmatmul.mubr.f32.gmra.mxu0 %v24
  %v305 = vpop.f32.mrf.mxu0
  %v306 = vadd.f32 %v81, %v305
  %v307 = vpop.f32.mrf.mxu0
  %v308 = vadd.f32 %v81, %v307
  %309 = vmatprep.mubr.f32.mxu0 %v99
  %310 = vmatmul.mubr.f32.gmra.mxu0 %v26
  %v311 = vpop.f32.mrf.mxu0
  %v312 = vadd.f32 %v86, %v311
  %v313 = vpop.f32.mrf.mxu0
  %v314 = vadd.f32 %v86, %v313
  %315 = vdwg.mxu0
  %vm316 = vcmask 261120
  %v317 = vsel %vm316, %v170, 0.0
  %v318 = vadd.f32 %v168, %v317
  %319 = vadd.xlane.f32.xlu0 %v318
  %v320 = vpop.xlane.xlu0 %319
  %v321 = vsel %vm316, %v176, 0.0
  %v322 = vadd.f32 %v174, %v321
  %323 = vadd.xlane.f32.xlu0 %v322
  %v324 = vpop.xlane.xlu0 %323
  %v325 = vsel %vm316, %v182, 0.0
  %v326 = vadd.f32 %v180, %v325
  %327 = vadd.xlane.f32.xlu0 %v326
  %v328 = vpop.xlane.xlu0 %327
  %v329 = vsel %vm316, %v188, 0.0
  %v330 = vadd.f32 %v186, %v329
  %331 = vadd.xlane.f32.xlu0 %v330
  %v332 = vpop.xlane.xlu0 %331
  %v333 = vsel %vm316, %v296, 0.0
  %v334 = vadd.f32 %v294, %v333
  %335 = vadd.xlane.f32.xlu0 %v334
  %v336 = vpop.xlane.xlu0 %335
  %v337 = vsel %vm316, %v302, 0.0
  %v338 = vadd.f32 %v300, %v337
  %339 = vadd.xlane.f32.xlu0 %v338
  %v340 = vpop.xlane.xlu0 %339
  %v341 = vsel %vm316, %v308, 0.0
  %v342 = vadd.f32 %v306, %v341
  %343 = vadd.xlane.f32.xlu0 %v342
  %v344 = vpop.xlane.xlu0 %343
  %v345 = vsel %vm316, %v314, 0.0
  %v346 = vadd.f32 %v312, %v345
  %347 = vadd.xlane.f32.xlu0 %v346
  %v348 = vpop.xlane.xlu0 %347
  %v349 = vadd.f32 %v320, %v336
  %v350 = vadd.f32 %v324, %v340
  %v351 = vadd.f32 %v328, %v344
  %v352 = vadd.f32 %v332, %v348
  %v353 = vmul.f32 %v349, 0.003125
  %v354 = vmul.f32 %v350, 0.003125
  %v355 = vmul.f32 %v351, 0.003125
  %v356 = vmul.f32 %v352, 0.003125
  %v357 = vsub.f32 %v168, %v353
  %v358 = vsub.f32 %v170, %v353
  %v359 = vsub.f32 %v174, %v354
  %v360 = vsub.f32 %v176, %v354
  %v361 = vsub.f32 %v180, %v355
  %v362 = vsub.f32 %v182, %v355
  %v363 = vsub.f32 %v186, %v356
  %v364 = vsub.f32 %v188, %v356
  %v365 = vmul.f32 %v357, %v357
  %v366 = vmul.f32 %v358, %v358
  %v367 = vmul.f32 %v359, %v359
  %v368 = vmul.f32 %v360, %v360
  %v369 = vmul.f32 %v361, %v361
  %v370 = vmul.f32 %v362, %v362
  %v371 = vmul.f32 %v363, %v363
  %v372 = vmul.f32 %v364, %v364
  %v373 = vsel %vm316, %v366, 0.0
  %v374 = vadd.f32 %v365, %v373
  %375 = vadd.xlane.f32.xlu0 %v374
  %v376 = vpop.xlane.xlu0 %375
  %v377 = vsel %vm316, %v368, 0.0
  %v378 = vadd.f32 %v367, %v377
  %379 = vadd.xlane.f32.xlu0 %v378
  %v380 = vpop.xlane.xlu0 %379
  %v381 = vsel %vm316, %v370, 0.0
  %v382 = vadd.f32 %v369, %v381
  %383 = vadd.xlane.f32.xlu0 %v382
  %v384 = vpop.xlane.xlu0 %383
  %v385 = vsel %vm316, %v372, 0.0
  %v386 = vadd.f32 %v371, %v385
  %387 = vadd.xlane.f32.xlu0 %v386
  %v388 = vpop.xlane.xlu0 %387
  %v389 = vsub.f32 %v294, %v353
  %v390 = vsub.f32 %v296, %v353
  %v391 = vsub.f32 %v300, %v354
  %v392 = vsub.f32 %v302, %v354
  %v393 = vsub.f32 %v306, %v355
  %v394 = vsub.f32 %v308, %v355
  %v395 = vsub.f32 %v312, %v356
  %v396 = vsub.f32 %v314, %v356
  %v397 = vmul.f32 %v389, %v389
  %v398 = vmul.f32 %v390, %v390
  %v399 = vmul.f32 %v391, %v391
  %v400 = vmul.f32 %v392, %v392
  %v401 = vmul.f32 %v393, %v393
  %v402 = vmul.f32 %v394, %v394
  %v403 = vmul.f32 %v395, %v395
  %v404 = vmul.f32 %v396, %v396
  %v405 = vsel %vm316, %v398, 0.0
  %v406 = vadd.f32 %v397, %v405
  %407 = vadd.xlane.f32.xlu0 %v406
  %v408 = vpop.xlane.xlu0 %407
  %v409 = vsel %vm316, %v400, 0.0
  %v410 = vadd.f32 %v399, %v409
  %411 = vadd.xlane.f32.xlu0 %v410
  %v412 = vpop.xlane.xlu0 %411
  %v413 = vsel %vm316, %v402, 0.0
  %v414 = vadd.f32 %v401, %v413
  %415 = vadd.xlane.f32.xlu0 %v414
  %v416 = vpop.xlane.xlu0 %415
  %v417 = vsel %vm316, %v404, 0.0
  %v418 = vadd.f32 %v403, %v417
  %419 = vadd.xlane.f32.xlu0 %v418
  %v420 = vpop.xlane.xlu0 %419
  %v421 = vadd.f32 %v376, %v408
  %v422 = vadd.f32 %v380, %v412
  %v423 = vadd.f32 %v384, %v416
  %v424 = vadd.f32 %v388, %v420
  %v425 = vmul.f32 %v421, 0.003125
  %v426 = vmul.f32 %v422, 0.003125
  %v427 = vmul.f32 %v423, 0.003125
  %v428 = vmul.f32 %v424, 0.003125
  %v429 = vld [vmem:[%s3] sm:$0xff]
  %v430 = vld [vmem:[%s3 + $0x8] sm:$0xff]
  %v431 = vld [vmem:[%s3 + $0x10] sm:$0xff]
  %v432 = vld [vmem:[%s3 + $0x18] sm:$0xff]
  %v433 = vadd.f32 %v425, 1e-05
  %v434 = vadd.f32 %v426, 1e-05
  %v435 = vadd.f32 %v427, 1e-05
  %v436 = vadd.f32 %v428, 1e-05
  %v437 = vrsqrt.pop %v433
  %v438 = vrsqrt.pop %v434
  %v439 = vrsqrt.pop %v435
  %v440 = vrsqrt.pop %v436
  %v441 = vmul.f32 %v429, %v437
  %v442 = vmul.f32 %v430, %v438
  %v443 = vmul.f32 %v431, %v439
  %v444 = vmul.f32 %v432, %v440
  %v445 = vld [vmem:[%s4] sm:$0xff]
  %v446 = vld [vmem:[%s4 + $0x8] sm:$0xff]
  %v447 = vld [vmem:[%s4 + $0x10] sm:$0xff]
  %v448 = vld [vmem:[%s4 + $0x18] sm:$0xff]
  %v449 = vmul.f32 %v353, %v441
  %v450 = vmul.f32 %v354, %v442
  %v451 = vmul.f32 %v355, %v443
  %v452 = vmul.f32 %v356, %v444
  %v453 = vsub.f32 %v445, %v449
  %v454 = vsub.f32 %v446, %v450
  %v455 = vsub.f32 %v447, %v451
  %v456 = vsub.f32 %v448, %v452
  %v457 = vadd.f32 %v168, %v294
  %v458 = vadd.f32 %v170, %v296
  %v459 = vadd.f32 %v174, %v300
  %v460 = vadd.f32 %v176, %v302
  %v461 = vadd.f32 %v180, %v306
  %v462 = vadd.f32 %v182, %v308
  %v463 = vadd.f32 %v186, %v312
  %v464 = vadd.f32 %v188, %v314
  %v465 = vmul.f32 %v457, 0.5
  %v466 = vmul.f32 %v458, 0.5
  %v467 = vmul.f32 %v459, 0.5
  %v468 = vmul.f32 %v460, 0.5
  %v469 = vmul.f32 %v461, 0.5
  %v470 = vmul.f32 %v462, 0.5
  %v471 = vmul.f32 %v463, 0.5
  %v472 = vmul.f32 %v464, 0.5
  %474 = vset.pattern.permute.xlu0 0
  %475 = vperm.xlu0 %474, %v441
  %v476 = vpop.permute.xlu0 %475
  %479 = vset.pattern.permute.xlu0 0
  %480 = vperm.xlu0 %479, %v442
  %v481 = vpop.permute.xlu0 %480
  %484 = vset.pattern.permute.xlu0 0
  %485 = vperm.xlu0 %484, %v443
  %v486 = vpop.permute.xlu0 %485
  %489 = vset.pattern.permute.xlu0 0
  %490 = vperm.xlu0 %489, %v444
  %v491 = vpop.permute.xlu0 %490
  %v493 = vmul.f32 %v465, %v476
  %v494 = vmul.f32 %v466, %v476
  %v495 = vmul.f32 %v467, %v481
  %v496 = vmul.f32 %v468, %v481
  %v497 = vmul.f32 %v469, %v486
  %v498 = vmul.f32 %v470, %v486
  %v499 = vmul.f32 %v471, %v491
  %v500 = vmul.f32 %v472, %v491
  %502 = vset.pattern.permute.xlu0 0
  %503 = vperm.xlu0 %502, %v453
  %v504 = vpop.permute.xlu0 %503
  %507 = vset.pattern.permute.xlu0 0
  %508 = vperm.xlu0 %507, %v454
  %v509 = vpop.permute.xlu0 %508
  %512 = vset.pattern.permute.xlu0 0
  %513 = vperm.xlu0 %512, %v455
  %v514 = vpop.permute.xlu0 %513
  %517 = vset.pattern.permute.xlu0 0
  %518 = vperm.xlu0 %517, %v456
  %v519 = vpop.permute.xlu0 %518
  %v521 = vadd.f32 %v493, %v504
  %v522 = vadd.f32 %v494, %v504
  %v523 = vadd.f32 %v495, %v509
  %v524 = vadd.f32 %v496, %v509
  %v525 = vadd.f32 %v497, %v514
  %v526 = vadd.f32 %v498, %v514
  %v527 = vadd.f32 %v499, %v519
  %v528 = vadd.f32 %v500, %v519
  %vm529 = vcmp.gt.f32.partialorder %v521, 0.0
  %vm530 = vcmp.gt.f32.partialorder %v522, 0.0
  %vm531 = vcmp.gt.f32.partialorder %v523, 0.0
  %vm532 = vcmp.gt.f32.partialorder %v524, 0.0
  %vm533 = vcmp.gt.f32.partialorder %v525, 0.0
  %vm534 = vcmp.gt.f32.partialorder %v526, 0.0
  %vm535 = vcmp.gt.f32.partialorder %v527, 0.0
  %vm536 = vcmp.gt.f32.partialorder %v528, 0.0
  %v537 = vmul.f32 %v521, 0.2
  %v538 = vmul.f32 %v522, 0.2
  %v539 = vmul.f32 %v523, 0.2
  %v540 = vmul.f32 %v524, 0.2
  %v541 = vmul.f32 %v525, 0.2
  %v542 = vmul.f32 %v526, 0.2
  %v543 = vmul.f32 %v527, 0.2
  %v544 = vmul.f32 %v528, 0.2
  %v545 = vsel %vm529, %v521, %v537
  %v546 = vsel %vm530, %v522, %v538
  %v547 = vsel %vm531, %v523, %v539
  %v548 = vsel %vm532, %v524, %v540
  %v549 = vsel %vm533, %v525, %v541
  %v550 = vsel %vm534, %v526, %v542
  %v551 = vsel %vm535, %v527, %v543
  %v552 = vsel %vm536, %v528, %v544
  %553 = vst [vmem:[%s5] sm:$0xff] %v545
  %554 = vst.msk [vmem:[%s5 + $0x8] sm:$0xff] %vm316, %v546
  %555 = vst [vmem:[%s5 + $0x10] sm:$0xff] %v547
  %556 = vst.msk [vmem:[%s5 + $0x18] sm:$0xff] %vm316, %v548
  %557 = vst [vmem:[%s5 + $0x20] sm:$0xff] %v549
  %558 = vst.msk [vmem:[%s5 + $0x28] sm:$0xff] %vm316, %v550
  %559 = vst [vmem:[%s5 + $0x30] sm:$0xff] %v551
  %560 = vst.msk [vmem:[%s5 + $0x38] sm:$0xff] %vm316, %v552
  // Predicated region
  $region22: #{_lambda_.7} parent=0 // pred_check
    _
  $region23: #{_lambda_.7} parent=0 // pred_check_branch
    %562 = sbr.rel (0) target = $region25
  $region24: #{_lambda_.7} parent=0 // pred_region
    _
  $region25: #{_lambda_.7} parent=0 // pred_fallthru
    _
  // Predicated region
  $region26: #{_lambda_.7} parent=0 // pred_check
    _
  $region27: #{_lambda_.7} parent=0 // pred_check_branch
    %564 = sbr.rel (0) target = $region29
  $region28: #{_lambda_.7} parent=0 // pred_region
    _
  $region29: #{_lambda_.7} parent=0 // pred_fallthru
    _

// kernel: _lambda_.8
$region0: #{_lambda_.8}
  #allocation0 [shape = 'u32[]', space=smem, size = 0x4, offset = 0x4, fixed_abs, tag = 'smem constant byte address 0x4 - core index']
  #allocation1 [shape = 'u32[144,128]{1,0:T(1,128)}', space=vmem, size = 0x12000, scoped, tag = 'internal scratch']
  %s0 = inlined_call_operand.vmem [shape: f32[4,288,40], index: 0, kind: input, shape index: {}]
  %s1 = inlined_call_operand.vmem [shape: f32[64,288], index: 1, kind: input, shape index: {}]
  %s2 = inlined_call_operand.vmem [shape: f32[64,1], index: 2, kind: input, shape index: {}]
  %s3 = inlined_call_operand.vmem [shape: f32[64,1], index: 3, kind: input, shape index: {}]
  %s4 = inlined_call_operand.vmem [shape: f32[64,1], index: 4, kind: input, shape index: {}]
  %s5 = inlined_call_operand.vmem [shape: f32[64,40], index: 5, kind: output, shape index: {}]
  %s6 = sld [smem:[#allocation0]]
  $region30: #{_lambda_.8} parent=0
    _
  %s8 = ssub.s32 1, %s6
  %s9 = scalar_select 0, %s8, %s6
  // Predicated region
  $region2: #{_lambda_.8} parent=0 // pred_check
    _
  $region3: #{_lambda_.8} parent=0 // pred_check_branch
    %11 = sbr.rel (0) target = $region5
  $region4: #{_lambda_.8} parent=0 // pred_region
    _
  $region5: #{_lambda_.8} parent=0 // pred_fallthru
    _
  // Predicated region
  $region6: #{_lambda_.8} parent=0 // pred_check
    _
  $region7: #{_lambda_.8} parent=0 // pred_check_branch
    %13 = sbr.rel (0) target = $region9
  $region8: #{_lambda_.8} parent=0 // pred_region
    _
  $region9: #{_lambda_.8} parent=0 // pred_fallthru
    _
  // Predicated region
  $region10: #{_lambda_.8} parent=0 // pred_check
    _
  $region11: #{_lambda_.8} parent=0 // pred_check_branch
    %15 = sbr.rel (0) target = $region13
  $region12: #{_lambda_.8} parent=0 // pred_region
    _
  $region13: #{_lambda_.8} parent=0 // pred_fallthru
    _
  // Predicated region
  $region14: #{_lambda_.8} parent=0 // pred_check
    _
  $region15: #{_lambda_.8} parent=0 // pred_check_branch
    %17 = sbr.rel (0) target = $region17
  $region16: #{_lambda_.8} parent=0 // pred_region
    _
  $region17: #{_lambda_.8} parent=0 // pred_fallthru
    _
  // Predicated region
  $region18: #{_lambda_.8} parent=0 // pred_check
    _
  $region19: #{_lambda_.8} parent=0 // pred_check_branch
    %19 = sbr.rel (0) target = $region21
  $region20: #{_lambda_.8} parent=0 // pred_region
    _
  $region21: #{_lambda_.8} parent=0 // pred_fallthru
    _
  %v20 = vld [vmem:[%s1] sm:$0xff]
  %v21 = vld [vmem:[%s1 + $0x8] sm:$0xff]
  %v22 = vld [vmem:[%s1 + $0x10] sm:$0xff]
  %v23 = vld [vmem:[%s1 + $0x18] sm:$0xff]
  %v24 = vld [vmem:[%s1 + $0x20] sm:$0xff]
  %v25 = vld [vmem:[%s1 + $0x28] sm:$0xff]
  %v26 = vld [vmem:[%s1 + $0x30] sm:$0xff]
  %v27 = vld [vmem:[%s1 + $0x38] sm:$0xff]
  %v28 = vld [vmem:[%s1 + $0x40] sm:$0xff]
  %v29 = vld [vmem:[%s1 + $0x48] sm:$0xff]
  %v30 = vld [vmem:[%s1 + $0x50] sm:$0xff]
  %v31 = vld [vmem:[%s1 + $0x58] sm:$0xff]
  %v32 = vld [vmem:[%s1 + $0x60] sm:$0xff]
  %v33 = vld [vmem:[%s1 + $0x68] sm:$0xff]
  %v34 = vld [vmem:[%s1 + $0x70] sm:$0xff]
  %v35 = vld [vmem:[%s1 + $0x78] sm:$0xff]
  %v36 = vld [vmem:[%s1 + $0x80] sm:$0xff]
  %v37 = vld [vmem:[%s1 + $0x88] sm:$0xff]
  %v38 = vld [vmem:[%s1 + $0x90] sm:$0xff]
  %v39 = vld [vmem:[%s1 + $0x98] sm:$0xff]
  %v40 = vld [vmem:[%s1 + $0xa0] sm:$0xff]
  %v41 = vld [vmem:[%s1 + $0xa8] sm:$0xff]
  %v42 = vld [vmem:[%s1 + $0xb0] sm:$0xff]
  %v43 = vld [vmem:[%s1 + $0xb8] sm:$0xff]
  %v44 = vld [vmem:[%s2] sm:$0xff]
  %v45 = vld [vmem:[%s2 + $0x8] sm:$0xff]
  %v46 = vld [vmem:[%s2 + $0x10] sm:$0xff]
  %v47 = vld [vmem:[%s2 + $0x18] sm:$0xff]
  %v48 = vld [vmem:[%s2 + $0x20] sm:$0xff]
  %v49 = vld [vmem:[%s2 + $0x28] sm:$0xff]
  %v50 = vld [vmem:[%s2 + $0x30] sm:$0xff]
  %v51 = vld [vmem:[%s2 + $0x38] sm:$0xff]
  %v52 = vld [vmem:[%s0] sm:$0xff]
  %v53 = vld [vmem:[%s0 + $0x8] sm:$0xff]
  %v54 = vld [vmem:[%s0 + $0x10] sm:$0xff]
  %v55 = vld [vmem:[%s0 + $0x18] sm:$0xff]
  %v56 = vld [vmem:[%s0 + $0x20] sm:$0xff]
  %v57 = vld [vmem:[%s0 + $0x28] sm:$0xff]
  %v58 = vld [vmem:[%s0 + $0x30] sm:$0xff]
  %v59 = vld [vmem:[%s0 + $0x38] sm:$0xff]
  %v60 = vld [vmem:[%s0 + $0x40] sm:$0xff]
  %v61 = vld [vmem:[%s0 + $0x48] sm:$0xff]
  %v62 = vld [vmem:[%s0 + $0x50] sm:$0xff]
  %v63 = vld [vmem:[%s0 + $0x58] sm:$0xff]
  %v64 = vld [vmem:[%s0 + $0x60] sm:$0xff]
  %v65 = vld [vmem:[%s0 + $0x68] sm:$0xff]
  %v66 = vld [vmem:[%s0 + $0x70] sm:$0xff]
  %v67 = vld [vmem:[%s0 + $0x78] sm:$0xff]
  %v68 = vld [vmem:[%s0 + $0x80] sm:$0xff]
  %v69 = vld [vmem:[%s0 + $0x88] sm:$0xff]
  %v70 = vld [vmem:[%s0 + $0x90] sm:$0xff]
  %v71 = vld [vmem:[%s0 + $0x98] sm:$0xff]
  %v72 = vld [vmem:[%s0 + $0xa0] sm:$0xff]
  %v73 = vld [vmem:[%s0 + $0xa8] sm:$0xff]
  %v74 = vld [vmem:[%s0 + $0xb0] sm:$0xff]
  %v75 = vld [vmem:[%s0 + $0xb8] sm:$0xff]
  %v76 = vld [vmem:[%s0 + $0xc0] sm:$0xff]
  %v77 = vld [vmem:[%s0 + $0xc8] sm:$0xff]
  %v78 = vld [vmem:[%s0 + $0xd0] sm:$0xff]
  %v79 = vld [vmem:[%s0 + $0xd8] sm:$0xff]
  %v80 = vld [vmem:[%s0 + $0xe0] sm:$0xff]
  %v81 = vld [vmem:[%s0 + $0xe8] sm:$0xff]
  %v82 = vld [vmem:[%s0 + $0xf0] sm:$0xff]
  %v83 = vld [vmem:[%s0 + $0xf8] sm:$0xff]
  %v84 = vld [vmem:[%s0 + $0x100] sm:$0xff]
  %v85 = vld [vmem:[%s0 + $0x108] sm:$0xff]
  %v86 = vld [vmem:[%s0 + $0x110] sm:$0xff]
  %v87 = vld [vmem:[%s0 + $0x118] sm:$0xff]
  %89 = vset.pattern.permute.xlu0 0
  %90 = vperm.xlu0 %89, %v44
  %v91 = vpop.permute.xlu0 %90
  %94 = vset.pattern.permute.xlu0 0
  %95 = vperm.xlu0 %94, %v45
  %v96 = vpop.permute.xlu0 %95
  %99 = vset.pattern.permute.xlu0 0
  %100 = vperm.xlu0 %99, %v46
  %v101 = vpop.permute.xlu0 %100
  %104 = vset.pattern.permute.xlu0 0
  %105 = vperm.xlu0 %104, %v47
  %v106 = vpop.permute.xlu0 %105
  %109 = vset.pattern.permute.xlu0 0
  %110 = vperm.xlu0 %109, %v48
  %v111 = vpop.permute.xlu0 %110
  %114 = vset.pattern.permute.xlu0 0
  %115 = vperm.xlu0 %114, %v49
  %v116 = vpop.permute.xlu0 %115
  %119 = vset.pattern.permute.xlu0 0
  %120 = vperm.xlu0 %119, %v50
  %v121 = vpop.permute.xlu0 %120
  %124 = vset.pattern.permute.xlu0 0
  %125 = vperm.xlu0 %124, %v51
  %v126 = vpop.permute.xlu0 %125
  %vm128 = vcmask 261120
  %v130 = vsel %vm128, %v22, 0
  %v133 = vsel %vm128, %v25, 0
  %v136 = vsel %vm128, %v28, 0
  %v139 = vsel %vm128, %v31, 0
  %v142 = vsel %vm128, %v34, 0
  %v145 = vsel %vm128, %v37, 0
  %v148 = vsel %vm128, %v40, 0
  %v151 = vsel %vm128, %v43, 0
  %153 = vmatprep.subr.mxu0 0.0
  %154 = vmatpush1.msra.mxu0 %v67
  %155 = vmatprep.subr.mxu0 0.0
  %156 = vmatpush1.msra.mxu0 %v66
  %157 = vmatprep.subr.mxu0 0.0
  %158 = vmatpush1.msra.mxu0 %v65
  %159 = vmatprep.subr.mxu0 0.0
  %160 = vmatpush1.msra.mxu0 %v64
  %161 = vmatprep.subr.mxu0 0.0
  %162 = vmatpush1.msra.mxu0 %v63
  %163 = vmatprep.subr.mxu0 0.0
  %164 = vmatpush1.msra.mxu0 %v62
  %165 = vmatprep.subr.mxu0 0.0
  %166 = vmatpush1.msra.mxu0 %v61
  %167 = vmatprep.subr.mxu0 0.0
  %168 = vmatpush1.msra.mxu0 %v60
  %169 = vmatprep.subr.mxu0 0.0
  %170 = vmatpush1.msra.mxu0 %v59
  %171 = vmatprep.subr.mxu0 0.0
  %172 = vmatpush1.msra.mxu0 %v58
  %173 = vmatprep.subr.mxu0 0.0
  %174 = vmatpush1.msra.mxu0 %v57
  %175 = vmatprep.subr.mxu0 0.0
  %176 = vmatpush1.msra.mxu0 %v56
  %177 = vmatprep.subr.mxu0 0.0
  %178 = vmatpush1.msra.mxu0 %v55
  %179 = vmatprep.subr.mxu0 0.0
  %180 = vmatpush1.msra.mxu0 %v54
  %181 = vmatprep.subr.mxu0 0.0
  %182 = vmatpush1.msra.mxu0 %v53
  %183 = vmatprep.subr.mxu0 0.0
  %184 = vmatpush1.msra.mxu0 %v52
  %185 = vmatprep.subr.mxu0 0.0
  %186 = vmatpush2.msra.mxu0 %v83
  %187 = vmatprep.subr.mxu0 0.0
  %188 = vmatpush2.msra.mxu0 %v82
  %189 = vmatprep.subr.mxu0 0.0
  %190 = vmatpush2.msra.mxu0 %v81
  %191 = vmatprep.subr.mxu0 0.0
  %192 = vmatpush2.msra.mxu0 %v80
  %193 = vmatprep.subr.mxu0 0.0
  %194 = vmatpush2.msra.mxu0 %v79
  %195 = vmatprep.subr.mxu0 0.0
  %196 = vmatpush2.msra.mxu0 %v78
  %197 = vmatprep.subr.mxu0 0.0
  %198 = vmatpush2.msra.mxu0 %v77
  %199 = vmatprep.subr.mxu0 0.0
  %200 = vmatpush2.msra.mxu0 %v76
  %201 = vmatprep.subr.mxu0 0.0
  %202 = vmatpush2.msra.mxu0 %v75
  %203 = vmatprep.subr.mxu0 0.0
  %204 = vmatpush2.msra.mxu0 %v74
  %205 = vmatprep.subr.mxu0 0.0
  %206 = vmatpush2.msra.mxu0 %v73
  %207 = vmatprep.subr.mxu0 0.0
  %208 = vmatpush2.msra.mxu0 %v72
  %209 = vmatprep.subr.mxu0 0.0
  %210 = vmatpush2.msra.mxu0 %v71
  %211 = vmatprep.subr.mxu0 0.0
  %212 = vmatpush2.msra.mxu0 %v70
  %213 = vmatprep.subr.mxu0 0.0
  %214 = vmatpush2.msra.mxu0 %v69
  %215 = vmatprep.subr.mxu0 0.0
  %216 = vmatpush2.msra.mxu0 %v68
  %217 = vmatprep.mubr.f32.mxu0 %v21
  %218 = vmatmul.mubr.f32.gmra.mxu0 %v20
  %v219 = vpop.f32.mrf.mxu0
  %v220 = vadd.f32 %v91, %v219
  %v221 = vpop.f32.mrf.mxu0
  %222 = vmatprep.mubr.f32.mxu0 %v24
  %223 = vmatmul.mubr.f32.gmra.mxu0 %v23
  %v224 = vpop.f32.mrf.mxu0
  %v225 = vadd.f32 %v96, %v224
  %v226 = vpop.f32.mrf.mxu0
  %227 = vmatprep.mubr.f32.mxu0 %v27
  %228 = vmatmul.mubr.f32.gmra.mxu0 %v26
  %v229 = vpop.f32.mrf.mxu0
  %v230 = vadd.f32 %v101, %v229
  %v231 = vpop.f32.mrf.mxu0
  %232 = vmatprep.mubr.f32.mxu0 %v30
  %233 = vmatmul.mubr.f32.gmra.mxu0 %v29
  %v234 = vpop.f32.mrf.mxu0
  %v235 = vadd.f32 %v106, %v234
  %v236 = vpop.f32.mrf.mxu0
  %237 = vmatprep.mubr.f32.mxu0 %v33
  %238 = vmatmul.mubr.f32.gmra.mxu0 %v32
  %v239 = vpop.f32.mrf.mxu0
  %v240 = vadd.f32 %v111, %v239
  %v241 = vpop.f32.mrf.mxu0
  %242 = vmatprep.mubr.f32.mxu0 %v36
  %243 = vmatmul.mubr.f32.gmra.mxu0 %v35
  %v244 = vpop.f32.mrf.mxu0
  %v245 = vadd.f32 %v116, %v244
  %v246 = vpop.f32.mrf.mxu0
  %247 = vmatprep.mubr.f32.mxu0 %v39
  %248 = vmatmul.mubr.f32.gmra.mxu0 %v38
  %v249 = vpop.f32.mrf.mxu0
  %v250 = vadd.f32 %v121, %v249
  %v251 = vpop.f32.mrf.mxu0
  %252 = vmatprep.mubr.f32.mxu0 %v42
  %253 = vmatmul.mubr.f32.gmra.mxu0 %v41
  %v254 = vpop.f32.mrf.mxu0
  %v255 = vadd.f32 %v126, %v254
  %v256 = vpop.f32.mrf.mxu0
  %257 = vdwg.mxu0
  %258 = vmatprep.subr.mxu0 0.0
  %259 = vmatpush1.msra.mxu0 0.0
  %260 = vmatprep.subr.mxu0 0.0
  %261 = vmatpush1.msra.mxu0 0.0
  %262 = vmatprep.subr.mxu0 0.0
  %263 = vmatpush1.msra.mxu0 0.0
  %264 = vmatprep.subr.mxu0 0.0
  %265 = vmatpush1.msra.mxu0 0.0
  %266 = vmatprep.subr.mxu0 0.0
  %267 = vmatpush1.msra.mxu0 0.0
  %268 = vmatprep.subr.mxu0 0.0
  %269 = vmatpush1.msra.mxu0 0.0
  %270 = vmatprep.subr.mxu0 0.0
  %271 = vmatpush1.msra.mxu0 0.0
  %272 = vmatprep.subr.mxu0 0.0
  %273 = vmatpush1.msra.mxu0 0.0
  %274 = vmatprep.subr.mxu0 0.0
  %275 = vmatpush1.msra.mxu0 0.0
  %276 = vmatprep.subr.mxu0 0.0
  %277 = vmatpush1.msra.mxu0 0.0
  %278 = vmatprep.subr.mxu0 0.0
  %279 = vmatpush1.msra.mxu0 0.0
  %280 = vmatprep.subr.mxu0 0.0
  %281 = vmatpush1.msra.mxu0 0.0
  %282 = vmatprep.subr.mxu0 0.0
  %283 = vmatpush1.msra.mxu0 %v87
  %284 = vmatprep.subr.mxu0 0.0
  %285 = vmatpush1.msra.mxu0 %v86
  %286 = vmatprep.subr.mxu0 0.0
  %287 = vmatpush1.msra.mxu0 %v85
  %288 = vmatprep.subr.mxu0 0.0
  %289 = vmatpush1.msra.mxu0 %v84
  %290 = vmatprep.subr.mxu0 0.0
  %291 = vmatpush2.msra.mxu0 0.0
  %292 = vmatprep.subr.mxu0 0.0
  %293 = vmatpush2.msra.mxu0 0.0
  %294 = vmatprep.subr.mxu0 0.0
  %295 = vmatpush2.msra.mxu0 0.0
  %296 = vmatprep.subr.mxu0 0.0
  %297 = vmatpush2.msra.mxu0 0.0
  %298 = vmatprep.subr.mxu0 0.0
  %299 = vmatpush2.msra.mxu0 0.0
  %300 = vmatprep.subr.mxu0 0.0
  %301 = vmatpush2.msra.mxu0 0.0
  %302 = vmatprep.subr.mxu0 0.0
  %303 = vmatpush2.msra.mxu0 0.0
  %304 = vmatprep.subr.mxu0 0.0
  %305 = vmatpush2.msra.mxu0 0.0
  %306 = vmatprep.subr.mxu0 0.0
  %307 = vmatpush2.msra.mxu0 0.0
  %308 = vmatprep.subr.mxu0 0.0
  %309 = vmatpush2.msra.mxu0 0.0
  %310 = vmatprep.subr.mxu0 0.0
  %311 = vmatpush2.msra.mxu0 0.0
  %312 = vmatprep.subr.mxu0 0.0
  %313 = vmatpush2.msra.mxu0 0.0
  %314 = vmatprep.subr.mxu0 0.0
  %315 = vmatpush2.msra.mxu0 0.0
  %316 = vmatprep.subr.mxu0 0.0
  %317 = vmatpush2.msra.mxu0 0.0
  %318 = vmatprep.subr.mxu0 0.0
  %319 = vmatpush2.msra.mxu0 0.0
  %320 = vmatprep.subr.mxu0 0.0
  %321 = vmatpush2.msra.mxu0 0.0
  %322 = vmatprep.mubr.f32.mxu0 0.0
  %323 = vmatmul.mubr.f32.gmra.mxu0 %v130
  %v324 = vpop.f32.mrf.mxu0
  %v325 = vadd.f32 %v220, %v324
  %v326 = vpop.f32.mrf.mxu0
  %327 = vmatprep.mubr.f32.mxu0 0.0
  %328 = vmatmul.mubr.f32.gmra.mxu0 %v133
  %v329 = vpop.f32.mrf.mxu0
  %v330 = vadd.f32 %v225, %v329
  %v331 = vpop.f32.mrf.mxu0
  %332 = vmatprep.mubr.f32.mxu0 0.0
  %333 = vmatmul.mubr.f32.gmra.mxu0 %v136
  %v334 = vpop.f32.mrf.mxu0
  %v335 = vadd.f32 %v230, %v334
  %v336 = vpop.f32.mrf.mxu0
  %337 = vmatprep.mubr.f32.mxu0 0.0
  %338 = vmatmul.mubr.f32.gmra.mxu0 %v139
  %v339 = vpop.f32.mrf.mxu0
  %v340 = vadd.f32 %v235, %v339
  %v341 = vpop.f32.mrf.mxu0
  %342 = vmatprep.mubr.f32.mxu0 0.0
  %343 = vmatmul.mubr.f32.gmra.mxu0 %v142
  %v344 = vpop.f32.mrf.mxu0
  %v345 = vadd.f32 %v240, %v344
  %v346 = vpop.f32.mrf.mxu0
  %347 = vmatprep.mubr.f32.mxu0 0.0
  %348 = vmatmul.mubr.f32.gmra.mxu0 %v145
  %v349 = vpop.f32.mrf.mxu0
  %v350 = vadd.f32 %v245, %v349
  %v351 = vpop.f32.mrf.mxu0
  %352 = vmatprep.mubr.f32.mxu0 0.0
  %353 = vmatmul.mubr.f32.gmra.mxu0 %v148
  %v354 = vpop.f32.mrf.mxu0
  %v355 = vadd.f32 %v250, %v354
  %v356 = vpop.f32.mrf.mxu0
  %357 = vmatprep.mubr.f32.mxu0 0.0
  %358 = vmatmul.mubr.f32.gmra.mxu0 %v151
  %v359 = vpop.f32.mrf.mxu0
  %v360 = vadd.f32 %v255, %v359
  %v361 = vpop.f32.mrf.mxu0
  %362 = vdwg.mxu0
  %s363 = scalar_lea.vmem %s0, 288
  %v364 = vld [vmem:[%s363] sm:$0xff]
  %v365 = vld [vmem:[%s363 + $0x8] sm:$0xff]
  %v366 = vld [vmem:[%s363 + $0x10] sm:$0xff]
  %v367 = vld [vmem:[%s363 + $0x18] sm:$0xff]
  %v368 = vld [vmem:[%s363 + $0x20] sm:$0xff]
  %v369 = vld [vmem:[%s363 + $0x28] sm:$0xff]
  %v370 = vld [vmem:[%s363 + $0x30] sm:$0xff]
  %v371 = vld [vmem:[%s363 + $0x38] sm:$0xff]
  %v372 = vld [vmem:[%s363 + $0x40] sm:$0xff]
  %v373 = vld [vmem:[%s363 + $0x48] sm:$0xff]
  %v374 = vld [vmem:[%s363 + $0x50] sm:$0xff]
  %v375 = vld [vmem:[%s363 + $0x58] sm:$0xff]
  %v376 = vld [vmem:[%s363 + $0x60] sm:$0xff]
  %v377 = vld [vmem:[%s363 + $0x68] sm:$0xff]
  %v378 = vld [vmem:[%s363 + $0x70] sm:$0xff]
  %v379 = vld [vmem:[%s363 + $0x78] sm:$0xff]
  %v380 = vld [vmem:[%s363 + $0x80] sm:$0xff]
  %v381 = vld [vmem:[%s363 + $0x88] sm:$0xff]
  %v382 = vld [vmem:[%s363 + $0x90] sm:$0xff]
  %v383 = vld [vmem:[%s363 + $0x98] sm:$0xff]
  %v384 = vld [vmem:[%s363 + $0xa0] sm:$0xff]
  %v385 = vld [vmem:[%s363 + $0xa8] sm:$0xff]
  %v386 = vld [vmem:[%s363 + $0xb0] sm:$0xff]
  %v387 = vld [vmem:[%s363 + $0xb8] sm:$0xff]
  %v388 = vld [vmem:[%s363 + $0xc0] sm:$0xff]
  %v389 = vld [vmem:[%s363 + $0xc8] sm:$0xff]
  %v390 = vld [vmem:[%s363 + $0xd0] sm:$0xff]
  %v391 = vld [vmem:[%s363 + $0xd8] sm:$0xff]
  %v392 = vld [vmem:[%s363 + $0xe0] sm:$0xff]
  %v393 = vld [vmem:[%s363 + $0xe8] sm:$0xff]
  %v394 = vld [vmem:[%s363 + $0xf0] sm:$0xff]
  %v395 = vld [vmem:[%s363 + $0xf8] sm:$0xff]
  %v396 = vld [vmem:[%s363 + $0x100] sm:$0xff]
  %v397 = vld [vmem:[%s363 + $0x108] sm:$0xff]
  %v398 = vld [vmem:[%s363 + $0x110] sm:$0xff]
  %v399 = vld [vmem:[%s363 + $0x118] sm:$0xff]
  %400 = vmatprep.subr.mxu0 0.0
  %401 = vmatpush1.msra.mxu0 %v379
  %402 = vmatprep.subr.mxu0 0.0
  %403 = vmatpush1.msra.mxu0 %v378
  %404 = vmatprep.subr.mxu0 0.0
  %405 = vmatpush1.msra.mxu0 %v377
  %406 = vmatprep.subr.mxu0 0.0
  %407 = vmatpush1.msra.mxu0 %v376
  %408 = vmatprep.subr.mxu0 0.0
  %409 = vmatpush1.msra.mxu0 %v375
  %410 = vmatprep.subr.mxu0 0.0
  %411 = vmatpush1.msra.mxu0 %v374
  %412 = vmatprep.subr.mxu0 0.0
  %413 = vmatpush1.msra.mxu0 %v373
  %414 = vmatprep.subr.mxu0 0.0
  %415 = vmatpush1.msra.mxu0 %v372
  %416 = vmatprep.subr.mxu0 0.0
  %417 = vmatpush1.msra.mxu0 %v371
  %418 = vmatprep.subr.mxu0 0.0
  %419 = vmatpush1.msra.mxu0 %v370
  %420 = vmatprep.subr.mxu0 0.0
  %421 = vmatpush1.msra.mxu0 %v369
  %422 = vmatprep.subr.mxu0 0.0
  %423 = vmatpush1.msra.mxu0 %v368
  %424 = vmatprep.subr.mxu0 0.0
  %425 = vmatpush1.msra.mxu0 %v367
  %426 = vmatprep.subr.mxu0 0.0
  %427 = vmatpush1.msra.mxu0 %v366
  %428 = vmatprep.subr.mxu0 0.0
  %429 = vmatpush1.msra.mxu0 %v365
  %430 = vmatprep.subr.mxu0 0.0
  %431 = vmatpush1.msra.mxu0 %v364
  %432 = vmatprep.subr.mxu0 0.0
  %433 = vmatpush2.msra.mxu0 %v395
  %434 = vmatprep.subr.mxu0 0.0
  %435 = vmatpush2.msra.mxu0 %v394
  %436 = vmatprep.subr.mxu0 0.0
  %437 = vmatpush2.msra.mxu0 %v393
  %438 = vmatprep.subr.mxu0 0.0
  %439 = vmatpush2.msra.mxu0 %v392
  %440 = vmatprep.subr.mxu0 0.0
  %441 = vmatpush2.msra.mxu0 %v391
  %442 = vmatprep.subr.mxu0 0.0
  %443 = vmatpush2.msra.mxu0 %v390
  %444 = vmatprep.subr.mxu0 0.0
  %445 = vmatpush2.msra.mxu0 %v389
  %446 = vmatprep.subr.mxu0 0.0
  %447 = vmatpush2.msra.mxu0 %v388
  %448 = vmatprep.subr.mxu0 0.0
  %449 = vmatpush2.msra.mxu0 %v387
  %450 = vmatprep.subr.mxu0 0.0
  %451 = vmatpush2.msra.mxu0 %v386
  %452 = vmatprep.subr.mxu0 0.0
  %453 = vmatpush2.msra.mxu0 %v385
  %454 = vmatprep.subr.mxu0 0.0
  %455 = vmatpush2.msra.mxu0 %v384
  %456 = vmatprep.subr.mxu0 0.0
  %457 = vmatpush2.msra.mxu0 %v383
  %458 = vmatprep.subr.mxu0 0.0
  %459 = vmatpush2.msra.mxu0 %v382
  %460 = vmatprep.subr.mxu0 0.0
  %461 = vmatpush2.msra.mxu0 %v381
  %462 = vmatprep.subr.mxu0 0.0
  %463 = vmatpush2.msra.mxu0 %v380
  %464 = vmatprep.mubr.f32.mxu0 %v21
  %465 = vmatmul.mubr.f32.gmra.mxu0 %v20
  %v466 = vpop.f32.mrf.mxu0
  %v467 = vadd.f32 %v91, %v466
  %v468 = vpop.f32.mrf.mxu0
  %469 = vmatprep.mubr.f32.mxu0 %v24
  %470 = vmatmul.mubr.f32.gmra.mxu0 %v23
  %v471 = vpop.f32.mrf.mxu0
  %v472 = vadd.f32 %v96, %v471
  %v473 = vpop.f32.mrf.mxu0
  %474 = vmatprep.mubr.f32.mxu0 %v27
  %475 = vmatmul.mubr.f32.gmra.mxu0 %v26
  %v476 = vpop.f32.mrf.mxu0
  %v477 = vadd.f32 %v101, %v476
  %v478 = vpop.f32.mrf.mxu0
  %479 = vmatprep.mubr.f32.mxu0 %v30
  %480 = vmatmul.mubr.f32.gmra.mxu0 %v29
  %v481 = vpop.f32.mrf.mxu0
  %v482 = vadd.f32 %v106, %v481
  %v483 = vpop.f32.mrf.mxu0
  %484 = vmatprep.mubr.f32.mxu0 %v33
  %485 = vmatmul.mubr.f32.gmra.mxu0 %v32
  %v486 = vpop.f32.mrf.mxu0
  %v487 = vadd.f32 %v111, %v486
  %v488 = vpop.f32.mrf.mxu0
  %489 = vmatprep.mubr.f32.mxu0 %v36
  %490 = vmatmul.mubr.f32.gmra.mxu0 %v35
  %v491 = vpop.f32.mrf.mxu0
  %v492 = vadd.f32 %v116, %v491
  %v493 = vpop.f32.mrf.mxu0
  %494 = vmatprep.mubr.f32.mxu0 %v39
  %495 = vmatmul.mubr.f32.gmra.mxu0 %v38
  %v496 = vpop.f32.mrf.mxu0
  %v497 = vadd.f32 %v121, %v496
  %v498 = vpop.f32.mrf.mxu0
  %499 = vmatprep.mubr.f32.mxu0 %v42
  %500 = vmatmul.mubr.f32.gmra.mxu0 %v41
  %v501 = vpop.f32.mrf.mxu0
  %v502 = vadd.f32 %v126, %v501
  %v503 = vpop.f32.mrf.mxu0
  %504 = vdwg.mxu0
  %505 = vmatprep.subr.mxu0 0.0
  %506 = vmatpush1.msra.mxu0 0.0
  %507 = vmatprep.subr.mxu0 0.0
  %508 = vmatpush1.msra.mxu0 0.0
  %509 = vmatprep.subr.mxu0 0.0
  %510 = vmatpush1.msra.mxu0 0.0
  %511 = vmatprep.subr.mxu0 0.0
  %512 = vmatpush1.msra.mxu0 0.0
  %513 = vmatprep.subr.mxu0 0.0
  %514 = vmatpush1.msra.mxu0 0.0
  %515 = vmatprep.subr.mxu0 0.0
  %516 = vmatpush1.msra.mxu0 0.0
  %517 = vmatprep.subr.mxu0 0.0
  %518 = vmatpush1.msra.mxu0 0.0
  %519 = vmatprep.subr.mxu0 0.0
  %520 = vmatpush1.msra.mxu0 0.0
  %521 = vmatprep.subr.mxu0 0.0
  %522 = vmatpush1.msra.mxu0 0.0
  %523 = vmatprep.subr.mxu0 0.0
  %524 = vmatpush1.msra.mxu0 0.0
  %525 = vmatprep.subr.mxu0 0.0
  %526 = vmatpush1.msra.mxu0 0.0
  %527 = vmatprep.subr.mxu0 0.0
  %528 = vmatpush1.msra.mxu0 0.0
  %529 = vmatprep.subr.mxu0 0.0
  %530 = vmatpush1.msra.mxu0 %v399
  %531 = vmatprep.subr.mxu0 0.0
  %532 = vmatpush1.msra.mxu0 %v398
  %533 = vmatprep.subr.mxu0 0.0
  %534 = vmatpush1.msra.mxu0 %v397
  %535 = vmatprep.subr.mxu0 0.0
  %536 = vmatpush1.msra.mxu0 %v396
  %537 = vmatprep.subr.mxu0 0.0
  %538 = vmatpush2.msra.mxu0 0.0
  %539 = vmatprep.subr.mxu0 0.0
  %540 = vmatpush2.msra.mxu0 0.0
  %541 = vmatprep.subr.mxu0 0.0
  %542 = vmatpush2.msra.mxu0 0.0
  %543 = vmatprep.subr.mxu0 0.0
  %544 = vmatpush2.msra.mxu0 0.0
  %545 = vmatprep.subr.mxu0 0.0
  %546 = vmatpush2.msra.mxu0 0.0
  %547 = vmatprep.subr.mxu0 0.0
  %548 = vmatpush2.msra.mxu0 0.0
  %549 = vmatprep.subr.mxu0 0.0
  %550 = vmatpush2.msra.mxu0 0.0
  %551 = vmatprep.subr.mxu0 0.0
  %552 = vmatpush2.msra.mxu0 0.0
  %553 = vmatprep.subr.mxu0 0.0
  %554 = vmatpush2.msra.mxu0 0.0
  %555 = vmatprep.subr.mxu0 0.0
  %556 = vmatpush2.msra.mxu0 0.0
  %557 = vmatprep.subr.mxu0 0.0
  %558 = vmatpush2.msra.mxu0 0.0
  %559 = vmatprep.subr.mxu0 0.0
  %560 = vmatpush2.msra.mxu0 0.0
  %561 = vmatprep.subr.mxu0 0.0
  %562 = vmatpush2.msra.mxu0 0.0
  %563 = vmatprep.subr.mxu0 0.0
  %564 = vmatpush2.msra.mxu0 0.0
  %565 = vmatprep.subr.mxu0 0.0
  %566 = vmatpush2.msra.mxu0 0.0
  %567 = vmatprep.subr.mxu0 0.0
  %568 = vmatpush2.msra.mxu0 0.0
  %569 = vmatprep.mubr.f32.mxu0 0.0
  %570 = vmatmul.mubr.f32.gmra.mxu0 %v130
  %v571 = vpop.f32.mrf.mxu0
  %v572 = vadd.f32 %v467, %v571
  %v573 = vpop.f32.mrf.mxu0
  %574 = vmatprep.mubr.f32.mxu0 0.0
  %575 = vmatmul.mubr.f32.gmra.mxu0 %v133
  %v576 = vpop.f32.mrf.mxu0
  %v577 = vadd.f32 %v472, %v576
  %v578 = vpop.f32.mrf.mxu0
  %579 = vmatprep.mubr.f32.mxu0 0.0
  %580 = vmatmul.mubr.f32.gmra.mxu0 %v136
  %v581 = vpop.f32.mrf.mxu0
  %v582 = vadd.f32 %v477, %v581
  %v583 = vpop.f32.mrf.mxu0
  %584 = vmatprep.mubr.f32.mxu0 0.0
  %585 = vmatmul.mubr.f32.gmra.mxu0 %v139
  %v586 = vpop.f32.mrf.mxu0
  %v587 = vadd.f32 %v482, %v586
  %v588 = vpop.f32.mrf.mxu0
  %589 = vmatprep.mubr.f32.mxu0 0.0
  %590 = vmatmul.mubr.f32.gmra.mxu0 %v142
  %v591 = vpop.f32.mrf.mxu0
  %v592 = vadd.f32 %v487, %v591
  %v593 = vpop.f32.mrf.mxu0
  %594 = vmatprep.mubr.f32.mxu0 0.0
  %595 = vmatmul.mubr.f32.gmra.mxu0 %v145
  %v596 = vpop.f32.mrf.mxu0
  %v597 = vadd.f32 %v492, %v596
  %v598 = vpop.f32.mrf.mxu0
  %599 = vmatprep.mubr.f32.mxu0 0.0
  %600 = vmatmul.mubr.f32.gmra.mxu0 %v148
  %v601 = vpop.f32.mrf.mxu0
  %v602 = vadd.f32 %v497, %v601
  %v603 = vpop.f32.mrf.mxu0
  %604 = vmatprep.mubr.f32.mxu0 0.0
  %605 = vmatmul.mubr.f32.gmra.mxu0 %v151
  %v606 = vpop.f32.mrf.mxu0
  %v607 = vadd.f32 %v502, %v606
  %v608 = vpop.f32.mrf.mxu0
  %609 = vdwg.mxu0
  %s610 = scalar_lea.vmem %s0, 576
  %v611 = vld [vmem:[%s610] sm:$0xff]
  %v612 = vld [vmem:[%s610 + $0x8] sm:$0xff]
  %v613 = vld [vmem:[%s610 + $0x10] sm:$0xff]
  %v614 = vld [vmem:[%s610 + $0x18] sm:$0xff]
  %v615 = vld [vmem:[%s610 + $0x20] sm:$0xff]
  %v616 = vld [vmem:[%s610 + $0x28] sm:$0xff]
  %v617 = vld [vmem:[%s610 + $0x30] sm:$0xff]
  %v618 = vld [vmem:[%s610 + $0x38] sm:$0xff]
  %v619 = vld [vmem:[%s610 + $0x40] sm:$0xff]
  %v620 = vld [vmem:[%s610 + $0x48] sm:$0xff]
  %v621 = vld [vmem:[%s610 + $0x50] sm:$0xff]
  %v622 = vld [vmem:[%s610 + $0x58] sm:$0xff]
  %v623 = vld [vmem:[%s610 + $0x60] sm:$0xff]
  %v624 = vld [vmem:[%s610 + $0x68] sm:$0xff]
  %v625 = vld [vmem:[%s610 + $0x70] sm:$0xff]
  %v626 = vld [vmem:[%s610 + $0x78] sm:$0xff]
  %v627 = vld [vmem:[%s610 + $0x80] sm:$0xff]
  %v628 = vld [vmem:[%s610 + $0x88] sm:$0xff]
  %v629 = vld [vmem:[%s610 + $0x90] sm:$0xff]
  %v630 = vld [vmem:[%s610 + $0x98] sm:$0xff]
  %v631 = vld [vmem:[%s610 + $0xa0] sm:$0xff]
  %v632 = vld [vmem:[%s610 + $0xa8] sm:$0xff]
  %v633 = vld [vmem:[%s610 + $0xb0] sm:$0xff]
  %v634 = vld [vmem:[%s610 + $0xb8] sm:$0xff]
  %v635 = vld [vmem:[%s610 + $0xc0] sm:$0xff]
  %v636 = vld [vmem:[%s610 + $0xc8] sm:$0xff]
  %v637 = vld [vmem:[%s610 + $0xd0] sm:$0xff]
  %v638 = vld [vmem:[%s610 + $0xd8] sm:$0xff]
  %v639 = vld [vmem:[%s610 + $0xe0] sm:$0xff]
  %v640 = vld [vmem:[%s610 + $0xe8] sm:$0xff]
  %v641 = vld [vmem:[%s610 + $0xf0] sm:$0xff]
  %v642 = vld [vmem:[%s610 + $0xf8] sm:$0xff]
  %v643 = vld [vmem:[%s610 + $0x100] sm:$0xff]
  %v644 = vld [vmem:[%s610 + $0x108] sm:$0xff]
  %v645 = vld [vmem:[%s610 + $0x110] sm:$0xff]
  %v646 = vld [vmem:[%s610 + $0x118] sm:$0xff]
  %647 = vmatprep.subr.mxu0 0.0
  %648 = vmatpush1.msra.mxu0 %v626
  %649 = vmatprep.subr.mxu0 0.0
  %650 = vmatpush1.msra.mxu0 %v625
  %651 = vmatprep.subr.mxu0 0.0
  %652 = vmatpush1.msra.mxu0 %v624
  %653 = vmatprep.subr.mxu0 0.0
  %654 = vmatpush1.msra.mxu0 %v623
  %655 = vmatprep.subr.mxu0 0.0
  %656 = vmatpush1.msra.mxu0 %v622
  %657 = vmatprep.subr.mxu0 0.0
  %658 = vmatpush1.msra.mxu0 %v621
  %659 = vmatprep.subr.mxu0 0.0
  %660 = vmatpush1.msra.mxu0 %v620
  %661 = vmatprep.subr.mxu0 0.0
  %662 = vmatpush1.msra.mxu0 %v619
  %663 = vmatprep.subr.mxu0 0.0
  %664 = vmatpush1.msra.mxu0 %v618
  %665 = vmatprep.subr.mxu0 0.0
  %666 = vmatpush1.msra.mxu0 %v617
  %667 = vmatprep.subr.mxu0 0.0
  %668 = vmatpush1.msra.mxu0 %v616
  %669 = vmatprep.subr.mxu0 0.0
  %670 = vmatpush1.msra.mxu0 %v615
  %671 = vmatprep.subr.mxu0 0.0
  %672 = vmatpush1.msra.mxu0 %v614
  %673 = vmatprep.subr.mxu0 0.0
  %674 = vmatpush1.msra.mxu0 %v613
  %675 = vmatprep.subr.mxu0 0.0
  %676 = vmatpush1.msra.mxu0 %v612
  %677 = vmatprep.subr.mxu0 0.0
  %678 = vmatpush1.msra.mxu0 %v611
  %679 = vmatprep.subr.mxu0 0.0
  %680 = vmatpush2.msra.mxu0 %v642
  %681 = vmatprep.subr.mxu0 0.0
  %682 = vmatpush2.msra.mxu0 %v641
  %683 = vmatprep.subr.mxu0 0.0
  %684 = vmatpush2.msra.mxu0 %v640
  %685 = vmatprep.subr.mxu0 0.0
  %686 = vmatpush2.msra.mxu0 %v639
  %687 = vmatprep.subr.mxu0 0.0
  %688 = vmatpush2.msra.mxu0 %v638
  %689 = vmatprep.subr.mxu0 0.0
  %690 = vmatpush2.msra.mxu0 %v637
  %691 = vmatprep.subr.mxu0 0.0
  %692 = vmatpush2.msra.mxu0 %v636
  %693 = vmatprep.subr.mxu0 0.0
  %694 = vmatpush2.msra.mxu0 %v635
  %695 = vmatprep.subr.mxu0 0.0
  %696 = vmatpush2.msra.mxu0 %v634
  %697 = vmatprep.subr.mxu0 0.0
  %698 = vmatpush2.msra.mxu0 %v633
  %699 = vmatprep.subr.mxu0 0.0
  %700 = vmatpush2.msra.mxu0 %v632
  %701 = vmatprep.subr.mxu0 0.0
  %702 = vmatpush2.msra.mxu0 %v631
  %703 = vmatprep.subr.mxu0 0.0
  %704 = vmatpush2.msra.mxu0 %v630
  %705 = vmatprep.subr.mxu0 0.0
  %706 = vmatpush2.msra.mxu0 %v629
  %707 = vmatprep.subr.mxu0 0.0
  %708 = vmatpush2.msra.mxu0 %v628
  %709 = vmatprep.subr.mxu0 0.0
  %710 = vmatpush2.msra.mxu0 %v627
  %711 = vmatprep.mubr.f32.mxu0 %v21
  %712 = vmatmul.mubr.f32.gmra.mxu0 %v20
  %v713 = vpop.f32.mrf.mxu0
  %v714 = vadd.f32 %v91, %v713
  %v715 = vpop.f32.mrf.mxu0
  %716 = vmatprep.mubr.f32.mxu0 %v24
  %717 = vmatmul.mubr.f32.gmra.mxu0 %v23
  %v718 = vpop.f32.mrf.mxu0
  %v719 = vadd.f32 %v96, %v718
  %v720 = vpop.f32.mrf.mxu0
  %721 = vmatprep.mubr.f32.mxu0 %v27
  %722 = vmatmul.mubr.f32.gmra.mxu0 %v26
  %v723 = vpop.f32.mrf.mxu0
  %v724 = vadd.f32 %v101, %v723
  %v725 = vpop.f32.mrf.mxu0
  %726 = vmatprep.mubr.f32.mxu0 %v30
  %727 = vmatmul.mubr.f32.gmra.mxu0 %v29
  %v728 = vpop.f32.mrf.mxu0
  %v729 = vadd.f32 %v106, %v728
  %v730 = vpop.f32.mrf.mxu0
  %731 = vmatprep.mubr.f32.mxu0 %v33
  %732 = vmatmul.mubr.f32.gmra.mxu0 %v32
  %v733 = vpop.f32.mrf.mxu0
  %v734 = vadd.f32 %v111, %v733
  %v735 = vpop.f32.mrf.mxu0
  %736 = vmatprep.mubr.f32.mxu0 %v36
  %737 = vmatmul.mubr.f32.gmra.mxu0 %v35
  %v738 = vpop.f32.mrf.mxu0
  %v739 = vadd.f32 %v116, %v738
  %v740 = vpop.f32.mrf.mxu0
  %741 = vmatprep.mubr.f32.mxu0 %v39
  %742 = vmatmul.mubr.f32.gmra.mxu0 %v38
  %v743 = vpop.f32.mrf.mxu0
  %v744 = vadd.f32 %v121, %v743
  %v745 = vpop.f32.mrf.mxu0
  %746 = vmatprep.mubr.f32.mxu0 %v42
  %747 = vmatmul.mubr.f32.gmra.mxu0 %v41
  %v748 = vpop.f32.mrf.mxu0
  %v749 = vadd.f32 %v126, %v748
  %v750 = vpop.f32.mrf.mxu0
  %751 = vdwg.mxu0
  %752 = vmatprep.subr.mxu0 0.0
  %753 = vmatpush1.msra.mxu0 0.0
  %754 = vmatprep.subr.mxu0 0.0
  %755 = vmatpush1.msra.mxu0 0.0
  %756 = vmatprep.subr.mxu0 0.0
  %757 = vmatpush1.msra.mxu0 0.0
  %758 = vmatprep.subr.mxu0 0.0
  %759 = vmatpush1.msra.mxu0 0.0
  %760 = vmatprep.subr.mxu0 0.0
  %761 = vmatpush1.msra.mxu0 0.0
  %762 = vmatprep.subr.mxu0 0.0
  %763 = vmatpush1.msra.mxu0 0.0
  %764 = vmatprep.subr.mxu0 0.0
  %765 = vmatpush1.msra.mxu0 0.0
  %766 = vmatprep.subr.mxu0 0.0
  %767 = vmatpush1.msra.mxu0 0.0
  %768 = vmatprep.subr.mxu0 0.0
  %769 = vmatpush1.msra.mxu0 0.0
  %770 = vmatprep.subr.mxu0 0.0
  %771 = vmatpush1.msra.mxu0 0.0
  %772 = vmatprep.subr.mxu0 0.0
  %773 = vmatpush1.msra.mxu0 0.0
  %774 = vmatprep.subr.mxu0 0.0
  %775 = vmatpush1.msra.mxu0 0.0
  %776 = vmatprep.subr.mxu0 0.0
  %777 = vmatpush1.msra.mxu0 %v646
  %778 = vmatprep.subr.mxu0 0.0
  %779 = vmatpush1.msra.mxu0 %v645
  %780 = vmatprep.subr.mxu0 0.0
  %781 = vmatpush1.msra.mxu0 %v644
  %782 = vmatprep.subr.mxu0 0.0
  %783 = vmatpush1.msra.mxu0 %v643
  %784 = vmatprep.subr.mxu0 0.0
  %785 = vmatpush2.msra.mxu0 0.0
  %786 = vmatprep.subr.mxu0 0.0
  %787 = vmatpush2.msra.mxu0 0.0
  %788 = vmatprep.subr.mxu0 0.0
  %789 = vmatpush2.msra.mxu0 0.0
  %790 = vmatprep.subr.mxu0 0.0
  %791 = vmatpush2.msra.mxu0 0.0
  %792 = vmatprep.subr.mxu0 0.0
  %793 = vmatpush2.msra.mxu0 0.0
  %794 = vmatprep.subr.mxu0 0.0
  %795 = vmatpush2.msra.mxu0 0.0
  %796 = vmatprep.subr.mxu0 0.0
  %797 = vmatpush2.msra.mxu0 0.0
  %798 = vmatprep.subr.mxu0 0.0
  %799 = vmatpush2.msra.mxu0 0.0
  %800 = vmatprep.subr.mxu0 0.0
  %801 = vmatpush2.msra.mxu0 0.0
  %802 = vmatprep.subr.mxu0 0.0
  %803 = vmatpush2.msra.mxu0 0.0
  %804 = vmatprep.subr.mxu0 0.0
  %805 = vmatpush2.msra.mxu0 0.0
  %806 = vmatprep.subr.mxu0 0.0
  %807 = vmatpush2.msra.mxu0 0.0
  %808 = vmatprep.subr.mxu0 0.0
  %809 = vmatpush2.msra.mxu0 0.0
  %810 = vmatprep.subr.mxu0 0.0
  %811 = vmatpush2.msra.mxu0 0.0
  %812 = vmatprep.subr.mxu0 0.0
  %813 = vmatpush2.msra.mxu0 0.0
  %814 = vmatprep.subr.mxu0 0.0
  %815 = vmatpush2.msra.mxu0 0.0
  %816 = vmatprep.mubr.f32.mxu0 0.0
  %817 = vmatmul.mubr.f32.gmra.mxu0 %v130
  %v818 = vpop.f32.mrf.mxu0
  %v819 = vadd.f32 %v714, %v818
  %v820 = vpop.f32.mrf.mxu0
  %821 = vmatprep.mubr.f32.mxu0 0.0
  %822 = vmatmul.mubr.f32.gmra.mxu0 %v133
  %v823 = vpop.f32.mrf.mxu0
  %v824 = vadd.f32 %v719, %v823
  %v825 = vpop.f32.mrf.mxu0
  %826 = vmatprep.mubr.f32.mxu0 0.0
  %827 = vmatmul.mubr.f32.gmra.mxu0 %v136
  %v828 = vpop.f32.mrf.mxu0
  %v829 = vadd.f32 %v724, %v828
  %v830 = vpop.f32.mrf.mxu0
  %831 = vmatprep.mubr.f32.mxu0 0.0
  %832 = vmatmul.mubr.f32.gmra.mxu0 %v139
  %v833 = vpop.f32.mrf.mxu0
  %v834 = vadd.f32 %v729, %v833
  %v835 = vpop.f32.mrf.mxu0
  %836 = vmatprep.mubr.f32.mxu0 0.0
  %837 = vmatmul.mubr.f32.gmra.mxu0 %v142
  %v838 = vpop.f32.mrf.mxu0
  %v839 = vadd.f32 %v734, %v838
  %v840 = vpop.f32.mrf.mxu0
  %841 = vmatprep.mubr.f32.mxu0 0.0
  %842 = vmatmul.mubr.f32.gmra.mxu0 %v145
  %v843 = vpop.f32.mrf.mxu0
  %v844 = vadd.f32 %v739, %v843
  %v845 = vpop.f32.mrf.mxu0
  %846 = vmatprep.mubr.f32.mxu0 0.0
  %847 = vmatmul.mubr.f32.gmra.mxu0 %v148
  %v848 = vpop.f32.mrf.mxu0
  %v849 = vadd.f32 %v744, %v848
  %v850 = vpop.f32.mrf.mxu0
  %851 = vmatprep.mubr.f32.mxu0 0.0
  %852 = vmatmul.mubr.f32.gmra.mxu0 %v151
  %v853 = vpop.f32.mrf.mxu0
  %v854 = vadd.f32 %v749, %v853
  %v855 = vpop.f32.mrf.mxu0
  %856 = vdwg.mxu0
  %s857 = scalar_lea.vmem %s0, 864
  %v858 = vld [vmem:[%s857] sm:$0xff]
  %v859 = vld [vmem:[%s857 + $0x8] sm:$0xff]
  %v860 = vld [vmem:[%s857 + $0x10] sm:$0xff]
  %v861 = vld [vmem:[%s857 + $0x18] sm:$0xff]
  %v862 = vld [vmem:[%s857 + $0x20] sm:$0xff]
  %v863 = vld [vmem:[%s857 + $0x28] sm:$0xff]
  %v864 = vld [vmem:[%s857 + $0x30] sm:$0xff]
  %v865 = vld [vmem:[%s857 + $0x38] sm:$0xff]
  %v866 = vld [vmem:[%s857 + $0x40] sm:$0xff]
  %v867 = vld [vmem:[%s857 + $0x48] sm:$0xff]
  %v868 = vld [vmem:[%s857 + $0x50] sm:$0xff]
  %v869 = vld [vmem:[%s857 + $0x58] sm:$0xff]
  %v870 = vld [vmem:[%s857 + $0x60] sm:$0xff]
  %v871 = vld [vmem:[%s857 + $0x68] sm:$0xff]
  %v872 = vld [vmem:[%s857 + $0x70] sm:$0xff]
  %v873 = vld [vmem:[%s857 + $0x78] sm:$0xff]
  %v874 = vld [vmem:[%s857 + $0x80] sm:$0xff]
  %v875 = vld [vmem:[%s857 + $0x88] sm:$0xff]
  %v876 = vld [vmem:[%s857 + $0x90] sm:$0xff]
  %v877 = vld [vmem:[%s857 + $0x98] sm:$0xff]
  %v878 = vld [vmem:[%s857 + $0xa0] sm:$0xff]
  %v879 = vld [vmem:[%s857 + $0xa8] sm:$0xff]
  %v880 = vld [vmem:[%s857 + $0xb0] sm:$0xff]
  %v881 = vld [vmem:[%s857 + $0xb8] sm:$0xff]
  %v882 = vld [vmem:[%s857 + $0xc0] sm:$0xff]
  %v883 = vld [vmem:[%s857 + $0xc8] sm:$0xff]
  %v884 = vld [vmem:[%s857 + $0xd0] sm:$0xff]
  %v885 = vld [vmem:[%s857 + $0xd8] sm:$0xff]
  %v886 = vld [vmem:[%s857 + $0xe0] sm:$0xff]
  %v887 = vld [vmem:[%s857 + $0xe8] sm:$0xff]
  %v888 = vld [vmem:[%s857 + $0xf0] sm:$0xff]
  %v889 = vld [vmem:[%s857 + $0xf8] sm:$0xff]
  %v890 = vld [vmem:[%s857 + $0x100] sm:$0xff]
  %v891 = vld [vmem:[%s857 + $0x108] sm:$0xff]
  %v892 = vld [vmem:[%s857 + $0x110] sm:$0xff]
  %v893 = vld [vmem:[%s857 + $0x118] sm:$0xff]
  %894 = vmatprep.subr.mxu0 0.0
  %895 = vmatpush1.msra.mxu0 %v873
  %896 = vmatprep.subr.mxu0 0.0
  %897 = vmatpush1.msra.mxu0 %v872
  %898 = vmatprep.subr.mxu0 0.0
  %899 = vmatpush1.msra.mxu0 %v871
  %900 = vmatprep.subr.mxu0 0.0
  %901 = vmatpush1.msra.mxu0 %v870
  %902 = vmatprep.subr.mxu0 0.0
  %903 = vmatpush1.msra.mxu0 %v869
  %904 = vmatprep.subr.mxu0 0.0
  %905 = vmatpush1.msra.mxu0 %v868
  %906 = vmatprep.subr.mxu0 0.0
  %907 = vmatpush1.msra.mxu0 %v867
  %908 = vmatprep.subr.mxu0 0.0
  %909 = vmatpush1.msra.mxu0 %v866
  %910 = vmatprep.subr.mxu0 0.0
  %911 = vmatpush1.msra.mxu0 %v865
  %912 = vmatprep.subr.mxu0 0.0
  %913 = vmatpush1.msra.mxu0 %v864
  %914 = vmatprep.subr.mxu0 0.0
  %915 = vmatpush1.msra.mxu0 %v863
  %916 = vmatprep.subr.mxu0 0.0
  %917 = vmatpush1.msra.mxu0 %v862
  %918 = vmatprep.subr.mxu0 0.0
  %919 = vmatpush1.msra.mxu0 %v861
  %920 = vmatprep.subr.mxu0 0.0
  %921 = vmatpush1.msra.mxu0 %v860
  %922 = vmatprep.subr.mxu0 0.0
  %923 = vmatpush1.msra.mxu0 %v859
  %924 = vmatprep.subr.mxu0 0.0
  %925 = vmatpush1.msra.mxu0 %v858
  %926 = vmatprep.subr.mxu0 0.0
  %927 = vmatpush2.msra.mxu0 %v889
  %928 = vmatprep.subr.mxu0 0.0
  %929 = vmatpush2.msra.mxu0 %v888
  %930 = vmatprep.subr.mxu0 0.0
  %931 = vmatpush2.msra.mxu0 %v887
  %932 = vmatprep.subr.mxu0 0.0
  %933 = vmatpush2.msra.mxu0 %v886
  %934 = vmatprep.subr.mxu0 0.0
  %935 = vmatpush2.msra.mxu0 %v885
  %936 = vmatprep.subr.mxu0 0.0
  %937 = vmatpush2.msra.mxu0 %v884
  %938 = vmatprep.subr.mxu0 0.0
  %939 = vmatpush2.msra.mxu0 %v883
  %940 = vmatprep.subr.mxu0 0.0
  %941 = vmatpush2.msra.mxu0 %v882
  %942 = vmatprep.subr.mxu0 0.0
  %943 = vmatpush2.msra.mxu0 %v881
  %944 = vmatprep.subr.mxu0 0.0
  %945 = vmatpush2.msra.mxu0 %v880
  %946 = vmatprep.subr.mxu0 0.0
  %947 = vmatpush2.msra.mxu0 %v879
  %948 = vmatprep.subr.mxu0 0.0
  %949 = vmatpush2.msra.mxu0 %v878
  %950 = vmatprep.subr.mxu0 0.0
  %951 = vmatpush2.msra.mxu0 %v877
  %952 = vmatprep.subr.mxu0 0.0
  %953 = vmatpush2.msra.mxu0 %v876
  %954 = vmatprep.subr.mxu0 0.0
  %955 = vmatpush2.msra.mxu0 %v875
  %956 = vmatprep.subr.mxu0 0.0
  %957 = vmatpush2.msra.mxu0 %v874
  %958 = vmatprep.mubr.f32.mxu0 %v21
  %959 = vmatmul.mubr.f32.gmra.mxu0 %v20
  %v960 = vpop.f32.mrf.mxu0
  %v961 = vadd.f32 %v91, %v960
  %v962 = vpop.f32.mrf.mxu0
  %963 = vmatprep.mubr.f32.mxu0 %v24
  %964 = vmatmul.mubr.f32.gmra.mxu0 %v23
  %v965 = vpop.f32.mrf.mxu0
  %v966 = vadd.f32 %v96, %v965
  %v967 = vpop.f32.mrf.mxu0
  %968 = vmatprep.mubr.f32.mxu0 %v27
  %969 = vmatmul.mubr.f32.gmra.mxu0 %v26
  %v970 = vpop.f32.mrf.mxu0
  %v971 = vadd.f32 %v101, %v970
  %v972 = vpop.f32.mrf.mxu0
  %973 = vmatprep.mubr.f32.mxu0 %v30
  %974 = vmatmul.mubr.f32.gmra.mxu0 %v29
  %v975 = vpop.f32.mrf.mxu0
  %v976 = vadd.f32 %v106, %v975
  %v977 = vpop.f32.mrf.mxu0
  %978 = vmatprep.mubr.f32.mxu0 %v33
  %979 = vmatmul.mubr.f32.gmra.mxu0 %v32
  %v980 = vpop.f32.mrf.mxu0
  %v981 = vadd.f32 %v111, %v980
  %v982 = vpop.f32.mrf.mxu0
  %983 = vmatprep.mubr.f32.mxu0 %v36
  %984 = vmatmul.mubr.f32.gmra.mxu0 %v35
  %v985 = vpop.f32.mrf.mxu0
  %v986 = vadd.f32 %v116, %v985
  %v987 = vpop.f32.mrf.mxu0
  %988 = vmatprep.mubr.f32.mxu0 %v39
  %989 = vmatmul.mubr.f32.gmra.mxu0 %v38
  %v990 = vpop.f32.mrf.mxu0
  %v991 = vadd.f32 %v121, %v990
  %v992 = vpop.f32.mrf.mxu0
  %993 = vmatprep.mubr.f32.mxu0 %v42
  %994 = vmatmul.mubr.f32.gmra.mxu0 %v41
  %v995 = vpop.f32.mrf.mxu0
  %v996 = vadd.f32 %v126, %v995
  %v997 = vpop.f32.mrf.mxu0
  %998 = vdwg.mxu0
  %999 = vmatprep.subr.mxu0 0.0
  %1000 = vmatpush1.msra.mxu0 0.0
  %1001 = vmatprep.subr.mxu0 0.0
  %1002 = vmatpush1.msra.mxu0 0.0
  %1003 = vmatprep.subr.mxu0 0.0
  %1004 = vmatpush1.msra.mxu0 0.0
  %1005 = vmatprep.subr.mxu0 0.0
  %1006 = vmatpush1.msra.mxu0 0.0
  %1007 = vmatprep.subr.mxu0 0.0
  %1008 = vmatpush1.msra.mxu0 0.0
  %1009 = vmatprep.subr.mxu0 0.0
  %1010 = vmatpush1.msra.mxu0 0.0
  %1011 = vmatprep.subr.mxu0 0.0
  %1012 = vmatpush1.msra.mxu0 0.0
  %1013 = vmatprep.subr.mxu0 0.0
  %1014 = vmatpush1.msra.mxu0 0.0
  %1015 = vmatprep.subr.mxu0 0.0
  %1016 = vmatpush1.msra.mxu0 0.0
  %1017 = vmatprep.subr.mxu0 0.0
  %1018 = vmatpush1.msra.mxu0 0.0
  %1019 = vmatprep.subr.mxu0 0.0
  %1020 = vmatpush1.msra.mxu0 0.0
  %1021 = vmatprep.subr.mxu0 0.0
  %1022 = vmatpush1.msra.mxu0 0.0
  %1023 = vmatprep.subr.mxu0 0.0
  %1024 = vmatpush1.msra.mxu0 %v893
  %1025 = vmatprep.subr.mxu0 0.0
  %1026 = vmatpush1.msra.mxu0 %v892
  %1027 = vmatprep.subr.mxu0 0.0
  %1028 = vmatpush1.msra.mxu0 %v891
  %1029 = vmatprep.subr.mxu0 0.0
  %1030 = vmatpush1.msra.mxu0 %v890
  %1031 = vmatprep.subr.mxu0 0.0
  %1032 = vmatpush2.msra.mxu0 0.0
  %1033 = vmatprep.subr.mxu0 0.0
  %1034 = vmatpush2.msra.mxu0 0.0
  %1035 = vmatprep.subr.mxu0 0.0
  %1036 = vmatpush2.msra.mxu0 0.0
  %1037 = vmatprep.subr.mxu0 0.0
  %1038 = vmatpush2.msra.mxu0 0.0
  %1039 = vmatprep.subr.mxu0 0.0
  %1040 = vmatpush2.msra.mxu0 0.0
  %1041 = vmatprep.subr.mxu0 0.0
  %1042 = vmatpush2.msra.mxu0 0.0
  %1043 = vmatprep.subr.mxu0 0.0
  %1044 = vmatpush2.msra.mxu0 0.0
  %1045 = vmatprep.subr.mxu0 0.0
  %1046 = vmatpush2.msra.mxu0 0.0
  %1047 = vmatprep.subr.mxu0 0.0
  %1048 = vmatpush2.msra.mxu0 0.0
  %1049 = vmatprep.subr.mxu0 0.0
  %1050 = vmatpush2.msra.mxu0 0.0
  %1051 = vmatprep.subr.mxu0 0.0
  %1052 = vmatpush2.msra.mxu0 0.0
  %1053 = vmatprep.subr.mxu0 0.0
  %1054 = vmatpush2.msra.mxu0 0.0
  %1055 = vmatprep.subr.mxu0 0.0
  %1056 = vmatpush2.msra.mxu0 0.0
  %1057 = vmatprep.subr.mxu0 0.0
  %1058 = vmatpush2.msra.mxu0 0.0
  %1059 = vmatprep.subr.mxu0 0.0
  %1060 = vmatpush2.msra.mxu0 0.0
  %1061 = vmatprep.subr.mxu0 0.0
  %1062 = vmatpush2.msra.mxu0 0.0
  %1063 = vmatprep.mubr.f32.mxu0 0.0
  %1064 = vmatmul.mubr.f32.gmra.mxu0 %v130
  %v1065 = vpop.f32.mrf.mxu0
  %v1066 = vadd.f32 %v961, %v1065
  %v1067 = vpop.f32.mrf.mxu0
  %1068 = vmatprep.mubr.f32.mxu0 0.0
  %1069 = vmatmul.mubr.f32.gmra.mxu0 %v133
  %v1070 = vpop.f32.mrf.mxu0
  %v1071 = vadd.f32 %v966, %v1070
  %v1072 = vpop.f32.mrf.mxu0
  %1073 = vmatprep.mubr.f32.mxu0 0.0
  %1074 = vmatmul.mubr.f32.gmra.mxu0 %v136
  %v1075 = vpop.f32.mrf.mxu0
  %v1076 = vadd.f32 %v971, %v1075
  %v1077 = vpop.f32.mrf.mxu0
  %1078 = vmatprep.mubr.f32.mxu0 0.0
  %1079 = vmatmul.mubr.f32.gmra.mxu0 %v139
  %v1080 = vpop.f32.mrf.mxu0
  %v1081 = vadd.f32 %v976, %v1080
  %v1082 = vpop.f32.mrf.mxu0
  %1083 = vmatprep.mubr.f32.mxu0 0.0
  %1084 = vmatmul.mubr.f32.gmra.mxu0 %v142
  %v1085 = vpop.f32.mrf.mxu0
  %v1086 = vadd.f32 %v981, %v1085
  %v1087 = vpop.f32.mrf.mxu0
  %1088 = vmatprep.mubr.f32.mxu0 0.0
  %1089 = vmatmul.mubr.f32.gmra.mxu0 %v145
  %v1090 = vpop.f32.mrf.mxu0
  %v1091 = vadd.f32 %v986, %v1090
  %v1092 = vpop.f32.mrf.mxu0
  %1093 = vmatprep.mubr.f32.mxu0 0.0
  %1094 = vmatmul.mubr.f32.gmra.mxu0 %v148
  %v1095 = vpop.f32.mrf.mxu0
  %v1096 = vadd.f32 %v991, %v1095
  %v1097 = vpop.f32.mrf.mxu0
  %1098 = vmatprep.mubr.f32.mxu0 0.0
  %1099 = vmatmul.mubr.f32.gmra.mxu0 %v151
  %v1100 = vpop.f32.mrf.mxu0
  %v1101 = vadd.f32 %v996, %v1100
  %v1102 = vpop.f32.mrf.mxu0
  %1103 = vdwg.mxu0
  %vm1104 = vcmask 326656
  %v1105 = vsel %vm1104, %v325, 0.0
  %1106 = vadd.xlane.f32.xlu0 %v1105
  %v1107 = vpop.xlane.xlu0 %1106
  %v1108 = vsel %vm1104, %v330, 0.0
  %1109 = vadd.xlane.f32.xlu0 %v1108
  %v1110 = vpop.xlane.xlu0 %1109
  %v1111 = vsel %vm1104, %v335, 0.0
  %1112 = vadd.xlane.f32.xlu0 %v1111
  %v1113 = vpop.xlane.xlu0 %1112
  %v1114 = vsel %vm1104, %v340, 0.0
  %1115 = vadd.xlane.f32.xlu0 %v1114
  %v1116 = vpop.xlane.xlu0 %1115
  %v1117 = vsel %vm1104, %v345, 0.0
  %1118 = vadd.xlane.f32.xlu0 %v1117
  %v1119 = vpop.xlane.xlu0 %1118
  %v1120 = vsel %vm1104, %v350, 0.0
  %1121 = vadd.xlane.f32.xlu0 %v1120
  %v1122 = vpop.xlane.xlu0 %1121
  %v1123 = vsel %vm1104, %v355, 0.0
  %1124 = vadd.xlane.f32.xlu0 %v1123
  %v1125 = vpop.xlane.xlu0 %1124
  %v1126 = vsel %vm1104, %v360, 0.0
  %1127 = vadd.xlane.f32.xlu0 %v1126
  %v1128 = vpop.xlane.xlu0 %1127
  %v1129 = vsel %vm1104, %v572, 0.0
  %1130 = vadd.xlane.f32.xlu0 %v1129
  %v1131 = vpop.xlane.xlu0 %1130
  %v1132 = vsel %vm1104, %v577, 0.0
  %1133 = vadd.xlane.f32.xlu0 %v1132
  %v1134 = vpop.xlane.xlu0 %1133
  %v1135 = vsel %vm1104, %v582, 0.0
  %1136 = vadd.xlane.f32.xlu0 %v1135
  %v1137 = vpop.xlane.xlu0 %1136
  %v1138 = vsel %vm1104, %v587, 0.0
  %1139 = vadd.xlane.f32.xlu0 %v1138
  %v1140 = vpop.xlane.xlu0 %1139
  %v1141 = vsel %vm1104, %v592, 0.0
  %1142 = vadd.xlane.f32.xlu0 %v1141
  %v1143 = vpop.xlane.xlu0 %1142
  %v1144 = vsel %vm1104, %v597, 0.0
  %1145 = vadd.xlane.f32.xlu0 %v1144
  %v1146 = vpop.xlane.xlu0 %1145
  %v1147 = vsel %vm1104, %v602, 0.0
  %1148 = vadd.xlane.f32.xlu0 %v1147
  %v1149 = vpop.xlane.xlu0 %1148
  %v1150 = vsel %vm1104, %v607, 0.0
  %1151 = vadd.xlane.f32.xlu0 %v1150
  %v1152 = vpop.xlane.xlu0 %1151
  %v1153 = vadd.f32 %v1107, %v1131
  %v1154 = vadd.f32 %v1110, %v1134
  %v1155 = vadd.f32 %v1113, %v1137
  %v1156 = vadd.f32 %v1116, %v1140
  %v1157 = vadd.f32 %v1119, %v1143
  %v1158 = vadd.f32 %v1122, %v1146
  %v1159 = vadd.f32 %v1125, %v1149
  %v1160 = vadd.f32 %v1128, %v1152
  %v1161 = vsel %vm1104, %v819, 0.0
  %1162 = vadd.xlane.f32.xlu0 %v1161
  %v1163 = vpop.xlane.xlu0 %1162
  %v1164 = vsel %vm1104, %v824, 0.0
  %1165 = vadd.xlane.f32.xlu0 %v1164
  %v1166 = vpop.xlane.xlu0 %1165
  %v1167 = vsel %vm1104, %v829, 0.0
  %1168 = vadd.xlane.f32.xlu0 %v1167
  %v1169 = vpop.xlane.xlu0 %1168
  %v1170 = vsel %vm1104, %v834, 0.0
  %1171 = vadd.xlane.f32.xlu0 %v1170
  %v1172 = vpop.xlane.xlu0 %1171
  %v1173 = vsel %vm1104, %v839, 0.0
  %1174 = vadd.xlane.f32.xlu0 %v1173
  %v1175 = vpop.xlane.xlu0 %1174
  %v1176 = vsel %vm1104, %v844, 0.0
  %1177 = vadd.xlane.f32.xlu0 %v1176
  %v1178 = vpop.xlane.xlu0 %1177
  %v1179 = vsel %vm1104, %v849, 0.0
  %1180 = vadd.xlane.f32.xlu0 %v1179
  %v1181 = vpop.xlane.xlu0 %1180
  %v1182 = vsel %vm1104, %v854, 0.0
  %1183 = vadd.xlane.f32.xlu0 %v1182
  %v1184 = vpop.xlane.xlu0 %1183
  %v1185 = vadd.f32 %v1153, %v1163
  %v1186 = vadd.f32 %v1154, %v1166
  %v1187 = vadd.f32 %v1155, %v1169
  %v1188 = vadd.f32 %v1156, %v1172
  %v1189 = vadd.f32 %v1157, %v1175
  %v1190 = vadd.f32 %v1158, %v1178
  %v1191 = vadd.f32 %v1159, %v1181
  %v1192 = vadd.f32 %v1160, %v1184
  %v1193 = vsel %vm1104, %v1066, 0.0
  %1194 = vadd.xlane.f32.xlu0 %v1193
  %v1195 = vpop.xlane.xlu0 %1194
  %v1196 = vsel %vm1104, %v1071, 0.0
  %1197 = vadd.xlane.f32.xlu0 %v1196
  %v1198 = vpop.xlane.xlu0 %1197
  %v1199 = vsel %vm1104, %v1076, 0.0
  %1200 = vadd.xlane.f32.xlu0 %v1199
  %v1201 = vpop.xlane.xlu0 %1200
  %v1202 = vsel %vm1104, %v1081, 0.0
  %1203 = vadd.xlane.f32.xlu0 %v1202
  %v1204 = vpop.xlane.xlu0 %1203
  %v1205 = vsel %vm1104, %v1086, 0.0
  %1206 = vadd.xlane.f32.xlu0 %v1205
  %v1207 = vpop.xlane.xlu0 %1206
  %v1208 = vsel %vm1104, %v1091, 0.0
  %1209 = vadd.xlane.f32.xlu0 %v1208
  %v1210 = vpop.xlane.xlu0 %1209
  %v1211 = vsel %vm1104, %v1096, 0.0
  %1212 = vadd.xlane.f32.xlu0 %v1211
  %v1213 = vpop.xlane.xlu0 %1212
  %v1214 = vsel %vm1104, %v1101, 0.0
  %1215 = vadd.xlane.f32.xlu0 %v1214
  %v1216 = vpop.xlane.xlu0 %1215
  %v1217 = vadd.f32 %v1185, %v1195
  %v1218 = vadd.f32 %v1186, %v1198
  %v1219 = vadd.f32 %v1187, %v1201
  %v1220 = vadd.f32 %v1188, %v1204
  %v1221 = vadd.f32 %v1189, %v1207
  %v1222 = vadd.f32 %v1190, %v1210
  %v1223 = vadd.f32 %v1191, %v1213
  %v1224 = vadd.f32 %v1192, %v1216
  %v1225 = vmul.f32 %v1217, 0.00625
  %v1226 = vmul.f32 %v1218, 0.00625
  %v1227 = vmul.f32 %v1219, 0.00625
  %v1228 = vmul.f32 %v1220, 0.00625
  %v1229 = vmul.f32 %v1221, 0.00625
  %v1230 = vmul.f32 %v1222, 0.00625
  %v1231 = vmul.f32 %v1223, 0.00625
  %v1232 = vmul.f32 %v1224, 0.00625
  %v1233 = vsub.f32 %v325, %v1225
  %v1234 = vsub.f32 %v330, %v1226
  %v1235 = vsub.f32 %v335, %v1227
  %v1236 = vsub.f32 %v340, %v1228
  %v1237 = vsub.f32 %v345, %v1229
  %v1238 = vsub.f32 %v350, %v1230
  %v1239 = vsub.f32 %v355, %v1231
  %v1240 = vsub.f32 %v360, %v1232
  %v1241 = vmul.f32 %v1233, %v1233
  %v1242 = vmul.f32 %v1234, %v1234
  %v1243 = vmul.f32 %v1235, %v1235
  %v1244 = vmul.f32 %v1236, %v1236
  %v1245 = vmul.f32 %v1237, %v1237
  %v1246 = vmul.f32 %v1238, %v1238
  %v1247 = vmul.f32 %v1239, %v1239
  %v1248 = vmul.f32 %v1240, %v1240
  %v1249 = vsel %vm1104, %v1241, 0.0
  %1250 = vadd.xlane.f32.xlu0 %v1249
  %v1251 = vpop.xlane.xlu0 %1250
  %v1252 = vsel %vm1104, %v1242, 0.0
  %1253 = vadd.xlane.f32.xlu0 %v1252
  %v1254 = vpop.xlane.xlu0 %1253
  %v1255 = vsel %vm1104, %v1243, 0.0
  %1256 = vadd.xlane.f32.xlu0 %v1255
  %v1257 = vpop.xlane.xlu0 %1256
  %v1258 = vsel %vm1104, %v1244, 0.0
  %1259 = vadd.xlane.f32.xlu0 %v1258
  %v1260 = vpop.xlane.xlu0 %1259
  %v1261 = vsel %vm1104, %v1245, 0.0
  %1262 = vadd.xlane.f32.xlu0 %v1261
  %v1263 = vpop.xlane.xlu0 %1262
  %v1264 = vsel %vm1104, %v1246, 0.0
  %1265 = vadd.xlane.f32.xlu0 %v1264
  %v1266 = vpop.xlane.xlu0 %1265
  %v1267 = vsel %vm1104, %v1247, 0.0
  %1268 = vadd.xlane.f32.xlu0 %v1267
  %v1269 = vpop.xlane.xlu0 %1268
  %v1270 = vsel %vm1104, %v1248, 0.0
  %1271 = vadd.xlane.f32.xlu0 %v1270
  %v1272 = vpop.xlane.xlu0 %1271
  %v1273 = vsub.f32 %v572, %v1225
  %v1274 = vsub.f32 %v577, %v1226
  %v1275 = vsub.f32 %v582, %v1227
  %v1276 = vsub.f32 %v587, %v1228
  %v1277 = vsub.f32 %v592, %v1229
  %v1278 = vsub.f32 %v597, %v1230
  %v1279 = vsub.f32 %v602, %v1231
  %v1280 = vsub.f32 %v607, %v1232
  %v1281 = vmul.f32 %v1273, %v1273
  %v1282 = vmul.f32 %v1274, %v1274
  %v1283 = vmul.f32 %v1275, %v1275
  %v1284 = vmul.f32 %v1276, %v1276
  %v1285 = vmul.f32 %v1277, %v1277
  %v1286 = vmul.f32 %v1278, %v1278
  %v1287 = vmul.f32 %v1279, %v1279
  %v1288 = vmul.f32 %v1280, %v1280
  %v1289 = vsel %vm1104, %v1281, 0.0
  %1290 = vadd.xlane.f32.xlu0 %v1289
  %v1291 = vpop.xlane.xlu0 %1290
  %v1292 = vsel %vm1104, %v1282, 0.0
  %1293 = vadd.xlane.f32.xlu0 %v1292
  %v1294 = vpop.xlane.xlu0 %1293
  %v1295 = vsel %vm1104, %v1283, 0.0
  %1296 = vadd.xlane.f32.xlu0 %v1295
  %v1297 = vpop.xlane.xlu0 %1296
  %v1298 = vsel %vm1104, %v1284, 0.0
  %1299 = vadd.xlane.f32.xlu0 %v1298
  %v1300 = vpop.xlane.xlu0 %1299
  %v1301 = vsel %vm1104, %v1285, 0.0
  %1302 = vadd.xlane.f32.xlu0 %v1301
  %v1303 = vpop.xlane.xlu0 %1302
  %v1304 = vsel %vm1104, %v1286, 0.0
  %1305 = vadd.xlane.f32.xlu0 %v1304
  %v1306 = vpop.xlane.xlu0 %1305
  %v1307 = vsel %vm1104, %v1287, 0.0
  %1308 = vadd.xlane.f32.xlu0 %v1307
  %v1309 = vpop.xlane.xlu0 %1308
  %v1310 = vsel %vm1104, %v1288, 0.0
  %1311 = vadd.xlane.f32.xlu0 %v1310
  %v1312 = vpop.xlane.xlu0 %1311
  %v1313 = vadd.f32 %v1251, %v1291
  %v1314 = vadd.f32 %v1254, %v1294
  %v1315 = vadd.f32 %v1257, %v1297
  %v1316 = vadd.f32 %v1260, %v1300
  %v1317 = vadd.f32 %v1263, %v1303
  %v1318 = vadd.f32 %v1266, %v1306
  %v1319 = vadd.f32 %v1269, %v1309
  %v1320 = vadd.f32 %v1272, %v1312
  %v1321 = vsub.f32 %v819, %v1225
  %v1322 = vsub.f32 %v824, %v1226
  %v1323 = vsub.f32 %v829, %v1227
  %v1324 = vsub.f32 %v834, %v1228
  %v1325 = vsub.f32 %v839, %v1229
  %v1326 = vsub.f32 %v844, %v1230
  %v1327 = vsub.f32 %v849, %v1231
  %v1328 = vsub.f32 %v854, %v1232
  %v1329 = vmul.f32 %v1321, %v1321
  %v1330 = vmul.f32 %v1322, %v1322
  %v1331 = vmul.f32 %v1323, %v1323
  %v1332 = vmul.f32 %v1324, %v1324
  %v1333 = vmul.f32 %v1325, %v1325
  %v1334 = vmul.f32 %v1326, %v1326
  %v1335 = vmul.f32 %v1327, %v1327
  %v1336 = vmul.f32 %v1328, %v1328
  %v1337 = vsel %vm1104, %v1329, 0.0
  %1338 = vadd.xlane.f32.xlu0 %v1337
  %v1339 = vpop.xlane.xlu0 %1338
  %v1340 = vsel %vm1104, %v1330, 0.0
  %1341 = vadd.xlane.f32.xlu0 %v1340
  %v1342 = vpop.xlane.xlu0 %1341
  %v1343 = vsel %vm1104, %v1331, 0.0
  %1344 = vadd.xlane.f32.xlu0 %v1343
  %v1345 = vpop.xlane.xlu0 %1344
  %v1346 = vsel %vm1104, %v1332, 0.0
  %1347 = vadd.xlane.f32.xlu0 %v1346
  %v1348 = vpop.xlane.xlu0 %1347
  %v1349 = vsel %vm1104, %v1333, 0.0
  %1350 = vadd.xlane.f32.xlu0 %v1349
  %v1351 = vpop.xlane.xlu0 %1350
  %v1352 = vsel %vm1104, %v1334, 0.0
  %1353 = vadd.xlane.f32.xlu0 %v1352
  %v1354 = vpop.xlane.xlu0 %1353
  %v1355 = vsel %vm1104, %v1335, 0.0
  %1356 = vadd.xlane.f32.xlu0 %v1355
  %v1357 = vpop.xlane.xlu0 %1356
  %v1358 = vsel %vm1104, %v1336, 0.0
  %1359 = vadd.xlane.f32.xlu0 %v1358
  %v1360 = vpop.xlane.xlu0 %1359
  %v1361 = vadd.f32 %v1313, %v1339
  %v1362 = vadd.f32 %v1314, %v1342
  %v1363 = vadd.f32 %v1315, %v1345
  %v1364 = vadd.f32 %v1316, %v1348
  %v1365 = vadd.f32 %v1317, %v1351
  %v1366 = vadd.f32 %v1318, %v1354
  %v1367 = vadd.f32 %v1319, %v1357
  %v1368 = vadd.f32 %v1320, %v1360
  %v1369 = vsub.f32 %v1066, %v1225
  %v1370 = vsub.f32 %v1071, %v1226
  %v1371 = vsub.f32 %v1076, %v1227
  %v1372 = vsub.f32 %v1081, %v1228
  %v1373 = vsub.f32 %v1086, %v1229
  %v1374 = vsub.f32 %v1091, %v1230
  %v1375 = vsub.f32 %v1096, %v1231
  %v1376 = vsub.f32 %v1101, %v1232
  %v1377 = vmul.f32 %v1369, %v1369
  %v1378 = vmul.f32 %v1370, %v1370
  %v1379 = vmul.f32 %v1371, %v1371
  %v1380 = vmul.f32 %v1372, %v1372
  %v1381 = vmul.f32 %v1373, %v1373
  %v1382 = vmul.f32 %v1374, %v1374
  %v1383 = vmul.f32 %v1375, %v1375
  %v1384 = vmul.f32 %v1376, %v1376
  %v1385 = vsel %vm1104, %v1377, 0.0
  %1386 = vadd.xlane.f32.xlu0 %v1385
  %v1387 = vpop.xlane.xlu0 %1386
  %v1388 = vsel %vm1104, %v1378, 0.0
  %1389 = vadd.xlane.f32.xlu0 %v1388
  %v1390 = vpop.xlane.xlu0 %1389
  %v1391 = vsel %vm1104, %v1379, 0.0
  %1392 = vadd.xlane.f32.xlu0 %v1391
  %v1393 = vpop.xlane.xlu0 %1392
  %v1394 = vsel %vm1104, %v1380, 0.0
  %1395 = vadd.xlane.f32.xlu0 %v1394
  %v1396 = vpop.xlane.xlu0 %1395
  %v1397 = vsel %vm1104, %v1381, 0.0
  %1398 = vadd.xlane.f32.xlu0 %v1397
  %v1399 = vpop.xlane.xlu0 %1398
  %v1400 = vsel %vm1104, %v1382, 0.0
  %1401 = vadd.xlane.f32.xlu0 %v1400
  %v1402 = vpop.xlane.xlu0 %1401
  %v1403 = vsel %vm1104, %v1383, 0.0
  %1404 = vadd.xlane.f32.xlu0 %v1403
  %v1405 = vpop.xlane.xlu0 %1404
  %v1406 = vsel %vm1104, %v1384, 0.0
  %1407 = vadd.xlane.f32.xlu0 %v1406
  %v1408 = vpop.xlane.xlu0 %1407
  %v1409 = vadd.f32 %v1361, %v1387
  %v1410 = vadd.f32 %v1362, %v1390
  %v1411 = vadd.f32 %v1363, %v1393
  %v1412 = vadd.f32 %v1364, %v1396
  %v1413 = vadd.f32 %v1365, %v1399
  %v1414 = vadd.f32 %v1366, %v1402
  %v1415 = vadd.f32 %v1367, %v1405
  %v1416 = vadd.f32 %v1368, %v1408
  %v1417 = vmul.f32 %v1409, 0.00625
  %v1418 = vmul.f32 %v1410, 0.00625
  %v1419 = vmul.f32 %v1411, 0.00625
  %v1420 = vmul.f32 %v1412, 0.00625
  %v1421 = vmul.f32 %v1413, 0.00625
  %v1422 = vmul.f32 %v1414, 0.00625
  %v1423 = vmul.f32 %v1415, 0.00625
  %v1424 = vmul.f32 %v1416, 0.00625
  %v1425 = vld [vmem:[%s3] sm:$0xff]
  %v1426 = vld [vmem:[%s3 + $0x8] sm:$0xff]
  %v1427 = vld [vmem:[%s3 + $0x10] sm:$0xff]
  %v1428 = vld [vmem:[%s3 + $0x18] sm:$0xff]
  %v1429 = vld [vmem:[%s3 + $0x20] sm:$0xff]
  %v1430 = vld [vmem:[%s3 + $0x28] sm:$0xff]
  %v1431 = vld [vmem:[%s3 + $0x30] sm:$0xff]
  %v1432 = vld [vmem:[%s3 + $0x38] sm:$0xff]
  %v1433 = vadd.f32 %v1417, 1e-05
  %v1434 = vadd.f32 %v1418, 1e-05
  %v1435 = vadd.f32 %v1419, 1e-05
  %v1436 = vadd.f32 %v1420, 1e-05
  %v1437 = vadd.f32 %v1421, 1e-05
  %v1438 = vadd.f32 %v1422, 1e-05
  %v1439 = vadd.f32 %v1423, 1e-05
  %v1440 = vadd.f32 %v1424, 1e-05
  %v1441 = vrsqrt.pop %v1433
  %v1442 = vrsqrt.pop %v1434
  %v1443 = vrsqrt.pop %v1435
  %v1444 = vrsqrt.pop %v1436
  %v1445 = vrsqrt.pop %v1437
  %v1446 = vrsqrt.pop %v1438
  %v1447 = vrsqrt.pop %v1439
  %v1448 = vrsqrt.pop %v1440
  %v1449 = vmul.f32 %v1425, %v1441
  %v1450 = vmul.f32 %v1426, %v1442
  %v1451 = vmul.f32 %v1427, %v1443
  %v1452 = vmul.f32 %v1428, %v1444
  %v1453 = vmul.f32 %v1429, %v1445
  %v1454 = vmul.f32 %v1430, %v1446
  %v1455 = vmul.f32 %v1431, %v1447
  %v1456 = vmul.f32 %v1432, %v1448
  %v1457 = vld [vmem:[%s4] sm:$0xff]
  %v1458 = vld [vmem:[%s4 + $0x8] sm:$0xff]
  %v1459 = vld [vmem:[%s4 + $0x10] sm:$0xff]
  %v1460 = vld [vmem:[%s4 + $0x18] sm:$0xff]
  %v1461 = vld [vmem:[%s4 + $0x20] sm:$0xff]
  %v1462 = vld [vmem:[%s4 + $0x28] sm:$0xff]
  %v1463 = vld [vmem:[%s4 + $0x30] sm:$0xff]
  %v1464 = vld [vmem:[%s4 + $0x38] sm:$0xff]
  %v1465 = vmul.f32 %v1225, %v1449
  %v1466 = vmul.f32 %v1226, %v1450
  %v1467 = vmul.f32 %v1227, %v1451
  %v1468 = vmul.f32 %v1228, %v1452
  %v1469 = vmul.f32 %v1229, %v1453
  %v1470 = vmul.f32 %v1230, %v1454
  %v1471 = vmul.f32 %v1231, %v1455
  %v1472 = vmul.f32 %v1232, %v1456
  %v1473 = vsub.f32 %v1457, %v1465
  %v1474 = vsub.f32 %v1458, %v1466
  %v1475 = vsub.f32 %v1459, %v1467
  %v1476 = vsub.f32 %v1460, %v1468
  %v1477 = vsub.f32 %v1461, %v1469
  %v1478 = vsub.f32 %v1462, %v1470
  %v1479 = vsub.f32 %v1463, %v1471
  %v1480 = vsub.f32 %v1464, %v1472
  %v1481 = vadd.f32 %v325, %v572
  %v1482 = vadd.f32 %v330, %v577
  %v1483 = vadd.f32 %v335, %v582
  %v1484 = vadd.f32 %v340, %v587
  %v1485 = vadd.f32 %v345, %v592
  %v1486 = vadd.f32 %v350, %v597
  %v1487 = vadd.f32 %v355, %v602
  %v1488 = vadd.f32 %v360, %v607
  %v1489 = vadd.f32 %v1481, %v819
  %v1490 = vadd.f32 %v1482, %v824
  %v1491 = vadd.f32 %v1483, %v829
  %v1492 = vadd.f32 %v1484, %v834
  %v1493 = vadd.f32 %v1485, %v839
  %v1494 = vadd.f32 %v1486, %v844
  %v1495 = vadd.f32 %v1487, %v849
  %v1496 = vadd.f32 %v1488, %v854
  %v1497 = vadd.f32 %v1489, %v1066
  %v1498 = vadd.f32 %v1490, %v1071
  %v1499 = vadd.f32 %v1491, %v1076
  %v1500 = vadd.f32 %v1492, %v1081
  %v1501 = vadd.f32 %v1493, %v1086
  %v1502 = vadd.f32 %v1494, %v1091
  %v1503 = vadd.f32 %v1495, %v1096
  %v1504 = vadd.f32 %v1496, %v1101
  %v1505 = vmul.f32 %v1497, 0.25
  %v1506 = vmul.f32 %v1498, 0.25
  %v1507 = vmul.f32 %v1499, 0.25
  %v1508 = vmul.f32 %v1500, 0.25
  %v1509 = vmul.f32 %v1501, 0.25
  %v1510 = vmul.f32 %v1502, 0.25
  %v1511 = vmul.f32 %v1503, 0.25
  %v1512 = vmul.f32 %v1504, 0.25
  %1514 = vset.pattern.permute.xlu0 0
  %1515 = vperm.xlu0 %1514, %v1449
  %v1516 = vpop.permute.xlu0 %1515
  %1519 = vset.pattern.permute.xlu0 0
  %1520 = vperm.xlu0 %1519, %v1450
  %v1521 = vpop.permute.xlu0 %1520
  %1524 = vset.pattern.permute.xlu0 0
  %1525 = vperm.xlu0 %1524, %v1451
  %v1526 = vpop.permute.xlu0 %1525
  %1529 = vset.pattern.permute.xlu0 0
  %1530 = vperm.xlu0 %1529, %v1452
  %v1531 = vpop.permute.xlu0 %1530
  %1534 = vset.pattern.permute.xlu0 0
  %1535 = vperm.xlu0 %1534, %v1453
  %v1536 = vpop.permute.xlu0 %1535
  %1539 = vset.pattern.permute.xlu0 0
  %1540 = vperm.xlu0 %1539, %v1454
  %v1541 = vpop.permute.xlu0 %1540
  %1544 = vset.pattern.permute.xlu0 0
  %1545 = vperm.xlu0 %1544, %v1455
  %v1546 = vpop.permute.xlu0 %1545
  %1549 = vset.pattern.permute.xlu0 0
  %1550 = vperm.xlu0 %1549, %v1456
  %v1551 = vpop.permute.xlu0 %1550
  %v1553 = vmul.f32 %v1505, %v1516
  %v1554 = vmul.f32 %v1506, %v1521
  %v1555 = vmul.f32 %v1507, %v1526
  %v1556 = vmul.f32 %v1508, %v1531
  %v1557 = vmul.f32 %v1509, %v1536
  %v1558 = vmul.f32 %v1510, %v1541
  %v1559 = vmul.f32 %v1511, %v1546
  %v1560 = vmul.f32 %v1512, %v1551
  %1562 = vset.pattern.permute.xlu0 0
  %1563 = vperm.xlu0 %1562, %v1473
  %v1564 = vpop.permute.xlu0 %1563
  %1567 = vset.pattern.permute.xlu0 0
  %1568 = vperm.xlu0 %1567, %v1474
  %v1569 = vpop.permute.xlu0 %1568
  %1572 = vset.pattern.permute.xlu0 0
  %1573 = vperm.xlu0 %1572, %v1475
  %v1574 = vpop.permute.xlu0 %1573
  %1577 = vset.pattern.permute.xlu0 0
  %1578 = vperm.xlu0 %1577, %v1476
  %v1579 = vpop.permute.xlu0 %1578
  %1582 = vset.pattern.permute.xlu0 0
  %1583 = vperm.xlu0 %1582, %v1477
  %v1584 = vpop.permute.xlu0 %1583
  %1587 = vset.pattern.permute.xlu0 0
  %1588 = vperm.xlu0 %1587, %v1478
  %v1589 = vpop.permute.xlu0 %1588
  %1592 = vset.pattern.permute.xlu0 0
  %1593 = vperm.xlu0 %1592, %v1479
  %v1594 = vpop.permute.xlu0 %1593
  %1597 = vset.pattern.permute.xlu0 0
  %1598 = vperm.xlu0 %1597, %v1480
  %v1599 = vpop.permute.xlu0 %1598
  %v1601 = vadd.f32 %v1553, %v1564
  %v1602 = vadd.f32 %v1554, %v1569
  %v1603 = vadd.f32 %v1555, %v1574
  %v1604 = vadd.f32 %v1556, %v1579
  %v1605 = vadd.f32 %v1557, %v1584
  %v1606 = vadd.f32 %v1558, %v1589
  %v1607 = vadd.f32 %v1559, %v1594
  %v1608 = vadd.f32 %v1560, %v1599
  %vm1609 = vcmp.gt.f32.partialorder %v1601, 0.0
  %vm1610 = vcmp.gt.f32.partialorder %v1602, 0.0
  %vm1611 = vcmp.gt.f32.partialorder %v1603, 0.0
  %vm1612 = vcmp.gt.f32.partialorder %v1604, 0.0
  %vm1613 = vcmp.gt.f32.partialorder %v1605, 0.0
  %vm1614 = vcmp.gt.f32.partialorder %v1606, 0.0
  %vm1615 = vcmp.gt.f32.partialorder %v1607, 0.0
  %vm1616 = vcmp.gt.f32.partialorder %v1608, 0.0
  %v1617 = vmul.f32 %v1601, 0.2
  %v1618 = vmul.f32 %v1602, 0.2
  %v1619 = vmul.f32 %v1603, 0.2
  %v1620 = vmul.f32 %v1604, 0.2
  %v1621 = vmul.f32 %v1605, 0.2
  %v1622 = vmul.f32 %v1606, 0.2
  %v1623 = vmul.f32 %v1607, 0.2
  %v1624 = vmul.f32 %v1608, 0.2
  %v1625 = vsel %vm1609, %v1601, %v1617
  %v1626 = vsel %vm1610, %v1602, %v1618
  %v1627 = vsel %vm1611, %v1603, %v1619
  %v1628 = vsel %vm1612, %v1604, %v1620
  %v1629 = vsel %vm1613, %v1605, %v1621
  %v1630 = vsel %vm1614, %v1606, %v1622
  %v1631 = vsel %vm1615, %v1607, %v1623
  %v1632 = vsel %vm1616, %v1608, %v1624
  %1633 = vst.msk [vmem:[%s5] sm:$0xff] %vm1104, %v1625
  %1634 = vst.msk [vmem:[%s5 + $0x8] sm:$0xff] %vm1104, %v1626
  %1635 = vst.msk [vmem:[%s5 + $0x10] sm:$0xff] %vm1104, %v1627
  %1636 = vst.msk [vmem:[%s5 + $0x18] sm:$0xff] %vm1104, %v1628
  %1637 = vst.msk [vmem:[%s5 + $0x20] sm:$0xff] %vm1104, %v1629
  %1638 = vst.msk [vmem:[%s5 + $0x28] sm:$0xff] %vm1104, %v1630
  %1639 = vst.msk [vmem:[%s5 + $0x30] sm:$0xff] %vm1104, %v1631
  %1640 = vst.msk [vmem:[%s5 + $0x38] sm:$0xff] %vm1104, %v1632
  // Predicated region
  $region22: #{_lambda_.8} parent=0 // pred_check
    _
  $region23: #{_lambda_.8} parent=0 // pred_check_branch
    %1642 = sbr.rel (0) target = $region25
  $region24: #{_lambda_.8} parent=0 // pred_region
    _
  $region25: #{_lambda_.8} parent=0 // pred_fallthru
    _
  // Predicated region
  $region26: #{_lambda_.8} parent=0 // pred_check
    _
  $region27: #{_lambda_.8} parent=0 // pred_check_branch
    %1644 = sbr.rel (0) target = $region29
  $region28: #{_lambda_.8} parent=0 // pred_region
    _
  $region29: #{_lambda_.8} parent=0 // pred_fallthru
    _

// kernel: tile.7
$region0: #{tile.7}
  %s0 = inlined_call_operand.vmem [shape: f32[128,2,3], index: 0, kind: input, shape index: {}]
  %s1 = inlined_call_operand.vmem [shape: f32[128,6], index: 1, kind: output, shape index: {}]
  $region1: #{tile.7} parent=0
    #allocation0 [shape = 'u8[8192]{0}', space=vmem, size = 0x2000, scoped, tag = 'scoped mem for input reshape']
    %s3 = sshll.u32 1, 4
    %s4 = ssub.s32 %s3, 1
    %s5 = scalar_lea.vmem %s0, 4
    %v6 = vld [vmem:[%s5] sm:%s4]
    %s7 = scalar_lea.vmem [#allocation0], 8
    %8 = vst [vmem:[%s7] sm:%s4] %v6
    %v9 = vld [vmem:[%s0] sm:%s4]
    %10 = vst [vmem:[#allocation0] sm:%s4] %v9
    %v11 = vld [vmem:[#allocation0] sm:$0x7]
    %12 = vst [vmem:[%s1] sm:$0x7] %v11
    %s13 = scalar_lea.vmem [#allocation0], 8
    %v14 = vld [vmem:[%s13] sm:$0x7]
    %s15 = scalar_lea.vmem %s1, 3
    %16 = vst [vmem:[%s15] sm:$0x7] %v14

// kernel: _lambda_.9
$region0: #{_lambda_.9}
  #allocation0 [shape = 'u32[]', space=smem, size = 0x4, offset = 0x4, fixed_abs, tag = 'smem constant byte address 0x4 - core index']
  #allocation1 [shape = 'u32[144,128]{1,0:T(1,128)}', space=vmem, size = 0x12000, scoped, tag = 'internal scratch']
  #allocation2 [shape = 'f32[1,1]{1,0:T(1,128)S(1)}', space=vmem, size = 0x200, scoped, tag = 'scoped memory for _lambda_.9']
  %s0 = inlined_call_operand.vmem [shape: f32[4,576,6], index: 0, kind: input, shape index: {}]
  %s1 = inlined_call_operand.vmem [shape: f32[576,4], index: 1, kind: input, shape index: {}]
  %s2 = inlined_call_operand.vmem [shape: f32[128,576], index: 2, kind: input, shape index: {}]
  %s3 = inlined_call_operand.vmem [shape: f32[128,1], index: 3, kind: input, shape index: {}]
  %s4 = inlined_call_operand.vmem [shape: f32[128,1], index: 4, kind: input, shape index: {}]
  %s5 = inlined_call_operand.vmem [shape: f32[128,1], index: 5, kind: input, shape index: {}]
  %s6 = inlined_call_operand.vmem [shape: f32[128,6], index: 6, kind: input, shape index: {}]
  %s7 = inlined_call_operand.vmem [shape: f32[6,2], index: 7, kind: input, shape index: {}]
  %s8 = inlined_call_operand.<no memory space> [shape: f32[1,1], index: 8, kind: input, shape index: {}]
  %s9 = inlined_call_operand.hbm [shape: f32[1,2], index: 9, kind: output, shape index: {}]
  %s10 = sld [smem:[#allocation0]]
  $region46: #{_lambda_.9} parent=0
    _
  %s12 = ssub.s32 1, %s10
  %s13 = scalar_select 0, %s12, %s10
  %v14 = vstv %s8
  %15 = vst [vmem:[#allocation2] sm:$0x1] %v14
  $region1: #{_lambda_.9} parent=0
    #allocation3 [shape = 'u8[512]{0}', space=vmem, size = 0x400, scoped, tag = 'output window, operand 0, single buffered']
    #allocation4 [shape = 's32[1]{0}', space=sflag, size = 0x4, scoped, tag = 'scoped memory for _lambda_.9']
    %16 = vsyncpa [#allocation4], 0
    // Predicated region
    $region2: #{_lambda_.9} parent=1 // pred_check
      _
    $region3: #{_lambda_.9} parent=1 // pred_check_branch
      %18 = sbr.rel (0) target = $region5
    $region4: #{_lambda_.9} parent=1 // pred_region
      _
    $region5: #{_lambda_.9} parent=1 // pred_fallthru
      _
    // Predicated region
    $region6: #{_lambda_.9} parent=1 // pred_check
      _
    $region7: #{_lambda_.9} parent=1 // pred_check_branch
      %20 = sbr.rel (0) target = $region9
    $region8: #{_lambda_.9} parent=1 // pred_region
      _
    $region9: #{_lambda_.9} parent=1 // pred_fallthru
      _
    // Predicated region
    $region10: #{_lambda_.9} parent=1 // pred_check
      _
    $region11: #{_lambda_.9} parent=1 // pred_check_branch
      %22 = sbr.rel (0) target = $region13
    $region12: #{_lambda_.9} parent=1 // pred_region
      _
    $region13: #{_lambda_.9} parent=1 // pred_fallthru
      _
    // Predicated region
    $region14: #{_lambda_.9} parent=1 // pred_check
      _
    $region15: #{_lambda_.9} parent=1 // pred_check_branch
      %24 = sbr.rel (0) target = $region17
    $region16: #{_lambda_.9} parent=1 // pred_region
      _
    $region17: #{_lambda_.9} parent=1 // pred_fallthru
      _
    // Predicated region
    $region18: #{_lambda_.9} parent=1 // pred_check
      _
    $region19: #{_lambda_.9} parent=1 // pred_check_branch
      %26 = sbr.rel (0) target = $region21
    $region20: #{_lambda_.9} parent=1 // pred_region
      _
    $region21: #{_lambda_.9} parent=1 // pred_fallthru
      _
    // Predicated region
    $region22: #{_lambda_.9} parent=1 // pred_check
      _
    $region23: #{_lambda_.9} parent=1 // pred_check_branch
      %28 = sbr.rel (0) target = $region25
    $region24: #{_lambda_.9} parent=1 // pred_region
      _
    $region25: #{_lambda_.9} parent=1 // pred_fallthru
      _
    // Predicated region
    $region26: #{_lambda_.9} parent=1 // pred_check
      _
    $region27: #{_lambda_.9} parent=1 // pred_check_branch
      %30 = sbr.rel (0) target = $region29
    $region28: #{_lambda_.9} parent=1 // pred_region
      _
    $region29: #{_lambda_.9} parent=1 // pred_fallthru
      _
    // Predicated region
    $region30: #{_lambda_.9} parent=1 // pred_check
      _
    $region31: #{_lambda_.9} parent=1 // pred_check_branch
      %32 = sbr.rel (0) target = $region33
    $region32: #{_lambda_.9} parent=1 // pred_region
      _
    $region33: #{_lambda_.9} parent=1 // pred_fallthru
      _
    // Predicated region
    $region34: #{_lambda_.9} parent=1 // pred_check
      _
    $region35: #{_lambda_.9} parent=1 // pred_check_branch
      %34 = sbr.rel (0) target = $region37
    $region36: #{_lambda_.9} parent=1 // pred_region
      _
    $region37: #{_lambda_.9} parent=1 // pred_fallthru
      _
    %v35 = vld [vmem:[%s2] sm:$0xff]
    %v36 = vld [vmem:[%s2 + $0x8] sm:$0xff]
    %v37 = vld [vmem:[%s2 + $0x10] sm:$0xff]
    %v38 = vld [vmem:[%s2 + $0x18] sm:$0xff]
    %v39 = vld [vmem:[%s2 + $0x20] sm:$0xff]
    %v40 = vld [vmem:[%s2 + $0x28] sm:$0xff]
    %v41 = vld [vmem:[%s2 + $0x30] sm:$0xff]
    %v42 = vld [vmem:[%s2 + $0x38] sm:$0xff]
    %v43 = vld [vmem:[%s2 + $0x40] sm:$0xff]
    %v44 = vld [vmem:[%s2 + $0x48] sm:$0xff]
    %v45 = vld [vmem:[%s2 + $0x50] sm:$0xff]
    %v46 = vld [vmem:[%s2 + $0x58] sm:$0xff]
    %v47 = vld [vmem:[%s2 + $0x60] sm:$0xff]
    %v48 = vld [vmem:[%s2 + $0x68] sm:$0xff]
    %v49 = vld [vmem:[%s2 + $0x70] sm:$0xff]
    %v50 = vld [vmem:[%s2 + $0x78] sm:$0xff]
    %v51 = vld [vmem:[%s2 + $0x80] sm:$0xff]
    %v52 = vld [vmem:[%s2 + $0x88] sm:$0xff]
    %v53 = vld [vmem:[%s2 + $0x90] sm:$0xff]
    %v54 = vld [vmem:[%s2 + $0x98] sm:$0xff]
    %v55 = vld [vmem:[%s2 + $0xa0] sm:$0xff]
    %v56 = vld [vmem:[%s2 + $0xa8] sm:$0xff]
    %v57 = vld [vmem:[%s2 + $0xb0] sm:$0xff]
    %v58 = vld [vmem:[%s2 + $0xb8] sm:$0xff]
    %v59 = vld [vmem:[%s2 + $0xc0] sm:$0xff]
    %v60 = vld [vmem:[%s2 + $0xc8] sm:$0xff]
    %v61 = vld [vmem:[%s2 + $0xd0] sm:$0xff]
    %v62 = vld [vmem:[%s2 + $0xd8] sm:$0xff]
    %v63 = vld [vmem:[%s2 + $0xe0] sm:$0xff]
    %v64 = vld [vmem:[%s2 + $0xe8] sm:$0xff]
    %v65 = vld [vmem:[%s2 + $0xf0] sm:$0xff]
    %v66 = vld [vmem:[%s2 + $0xf8] sm:$0xff]
    %v67 = vld [vmem:[%s2 + $0x100] sm:$0xff]
    %v68 = vld [vmem:[%s2 + $0x108] sm:$0xff]
    %v69 = vld [vmem:[%s2 + $0x110] sm:$0xff]
    %v70 = vld [vmem:[%s2 + $0x118] sm:$0xff]
    %v71 = vld [vmem:[%s2 + $0x120] sm:$0xff]
    %v72 = vld [vmem:[%s2 + $0x128] sm:$0xff]
    %v73 = vld [vmem:[%s2 + $0x130] sm:$0xff]
    %v74 = vld [vmem:[%s2 + $0x138] sm:$0xff]
    %v75 = vld [vmem:[%s2 + $0x140] sm:$0xff]
    %v76 = vld [vmem:[%s2 + $0x148] sm:$0xff]
    %v77 = vld [vmem:[%s2 + $0x150] sm:$0xff]
    %v78 = vld [vmem:[%s2 + $0x158] sm:$0xff]
    %v79 = vld [vmem:[%s2 + $0x160] sm:$0xff]
    %v80 = vld [vmem:[%s2 + $0x168] sm:$0xff]
    %v81 = vld [vmem:[%s2 + $0x170] sm:$0xff]
    %v82 = vld [vmem:[%s2 + $0x178] sm:$0xff]
    %v83 = vld [vmem:[%s2 + $0x180] sm:$0xff]
    %v84 = vld [vmem:[%s2 + $0x188] sm:$0xff]
    %v85 = vld [vmem:[%s2 + $0x190] sm:$0xff]
    %v86 = vld [vmem:[%s2 + $0x198] sm:$0xff]
    %v87 = vld [vmem:[%s2 + $0x1a0] sm:$0xff]
    %v88 = vld [vmem:[%s2 + $0x1a8] sm:$0xff]
    %v89 = vld [vmem:[%s2 + $0x1b0] sm:$0xff]
    %v90 = vld [vmem:[%s2 + $0x1b8] sm:$0xff]
    %v91 = vld [vmem:[%s2 + $0x1c0] sm:$0xff]
    %v92 = vld [vmem:[%s2 + $0x1c8] sm:$0xff]
    %v93 = vld [vmem:[%s2 + $0x1d0] sm:$0xff]
    %v94 = vld [vmem:[%s2 + $0x1d8] sm:$0xff]
    %v95 = vld [vmem:[%s2 + $0x1e0] sm:$0xff]
    %v96 = vld [vmem:[%s2 + $0x1e8] sm:$0xff]
    %v97 = vld [vmem:[%s2 + $0x1f0] sm:$0xff]
    %v98 = vld [vmem:[%s2 + $0x1f8] sm:$0xff]
    %v99 = vld [vmem:[%s2 + $0x200] sm:$0xff]
    %v100 = vld [vmem:[%s2 + $0x208] sm:$0xff]
    %v101 = vld [vmem:[%s2 + $0x210] sm:$0xff]
    %v102 = vld [vmem:[%s2 + $0x218] sm:$0xff]
    %v103 = vld [vmem:[%s2 + $0x220] sm:$0xff]
    %v104 = vld [vmem:[%s2 + $0x228] sm:$0xff]
    %v105 = vld [vmem:[%s2 + $0x230] sm:$0xff]
    %v106 = vld [vmem:[%s2 + $0x238] sm:$0xff]
    %v107 = vld [vmem:[%s2 + $0x240] sm:$0xff]
    %v108 = vld [vmem:[%s2 + $0x248] sm:$0xff]
    %v109 = vld [vmem:[%s2 + $0x250] sm:$0xff]
    %v110 = vld [vmem:[%s2 + $0x258] sm:$0xff]
    %v111 = vld [vmem:[%s2 + $0x260] sm:$0xff]
    %v112 = vld [vmem:[%s2 + $0x268] sm:$0xff]
    %v113 = vld [vmem:[%s2 + $0x270] sm:$0xff]
    %v114 = vld [vmem:[%s2 + $0x278] sm:$0xff]
    %v115 = vld [vmem:[%s3] sm:$0xff]
    %v116 = vld [vmem:[%s3 + $0x8] sm:$0xff]
    %v117 = vld [vmem:[%s3 + $0x10] sm:$0xff]
    %v118 = vld [vmem:[%s3 + $0x18] sm:$0xff]
    %v119 = vld [vmem:[%s3 + $0x20] sm:$0xff]
    %v120 = vld [vmem:[%s3 + $0x28] sm:$0xff]
    %v121 = vld [vmem:[%s3 + $0x30] sm:$0xff]
    %v122 = vld [vmem:[%s3 + $0x38] sm:$0xff]
    %v123 = vld [vmem:[%s3 + $0x40] sm:$0xff]
    %v124 = vld [vmem:[%s3 + $0x48] sm:$0xff]
    %v125 = vld [vmem:[%s3 + $0x50] sm:$0xff]
    %v126 = vld [vmem:[%s3 + $0x58] sm:$0xff]
    %v127 = vld [vmem:[%s3 + $0x60] sm:$0xff]
    %v128 = vld [vmem:[%s3 + $0x68] sm:$0xff]
    %v129 = vld [vmem:[%s3 + $0x70] sm:$0xff]
    %v130 = vld [vmem:[%s3 + $0x78] sm:$0xff]
    %v131 = vld [vmem:[%s0] sm:$0xff]
    %v132 = vld [vmem:[%s0 + $0x8] sm:$0xff]
    %v133 = vld [vmem:[%s0 + $0x10] sm:$0xff]
    %v134 = vld [vmem:[%s0 + $0x18] sm:$0xff]
    %v135 = vld [vmem:[%s0 + $0x20] sm:$0xff]
    %v136 = vld [vmem:[%s0 + $0x28] sm:$0xff]
    %v137 = vld [vmem:[%s0 + $0x30] sm:$0xff]
    %v138 = vld [vmem:[%s0 + $0x38] sm:$0xff]
    %v139 = vld [vmem:[%s0 + $0x40] sm:$0xff]
    %v140 = vld [vmem:[%s0 + $0x48] sm:$0xff]
    %v141 = vld [vmem:[%s0 + $0x50] sm:$0xff]
    %v142 = vld [vmem:[%s0 + $0x58] sm:$0xff]
    %v143 = vld [vmem:[%s0 + $0x60] sm:$0xff]
    %v144 = vld [vmem:[%s0 + $0x68] sm:$0xff]
    %v145 = vld [vmem:[%s0 + $0x70] sm:$0xff]
    %v146 = vld [vmem:[%s0 + $0x78] sm:$0xff]
    %v147 = vld [vmem:[%s0 + $0x80] sm:$0xff]
    %v148 = vld [vmem:[%s0 + $0x88] sm:$0xff]
    %v149 = vld [vmem:[%s0 + $0x90] sm:$0xff]
    %v150 = vld [vmem:[%s0 + $0x98] sm:$0xff]
    %v151 = vld [vmem:[%s0 + $0xa0] sm:$0xff]
    %v152 = vld [vmem:[%s0 + $0xa8] sm:$0xff]
    %v153 = vld [vmem:[%s0 + $0xb0] sm:$0xff]
    %v154 = vld [vmem:[%s0 + $0xb8] sm:$0xff]
    %v155 = vld [vmem:[%s0 + $0xc0] sm:$0xff]
    %v156 = vld [vmem:[%s0 + $0xc8] sm:$0xff]
    %v157 = vld [vmem:[%s0 + $0xd0] sm:$0xff]
    %v158 = vld [vmem:[%s0 + $0xd8] sm:$0xff]
    %v159 = vld [vmem:[%s0 + $0xe0] sm:$0xff]
    %v160 = vld [vmem:[%s0 + $0xe8] sm:$0xff]
    %v161 = vld [vmem:[%s0 + $0xf0] sm:$0xff]
    %v162 = vld [vmem:[%s0 + $0xf8] sm:$0xff]
    %v163 = vld [vmem:[%s0 + $0x100] sm:$0xff]
    %v164 = vld [vmem:[%s0 + $0x108] sm:$0xff]
    %v165 = vld [vmem:[%s0 + $0x110] sm:$0xff]
    %v166 = vld [vmem:[%s0 + $0x118] sm:$0xff]
    %v167 = vld [vmem:[%s0 + $0x120] sm:$0xff]
    %v168 = vld [vmem:[%s0 + $0x128] sm:$0xff]
    %v169 = vld [vmem:[%s0 + $0x130] sm:$0xff]
    %v170 = vld [vmem:[%s0 + $0x138] sm:$0xff]
    %v171 = vld [vmem:[%s0 + $0x140] sm:$0xff]
    %v172 = vld [vmem:[%s0 + $0x148] sm:$0xff]
    %v173 = vld [vmem:[%s0 + $0x150] sm:$0xff]
    %v174 = vld [vmem:[%s0 + $0x158] sm:$0xff]
    %v175 = vld [vmem:[%s0 + $0x160] sm:$0xff]
    %v176 = vld [vmem:[%s0 + $0x168] sm:$0xff]
    %v177 = vld [vmem:[%s0 + $0x170] sm:$0xff]
    %v178 = vld [vmem:[%s0 + $0x178] sm:$0xff]
    %v179 = vld [vmem:[%s0 + $0x180] sm:$0xff]
    %v180 = vld [vmem:[%s0 + $0x188] sm:$0xff]
    %v181 = vld [vmem:[%s0 + $0x190] sm:$0xff]
    %v182 = vld [vmem:[%s0 + $0x198] sm:$0xff]
    %v183 = vld [vmem:[%s0 + $0x1a0] sm:$0xff]
    %v184 = vld [vmem:[%s0 + $0x1a8] sm:$0xff]
    %v185 = vld [vmem:[%s0 + $0x1b0] sm:$0xff]
    %v186 = vld [vmem:[%s0 + $0x1b8] sm:$0xff]
    %v187 = vld [vmem:[%s0 + $0x1c0] sm:$0xff]
    %v188 = vld [vmem:[%s0 + $0x1c8] sm:$0xff]
    %v189 = vld [vmem:[%s0 + $0x1d0] sm:$0xff]
    %v190 = vld [vmem:[%s0 + $0x1d8] sm:$0xff]
    %v191 = vld [vmem:[%s0 + $0x1e0] sm:$0xff]
    %v192 = vld [vmem:[%s0 + $0x1e8] sm:$0xff]
    %v193 = vld [vmem:[%s0 + $0x1f0] sm:$0xff]
    %v194 = vld [vmem:[%s0 + $0x1f8] sm:$0xff]
    %v195 = vld [vmem:[%s0 + $0x200] sm:$0xff]
    %v196 = vld [vmem:[%s0 + $0x208] sm:$0xff]
    %v197 = vld [vmem:[%s0 + $0x210] sm:$0xff]
    %v198 = vld [vmem:[%s0 + $0x218] sm:$0xff]
    %v199 = vld [vmem:[%s0 + $0x220] sm:$0xff]
    %v200 = vld [vmem:[%s0 + $0x228] sm:$0xff]
    %v201 = vld [vmem:[%s0 + $0x230] sm:$0xff]
    %v202 = vld [vmem:[%s0 + $0x238] sm:$0xff]
    %204 = vset.pattern.permute.xlu0 0
    %205 = vperm.xlu0 %204, %v115
    %v206 = vpop.permute.xlu0 %205
    %209 = vset.pattern.permute.xlu0 0
    %210 = vperm.xlu0 %209, %v116
    %v211 = vpop.permute.xlu0 %210
    %214 = vset.pattern.permute.xlu0 0
    %215 = vperm.xlu0 %214, %v117
    %v216 = vpop.permute.xlu0 %215
    %219 = vset.pattern.permute.xlu0 0
    %220 = vperm.xlu0 %219, %v118
    %v221 = vpop.permute.xlu0 %220
    %224 = vset.pattern.permute.xlu0 0
    %225 = vperm.xlu0 %224, %v119
    %v226 = vpop.permute.xlu0 %225
    %229 = vset.pattern.permute.xlu0 0
    %230 = vperm.xlu0 %229, %v120
    %v231 = vpop.permute.xlu0 %230
    %234 = vset.pattern.permute.xlu0 0
    %235 = vperm.xlu0 %234, %v121
    %v236 = vpop.permute.xlu0 %235
    %239 = vset.pattern.permute.xlu0 0
    %240 = vperm.xlu0 %239, %v122
    %v241 = vpop.permute.xlu0 %240
    %244 = vset.pattern.permute.xlu0 0
    %245 = vperm.xlu0 %244, %v123
    %v246 = vpop.permute.xlu0 %245
    %249 = vset.pattern.permute.xlu0 0
    %250 = vperm.xlu0 %249, %v124
    %v251 = vpop.permute.xlu0 %250
    %254 = vset.pattern.permute.xlu0 0
    %255 = vperm.xlu0 %254, %v125
    %v256 = vpop.permute.xlu0 %255
    %259 = vset.pattern.permute.xlu0 0
    %260 = vperm.xlu0 %259, %v126
    %v261 = vpop.permute.xlu0 %260
    %264 = vset.pattern.permute.xlu0 0
    %265 = vperm.xlu0 %264, %v127
    %v266 = vpop.permute.xlu0 %265
    %269 = vset.pattern.permute.xlu0 0
    %270 = vperm.xlu0 %269, %v128
    %v271 = vpop.permute.xlu0 %270
    %274 = vset.pattern.permute.xlu0 0
    %275 = vperm.xlu0 %274, %v129
    %v276 = vpop.permute.xlu0 %275
    %279 = vset.pattern.permute.xlu0 0
    %280 = vperm.xlu0 %279, %v130
    %v281 = vpop.permute.xlu0 %280
    %vm283 = vcmask 523264
    %v285 = vsel %vm283, %v39, 0
    %v288 = vsel %vm283, %v44, 0
    %v291 = vsel %vm283, %v49, 0
    %v294 = vsel %vm283, %v54, 0
    %v297 = vsel %vm283, %v59, 0
    %v300 = vsel %vm283, %v64, 0
    %v303 = vsel %vm283, %v69, 0
    %v306 = vsel %vm283, %v74, 0
    %v309 = vsel %vm283, %v79, 0
    %v312 = vsel %vm283, %v84, 0
    %v315 = vsel %vm283, %v89, 0
    %v318 = vsel %vm283, %v94, 0
    %v321 = vsel %vm283, %v99, 0
    %v324 = vsel %vm283, %v104, 0
    %v327 = vsel %vm283, %v109, 0
    %v330 = vsel %vm283, %v114, 0
    %332 = vmatprep.subr.mxu0 0.0
    %333 = vmatpush1.msra.mxu0 %v146
    %334 = vmatprep.subr.mxu0 0.0
    %335 = vmatpush1.msra.mxu0 %v145
    %336 = vmatprep.subr.mxu0 0.0
    %337 = vmatpush1.msra.mxu0 %v144
    %338 = vmatprep.subr.mxu0 0.0
    %339 = vmatpush1.msra.mxu0 %v143
    %340 = vmatprep.subr.mxu0 0.0
    %341 = vmatpush1.msra.mxu0 %v142
    %342 = vmatprep.subr.mxu0 0.0
    %343 = vmatpush1.msra.mxu0 %v141
    %344 = vmatprep.subr.mxu0 0.0
    %345 = vmatpush1.msra.mxu0 %v140
    %346 = vmatprep.subr.mxu0 0.0
    %347 = vmatpush1.msra.mxu0 %v139
    %348 = vmatprep.subr.mxu0 0.0
    %349 = vmatpush1.msra.mxu0 %v138
    %350 = vmatprep.subr.mxu0 0.0
    %351 = vmatpush1.msra.mxu0 %v137
    %352 = vmatprep.subr.mxu0 0.0
    %353 = vmatpush1.msra.mxu0 %v136
    %354 = vmatprep.subr.mxu0 0.0
    %355 = vmatpush1.msra.mxu0 %v135
    %356 = vmatprep.subr.mxu0 0.0
    %357 = vmatpush1.msra.mxu0 %v134
    %358 = vmatprep.subr.mxu0 0.0
    %359 = vmatpush1.msra.mxu0 %v133
    %360 = vmatprep.subr.mxu0 0.0
    %361 = vmatpush1.msra.mxu0 %v132
    %362 = vmatprep.subr.mxu0 0.0
    %363 = vmatpush1.msra.mxu0 %v131
    %364 = vmatprep.subr.mxu0 0.0
    %365 = vmatpush2.msra.mxu0 %v162
    %366 = vmatprep.subr.mxu0 0.0
    %367 = vmatpush2.msra.mxu0 %v161
    %368 = vmatprep.subr.mxu0 0.0
    %369 = vmatpush2.msra.mxu0 %v160
    %370 = vmatprep.subr.mxu0 0.0
    %371 = vmatpush2.msra.mxu0 %v159
    %372 = vmatprep.subr.mxu0 0.0
    %373 = vmatpush2.msra.mxu0 %v158
    %374 = vmatprep.subr.mxu0 0.0
    %375 = vmatpush2.msra.mxu0 %v157
    %376 = vmatprep.subr.mxu0 0.0
    %377 = vmatpush2.msra.mxu0 %v156
    %378 = vmatprep.subr.mxu0 0.0
    %379 = vmatpush2.msra.mxu0 %v155
    %380 = vmatprep.subr.mxu0 0.0
    %381 = vmatpush2.msra.mxu0 %v154
    %382 = vmatprep.subr.mxu0 0.0
    %383 = vmatpush2.msra.mxu0 %v153
    %384 = vmatprep.subr.mxu0 0.0
    %385 = vmatpush2.msra.mxu0 %v152
    %386 = vmatprep.subr.mxu0 0.0
    %387 = vmatpush2.msra.mxu0 %v151
    %388 = vmatprep.subr.mxu0 0.0
    %389 = vmatpush2.msra.mxu0 %v150
    %390 = vmatprep.subr.mxu0 0.0
    %391 = vmatpush2.msra.mxu0 %v149
    %392 = vmatprep.subr.mxu0 0.0
    %393 = vmatpush2.msra.mxu0 %v148
    %394 = vmatprep.subr.mxu0 0.0
    %395 = vmatpush2.msra.mxu0 %v147
    %396 = vmatprep.mubr.f32.mxu0 %v36
    %397 = vmatmul.mubr.f32.gmra.mxu0 %v35
    %v398 = vpop.f32.mrf.mxu0
    %v399 = vadd.f32 %v206, %v398
    %v400 = vpop.f32.mrf.mxu0
    %401 = vmatprep.mubr.f32.mxu0 %v41
    %402 = vmatmul.mubr.f32.gmra.mxu0 %v40
    %v403 = vpop.f32.mrf.mxu0
    %v404 = vadd.f32 %v211, %v403
    %v405 = vpop.f32.mrf.mxu0
    %406 = vmatprep.mubr.f32.mxu0 %v46
    %407 = vmatmul.mubr.f32.gmra.mxu0 %v45
    %v408 = vpop.f32.mrf.mxu0
    %v409 = vadd.f32 %v216, %v408
    %v410 = vpop.f32.mrf.mxu0
    %411 = vmatprep.mubr.f32.mxu0 %v51
    %412 = vmatmul.mubr.f32.gmra.mxu0 %v50
    %v413 = vpop.f32.mrf.mxu0
    %v414 = vadd.f32 %v221, %v413
    %v415 = vpop.f32.mrf.mxu0
    %416 = vmatprep.mubr.f32.mxu0 %v56
    %417 = vmatmul.mubr.f32.gmra.mxu0 %v55
    %v418 = vpop.f32.mrf.mxu0
    %v419 = vadd.f32 %v226, %v418
    %v420 = vpop.f32.mrf.mxu0
    %421 = vmatprep.mubr.f32.mxu0 %v61
    %422 = vmatmul.mubr.f32.gmra.mxu0 %v60
    %v423 = vpop.f32.mrf.mxu0
    %v424 = vadd.f32 %v231, %v423
    %v425 = vpop.f32.mrf.mxu0
    %426 = vmatprep.mubr.f32.mxu0 %v66
    %427 = vmatmul.mubr.f32.gmra.mxu0 %v65
    %v428 = vpop.f32.mrf.mxu0
    %v429 = vadd.f32 %v236, %v428
    %v430 = vpop.f32.mrf.mxu0
    %431 = vmatprep.mubr.f32.mxu0 %v71
    %432 = vmatmul.mubr.f32.gmra.mxu0 %v70
    %v433 = vpop.f32.mrf.mxu0
    %v434 = vadd.f32 %v241, %v433
    %v435 = vpop.f32.mrf.mxu0
    %436 = vmatprep.mubr.f32.mxu0 %v76
    %437 = vmatmul.mubr.f32.gmra.mxu0 %v75
    %v438 = vpop.f32.mrf.mxu0
    %v439 = vadd.f32 %v246, %v438
    %v440 = vpop.f32.mrf.mxu0
    %441 = vmatprep.mubr.f32.mxu0 %v81
    %442 = vmatmul.mubr.f32.gmra.mxu0 %v80
    %v443 = vpop.f32.mrf.mxu0
    %v444 = vadd.f32 %v251, %v443
    %v445 = vpop.f32.mrf.mxu0
    %446 = vmatprep.mubr.f32.mxu0 %v86
    %447 = vmatmul.mubr.f32.gmra.mxu0 %v85
    %v448 = vpop.f32.mrf.mxu0
    %v449 = vadd.f32 %v256, %v448
    %v450 = vpop.f32.mrf.mxu0
    %451 = vmatprep.mubr.f32.mxu0 %v91
    %452 = vmatmul.mubr.f32.gmra.mxu0 %v90
    %v453 = vpop.f32.mrf.mxu0
    %v454 = vadd.f32 %v261, %v453
    %v455 = vpop.f32.mrf.mxu0
    %456 = vmatprep.mubr.f32.mxu0 %v96
    %457 = vmatmul.mubr.f32.gmra.mxu0 %v95
    %v458 = vpop.f32.mrf.mxu0
    %v459 = vadd.f32 %v266, %v458
    %v460 = vpop.f32.mrf.mxu0
    %461 = vmatprep.mubr.f32.mxu0 %v101
    %462 = vmatmul.mubr.f32.gmra.mxu0 %v100
    %v463 = vpop.f32.mrf.mxu0
    %v464 = vadd.f32 %v271, %v463
    %v465 = vpop.f32.mrf.mxu0
    %466 = vmatprep.mubr.f32.mxu0 %v106
    %467 = vmatmul.mubr.f32.gmra.mxu0 %v105
    %v468 = vpop.f32.mrf.mxu0
    %v469 = vadd.f32 %v276, %v468
    %v470 = vpop.f32.mrf.mxu0
    %471 = vmatprep.mubr.f32.mxu0 %v111
    %472 = vmatmul.mubr.f32.gmra.mxu0 %v110
    %v473 = vpop.f32.mrf.mxu0
    %v474 = vadd.f32 %v281, %v473
    %v475 = vpop.f32.mrf.mxu0
    %476 = vdwg.mxu0
    %477 = vmatprep.subr.mxu0 0.0
    %478 = vmatpush1.msra.mxu0 %v178
    %479 = vmatprep.subr.mxu0 0.0
    %480 = vmatpush1.msra.mxu0 %v177
    %481 = vmatprep.subr.mxu0 0.0
    %482 = vmatpush1.msra.mxu0 %v176
    %483 = vmatprep.subr.mxu0 0.0
    %484 = vmatpush1.msra.mxu0 %v175
    %485 = vmatprep.subr.mxu0 0.0
    %486 = vmatpush1.msra.mxu0 %v174
    %487 = vmatprep.subr.mxu0 0.0
    %488 = vmatpush1.msra.mxu0 %v173
    %489 = vmatprep.subr.mxu0 0.0
    %490 = vmatpush1.msra.mxu0 %v172
    %491 = vmatprep.subr.mxu0 0.0
    %492 = vmatpush1.msra.mxu0 %v171
    %493 = vmatprep.subr.mxu0 0.0
    %494 = vmatpush1.msra.mxu0 %v170
    %495 = vmatprep.subr.mxu0 0.0
    %496 = vmatpush1.msra.mxu0 %v169
    %497 = vmatprep.subr.mxu0 0.0
    %498 = vmatpush1.msra.mxu0 %v168
    %499 = vmatprep.subr.mxu0 0.0
    %500 = vmatpush1.msra.mxu0 %v167
    %501 = vmatprep.subr.mxu0 0.0
    %502 = vmatpush1.msra.mxu0 %v166
    %503 = vmatprep.subr.mxu0 0.0
    %504 = vmatpush1.msra.mxu0 %v165
    %505 = vmatprep.subr.mxu0 0.0
    %506 = vmatpush1.msra.mxu0 %v164
    %507 = vmatprep.subr.mxu0 0.0
    %508 = vmatpush1.msra.mxu0 %v163
    %509 = vmatprep.subr.mxu0 0.0
    %510 = vmatpush2.msra.mxu0 %v194
    %511 = vmatprep.subr.mxu0 0.0
    %512 = vmatpush2.msra.mxu0 %v193
    %513 = vmatprep.subr.mxu0 0.0
    %514 = vmatpush2.msra.mxu0 %v192
    %515 = vmatprep.subr.mxu0 0.0
    %516 = vmatpush2.msra.mxu0 %v191
    %517 = vmatprep.subr.mxu0 0.0
    %518 = vmatpush2.msra.mxu0 %v190
    %519 = vmatprep.subr.mxu0 0.0
    %520 = vmatpush2.msra.mxu0 %v189
    %521 = vmatprep.subr.mxu0 0.0
    %522 = vmatpush2.msra.mxu0 %v188
    %523 = vmatprep.subr.mxu0 0.0
    %524 = vmatpush2.msra.mxu0 %v187
    %525 = vmatprep.subr.mxu0 0.0
    %526 = vmatpush2.msra.mxu0 %v186
    %527 = vmatprep.subr.mxu0 0.0
    %528 = vmatpush2.msra.mxu0 %v185
    %529 = vmatprep.subr.mxu0 0.0
    %530 = vmatpush2.msra.mxu0 %v184
    %531 = vmatprep.subr.mxu0 0.0
    %532 = vmatpush2.msra.mxu0 %v183
    %533 = vmatprep.subr.mxu0 0.0
    %534 = vmatpush2.msra.mxu0 %v182
    %535 = vmatprep.subr.mxu0 0.0
    %536 = vmatpush2.msra.mxu0 %v181
    %537 = vmatprep.subr.mxu0 0.0
    %538 = vmatpush2.msra.mxu0 %v180
    %539 = vmatprep.subr.mxu0 0.0
    %540 = vmatpush2.msra.mxu0 %v179
    %541 = vmatprep.mubr.f32.mxu0 %v38
    %542 = vmatmul.mubr.f32.gmra.mxu0 %v37
    %v543 = vpop.f32.mrf.mxu0
    %v544 = vadd.f32 %v399, %v543
    %v545 = vpop.f32.mrf.mxu0
    %546 = vmatprep.mubr.f32.mxu0 %v43
    %547 = vmatmul.mubr.f32.gmra.mxu0 %v42
    %v548 = vpop.f32.mrf.mxu0
    %v549 = vadd.f32 %v404, %v548
    %v550 = vpop.f32.mrf.mxu0
    %551 = vmatprep.mubr.f32.mxu0 %v48
    %552 = vmatmul.mubr.f32.gmra.mxu0 %v47
    %v553 = vpop.f32.mrf.mxu0
    %v554 = vadd.f32 %v409, %v553
    %v555 = vpop.f32.mrf.mxu0
    %556 = vmatprep.mubr.f32.mxu0 %v53
    %557 = vmatmul.mubr.f32.gmra.mxu0 %v52
    %v558 = vpop.f32.mrf.mxu0
    %v559 = vadd.f32 %v414, %v558
    %v560 = vpop.f32.mrf.mxu0
    %561 = vmatprep.mubr.f32.mxu0 %v58
    %562 = vmatmul.mubr.f32.gmra.mxu0 %v57
    %v563 = vpop.f32.mrf.mxu0
    %v564 = vadd.f32 %v419, %v563
    %v565 = vpop.f32.mrf.mxu0
    %566 = vmatprep.mubr.f32.mxu0 %v63
    %567 = vmatmul.mubr.f32.gmra.mxu0 %v62
    %v568 = vpop.f32.mrf.mxu0
    %v569 = vadd.f32 %v424, %v568
    %v570 = vpop.f32.mrf.mxu0
    %571 = vmatprep.mubr.f32.mxu0 %v68
    %572 = vmatmul.mubr.f32.gmra.mxu0 %v67
    %v573 = vpop.f32.mrf.mxu0
    %v574 = vadd.f32 %v429, %v573
    %v575 = vpop.f32.mrf.mxu0
    %576 = vmatprep.mubr.f32.mxu0 %v73
    %577 = vmatmul.mubr.f32.gmra.mxu0 %v72
    %v578 = vpop.f32.mrf.mxu0
    %v579 = vadd.f32 %v434, %v578
    %v580 = vpop.f32.mrf.mxu0
    %581 = vmatprep.mubr.f32.mxu0 %v78
    %582 = vmatmul.mubr.f32.gmra.mxu0 %v77
    %v583 = vpop.f32.mrf.mxu0
    %v584 = vadd.f32 %v439, %v583
    %v585 = vpop.f32.mrf.mxu0
    %586 = vmatprep.mubr.f32.mxu0 %v83
    %587 = vmatmul.mubr.f32.gmra.mxu0 %v82
    %v588 = vpop.f32.mrf.mxu0
    %v589 = vadd.f32 %v444, %v588
    %v590 = vpop.f32.mrf.mxu0
    %591 = vmatprep.mubr.f32.mxu0 %v88
    %592 = vmatmul.mubr.f32.gmra.mxu0 %v87
    %v593 = vpop.f32.mrf.mxu0
    %v594 = vadd.f32 %v449, %v593
    %v595 = vpop.f32.mrf.mxu0
    %596 = vmatprep.mubr.f32.mxu0 %v93
    %597 = vmatmul.mubr.f32.gmra.mxu0 %v92
    %v598 = vpop.f32.mrf.mxu0
    %v599 = vadd.f32 %v454, %v598
    %v600 = vpop.f32.mrf.mxu0
    %601 = vmatprep.mubr.f32.mxu0 %v98
    %602 = vmatmul.mubr.f32.gmra.mxu0 %v97
    %v603 = vpop.f32.mrf.mxu0
    %v604 = vadd.f32 %v459, %v603
    %v605 = vpop.f32.mrf.mxu0
    %606 = vmatprep.mubr.f32.mxu0 %v103
    %607 = vmatmul.mubr.f32.gmra.mxu0 %v102
    %v608 = vpop.f32.mrf.mxu0
    %v609 = vadd.f32 %v464, %v608
    %v610 = vpop.f32.mrf.mxu0
    %611 = vmatprep.mubr.f32.mxu0 %v108
    %612 = vmatmul.mubr.f32.gmra.mxu0 %v107
    %v613 = vpop.f32.mrf.mxu0
    %v614 = vadd.f32 %v469, %v613
    %v615 = vpop.f32.mrf.mxu0
    %616 = vmatprep.mubr.f32.mxu0 %v113
    %617 = vmatmul.mubr.f32.gmra.mxu0 %v112
    %v618 = vpop.f32.mrf.mxu0
    %v619 = vadd.f32 %v474, %v618
    %v620 = vpop.f32.mrf.mxu0
    %621 = vdwg.mxu0
    %622 = vmatprep.subr.mxu0 0.0
    %623 = vmatpush1.msra.mxu0 0.0
    %624 = vmatprep.subr.mxu0 0.0
    %625 = vmatpush1.msra.mxu0 0.0
    %626 = vmatprep.subr.mxu0 0.0
    %627 = vmatpush1.msra.mxu0 0.0
    %628 = vmatprep.subr.mxu0 0.0
    %629 = vmatpush1.msra.mxu0 0.0
    %630 = vmatprep.subr.mxu0 0.0
    %631 = vmatpush1.msra.mxu0 0.0
    %632 = vmatprep.subr.mxu0 0.0
    %633 = vmatpush1.msra.mxu0 0.0
    %634 = vmatprep.subr.mxu0 0.0
    %635 = vmatpush1.msra.mxu0 0.0
    %636 = vmatprep.subr.mxu0 0.0
    %637 = vmatpush1.msra.mxu0 0.0
    %638 = vmatprep.subr.mxu0 0.0
    %639 = vmatpush1.msra.mxu0 %v202
    %640 = vmatprep.subr.mxu0 0.0
    %641 = vmatpush1.msra.mxu0 %v201
    %642 = vmatprep.subr.mxu0 0.0
    %643 = vmatpush1.msra.mxu0 %v200
    %644 = vmatprep.subr.mxu0 0.0
    %645 = vmatpush1.msra.mxu0 %v199
    %646 = vmatprep.subr.mxu0 0.0
    %647 = vmatpush1.msra.mxu0 %v198
    %648 = vmatprep.subr.mxu0 0.0
    %649 = vmatpush1.msra.mxu0 %v197
    %650 = vmatprep.subr.mxu0 0.0
    %651 = vmatpush1.msra.mxu0 %v196
    %652 = vmatprep.subr.mxu0 0.0
    %653 = vmatpush1.msra.mxu0 %v195
    %654 = vmatprep.subr.mxu0 0.0
    %655 = vmatpush2.msra.mxu0 0.0
    %656 = vmatprep.subr.mxu0 0.0
    %657 = vmatpush2.msra.mxu0 0.0
    %658 = vmatprep.subr.mxu0 0.0
    %659 = vmatpush2.msra.mxu0 0.0
    %660 = vmatprep.subr.mxu0 0.0
    %661 = vmatpush2.msra.mxu0 0.0
    %662 = vmatprep.subr.mxu0 0.0
    %663 = vmatpush2.msra.mxu0 0.0
    %664 = vmatprep.subr.mxu0 0.0
    %665 = vmatpush2.msra.mxu0 0.0
    %666 = vmatprep.subr.mxu0 0.0
    %667 = vmatpush2.msra.mxu0 0.0
    %668 = vmatprep.subr.mxu0 0.0
    %669 = vmatpush2.msra.mxu0 0.0
    %670 = vmatprep.subr.mxu0 0.0
    %671 = vmatpush2.msra.mxu0 0.0
    %672 = vmatprep.subr.mxu0 0.0
    %673 = vmatpush2.msra.mxu0 0.0
    %674 = vmatprep.subr.mxu0 0.0
    %675 = vmatpush2.msra.mxu0 0.0
    %676 = vmatprep.subr.mxu0 0.0
    %677 = vmatpush2.msra.mxu0 0.0
    %678 = vmatprep.subr.mxu0 0.0
    %679 = vmatpush2.msra.mxu0 0.0
    %680 = vmatprep.subr.mxu0 0.0
    %681 = vmatpush2.msra.mxu0 0.0
    %682 = vmatprep.subr.mxu0 0.0
    %683 = vmatpush2.msra.mxu0 0.0
    %684 = vmatprep.subr.mxu0 0.0
    %685 = vmatpush2.msra.mxu0 0.0
    %686 = vmatprep.mubr.f32.mxu0 0.0
    %687 = vmatmul.mubr.f32.gmra.mxu0 %v285
    %v688 = vpop.f32.mrf.mxu0
    %v689 = vadd.f32 %v544, %v688
    %v690 = vpop.f32.mrf.mxu0
    %691 = vmatprep.mubr.f32.mxu0 0.0
    %692 = vmatmul.mubr.f32.gmra.mxu0 %v288
    %v693 = vpop.f32.mrf.mxu0
    %v694 = vadd.f32 %v549, %v693
    %v695 = vpop.f32.mrf.mxu0
    %696 = vmatprep.mubr.f32.mxu0 0.0
    %697 = vmatmul.mubr.f32.gmra.mxu0 %v291
    %v698 = vpop.f32.mrf.mxu0
    %v699 = vadd.f32 %v554, %v698
    %v700 = vpop.f32.mrf.mxu0
    %701 = vmatprep.mubr.f32.mxu0 0.0
    %702 = vmatmul.mubr.f32.gmra.mxu0 %v294
    %v703 = vpop.f32.mrf.mxu0
    %v704 = vadd.f32 %v559, %v703
    %v705 = vpop.f32.mrf.mxu0
    %706 = vmatprep.mubr.f32.mxu0 0.0
    %707 = vmatmul.mubr.f32.gmra.mxu0 %v297
    %v708 = vpop.f32.mrf.mxu0
    %v709 = vadd.f32 %v564, %v708
    %v710 = vpop.f32.mrf.mxu0
    %711 = vmatprep.mubr.f32.mxu0 0.0
    %712 = vmatmul.mubr.f32.gmra.mxu0 %v300
    %v713 = vpop.f32.mrf.mxu0
    %v714 = vadd.f32 %v569, %v713
    %v715 = vpop.f32.mrf.mxu0
    %716 = vmatprep.mubr.f32.mxu0 0.0
    %717 = vmatmul.mubr.f32.gmra.mxu0 %v303
    %v718 = vpop.f32.mrf.mxu0
    %v719 = vadd.f32 %v574, %v718
    %v720 = vpop.f32.mrf.mxu0
    %721 = vmatprep.mubr.f32.mxu0 0.0
    %722 = vmatmul.mubr.f32.gmra.mxu0 %v306
    %v723 = vpop.f32.mrf.mxu0
    %v724 = vadd.f32 %v579, %v723
    %v725 = vpop.f32.mrf.mxu0
    %726 = vmatprep.mubr.f32.mxu0 0.0
    %727 = vmatmul.mubr.f32.gmra.mxu0 %v309
    %v728 = vpop.f32.mrf.mxu0
    %v729 = vadd.f32 %v584, %v728
    %v730 = vpop.f32.mrf.mxu0
    %731 = vmatprep.mubr.f32.mxu0 0.0
    %732 = vmatmul.mubr.f32.gmra.mxu0 %v312
    %v733 = vpop.f32.mrf.mxu0
    %v734 = vadd.f32 %v589, %v733
    %v735 = vpop.f32.mrf.mxu0
    %736 = vmatprep.mubr.f32.mxu0 0.0
    %737 = vmatmul.mubr.f32.gmra.mxu0 %v315
    %v738 = vpop.f32.mrf.mxu0
    %v739 = vadd.f32 %v594, %v738
    %v740 = vpop.f32.mrf.mxu0
    %741 = vmatprep.mubr.f32.mxu0 0.0
    %742 = vmatmul.mubr.f32.gmra.mxu0 %v318
    %v743 = vpop.f32.mrf.mxu0
    %v744 = vadd.f32 %v599, %v743
    %v745 = vpop.f32.mrf.mxu0
    %746 = vmatprep.mubr.f32.mxu0 0.0
    %747 = vmatmul.mubr.f32.gmra.mxu0 %v321
    %v748 = vpop.f32.mrf.mxu0
    %v749 = vadd.f32 %v604, %v748
    %v750 = vpop.f32.mrf.mxu0
    %751 = vmatprep.mubr.f32.mxu0 0.0
    %752 = vmatmul.mubr.f32.gmra.mxu0 %v324
    %v753 = vpop.f32.mrf.mxu0
    %v754 = vadd.f32 %v609, %v753
    %v755 = vpop.f32.mrf.mxu0
    %756 = vmatprep.mubr.f32.mxu0 0.0
    %757 = vmatmul.mubr.f32.gmra.mxu0 %v327
    %v758 = vpop.f32.mrf.mxu0
    %v759 = vadd.f32 %v614, %v758
    %v760 = vpop.f32.mrf.mxu0
    %761 = vmatprep.mubr.f32.mxu0 0.0
    %762 = vmatmul.mubr.f32.gmra.mxu0 %v330
    %v763 = vpop.f32.mrf.mxu0
    %v764 = vadd.f32 %v619, %v763
    %v765 = vpop.f32.mrf.mxu0
    %766 = vdwg.mxu0
    %s767 = scalar_lea.vmem %s0, 576
    %v768 = vld [vmem:[%s767] sm:$0xff]
    %v769 = vld [vmem:[%s767 + $0x8] sm:$0xff]
    %v770 = vld [vmem:[%s767 + $0x10] sm:$0xff]
    %v771 = vld [vmem:[%s767 + $0x18] sm:$0xff]
    %v772 = vld [vmem:[%s767 + $0x20] sm:$0xff]
    %v773 = vld [vmem:[%s767 + $0x28] sm:$0xff]
    %v774 = vld [vmem:[%s767 + $0x30] sm:$0xff]
    %v775 = vld [vmem:[%s767 + $0x38] sm:$0xff]
    %v776 = vld [vmem:[%s767 + $0x40] sm:$0xff]
    %v777 = vld [vmem:[%s767 + $0x48] sm:$0xff]
    %v778 = vld [vmem:[%s767 + $0x50] sm:$0xff]
    %v779 = vld [vmem:[%s767 + $0x58] sm:$0xff]
    %v780 = vld [vmem:[%s767 + $0x60] sm:$0xff]
    %v781 = vld [vmem:[%s767 + $0x68] sm:$0xff]
    %v782 = vld [vmem:[%s767 + $0x70] sm:$0xff]
    %v783 = vld [vmem:[%s767 + $0x78] sm:$0xff]
    %v784 = vld [vmem:[%s767 + $0x80] sm:$0xff]
    %v785 = vld [vmem:[%s767 + $0x88] sm:$0xff]
    %v786 = vld [vmem:[%s767 + $0x90] sm:$0xff]
    %v787 = vld [vmem:[%s767 + $0x98] sm:$0xff]
    %v788 = vld [vmem:[%s767 + $0xa0] sm:$0xff]
    %v789 = vld [vmem:[%s767 + $0xa8] sm:$0xff]
    %v790 = vld [vmem:[%s767 + $0xb0] sm:$0xff]
    %v791 = vld [vmem:[%s767 + $0xb8] sm:$0xff]
    %v792 = vld [vmem:[%s767 + $0xc0] sm:$0xff]
    %v793 = vld [vmem:[%s767 + $0xc8] sm:$0xff]
    %v794 = vld [vmem:[%s767 + $0xd0] sm:$0xff]
    %v795 = vld [vmem:[%s767 + $0xd8] sm:$0xff]
    %v796 = vld [vmem:[%s767 + $0xe0] sm:$0xff]
    %v797 = vld [vmem:[%s767 + $0xe8] sm:$0xff]
    %v798 = vld [vmem:[%s767 + $0xf0] sm:$0xff]
    %v799 = vld [vmem:[%s767 + $0xf8] sm:$0xff]
    %v800 = vld [vmem:[%s767 + $0x100] sm:$0xff]
    %v801 = vld [vmem:[%s767 + $0x108] sm:$0xff]
    %v802 = vld [vmem:[%s767 + $0x110] sm:$0xff]
    %v803 = vld [vmem:[%s767 + $0x118] sm:$0xff]
    %v804 = vld [vmem:[%s767 + $0x120] sm:$0xff]
    %v805 = vld [vmem:[%s767 + $0x128] sm:$0xff]
    %v806 = vld [vmem:[%s767 + $0x130] sm:$0xff]
    %v807 = vld [vmem:[%s767 + $0x138] sm:$0xff]
    %v808 = vld [vmem:[%s767 + $0x140] sm:$0xff]
    %v809 = vld [vmem:[%s767 + $0x148] sm:$0xff]
    %v810 = vld [vmem:[%s767 + $0x150] sm:$0xff]
    %v811 = vld [vmem:[%s767 + $0x158] sm:$0xff]
    %v812 = vld [vmem:[%s767 + $0x160] sm:$0xff]
    %v813 = vld [vmem:[%s767 + $0x168] sm:$0xff]
    %v814 = vld [vmem:[%s767 + $0x170] sm:$0xff]
    %v815 = vld [vmem:[%s767 + $0x178] sm:$0xff]
    %v816 = vld [vmem:[%s767 + $0x180] sm:$0xff]
    %v817 = vld [vmem:[%s767 + $0x188] sm:$0xff]
    %v818 = vld [vmem:[%s767 + $0x190] sm:$0xff]
    %v819 = vld [vmem:[%s767 + $0x198] sm:$0xff]
    %v820 = vld [vmem:[%s767 + $0x1a0] sm:$0xff]
    %v821 = vld [vmem:[%s767 + $0x1a8] sm:$0xff]
    %v822 = vld [vmem:[%s767 + $0x1b0] sm:$0xff]
    %v823 = vld [vmem:[%s767 + $0x1b8] sm:$0xff]
    %v824 = vld [vmem:[%s767 + $0x1c0] sm:$0xff]
    %v825 = vld [vmem:[%s767 + $0x1c8] sm:$0xff]
    %v826 = vld [vmem:[%s767 + $0x1d0] sm:$0xff]
    %v827 = vld [vmem:[%s767 + $0x1d8] sm:$0xff]
    %v828 = vld [vmem:[%s767 + $0x1e0] sm:$0xff]
    %v829 = vld [vmem:[%s767 + $0x1e8] sm:$0xff]
    %v830 = vld [vmem:[%s767 + $0x1f0] sm:$0xff]
    %v831 = vld [vmem:[%s767 + $0x1f8] sm:$0xff]
    %v832 = vld [vmem:[%s767 + $0x200] sm:$0xff]
    %v833 = vld [vmem:[%s767 + $0x208] sm:$0xff]
    %v834 = vld [vmem:[%s767 + $0x210] sm:$0xff]
    %v835 = vld [vmem:[%s767 + $0x218] sm:$0xff]
    %v836 = vld [vmem:[%s767 + $0x220] sm:$0xff]
    %v837 = vld [vmem:[%s767 + $0x228] sm:$0xff]
    %v838 = vld [vmem:[%s767 + $0x230] sm:$0xff]
    %v839 = vld [vmem:[%s767 + $0x238] sm:$0xff]
    %840 = vmatprep.subr.mxu0 0.0
    %841 = vmatpush1.msra.mxu0 %v783
    %842 = vmatprep.subr.mxu0 0.0
    %843 = vmatpush1.msra.mxu0 %v782
    %844 = vmatprep.subr.mxu0 0.0
    %845 = vmatpush1.msra.mxu0 %v781
    %846 = vmatprep.subr.mxu0 0.0
    %847 = vmatpush1.msra.mxu0 %v780
    %848 = vmatprep.subr.mxu0 0.0
    %849 = vmatpush1.msra.mxu0 %v779
    %850 = vmatprep.subr.mxu0 0.0
    %851 = vmatpush1.msra.mxu0 %v778
    %852 = vmatprep.subr.mxu0 0.0
    %853 = vmatpush1.msra.mxu0 %v777
    %854 = vmatprep.subr.mxu0 0.0
    %855 = vmatpush1.msra.mxu0 %v776
    %856 = vmatprep.subr.mxu0 0.0
    %857 = vmatpush1.msra.mxu0 %v775
    %858 = vmatprep.subr.mxu0 0.0
    %859 = vmatpush1.msra.mxu0 %v774
    %860 = vmatprep.subr.mxu0 0.0
    %861 = vmatpush1.msra.mxu0 %v773
    %862 = vmatprep.subr.mxu0 0.0
    %863 = vmatpush1.msra.mxu0 %v772
    %864 = vmatprep.subr.mxu0 0.0
    %865 = vmatpush1.msra.mxu0 %v771
    %866 = vmatprep.subr.mxu0 0.0
    %867 = vmatpush1.msra.mxu0 %v770
    %868 = vmatprep.subr.mxu0 0.0
    %869 = vmatpush1.msra.mxu0 %v769
    %870 = vmatprep.subr.mxu0 0.0
    %871 = vmatpush1.msra.mxu0 %v768
    %872 = vmatprep.subr.mxu0 0.0
    %873 = vmatpush2.msra.mxu0 %v799
    %874 = vmatprep.subr.mxu0 0.0
    %875 = vmatpush2.msra.mxu0 %v798
    %876 = vmatprep.subr.mxu0 0.0
    %877 = vmatpush2.msra.mxu0 %v797
    %878 = vmatprep.subr.mxu0 0.0
    %879 = vmatpush2.msra.mxu0 %v796
    %880 = vmatprep.subr.mxu0 0.0
    %881 = vmatpush2.msra.mxu0 %v795
    %882 = vmatprep.subr.mxu0 0.0
    %883 = vmatpush2.msra.mxu0 %v794
    %884 = vmatprep.subr.mxu0 0.0
    %885 = vmatpush2.msra.mxu0 %v793
    %886 = vmatprep.subr.mxu0 0.0
    %887 = vmatpush2.msra.mxu0 %v792
    %888 = vmatprep.subr.mxu0 0.0
    %889 = vmatpush2.msra.mxu0 %v791
    %890 = vmatprep.subr.mxu0 0.0
    %891 = vmatpush2.msra.mxu0 %v790
    %892 = vmatprep.subr.mxu0 0.0
    %893 = vmatpush2.msra.mxu0 %v789
    %894 = vmatprep.subr.mxu0 0.0
    %895 = vmatpush2.msra.mxu0 %v788
    %896 = vmatprep.subr.mxu0 0.0
    %897 = vmatpush2.msra.mxu0 %v787
    %898 = vmatprep.subr.mxu0 0.0
    %899 = vmatpush2.msra.mxu0 %v786
    %900 = vmatprep.subr.mxu0 0.0
    %901 = vmatpush2.msra.mxu0 %v785
    %902 = vmatprep.subr.mxu0 0.0
    %903 = vmatpush2.msra.mxu0 %v784
    %904 = vmatprep.mubr.f32.mxu0 %v36
    %905 = vmatmul.mubr.f32.gmra.mxu0 %v35
    %v906 = vpop.f32.mrf.mxu0
    %v907 = vadd.f32 %v206, %v906
    %v908 = vpop.f32.mrf.mxu0
    %909 = vmatprep.mubr.f32.mxu0 %v41
    %910 = vmatmul.mubr.f32.gmra.mxu0 %v40
    %v911 = vpop.f32.mrf.mxu0
    %v912 = vadd.f32 %v211, %v911
    %v913 = vpop.f32.mrf.mxu0
    %914 = vmatprep.mubr.f32.mxu0 %v46
    %915 = vmatmul.mubr.f32.gmra.mxu0 %v45
    %v916 = vpop.f32.mrf.mxu0
    %v917 = vadd.f32 %v216, %v916
    %v918 = vpop.f32.mrf.mxu0
    %919 = vmatprep.mubr.f32.mxu0 %v51
    %920 = vmatmul.mubr.f32.gmra.mxu0 %v50
    %v921 = vpop.f32.mrf.mxu0
    %v922 = vadd.f32 %v221, %v921
    %v923 = vpop.f32.mrf.mxu0
    %924 = vmatprep.mubr.f32.mxu0 %v56
    %925 = vmatmul.mubr.f32.gmra.mxu0 %v55
    %v926 = vpop.f32.mrf.mxu0
    %v927 = vadd.f32 %v226, %v926
    %v928 = vpop.f32.mrf.mxu0
    %929 = vmatprep.mubr.f32.mxu0 %v61
    %930 = vmatmul.mubr.f32.gmra.mxu0 %v60
    %v931 = vpop.f32.mrf.mxu0
    %v932 = vadd.f32 %v231, %v931
    %v933 = vpop.f32.mrf.mxu0
    %934 = vmatprep.mubr.f32.mxu0 %v66
    %935 = vmatmul.mubr.f32.gmra.mxu0 %v65
    %v936 = vpop.f32.mrf.mxu0
    %v937 = vadd.f32 %v236, %v936
    %v938 = vpop.f32.mrf.mxu0
    %939 = vmatprep.mubr.f32.mxu0 %v71
    %940 = vmatmul.mubr.f32.gmra.mxu0 %v70
    %v941 = vpop.f32.mrf.mxu0
    %v942 = vadd.f32 %v241, %v941
    %v943 = vpop.f32.mrf.mxu0
    %944 = vmatprep.mubr.f32.mxu0 %v76
    %945 = vmatmul.mubr.f32.gmra.mxu0 %v75
    %v946 = vpop.f32.mrf.mxu0
    %v947 = vadd.f32 %v246, %v946
    %v948 = vpop.f32.mrf.mxu0
    %949 = vmatprep.mubr.f32.mxu0 %v81
    %950 = vmatmul.mubr.f32.gmra.mxu0 %v80
    %v951 = vpop.f32.mrf.mxu0
    %v952 = vadd.f32 %v251, %v951
    %v953 = vpop.f32.mrf.mxu0
    %954 = vmatprep.mubr.f32.mxu0 %v86
    %955 = vmatmul.mubr.f32.gmra.mxu0 %v85
    %v956 = vpop.f32.mrf.mxu0
    %v957 = vadd.f32 %v256, %v956
    %v958 = vpop.f32.mrf.mxu0
    %959 = vmatprep.mubr.f32.mxu0 %v91
    %960 = vmatmul.mubr.f32.gmra.mxu0 %v90
    %v961 = vpop.f32.mrf.mxu0
    %v962 = vadd.f32 %v261, %v961
    %v963 = vpop.f32.mrf.mxu0
    %964 = vmatprep.mubr.f32.mxu0 %v96
    %965 = vmatmul.mubr.f32.gmra.mxu0 %v95
    %v966 = vpop.f32.mrf.mxu0
    %v967 = vadd.f32 %v266, %v966
    %v968 = vpop.f32.mrf.mxu0
    %969 = vmatprep.mubr.f32.mxu0 %v101
    %970 = vmatmul.mubr.f32.gmra.mxu0 %v100
    %v971 = vpop.f32.mrf.mxu0
    %v972 = vadd.f32 %v271, %v971
    %v973 = vpop.f32.mrf.mxu0
    %974 = vmatprep.mubr.f32.mxu0 %v106
    %975 = vmatmul.mubr.f32.gmra.mxu0 %v105
    %v976 = vpop.f32.mrf.mxu0
    %v977 = vadd.f32 %v276, %v976
    %v978 = vpop.f32.mrf.mxu0
    %979 = vmatprep.mubr.f32.mxu0 %v111
    %980 = vmatmul.mubr.f32.gmra.mxu0 %v110
    %v981 = vpop.f32.mrf.mxu0
    %v982 = vadd.f32 %v281, %v981
    %v983 = vpop.f32.mrf.mxu0
    %984 = vdwg.mxu0
    %985 = vmatprep.subr.mxu0 0.0
    %986 = vmatpush1.msra.mxu0 %v815
    %987 = vmatprep.subr.mxu0 0.0
    %988 = vmatpush1.msra.mxu0 %v814
    %989 = vmatprep.subr.mxu0 0.0
    %990 = vmatpush1.msra.mxu0 %v813
    %991 = vmatprep.subr.mxu0 0.0
    %992 = vmatpush1.msra.mxu0 %v812
    %993 = vmatprep.subr.mxu0 0.0
    %994 = vmatpush1.msra.mxu0 %v811
    %995 = vmatprep.subr.mxu0 0.0
    %996 = vmatpush1.msra.mxu0 %v810
    %997 = vmatprep.subr.mxu0 0.0
    %998 = vmatpush1.msra.mxu0 %v809
    %999 = vmatprep.subr.mxu0 0.0
    %1000 = vmatpush1.msra.mxu0 %v808
    %1001 = vmatprep.subr.mxu0 0.0
    %1002 = vmatpush1.msra.mxu0 %v807
    %1003 = vmatprep.subr.mxu0 0.0
    %1004 = vmatpush1.msra.mxu0 %v806
    %1005 = vmatprep.subr.mxu0 0.0
    %1006 = vmatpush1.msra.mxu0 %v805
    %1007 = vmatprep.subr.mxu0 0.0
    %1008 = vmatpush1.msra.mxu0 %v804
    %1009 = vmatprep.subr.mxu0 0.0
    %1010 = vmatpush1.msra.mxu0 %v803
    %1011 = vmatprep.subr.mxu0 0.0
    %1012 = vmatpush1.msra.mxu0 %v802
    %1013 = vmatprep.subr.mxu0 0.0
    %1014 = vmatpush1.msra.mxu0 %v801
    %1015 = vmatprep.subr.mxu0 0.0
    %1016 = vmatpush1.msra.mxu0 %v800
    %1017 = vmatprep.subr.mxu0 0.0
    %1018 = vmatpush2.msra.mxu0 %v831
    %1019 = vmatprep.subr.mxu0 0.0
    %1020 = vmatpush2.msra.mxu0 %v830
    %1021 = vmatprep.subr.mxu0 0.0
    %1022 = vmatpush2.msra.mxu0 %v829
    %1023 = vmatprep.subr.mxu0 0.0
    %1024 = vmatpush2.msra.mxu0 %v828
    %1025 = vmatprep.subr.mxu0 0.0
    %1026 = vmatpush2.msra.mxu0 %v827
    %1027 = vmatprep.subr.mxu0 0.0
    %1028 = vmatpush2.msra.mxu0 %v826
    %1029 = vmatprep.subr.mxu0 0.0
    %1030 = vmatpush2.msra.mxu0 %v825
    %1031 = vmatprep.subr.mxu0 0.0
    %1032 = vmatpush2.msra.mxu0 %v824
    %1033 = vmatprep.subr.mxu0 0.0
    %1034 = vmatpush2.msra.mxu0 %v823
    %1035 = vmatprep.subr.mxu0 0.0
    %1036 = vmatpush2.msra.mxu0 %v822
    %1037 = vmatprep.subr.mxu0 0.0
    %1038 = vmatpush2.msra.mxu0 %v821
    %1039 = vmatprep.subr.mxu0 0.0
    %1040 = vmatpush2.msra.mxu0 %v820
    %1041 = vmatprep.subr.mxu0 0.0
    %1042 = vmatpush2.msra.mxu0 %v819
    %1043 = vmatprep.subr.mxu0 0.0
    %1044 = vmatpush2.msra.mxu0 %v818
    %1045 = vmatprep.subr.mxu0 0.0
    %1046 = vmatpush2.msra.mxu0 %v817
    %1047 = vmatprep.subr.mxu0 0.0
    %1048 = vmatpush2.msra.mxu0 %v816
    %1049 = vmatprep.mubr.f32.mxu0 %v38
    %1050 = vmatmul.mubr.f32.gmra.mxu0 %v37
    %v1051 = vpop.f32.mrf.mxu0
    %v1052 = vadd.f32 %v907, %v1051
    %v1053 = vpop.f32.mrf.mxu0
    %1054 = vmatprep.mubr.f32.mxu0 %v43
    %1055 = vmatmul.mubr.f32.gmra.mxu0 %v42
    %v1056 = vpop.f32.mrf.mxu0
    %v1057 = vadd.f32 %v912, %v1056
    %v1058 = vpop.f32.mrf.mxu0
    %1059 = vmatprep.mubr.f32.mxu0 %v48
    %1060 = vmatmul.mubr.f32.gmra.mxu0 %v47
    %v1061 = vpop.f32.mrf.mxu0
    %v1062 = vadd.f32 %v917, %v1061
    %v1063 = vpop.f32.mrf.mxu0
    %1064 = vmatprep.mubr.f32.mxu0 %v53
    %1065 = vmatmul.mubr.f32.gmra.mxu0 %v52
    %v1066 = vpop.f32.mrf.mxu0
    %v1067 = vadd.f32 %v922, %v1066
    %v1068 = vpop.f32.mrf.mxu0
    %1069 = vmatprep.mubr.f32.mxu0 %v58
    %1070 = vmatmul.mubr.f32.gmra.mxu0 %v57
    %v1071 = vpop.f32.mrf.mxu0
    %v1072 = vadd.f32 %v927, %v1071
    %v1073 = vpop.f32.mrf.mxu0
    %1074 = vmatprep.mubr.f32.mxu0 %v63
    %1075 = vmatmul.mubr.f32.gmra.mxu0 %v62
    %v1076 = vpop.f32.mrf.mxu0
    %v1077 = vadd.f32 %v932, %v1076
    %v1078 = vpop.f32.mrf.mxu0
    %1079 = vmatprep.mubr.f32.mxu0 %v68
    %1080 = vmatmul.mubr.f32.gmra.mxu0 %v67
    %v1081 = vpop.f32.mrf.mxu0
    %v1082 = vadd.f32 %v937, %v1081
    %v1083 = vpop.f32.mrf.mxu0
    %1084 = vmatprep.mubr.f32.mxu0 %v73
    %1085 = vmatmul.mubr.f32.gmra.mxu0 %v72
    %v1086 = vpop.f32.mrf.mxu0
    %v1087 = vadd.f32 %v942, %v1086
    %v1088 = vpop.f32.mrf.mxu0
    %1089 = vmatprep.mubr.f32.mxu0 %v78
    %1090 = vmatmul.mubr.f32.gmra.mxu0 %v77
    %v1091 = vpop.f32.mrf.mxu0
    %v1092 = vadd.f32 %v947, %v1091
    %v1093 = vpop.f32.mrf.mxu0
    %1094 = vmatprep.mubr.f32.mxu0 %v83
    %1095 = vmatmul.mubr.f32.gmra.mxu0 %v82
    %v1096 = vpop.f32.mrf.mxu0
    %v1097 = vadd.f32 %v952, %v1096
    %v1098 = vpop.f32.mrf.mxu0
    %1099 = vmatprep.mubr.f32.mxu0 %v88
    %1100 = vmatmul.mubr.f32.gmra.mxu0 %v87
    %v1101 = vpop.f32.mrf.mxu0
    %v1102 = vadd.f32 %v957, %v1101
    %v1103 = vpop.f32.mrf.mxu0
    %1104 = vmatprep.mubr.f32.mxu0 %v93
    %1105 = vmatmul.mubr.f32.gmra.mxu0 %v92
    %v1106 = vpop.f32.mrf.mxu0
    %v1107 = vadd.f32 %v962, %v1106
    %v1108 = vpop.f32.mrf.mxu0
    %1109 = vmatprep.mubr.f32.mxu0 %v98
    %1110 = vmatmul.mubr.f32.gmra.mxu0 %v97
    %v1111 = vpop.f32.mrf.mxu0
    %v1112 = vadd.f32 %v967, %v1111
    %v1113 = vpop.f32.mrf.mxu0
    %1114 = vmatprep.mubr.f32.mxu0 %v103
    %1115 = vmatmul.mubr.f32.gmra.mxu0 %v102
    %v1116 = vpop.f32.mrf.mxu0
    %v1117 = vadd.f32 %v972, %v1116
    %v1118 = vpop.f32.mrf.mxu0
    %1119 = vmatprep.mubr.f32.mxu0 %v108
    %1120 = vmatmul.mubr.f32.gmra.mxu0 %v107
    %v1121 = vpop.f32.mrf.mxu0
    %v1122 = vadd.f32 %v977, %v1121
    %v1123 = vpop.f32.mrf.mxu0
    %1124 = vmatprep.mubr.f32.mxu0 %v113
    %1125 = vmatmul.mubr.f32.gmra.mxu0 %v112
    %v1126 = vpop.f32.mrf.mxu0
    %v1127 = vadd.f32 %v982, %v1126
    %v1128 = vpop.f32.mrf.mxu0
    %1129 = vdwg.mxu0
    %1130 = vmatprep.subr.mxu0 0.0
    %1131 = vmatpush1.msra.mxu0 0.0
    %1132 = vmatprep.subr.mxu0 0.0
    %1133 = vmatpush1.msra.mxu0 0.0
    %1134 = vmatprep.subr.mxu0 0.0
    %1135 = vmatpush1.msra.mxu0 0.0
    %1136 = vmatprep.subr.mxu0 0.0
    %1137 = vmatpush1.msra.mxu0 0.0
    %1138 = vmatprep.subr.mxu0 0.0
    %1139 = vmatpush1.msra.mxu0 0.0
    %1140 = vmatprep.subr.mxu0 0.0
    %1141 = vmatpush1.msra.mxu0 0.0
    %1142 = vmatprep.subr.mxu0 0.0
    %1143 = vmatpush1.msra.mxu0 0.0
    %1144 = vmatprep.subr.mxu0 0.0
    %1145 = vmatpush1.msra.mxu0 0.0
    %1146 = vmatprep.subr.mxu0 0.0
    %1147 = vmatpush1.msra.mxu0 %v839
    %1148 = vmatprep.subr.mxu0 0.0
    %1149 = vmatpush1.msra.mxu0 %v838
    %1150 = vmatprep.subr.mxu0 0.0
    %1151 = vmatpush1.msra.mxu0 %v837
    %1152 = vmatprep.subr.mxu0 0.0
    %1153 = vmatpush1.msra.mxu0 %v836
    %1154 = vmatprep.subr.mxu0 0.0
    %1155 = vmatpush1.msra.mxu0 %v835
    %1156 = vmatprep.subr.mxu0 0.0
    %1157 = vmatpush1.msra.mxu0 %v834
    %1158 = vmatprep.subr.mxu0 0.0
    %1159 = vmatpush1.msra.mxu0 %v833
    %1160 = vmatprep.subr.mxu0 0.0
    %1161 = vmatpush1.msra.mxu0 %v832
    %1162 = vmatprep.subr.mxu0 0.0
    %1163 = vmatpush2.msra.mxu0 0.0
    %1164 = vmatprep.subr.mxu0 0.0
    %1165 = vmatpush2.msra.mxu0 0.0
    %1166 = vmatprep.subr.mxu0 0.0
    %1167 = vmatpush2.msra.mxu0 0.0
    %1168 = vmatprep.subr.mxu0 0.0
    %1169 = vmatpush2.msra.mxu0 0.0
    %1170 = vmatprep.subr.mxu0 0.0
    %1171 = vmatpush2.msra.mxu0 0.0
    %1172 = vmatprep.subr.mxu0 0.0
    %1173 = vmatpush2.msra.mxu0 0.0
    %1174 = vmatprep.subr.mxu0 0.0
    %1175 = vmatpush2.msra.mxu0 0.0
    %1176 = vmatprep.subr.mxu0 0.0
    %1177 = vmatpush2.msra.mxu0 0.0
    %1178 = vmatprep.subr.mxu0 0.0
    %1179 = vmatpush2.msra.mxu0 0.0
    %1180 = vmatprep.subr.mxu0 0.0
    %1181 = vmatpush2.msra.mxu0 0.0
    %1182 = vmatprep.subr.mxu0 0.0
    %1183 = vmatpush2.msra.mxu0 0.0
    %1184 = vmatprep.subr.mxu0 0.0
    %1185 = vmatpush2.msra.mxu0 0.0
    %1186 = vmatprep.subr.mxu0 0.0
    %1187 = vmatpush2.msra.mxu0 0.0
    %1188 = vmatprep.subr.mxu0 0.0
    %1189 = vmatpush2.msra.mxu0 0.0
    %1190 = vmatprep.subr.mxu0 0.0
    %1191 = vmatpush2.msra.mxu0 0.0
    %1192 = vmatprep.subr.mxu0 0.0
    %1193 = vmatpush2.msra.mxu0 0.0
    %1194 = vmatprep.mubr.f32.mxu0 0.0
    %1195 = vmatmul.mubr.f32.gmra.mxu0 %v285
    %v1196 = vpop.f32.mrf.mxu0
    %v1197 = vadd.f32 %v1052, %v1196
    %v1198 = vpop.f32.mrf.mxu0
    %1199 = vmatprep.mubr.f32.mxu0 0.0
    %1200 = vmatmul.mubr.f32.gmra.mxu0 %v288
    %v1201 = vpop.f32.mrf.mxu0
    %v1202 = vadd.f32 %v1057, %v1201
    %v1203 = vpop.f32.mrf.mxu0
    %1204 = vmatprep.mubr.f32.mxu0 0.0
    %1205 = vmatmul.mubr.f32.gmra.mxu0 %v291
    %v1206 = vpop.f32.mrf.mxu0
    %v1207 = vadd.f32 %v1062, %v1206
    %v1208 = vpop.f32.mrf.mxu0
    %1209 = vmatprep.mubr.f32.mxu0 0.0
    %1210 = vmatmul.mubr.f32.gmra.mxu0 %v294
    %v1211 = vpop.f32.mrf.mxu0
    %v1212 = vadd.f32 %v1067, %v1211
    %v1213 = vpop.f32.mrf.mxu0
    %1214 = vmatprep.mubr.f32.mxu0 0.0
    %1215 = vmatmul.mubr.f32.gmra.mxu0 %v297
    %v1216 = vpop.f32.mrf.mxu0
    %v1217 = vadd.f32 %v1072, %v1216
    %v1218 = vpop.f32.mrf.mxu0
    %1219 = vmatprep.mubr.f32.mxu0 0.0
    %1220 = vmatmul.mubr.f32.gmra.mxu0 %v300
    %v1221 = vpop.f32.mrf.mxu0
    %v1222 = vadd.f32 %v1077, %v1221
    %v1223 = vpop.f32.mrf.mxu0
    %1224 = vmatprep.mubr.f32.mxu0 0.0
    %1225 = vmatmul.mubr.f32.gmra.mxu0 %v303
    %v1226 = vpop.f32.mrf.mxu0
    %v1227 = vadd.f32 %v1082, %v1226
    %v1228 = vpop.f32.mrf.mxu0
    %1229 = vmatprep.mubr.f32.mxu0 0.0
    %1230 = vmatmul.mubr.f32.gmra.mxu0 %v306
    %v1231 = vpop.f32.mrf.mxu0
    %v1232 = vadd.f32 %v1087, %v1231
    %v1233 = vpop.f32.mrf.mxu0
    %1234 = vmatprep.mubr.f32.mxu0 0.0
    %1235 = vmatmul.mubr.f32.gmra.mxu0 %v309
    %v1236 = vpop.f32.mrf.mxu0
    %v1237 = vadd.f32 %v1092, %v1236
    %v1238 = vpop.f32.mrf.mxu0
    %1239 = vmatprep.mubr.f32.mxu0 0.0
    %1240 = vmatmul.mubr.f32.gmra.mxu0 %v312
    %v1241 = vpop.f32.mrf.mxu0
    %v1242 = vadd.f32 %v1097, %v1241
    %v1243 = vpop.f32.mrf.mxu0
    %1244 = vmatprep.mubr.f32.mxu0 0.0
    %1245 = vmatmul.mubr.f32.gmra.mxu0 %v315
    %v1246 = vpop.f32.mrf.mxu0
    %v1247 = vadd.f32 %v1102, %v1246
    %v1248 = vpop.f32.mrf.mxu0
    %1249 = vmatprep.mubr.f32.mxu0 0.0
    %1250 = vmatmul.mubr.f32.gmra.mxu0 %v318
    %v1251 = vpop.f32.mrf.mxu0
    %v1252 = vadd.f32 %v1107, %v1251
    %v1253 = vpop.f32.mrf.mxu0
    %1254 = vmatprep.mubr.f32.mxu0 0.0
    %1255 = vmatmul.mubr.f32.gmra.mxu0 %v321
    %v1256 = vpop.f32.mrf.mxu0
    %v1257 = vadd.f32 %v1112, %v1256
    %v1258 = vpop.f32.mrf.mxu0
    %1259 = vmatprep.mubr.f32.mxu0 0.0
    %1260 = vmatmul.mubr.f32.gmra.mxu0 %v324
    %v1261 = vpop.f32.mrf.mxu0
    %v1262 = vadd.f32 %v1117, %v1261
    %v1263 = vpop.f32.mrf.mxu0
    %1264 = vmatprep.mubr.f32.mxu0 0.0
    %1265 = vmatmul.mubr.f32.gmra.mxu0 %v327
    %v1266 = vpop.f32.mrf.mxu0
    %v1267 = vadd.f32 %v1122, %v1266
    %v1268 = vpop.f32.mrf.mxu0
    %1269 = vmatprep.mubr.f32.mxu0 0.0
    %1270 = vmatmul.mubr.f32.gmra.mxu0 %v330
    %v1271 = vpop.f32.mrf.mxu0
    %v1272 = vadd.f32 %v1127, %v1271
    %v1273 = vpop.f32.mrf.mxu0
    %1274 = vdwg.mxu0
    %s1275 = scalar_lea.vmem %s0, 1152
    %v1276 = vld [vmem:[%s1275] sm:$0xff]
    %v1277 = vld [vmem:[%s1275 + $0x8] sm:$0xff]
    %v1278 = vld [vmem:[%s1275 + $0x10] sm:$0xff]
    %v1279 = vld [vmem:[%s1275 + $0x18] sm:$0xff]
    %v1280 = vld [vmem:[%s1275 + $0x20] sm:$0xff]
    %v1281 = vld [vmem:[%s1275 + $0x28] sm:$0xff]
    %v1282 = vld [vmem:[%s1275 + $0x30] sm:$0xff]
    %v1283 = vld [vmem:[%s1275 + $0x38] sm:$0xff]
    %v1284 = vld [vmem:[%s1275 + $0x40] sm:$0xff]
    %v1285 = vld [vmem:[%s1275 + $0x48] sm:$0xff]
    %v1286 = vld [vmem:[%s1275 + $0x50] sm:$0xff]
    %v1287 = vld [vmem:[%s1275 + $0x58] sm:$0xff]
    %v1288 = vld [vmem:[%s1275 + $0x60] sm:$0xff]
    %v1289 = vld [vmem:[%s1275 + $0x68] sm:$0xff]
    %v1290 = vld [vmem:[%s1275 + $0x70] sm:$0xff]
    %v1291 = vld [vmem:[%s1275 + $0x78] sm:$0xff]
    %v1292 = vld [vmem:[%s1275 + $0x80] sm:$0xff]
    %v1293 = vld [vmem:[%s1275 + $0x88] sm:$0xff]
    %v1294 = vld [vmem:[%s1275 + $0x90] sm:$0xff]
    %v1295 = vld [vmem:[%s1275 + $0x98] sm:$0xff]
    %v1296 = vld [vmem:[%s1275 + $0xa0] sm:$0xff]
    %v1297 = vld [vmem:[%s1275 + $0xa8] sm:$0xff]
    %v1298 = vld [vmem:[%s1275 + $0xb0] sm:$0xff]
    %v1299 = vld [vmem:[%s1275 + $0xb8] sm:$0xff]
    %v1300 = vld [vmem:[%s1275 + $0xc0] sm:$0xff]
    %v1301 = vld [vmem:[%s1275 + $0xc8] sm:$0xff]
    %v1302 = vld [vmem:[%s1275 + $0xd0] sm:$0xff]
    %v1303 = vld [vmem:[%s1275 + $0xd8] sm:$0xff]
    %v1304 = vld [vmem:[%s1275 + $0xe0] sm:$0xff]
    %v1305 = vld [vmem:[%s1275 + $0xe8] sm:$0xff]
    %v1306 = vld [vmem:[%s1275 + $0xf0] sm:$0xff]
    %v1307 = vld [vmem:[%s1275 + $0xf8] sm:$0xff]
    %v1308 = vld [vmem:[%s1275 + $0x100] sm:$0xff]
    %v1309 = vld [vmem:[%s1275 + $0x108] sm:$0xff]
    %v1310 = vld [vmem:[%s1275 + $0x110] sm:$0xff]
    %v1311 = vld [vmem:[%s1275 + $0x118] sm:$0xff]
    %v1312 = vld [vmem:[%s1275 + $0x120] sm:$0xff]
    %v1313 = vld [vmem:[%s1275 + $0x128] sm:$0xff]
    %v1314 = vld [vmem:[%s1275 + $0x130] sm:$0xff]
    %v1315 = vld [vmem:[%s1275 + $0x138] sm:$0xff]
    %v1316 = vld [vmem:[%s1275 + $0x140] sm:$0xff]
    %v1317 = vld [vmem:[%s1275 + $0x148] sm:$0xff]
    %v1318 = vld [vmem:[%s1275 + $0x150] sm:$0xff]
    %v1319 = vld [vmem:[%s1275 + $0x158] sm:$0xff]
    %v1320 = vld [vmem:[%s1275 + $0x160] sm:$0xff]
    %v1321 = vld [vmem:[%s1275 + $0x168] sm:$0xff]
    %v1322 = vld [vmem:[%s1275 + $0x170] sm:$0xff]
    %v1323 = vld [vmem:[%s1275 + $0x178] sm:$0xff]
    %v1324 = vld [vmem:[%s1275 + $0x180] sm:$0xff]
    %v1325 = vld [vmem:[%s1275 + $0x188] sm:$0xff]
    %v1326 = vld [vmem:[%s1275 + $0x190] sm:$0xff]
    %v1327 = vld [vmem:[%s1275 + $0x198] sm:$0xff]
    %v1328 = vld [vmem:[%s1275 + $0x1a0] sm:$0xff]
    %v1329 = vld [vmem:[%s1275 + $0x1a8] sm:$0xff]
    %v1330 = vld [vmem:[%s1275 + $0x1b0] sm:$0xff]
    %v1331 = vld [vmem:[%s1275 + $0x1b8] sm:$0xff]
    %v1332 = vld [vmem:[%s1275 + $0x1c0] sm:$0xff]
    %v1333 = vld [vmem:[%s1275 + $0x1c8] sm:$0xff]
    %v1334 = vld [vmem:[%s1275 + $0x1d0] sm:$0xff]
    %v1335 = vld [vmem:[%s1275 + $0x1d8] sm:$0xff]
    %v1336 = vld [vmem:[%s1275 + $0x1e0] sm:$0xff]
    %v1337 = vld [vmem:[%s1275 + $0x1e8] sm:$0xff]
    %v1338 = vld [vmem:[%s1275 + $0x1f0] sm:$0xff]
    %v1339 = vld [vmem:[%s1275 + $0x1f8] sm:$0xff]
    %v1340 = vld [vmem:[%s1275 + $0x200] sm:$0xff]
    %v1341 = vld [vmem:[%s1275 + $0x208] sm:$0xff]
    %v1342 = vld [vmem:[%s1275 + $0x210] sm:$0xff]
    %v1343 = vld [vmem:[%s1275 + $0x218] sm:$0xff]
    %v1344 = vld [vmem:[%s1275 + $0x220] sm:$0xff]
    %v1345 = vld [vmem:[%s1275 + $0x228] sm:$0xff]
    %v1346 = vld [vmem:[%s1275 + $0x230] sm:$0xff]
    %v1347 = vld [vmem:[%s1275 + $0x238] sm:$0xff]
    %1348 = vmatprep.subr.mxu0 0.0
    %1349 = vmatpush1.msra.mxu0 %v1291
    %1350 = vmatprep.subr.mxu0 0.0
    %1351 = vmatpush1.msra.mxu0 %v1290
    %1352 = vmatprep.subr.mxu0 0.0
    %1353 = vmatpush1.msra.mxu0 %v1289
    %1354 = vmatprep.subr.mxu0 0.0
    %1355 = vmatpush1.msra.mxu0 %v1288
    %1356 = vmatprep.subr.mxu0 0.0
    %1357 = vmatpush1.msra.mxu0 %v1287
    %1358 = vmatprep.subr.mxu0 0.0
    %1359 = vmatpush1.msra.mxu0 %v1286
    %1360 = vmatprep.subr.mxu0 0.0
    %1361 = vmatpush1.msra.mxu0 %v1285
    %1362 = vmatprep.subr.mxu0 0.0
    %1363 = vmatpush1.msra.mxu0 %v1284
    %1364 = vmatprep.subr.mxu0 0.0
    %1365 = vmatpush1.msra.mxu0 %v1283
    %1366 = vmatprep.subr.mxu0 0.0
    %1367 = vmatpush1.msra.mxu0 %v1282
    %1368 = vmatprep.subr.mxu0 0.0
    %1369 = vmatpush1.msra.mxu0 %v1281
    %1370 = vmatprep.subr.mxu0 0.0
    %1371 = vmatpush1.msra.mxu0 %v1280
    %1372 = vmatprep.subr.mxu0 0.0
    %1373 = vmatpush1.msra.mxu0 %v1279
    %1374 = vmatprep.subr.mxu0 0.0
    %1375 = vmatpush1.msra.mxu0 %v1278
    %1376 = vmatprep.subr.mxu0 0.0
    %1377 = vmatpush1.msra.mxu0 %v1277
    %1378 = vmatprep.subr.mxu0 0.0
    %1379 = vmatpush1.msra.mxu0 %v1276
    %1380 = vmatprep.subr.mxu0 0.0
    %1381 = vmatpush2.msra.mxu0 %v1307
    %1382 = vmatprep.subr.mxu0 0.0
    %1383 = vmatpush2.msra.mxu0 %v1306
    %1384 = vmatprep.subr.mxu0 0.0
    %1385 = vmatpush2.msra.mxu0 %v1305
    %1386 = vmatprep.subr.mxu0 0.0
    %1387 = vmatpush2.msra.mxu0 %v1304
    %1388 = vmatprep.subr.mxu0 0.0
    %1389 = vmatpush2.msra.mxu0 %v1303
    %1390 = vmatprep.subr.mxu0 0.0
    %1391 = vmatpush2.msra.mxu0 %v1302
    %1392 = vmatprep.subr.mxu0 0.0
    %1393 = vmatpush2.msra.mxu0 %v1301
    %1394 = vmatprep.subr.mxu0 0.0
    %1395 = vmatpush2.msra.mxu0 %v1300
    %1396 = vmatprep.subr.mxu0 0.0
    %1397 = vmatpush2.msra.mxu0 %v1299
    %1398 = vmatprep.subr.mxu0 0.0
    %1399 = vmatpush2.msra.mxu0 %v1298
    %1400 = vmatprep.subr.mxu0 0.0
    %1401 = vmatpush2.msra.mxu0 %v1297
    %1402 = vmatprep.subr.mxu0 0.0
    %1403 = vmatpush2.msra.mxu0 %v1296
    %1404 = vmatprep.subr.mxu0 0.0
    %1405 = vmatpush2.msra.mxu0 %v1295
    %1406 = vmatprep.subr.mxu0 0.0
    %1407 = vmatpush2.msra.mxu0 %v1294
    %1408 = vmatprep.subr.mxu0 0.0
    %1409 = vmatpush2.msra.mxu0 %v1293
    %1410 = vmatprep.subr.mxu0 0.0
    %1411 = vmatpush2.msra.mxu0 %v1292
    %1412 = vmatprep.mubr.f32.mxu0 %v36
    %1413 = vmatmul.mubr.f32.gmra.mxu0 %v35
    %v1414 = vpop.f32.mrf.mxu0
    %v1415 = vadd.f32 %v206, %v1414
    %v1416 = vpop.f32.mrf.mxu0
    %1417 = vmatprep.mubr.f32.mxu0 %v41
    %1418 = vmatmul.mubr.f32.gmra.mxu0 %v40
    %v1419 = vpop.f32.mrf.mxu0
    %v1420 = vadd.f32 %v211, %v1419
    %v1421 = vpop.f32.mrf.mxu0
    %1422 = vmatprep.mubr.f32.mxu0 %v46
    %1423 = vmatmul.mubr.f32.gmra.mxu0 %v45
    %v1424 = vpop.f32.mrf.mxu0
    %v1425 = vadd.f32 %v216, %v1424
    %v1426 = vpop.f32.mrf.mxu0
    %1427 = vmatprep.mubr.f32.mxu0 %v51
    %1428 = vmatmul.mubr.f32.gmra.mxu0 %v50
    %v1429 = vpop.f32.mrf.mxu0
    %v1430 = vadd.f32 %v221, %v1429
    %v1431 = vpop.f32.mrf.mxu0
    %1432 = vmatprep.mubr.f32.mxu0 %v56
    %1433 = vmatmul.mubr.f32.gmra.mxu0 %v55
    %v1434 = vpop.f32.mrf.mxu0
    %v1435 = vadd.f32 %v226, %v1434
    %v1436 = vpop.f32.mrf.mxu0
    %1437 = vmatprep.mubr.f32.mxu0 %v61
    %1438 = vmatmul.mubr.f32.gmra.mxu0 %v60
    %v1439 = vpop.f32.mrf.mxu0
    %v1440 = vadd.f32 %v231, %v1439
    %v1441 = vpop.f32.mrf.mxu0
    %1442 = vmatprep.mubr.f32.mxu0 %v66
    %1443 = vmatmul.mubr.f32.gmra.mxu0 %v65
    %v1444 = vpop.f32.mrf.mxu0
    %v1445 = vadd.f32 %v236, %v1444
    %v1446 = vpop.f32.mrf.mxu0
    %1447 = vmatprep.mubr.f32.mxu0 %v71
    %1448 = vmatmul.mubr.f32.gmra.mxu0 %v70
    %v1449 = vpop.f32.mrf.mxu0
    %v1450 = vadd.f32 %v241, %v1449
    %v1451 = vpop.f32.mrf.mxu0
    %1452 = vmatprep.mubr.f32.mxu0 %v76
    %1453 = vmatmul.mubr.f32.gmra.mxu0 %v75
    %v1454 = vpop.f32.mrf.mxu0
    %v1455 = vadd.f32 %v246, %v1454
    %v1456 = vpop.f32.mrf.mxu0
    %1457 = vmatprep.mubr.f32.mxu0 %v81
    %1458 = vmatmul.mubr.f32.gmra.mxu0 %v80
    %v1459 = vpop.f32.mrf.mxu0
    %v1460 = vadd.f32 %v251, %v1459
    %v1461 = vpop.f32.mrf.mxu0
    %1462 = vmatprep.mubr.f32.mxu0 %v86
    %1463 = vmatmul.mubr.f32.gmra.mxu0 %v85
    %v1464 = vpop.f32.mrf.mxu0
    %v1465 = vadd.f32 %v256, %v1464
    %v1466 = vpop.f32.mrf.mxu0
    %1467 = vmatprep.mubr.f32.mxu0 %v91
    %1468 = vmatmul.mubr.f32.gmra.mxu0 %v90
    %v1469 = vpop.f32.mrf.mxu0
    %v1470 = vadd.f32 %v261, %v1469
    %v1471 = vpop.f32.mrf.mxu0
    %1472 = vmatprep.mubr.f32.mxu0 %v96
    %1473 = vmatmul.mubr.f32.gmra.mxu0 %v95
    %v1474 = vpop.f32.mrf.mxu0
    %v1475 = vadd.f32 %v266, %v1474
    %v1476 = vpop.f32.mrf.mxu0
    %1477 = vmatprep.mubr.f32.mxu0 %v101
    %1478 = vmatmul.mubr.f32.gmra.mxu0 %v100
    %v1479 = vpop.f32.mrf.mxu0
    %v1480 = vadd.f32 %v271, %v1479
    %v1481 = vpop.f32.mrf.mxu0
    %1482 = vmatprep.mubr.f32.mxu0 %v106
    %1483 = vmatmul.mubr.f32.gmra.mxu0 %v105
    %v1484 = vpop.f32.mrf.mxu0
    %v1485 = vadd.f32 %v276, %v1484
    %v1486 = vpop.f32.mrf.mxu0
    %1487 = vmatprep.mubr.f32.mxu0 %v111
    %1488 = vmatmul.mubr.f32.gmra.mxu0 %v110
    %v1489 = vpop.f32.mrf.mxu0
    %v1490 = vadd.f32 %v281, %v1489
    %v1491 = vpop.f32.mrf.mxu0
    %1492 = vdwg.mxu0
    %1493 = vmatprep.subr.mxu0 0.0
    %1494 = vmatpush1.msra.mxu0 %v1323
    %1495 = vmatprep.subr.mxu0 0.0
    %1496 = vmatpush1.msra.mxu0 %v1322
    %1497 = vmatprep.subr.mxu0 0.0
    %1498 = vmatpush1.msra.mxu0 %v1321
    %1499 = vmatprep.subr.mxu0 0.0
    %1500 = vmatpush1.msra.mxu0 %v1320
    %1501 = vmatprep.subr.mxu0 0.0
    %1502 = vmatpush1.msra.mxu0 %v1319
    %1503 = vmatprep.subr.mxu0 0.0
    %1504 = vmatpush1.msra.mxu0 %v1318
    %1505 = vmatprep.subr.mxu0 0.0
    %1506 = vmatpush1.msra.mxu0 %v1317
    %1507 = vmatprep.subr.mxu0 0.0
    %1508 = vmatpush1.msra.mxu0 %v1316
    %1509 = vmatprep.subr.mxu0 0.0
    %1510 = vmatpush1.msra.mxu0 %v1315
    %1511 = vmatprep.subr.mxu0 0.0
    %1512 = vmatpush1.msra.mxu0 %v1314
    %1513 = vmatprep.subr.mxu0 0.0
    %1514 = vmatpush1.msra.mxu0 %v1313
    %1515 = vmatprep.subr.mxu0 0.0
    %1516 = vmatpush1.msra.mxu0 %v1312
    %1517 = vmatprep.subr.mxu0 0.0
    %1518 = vmatpush1.msra.mxu0 %v1311
    %1519 = vmatprep.subr.mxu0 0.0
    %1520 = vmatpush1.msra.mxu0 %v1310
    %1521 = vmatprep.subr.mxu0 0.0
    %1522 = vmatpush1.msra.mxu0 %v1309
    %1523 = vmatprep.subr.mxu0 0.0
    %1524 = vmatpush1.msra.mxu0 %v1308
    %1525 = vmatprep.subr.mxu0 0.0
    %1526 = vmatpush2.msra.mxu0 %v1339
    %1527 = vmatprep.subr.mxu0 0.0
    %1528 = vmatpush2.msra.mxu0 %v1338
    %1529 = vmatprep.subr.mxu0 0.0
    %1530 = vmatpush2.msra.mxu0 %v1337
    %1531 = vmatprep.subr.mxu0 0.0
    %1532 = vmatpush2.msra.mxu0 %v1336
    %1533 = vmatprep.subr.mxu0 0.0
    %1534 = vmatpush2.msra.mxu0 %v1335
    %1535 = vmatprep.subr.mxu0 0.0
    %1536 = vmatpush2.msra.mxu0 %v1334
    %1537 = vmatprep.subr.mxu0 0.0
    %1538 = vmatpush2.msra.mxu0 %v1333
    %1539 = vmatprep.subr.mxu0 0.0
    %1540 = vmatpush2.msra.mxu0 %v1332
    %1541 = vmatprep.subr.mxu0 0.0
    %1542 = vmatpush2.msra.mxu0 %v1331
    %1543 = vmatprep.subr.mxu0 0.0
    %1544 = vmatpush2.msra.mxu0 %v1330
    %1545 = vmatprep.subr.mxu0 0.0
    %1546 = vmatpush2.msra.mxu0 %v1329
    %1547 = vmatprep.subr.mxu0 0.0
    %1548 = vmatpush2.msra.mxu0 %v1328
    %1549 = vmatprep.subr.mxu0 0.0
    %1550 = vmatpush2.msra.mxu0 %v1327
    %1551 = vmatprep.subr.mxu0 0.0
    %1552 = vmatpush2.msra.mxu0 %v1326
    %1553 = vmatprep.subr.mxu0 0.0
    %1554 = vmatpush2.msra.mxu0 %v1325
    %1555 = vmatprep.subr.mxu0 0.0
    %1556 = vmatpush2.msra.mxu0 %v1324
    %1557 = vmatprep.mubr.f32.mxu0 %v38
    %1558 = vmatmul.mubr.f32.gmra.mxu0 %v37
    %v1559 = vpop.f32.mrf.mxu0
    %v1560 = vadd.f32 %v1415, %v1559
    %v1561 = vpop.f32.mrf.mxu0
    %1562 = vmatprep.mubr.f32.mxu0 %v43
    %1563 = vmatmul.mubr.f32.gmra.mxu0 %v42
    %v1564 = vpop.f32.mrf.mxu0
    %v1565 = vadd.f32 %v1420, %v1564
    %v1566 = vpop.f32.mrf.mxu0
    %1567 = vmatprep.mubr.f32.mxu0 %v48
    %1568 = vmatmul.mubr.f32.gmra.mxu0 %v47
    %v1569 = vpop.f32.mrf.mxu0
    %v1570 = vadd.f32 %v1425, %v1569
    %v1571 = vpop.f32.mrf.mxu0
    %1572 = vmatprep.mubr.f32.mxu0 %v53
    %1573 = vmatmul.mubr.f32.gmra.mxu0 %v52
    %v1574 = vpop.f32.mrf.mxu0
    %v1575 = vadd.f32 %v1430, %v1574
    %v1576 = vpop.f32.mrf.mxu0
    %1577 = vmatprep.mubr.f32.mxu0 %v58
    %1578 = vmatmul.mubr.f32.gmra.mxu0 %v57
    %v1579 = vpop.f32.mrf.mxu0
    %v1580 = vadd.f32 %v1435, %v1579
    %v1581 = vpop.f32.mrf.mxu0
    %1582 = vmatprep.mubr.f32.mxu0 %v63
    %1583 = vmatmul.mubr.f32.gmra.mxu0 %v62
    %v1584 = vpop.f32.mrf.mxu0
    %v1585 = vadd.f32 %v1440, %v1584
    %v1586 = vpop.f32.mrf.mxu0
    %1587 = vmatprep.mubr.f32.mxu0 %v68
    %1588 = vmatmul.mubr.f32.gmra.mxu0 %v67
    %v1589 = vpop.f32.mrf.mxu0
    %v1590 = vadd.f32 %v1445, %v1589
    %v1591 = vpop.f32.mrf.mxu0
    %1592 = vmatprep.mubr.f32.mxu0 %v73
    %1593 = vmatmul.mubr.f32.gmra.mxu0 %v72
    %v1594 = vpop.f32.mrf.mxu0
    %v1595 = vadd.f32 %v1450, %v1594
    %v1596 = vpop.f32.mrf.mxu0
    %1597 = vmatprep.mubr.f32.mxu0 %v78
    %1598 = vmatmul.mubr.f32.gmra.mxu0 %v77
    %v1599 = vpop.f32.mrf.mxu0
    %v1600 = vadd.f32 %v1455, %v1599
    %v1601 = vpop.f32.mrf.mxu0
    %1602 = vmatprep.mubr.f32.mxu0 %v83
    %1603 = vmatmul.mubr.f32.gmra.mxu0 %v82
    %v1604 = vpop.f32.mrf.mxu0
    %v1605 = vadd.f32 %v1460, %v1604
    %v1606 = vpop.f32.mrf.mxu0
    %1607 = vmatprep.mubr.f32.mxu0 %v88
    %1608 = vmatmul.mubr.f32.gmra.mxu0 %v87
    %v1609 = vpop.f32.mrf.mxu0
    %v1610 = vadd.f32 %v1465, %v1609
    %v1611 = vpop.f32.mrf.mxu0
    %1612 = vmatprep.mubr.f32.mxu0 %v93
    %1613 = vmatmul.mubr.f32.gmra.mxu0 %v92
    %v1614 = vpop.f32.mrf.mxu0
    %v1615 = vadd.f32 %v1470, %v1614
    %v1616 = vpop.f32.mrf.mxu0
    %1617 = vmatprep.mubr.f32.mxu0 %v98
    %1618 = vmatmul.mubr.f32.gmra.mxu0 %v97
    %v1619 = vpop.f32.mrf.mxu0
    %v1620 = vadd.f32 %v1475, %v1619
    %v1621 = vpop.f32.mrf.mxu0
    %1622 = vmatprep.mubr.f32.mxu0 %v103
    %1623 = vmatmul.mubr.f32.gmra.mxu0 %v102
    %v1624 = vpop.f32.mrf.mxu0
    %v1625 = vadd.f32 %v1480, %v1624
    %v1626 = vpop.f32.mrf.mxu0
    %1627 = vmatprep.mubr.f32.mxu0 %v108
    %1628 = vmatmul.mubr.f32.gmra.mxu0 %v107
    %v1629 = vpop.f32.mrf.mxu0
    %v1630 = vadd.f32 %v1485, %v1629
    %v1631 = vpop.f32.mrf.mxu0
    %1632 = vmatprep.mubr.f32.mxu0 %v113
    %1633 = vmatmul.mubr.f32.gmra.mxu0 %v112
    %v1634 = vpop.f32.mrf.mxu0
    %v1635 = vadd.f32 %v1490, %v1634
    %v1636 = vpop.f32.mrf.mxu0
    %1637 = vdwg.mxu0
    %1638 = vmatprep.subr.mxu0 0.0
    %1639 = vmatpush1.msra.mxu0 0.0
    %1640 = vmatprep.subr.mxu0 0.0
    %1641 = vmatpush1.msra.mxu0 0.0
    %1642 = vmatprep.subr.mxu0 0.0
    %1643 = vmatpush1.msra.mxu0 0.0
    %1644 = vmatprep.subr.mxu0 0.0
    %1645 = vmatpush1.msra.mxu0 0.0
    %1646 = vmatprep.subr.mxu0 0.0
    %1647 = vmatpush1.msra.mxu0 0.0
    %1648 = vmatprep.subr.mxu0 0.0
    %1649 = vmatpush1.msra.mxu0 0.0
    %1650 = vmatprep.subr.mxu0 0.0
    %1651 = vmatpush1.msra.mxu0 0.0
    %1652 = vmatprep.subr.mxu0 0.0
    %1653 = vmatpush1.msra.mxu0 0.0
    %1654 = vmatprep.subr.mxu0 0.0
    %1655 = vmatpush1.msra.mxu0 %v1347
    %1656 = vmatprep.subr.mxu0 0.0
    %1657 = vmatpush1.msra.mxu0 %v1346
    %1658 = vmatprep.subr.mxu0 0.0
    %1659 = vmatpush1.msra.mxu0 %v1345
    %1660 = vmatprep.subr.mxu0 0.0
    %1661 = vmatpush1.msra.mxu0 %v1344
    %1662 = vmatprep.subr.mxu0 0.0
    %1663 = vmatpush1.msra.mxu0 %v1343
    %1664 = vmatprep.subr.mxu0 0.0
    %1665 = vmatpush1.msra.mxu0 %v1342
    %1666 = vmatprep.subr.mxu0 0.0
    %1667 = vmatpush1.msra.mxu0 %v1341
    %1668 = vmatprep.subr.mxu0 0.0
    %1669 = vmatpush1.msra.mxu0 %v1340
    %1670 = vmatprep.subr.mxu0 0.0
    %1671 = vmatpush2.msra.mxu0 0.0
    %1672 = vmatprep.subr.mxu0 0.0
    %1673 = vmatpush2.msra.mxu0 0.0
    %1674 = vmatprep.subr.mxu0 0.0
    %1675 = vmatpush2.msra.mxu0 0.0
    %1676 = vmatprep.subr.mxu0 0.0
    %1677 = vmatpush2.msra.mxu0 0.0
    %1678 = vmatprep.subr.mxu0 0.0
    %1679 = vmatpush2.msra.mxu0 0.0
    %1680 = vmatprep.subr.mxu0 0.0
    %1681 = vmatpush2.msra.mxu0 0.0
    %1682 = vmatprep.subr.mxu0 0.0
    %1683 = vmatpush2.msra.mxu0 0.0
    %1684 = vmatprep.subr.mxu0 0.0
    %1685 = vmatpush2.msra.mxu0 0.0
    %1686 = vmatprep.subr.mxu0 0.0
    %1687 = vmatpush2.msra.mxu0 0.0
    %1688 = vmatprep.subr.mxu0 0.0
    %1689 = vmatpush2.msra.mxu0 0.0
    %1690 = vmatprep.subr.mxu0 0.0
    %1691 = vmatpush2.msra.mxu0 0.0
    %1692 = vmatprep.subr.mxu0 0.0
    %1693 = vmatpush2.msra.mxu0 0.0
    %1694 = vmatprep.subr.mxu0 0.0
    %1695 = vmatpush2.msra.mxu0 0.0
    %1696 = vmatprep.subr.mxu0 0.0
    %1697 = vmatpush2.msra.mxu0 0.0
    %1698 = vmatprep.subr.mxu0 0.0
    %1699 = vmatpush2.msra.mxu0 0.0
    %1700 = vmatprep.subr.mxu0 0.0
    %1701 = vmatpush2.msra.mxu0 0.0
    %1702 = vmatprep.mubr.f32.mxu0 0.0
    %1703 = vmatmul.mubr.f32.gmra.mxu0 %v285
    %v1704 = vpop.f32.mrf.mxu0
    %v1705 = vadd.f32 %v1560, %v1704
    %v1706 = vpop.f32.mrf.mxu0
    %1707 = vmatprep.mubr.f32.mxu0 0.0
    %1708 = vmatmul.mubr.f32.gmra.mxu0 %v288
    %v1709 = vpop.f32.mrf.mxu0
    %v1710 = vadd.f32 %v1565, %v1709
    %v1711 = vpop.f32.mrf.mxu0
    %1712 = vmatprep.mubr.f32.mxu0 0.0
    %1713 = vmatmul.mubr.f32.gmra.mxu0 %v291
    %v1714 = vpop.f32.mrf.mxu0
    %v1715 = vadd.f32 %v1570, %v1714
    %v1716 = vpop.f32.mrf.mxu0
    %1717 = vmatprep.mubr.f32.mxu0 0.0
    %1718 = vmatmul.mubr.f32.gmra.mxu0 %v294
    %v1719 = vpop.f32.mrf.mxu0
    %v1720 = vadd.f32 %v1575, %v1719
    %v1721 = vpop.f32.mrf.mxu0
    %1722 = vmatprep.mubr.f32.mxu0 0.0
    %1723 = vmatmul.mubr.f32.gmra.mxu0 %v297
    %v1724 = vpop.f32.mrf.mxu0
    %v1725 = vadd.f32 %v1580, %v1724
    %v1726 = vpop.f32.mrf.mxu0
    %1727 = vmatprep.mubr.f32.mxu0 0.0
    %1728 = vmatmul.mubr.f32.gmra.mxu0 %v300
    %v1729 = vpop.f32.mrf.mxu0
    %v1730 = vadd.f32 %v1585, %v1729
    %v1731 = vpop.f32.mrf.mxu0
    %1732 = vmatprep.mubr.f32.mxu0 0.0
    %1733 = vmatmul.mubr.f32.gmra.mxu0 %v303
    %v1734 = vpop.f32.mrf.mxu0
    %v1735 = vadd.f32 %v1590, %v1734
    %v1736 = vpop.f32.mrf.mxu0
    %1737 = vmatprep.mubr.f32.mxu0 0.0
    %1738 = vmatmul.mubr.f32.gmra.mxu0 %v306
    %v1739 = vpop.f32.mrf.mxu0
    %v1740 = vadd.f32 %v1595, %v1739
    %v1741 = vpop.f32.mrf.mxu0
    %1742 = vmatprep.mubr.f32.mxu0 0.0
    %1743 = vmatmul.mubr.f32.gmra.mxu0 %v309
    %v1744 = vpop.f32.mrf.mxu0
    %v1745 = vadd.f32 %v1600, %v1744
    %v1746 = vpop.f32.mrf.mxu0
    %1747 = vmatprep.mubr.f32.mxu0 0.0
    %1748 = vmatmul.mubr.f32.gmra.mxu0 %v312
    %v1749 = vpop.f32.mrf.mxu0
    %v1750 = vadd.f32 %v1605, %v1749
    %v1751 = vpop.f32.mrf.mxu0
    %1752 = vmatprep.mubr.f32.mxu0 0.0
    %1753 = vmatmul.mubr.f32.gmra.mxu0 %v315
    %v1754 = vpop.f32.mrf.mxu0
    %v1755 = vadd.f32 %v1610, %v1754
    %v1756 = vpop.f32.mrf.mxu0
    %1757 = vmatprep.mubr.f32.mxu0 0.0
    %1758 = vmatmul.mubr.f32.gmra.mxu0 %v318
    %v1759 = vpop.f32.mrf.mxu0
    %v1760 = vadd.f32 %v1615, %v1759
    %v1761 = vpop.f32.mrf.mxu0
    %1762 = vmatprep.mubr.f32.mxu0 0.0
    %1763 = vmatmul.mubr.f32.gmra.mxu0 %v321
    %v1764 = vpop.f32.mrf.mxu0
    %v1765 = vadd.f32 %v1620, %v1764
    %v1766 = vpop.f32.mrf.mxu0
    %1767 = vmatprep.mubr.f32.mxu0 0.0
    %1768 = vmatmul.mubr.f32.gmra.mxu0 %v324
    %v1769 = vpop.f32.mrf.mxu0
    %v1770 = vadd.f32 %v1625, %v1769
    %v1771 = vpop.f32.mrf.mxu0
    %1772 = vmatprep.mubr.f32.mxu0 0.0
    %1773 = vmatmul.mubr.f32.gmra.mxu0 %v327
    %v1774 = vpop.f32.mrf.mxu0
    %v1775 = vadd.f32 %v1630, %v1774
    %v1776 = vpop.f32.mrf.mxu0
    %1777 = vmatprep.mubr.f32.mxu0 0.0
    %1778 = vmatmul.mubr.f32.gmra.mxu0 %v330
    %v1779 = vpop.f32.mrf.mxu0
    %v1780 = vadd.f32 %v1635, %v1779
    %v1781 = vpop.f32.mrf.mxu0
    %1782 = vdwg.mxu0
    %s1783 = scalar_lea.vmem %s0, 1728
    %v1784 = vld [vmem:[%s1783] sm:$0xff]
    %v1785 = vld [vmem:[%s1783 + $0x8] sm:$0xff]
    %v1786 = vld [vmem:[%s1783 + $0x10] sm:$0xff]
    %v1787 = vld [vmem:[%s1783 + $0x18] sm:$0xff]
    %v1788 = vld [vmem:[%s1783 + $0x20] sm:$0xff]
    %v1789 = vld [vmem:[%s1783 + $0x28] sm:$0xff]
    %v1790 = vld [vmem:[%s1783 + $0x30] sm:$0xff]
    %v1791 = vld [vmem:[%s1783 + $0x38] sm:$0xff]
    %v1792 = vld [vmem:[%s1783 + $0x40] sm:$0xff]
    %v1793 = vld [vmem:[%s1783 + $0x48] sm:$0xff]
    %v1794 = vld [vmem:[%s1783 + $0x50] sm:$0xff]
    %v1795 = vld [vmem:[%s1783 + $0x58] sm:$0xff]
    %v1796 = vld [vmem:[%s1783 + $0x60] sm:$0xff]
    %v1797 = vld [vmem:[%s1783 + $0x68] sm:$0xff]
    %v1798 = vld [vmem:[%s1783 + $0x70] sm:$0xff]
    %v1799 = vld [vmem:[%s1783 + $0x78] sm:$0xff]
    %v1800 = vld [vmem:[%s1783 + $0x80] sm:$0xff]
    %v1801 = vld [vmem:[%s1783 + $0x88] sm:$0xff]
    %v1802 = vld [vmem:[%s1783 + $0x90] sm:$0xff]
    %v1803 = vld [vmem:[%s1783 + $0x98] sm:$0xff]
    %v1804 = vld [vmem:[%s1783 + $0xa0] sm:$0xff]
    %v1805 = vld [vmem:[%s1783 + $0xa8] sm:$0xff]
    %v1806 = vld [vmem:[%s1783 + $0xb0] sm:$0xff]
    %v1807 = vld [vmem:[%s1783 + $0xb8] sm:$0xff]
    %v1808 = vld [vmem:[%s1783 + $0xc0] sm:$0xff]
    %v1809 = vld [vmem:[%s1783 + $0xc8] sm:$0xff]
    %v1810 = vld [vmem:[%s1783 + $0xd0] sm:$0xff]
    %v1811 = vld [vmem:[%s1783 + $0xd8] sm:$0xff]
    %v1812 = vld [vmem:[%s1783 + $0xe0] sm:$0xff]
    %v1813 = vld [vmem:[%s1783 + $0xe8] sm:$0xff]
    %v1814 = vld [vmem:[%s1783 + $0xf0] sm:$0xff]
    %v1815 = vld [vmem:[%s1783 + $0xf8] sm:$0xff]
    %v1816 = vld [vmem:[%s1783 + $0x100] sm:$0xff]
    %v1817 = vld [vmem:[%s1783 + $0x108] sm:$0xff]
    %v1818 = vld [vmem:[%s1783 + $0x110] sm:$0xff]
    %v1819 = vld [vmem:[%s1783 + $0x118] sm:$0xff]
    %v1820 = vld [vmem:[%s1783 + $0x120] sm:$0xff]
    %v1821 = vld [vmem:[%s1783 + $0x128] sm:$0xff]
    %v1822 = vld [vmem:[%s1783 + $0x130] sm:$0xff]
    %v1823 = vld [vmem:[%s1783 + $0x138] sm:$0xff]
    %v1824 = vld [vmem:[%s1783 + $0x140] sm:$0xff]
    %v1825 = vld [vmem:[%s1783 + $0x148] sm:$0xff]
    %v1826 = vld [vmem:[%s1783 + $0x150] sm:$0xff]
    %v1827 = vld [vmem:[%s1783 + $0x158] sm:$0xff]
    %v1828 = vld [vmem:[%s1783 + $0x160] sm:$0xff]
    %v1829 = vld [vmem:[%s1783 + $0x168] sm:$0xff]
    %v1830 = vld [vmem:[%s1783 + $0x170] sm:$0xff]
    %v1831 = vld [vmem:[%s1783 + $0x178] sm:$0xff]
    %v1832 = vld [vmem:[%s1783 + $0x180] sm:$0xff]
    %v1833 = vld [vmem:[%s1783 + $0x188] sm:$0xff]
    %v1834 = vld [vmem:[%s1783 + $0x190] sm:$0xff]
    %v1835 = vld [vmem:[%s1783 + $0x198] sm:$0xff]
    %v1836 = vld [vmem:[%s1783 + $0x1a0] sm:$0xff]
    %v1837 = vld [vmem:[%s1783 + $0x1a8] sm:$0xff]
    %v1838 = vld [vmem:[%s1783 + $0x1b0] sm:$0xff]
    %v1839 = vld [vmem:[%s1783 + $0x1b8] sm:$0xff]
    %v1840 = vld [vmem:[%s1783 + $0x1c0] sm:$0xff]
    %v1841 = vld [vmem:[%s1783 + $0x1c8] sm:$0xff]
    %v1842 = vld [vmem:[%s1783 + $0x1d0] sm:$0xff]
    %v1843 = vld [vmem:[%s1783 + $0x1d8] sm:$0xff]
    %v1844 = vld [vmem:[%s1783 + $0x1e0] sm:$0xff]
    %v1845 = vld [vmem:[%s1783 + $0x1e8] sm:$0xff]
    %v1846 = vld [vmem:[%s1783 + $0x1f0] sm:$0xff]
    %v1847 = vld [vmem:[%s1783 + $0x1f8] sm:$0xff]
    %v1848 = vld [vmem:[%s1783 + $0x200] sm:$0xff]
    %v1849 = vld [vmem:[%s1783 + $0x208] sm:$0xff]
    %v1850 = vld [vmem:[%s1783 + $0x210] sm:$0xff]
    %v1851 = vld [vmem:[%s1783 + $0x218] sm:$0xff]
    %v1852 = vld [vmem:[%s1783 + $0x220] sm:$0xff]
    %v1853 = vld [vmem:[%s1783 + $0x228] sm:$0xff]
    %v1854 = vld [vmem:[%s1783 + $0x230] sm:$0xff]
    %v1855 = vld [vmem:[%s1783 + $0x238] sm:$0xff]
    %1856 = vmatprep.subr.mxu0 0.0
    %1857 = vmatpush1.msra.mxu0 %v1799
    %1858 = vmatprep.subr.mxu0 0.0
    %1859 = vmatpush1.msra.mxu0 %v1798
    %1860 = vmatprep.subr.mxu0 0.0
    %1861 = vmatpush1.msra.mxu0 %v1797
    %1862 = vmatprep.subr.mxu0 0.0
    %1863 = vmatpush1.msra.mxu0 %v1796
    %1864 = vmatprep.subr.mxu0 0.0
    %1865 = vmatpush1.msra.mxu0 %v1795
    %1866 = vmatprep.subr.mxu0 0.0
    %1867 = vmatpush1.msra.mxu0 %v1794
    %1868 = vmatprep.subr.mxu0 0.0
    %1869 = vmatpush1.msra.mxu0 %v1793
    %1870 = vmatprep.subr.mxu0 0.0
    %1871 = vmatpush1.msra.mxu0 %v1792
    %1872 = vmatprep.subr.mxu0 0.0
    %1873 = vmatpush1.msra.mxu0 %v1791
    %1874 = vmatprep.subr.mxu0 0.0
    %1875 = vmatpush1.msra.mxu0 %v1790
    %1876 = vmatprep.subr.mxu0 0.0
    %1877 = vmatpush1.msra.mxu0 %v1789
    %1878 = vmatprep.subr.mxu0 0.0
    %1879 = vmatpush1.msra.mxu0 %v1788
    %1880 = vmatprep.subr.mxu0 0.0
    %1881 = vmatpush1.msra.mxu0 %v1787
    %1882 = vmatprep.subr.mxu0 0.0
    %1883 = vmatpush1.msra.mxu0 %v1786
    %1884 = vmatprep.subr.mxu0 0.0
    %1885 = vmatpush1.msra.mxu0 %v1785
    %1886 = vmatprep.subr.mxu0 0.0
    %1887 = vmatpush1.msra.mxu0 %v1784
    %1888 = vmatprep.subr.mxu0 0.0
    %1889 = vmatpush2.msra.mxu0 %v1815
    %1890 = vmatprep.subr.mxu0 0.0
    %1891 = vmatpush2.msra.mxu0 %v1814
    %1892 = vmatprep.subr.mxu0 0.0
    %1893 = vmatpush2.msra.mxu0 %v1813
    %1894 = vmatprep.subr.mxu0 0.0
    %1895 = vmatpush2.msra.mxu0 %v1812
    %1896 = vmatprep.subr.mxu0 0.0
    %1897 = vmatpush2.msra.mxu0 %v1811
    %1898 = vmatprep.subr.mxu0 0.0
    %1899 = vmatpush2.msra.mxu0 %v1810
    %1900 = vmatprep.subr.mxu0 0.0
    %1901 = vmatpush2.msra.mxu0 %v1809
    %1902 = vmatprep.subr.mxu0 0.0
    %1903 = vmatpush2.msra.mxu0 %v1808
    %1904 = vmatprep.subr.mxu0 0.0
    %1905 = vmatpush2.msra.mxu0 %v1807
    %1906 = vmatprep.subr.mxu0 0.0
    %1907 = vmatpush2.msra.mxu0 %v1806
    %1908 = vmatprep.subr.mxu0 0.0
    %1909 = vmatpush2.msra.mxu0 %v1805
    %1910 = vmatprep.subr.mxu0 0.0
    %1911 = vmatpush2.msra.mxu0 %v1804
    %1912 = vmatprep.subr.mxu0 0.0
    %1913 = vmatpush2.msra.mxu0 %v1803
    %1914 = vmatprep.subr.mxu0 0.0
    %1915 = vmatpush2.msra.mxu0 %v1802
    %1916 = vmatprep.subr.mxu0 0.0
    %1917 = vmatpush2.msra.mxu0 %v1801
    %1918 = vmatprep.subr.mxu0 0.0
    %1919 = vmatpush2.msra.mxu0 %v1800
    %1920 = vmatprep.mubr.f32.mxu0 %v36
    %1921 = vmatmul.mubr.f32.gmra.mxu0 %v35
    %v1922 = vpop.f32.mrf.mxu0
    %v1923 = vadd.f32 %v206, %v1922
    %v1924 = vpop.f32.mrf.mxu0
    %1925 = vmatprep.mubr.f32.mxu0 %v41
    %1926 = vmatmul.mubr.f32.gmra.mxu0 %v40
    %v1927 = vpop.f32.mrf.mxu0
    %v1928 = vadd.f32 %v211, %v1927
    %v1929 = vpop.f32.mrf.mxu0
    %1930 = vmatprep.mubr.f32.mxu0 %v46
    %1931 = vmatmul.mubr.f32.gmra.mxu0 %v45
    %v1932 = vpop.f32.mrf.mxu0
    %v1933 = vadd.f32 %v216, %v1932
    %v1934 = vpop.f32.mrf.mxu0
    %1935 = vmatprep.mubr.f32.mxu0 %v51
    %1936 = vmatmul.mubr.f32.gmra.mxu0 %v50
    %v1937 = vpop.f32.mrf.mxu0
    %v1938 = vadd.f32 %v221, %v1937
    %v1939 = vpop.f32.mrf.mxu0
    %1940 = vmatprep.mubr.f32.mxu0 %v56
    %1941 = vmatmul.mubr.f32.gmra.mxu0 %v55
    %v1942 = vpop.f32.mrf.mxu0
    %v1943 = vadd.f32 %v226, %v1942
    %v1944 = vpop.f32.mrf.mxu0
    %1945 = vmatprep.mubr.f32.mxu0 %v61
    %1946 = vmatmul.mubr.f32.gmra.mxu0 %v60
    %v1947 = vpop.f32.mrf.mxu0
    %v1948 = vadd.f32 %v231, %v1947
    %v1949 = vpop.f32.mrf.mxu0
    %1950 = vmatprep.mubr.f32.mxu0 %v66
    %1951 = vmatmul.mubr.f32.gmra.mxu0 %v65
    %v1952 = vpop.f32.mrf.mxu0
    %v1953 = vadd.f32 %v236, %v1952
    %v1954 = vpop.f32.mrf.mxu0
    %1955 = vmatprep.mubr.f32.mxu0 %v71
    %1956 = vmatmul.mubr.f32.gmra.mxu0 %v70
    %v1957 = vpop.f32.mrf.mxu0
    %v1958 = vadd.f32 %v241, %v1957
    %v1959 = vpop.f32.mrf.mxu0
    %1960 = vmatprep.mubr.f32.mxu0 %v76
    %1961 = vmatmul.mubr.f32.gmra.mxu0 %v75
    %v1962 = vpop.f32.mrf.mxu0
    %v1963 = vadd.f32 %v246, %v1962
    %v1964 = vpop.f32.mrf.mxu0
    %1965 = vmatprep.mubr.f32.mxu0 %v81
    %1966 = vmatmul.mubr.f32.gmra.mxu0 %v80
    %v1967 = vpop.f32.mrf.mxu0
    %v1968 = vadd.f32 %v251, %v1967
    %v1969 = vpop.f32.mrf.mxu0
    %1970 = vmatprep.mubr.f32.mxu0 %v86
    %1971 = vmatmul.mubr.f32.gmra.mxu0 %v85
    %v1972 = vpop.f32.mrf.mxu0
    %v1973 = vadd.f32 %v256, %v1972
    %v1974 = vpop.f32.mrf.mxu0
    %1975 = vmatprep.mubr.f32.mxu0 %v91
    %1976 = vmatmul.mubr.f32.gmra.mxu0 %v90
    %v1977 = vpop.f32.mrf.mxu0
    %v1978 = vadd.f32 %v261, %v1977
    %v1979 = vpop.f32.mrf.mxu0
    %1980 = vmatprep.mubr.f32.mxu0 %v96
    %1981 = vmatmul.mubr.f32.gmra.mxu0 %v95
    %v1982 = vpop.f32.mrf.mxu0
    %v1983 = vadd.f32 %v266, %v1982
    %v1984 = vpop.f32.mrf.mxu0
    %1985 = vmatprep.mubr.f32.mxu0 %v101
    %1986 = vmatmul.mubr.f32.gmra.mxu0 %v100
    %v1987 = vpop.f32.mrf.mxu0
    %v1988 = vadd.f32 %v271, %v1987
    %v1989 = vpop.f32.mrf.mxu0
    %1990 = vmatprep.mubr.f32.mxu0 %v106
    %1991 = vmatmul.mubr.f32.gmra.mxu0 %v105
    %v1992 = vpop.f32.mrf.mxu0
    %v1993 = vadd.f32 %v276, %v1992
    %v1994 = vpop.f32.mrf.mxu0
    %1995 = vmatprep.mubr.f32.mxu0 %v111
    %1996 = vmatmul.mubr.f32.gmra.mxu0 %v110
    %v1997 = vpop.f32.mrf.mxu0
    %v1998 = vadd.f32 %v281, %v1997
    %v1999 = vpop.f32.mrf.mxu0
    %2000 = vdwg.mxu0
    %2001 = vmatprep.subr.mxu0 0.0
    %2002 = vmatpush1.msra.mxu0 %v1831
    %2003 = vmatprep.subr.mxu0 0.0
    %2004 = vmatpush1.msra.mxu0 %v1830
    %2005 = vmatprep.subr.mxu0 0.0
    %2006 = vmatpush1.msra.mxu0 %v1829
    %2007 = vmatprep.subr.mxu0 0.0
    %2008 = vmatpush1.msra.mxu0 %v1828
    %2009 = vmatprep.subr.mxu0 0.0
    %2010 = vmatpush1.msra.mxu0 %v1827
    %2011 = vmatprep.subr.mxu0 0.0
    %2012 = vmatpush1.msra.mxu0 %v1826
    %2013 = vmatprep.subr.mxu0 0.0
    %2014 = vmatpush1.msra.mxu0 %v1825
    %2015 = vmatprep.subr.mxu0 0.0
    %2016 = vmatpush1.msra.mxu0 %v1824
    %2017 = vmatprep.subr.mxu0 0.0
    %2018 = vmatpush1.msra.mxu0 %v1823
    %2019 = vmatprep.subr.mxu0 0.0
    %2020 = vmatpush1.msra.mxu0 %v1822
    %2021 = vmatprep.subr.mxu0 0.0
    %2022 = vmatpush1.msra.mxu0 %v1821
    %2023 = vmatprep.subr.mxu0 0.0
    %2024 = vmatpush1.msra.mxu0 %v1820
    %2025 = vmatprep.subr.mxu0 0.0
    %2026 = vmatpush1.msra.mxu0 %v1819
    %2027 = vmatprep.subr.mxu0 0.0
    %2028 = vmatpush1.msra.mxu0 %v1818
    %2029 = vmatprep.subr.mxu0 0.0
    %2030 = vmatpush1.msra.mxu0 %v1817
    %2031 = vmatprep.subr.mxu0 0.0
    %2032 = vmatpush1.msra.mxu0 %v1816
    %2033 = vmatprep.subr.mxu0 0.0
    %2034 = vmatpush2.msra.mxu0 %v1847
    %2035 = vmatprep.subr.mxu0 0.0
    %2036 = vmatpush2.msra.mxu0 %v1846
    %2037 = vmatprep.subr.mxu0 0.0
    %2038 = vmatpush2.msra.mxu0 %v1845
    %2039 = vmatprep.subr.mxu0 0.0
    %2040 = vmatpush2.msra.mxu0 %v1844
    %2041 = vmatprep.subr.mxu0 0.0
    %2042 = vmatpush2.msra.mxu0 %v1843
    %2043 = vmatprep.subr.mxu0 0.0
    %2044 = vmatpush2.msra.mxu0 %v1842
    %2045 = vmatprep.subr.mxu0 0.0
    %2046 = vmatpush2.msra.mxu0 %v1841
    %2047 = vmatprep.subr.mxu0 0.0
    %2048 = vmatpush2.msra.mxu0 %v1840
    %2049 = vmatprep.subr.mxu0 0.0
    %2050 = vmatpush2.msra.mxu0 %v1839
    %2051 = vmatprep.subr.mxu0 0.0
    %2052 = vmatpush2.msra.mxu0 %v1838
    %2053 = vmatprep.subr.mxu0 0.0
    %2054 = vmatpush2.msra.mxu0 %v1837
    %2055 = vmatprep.subr.mxu0 0.0
    %2056 = vmatpush2.msra.mxu0 %v1836
    %2057 = vmatprep.subr.mxu0 0.0
    %2058 = vmatpush2.msra.mxu0 %v1835
    %2059 = vmatprep.subr.mxu0 0.0
    %2060 = vmatpush2.msra.mxu0 %v1834
    %2061 = vmatprep.subr.mxu0 0.0
    %2062 = vmatpush2.msra.mxu0 %v1833
    %2063 = vmatprep.subr.mxu0 0.0
    %2064 = vmatpush2.msra.mxu0 %v1832
    %2065 = vmatprep.mubr.f32.mxu0 %v38
    %2066 = vmatmul.mubr.f32.gmra.mxu0 %v37
    %v2067 = vpop.f32.mrf.mxu0
    %v2068 = vadd.f32 %v1923, %v2067
    %v2069 = vpop.f32.mrf.mxu0
    %2070 = vmatprep.mubr.f32.mxu0 %v43
    %2071 = vmatmul.mubr.f32.gmra.mxu0 %v42
    %v2072 = vpop.f32.mrf.mxu0
    %v2073 = vadd.f32 %v1928, %v2072
    %v2074 = vpop.f32.mrf.mxu0
    %2075 = vmatprep.mubr.f32.mxu0 %v48
    %2076 = vmatmul.mubr.f32.gmra.mxu0 %v47
    %v2077 = vpop.f32.mrf.mxu0
    %v2078 = vadd.f32 %v1933, %v2077
    %v2079 = vpop.f32.mrf.mxu0
    %2080 = vmatprep.mubr.f32.mxu0 %v53
    %2081 = vmatmul.mubr.f32.gmra.mxu0 %v52
    %v2082 = vpop.f32.mrf.mxu0
    %v2083 = vadd.f32 %v1938, %v2082
    %v2084 = vpop.f32.mrf.mxu0
    %2085 = vmatprep.mubr.f32.mxu0 %v58
    %2086 = vmatmul.mubr.f32.gmra.mxu0 %v57
    %v2087 = vpop.f32.mrf.mxu0
    %v2088 = vadd.f32 %v1943, %v2087
    %v2089 = vpop.f32.mrf.mxu0
    %2090 = vmatprep.mubr.f32.mxu0 %v63
    %2091 = vmatmul.mubr.f32.gmra.mxu0 %v62
    %v2092 = vpop.f32.mrf.mxu0
    %v2093 = vadd.f32 %v1948, %v2092
    %v2094 = vpop.f32.mrf.mxu0
    %2095 = vmatprep.mubr.f32.mxu0 %v68
    %2096 = vmatmul.mubr.f32.gmra.mxu0 %v67
    %v2097 = vpop.f32.mrf.mxu0
    %v2098 = vadd.f32 %v1953, %v2097
    %v2099 = vpop.f32.mrf.mxu0
    %2100 = vmatprep.mubr.f32.mxu0 %v73
    %2101 = vmatmul.mubr.f32.gmra.mxu0 %v72
    %v2102 = vpop.f32.mrf.mxu0
    %v2103 = vadd.f32 %v1958, %v2102
    %v2104 = vpop.f32.mrf.mxu0
    %2105 = vmatprep.mubr.f32.mxu0 %v78
    %2106 = vmatmul.mubr.f32.gmra.mxu0 %v77
    %v2107 = vpop.f32.mrf.mxu0
    %v2108 = vadd.f32 %v1963, %v2107
    %v2109 = vpop.f32.mrf.mxu0
    %2110 = vmatprep.mubr.f32.mxu0 %v83
    %2111 = vmatmul.mubr.f32.gmra.mxu0 %v82
    %v2112 = vpop.f32.mrf.mxu0
    %v2113 = vadd.f32 %v1968, %v2112
    %v2114 = vpop.f32.mrf.mxu0
    %2115 = vmatprep.mubr.f32.mxu0 %v88
    %2116 = vmatmul.mubr.f32.gmra.mxu0 %v87
    %v2117 = vpop.f32.mrf.mxu0
    %v2118 = vadd.f32 %v1973, %v2117
    %v2119 = vpop.f32.mrf.mxu0
    %2120 = vmatprep.mubr.f32.mxu0 %v93
    %2121 = vmatmul.mubr.f32.gmra.mxu0 %v92
    %v2122 = vpop.f32.mrf.mxu0
    %v2123 = vadd.f32 %v1978, %v2122
    %v2124 = vpop.f32.mrf.mxu0
    %2125 = vmatprep.mubr.f32.mxu0 %v98
    %2126 = vmatmul.mubr.f32.gmra.mxu0 %v97
    %v2127 = vpop.f32.mrf.mxu0
    %v2128 = vadd.f32 %v1983, %v2127
    %v2129 = vpop.f32.mrf.mxu0
    %2130 = vmatprep.mubr.f32.mxu0 %v103
    %2131 = vmatmul.mubr.f32.gmra.mxu0 %v102
    %v2132 = vpop.f32.mrf.mxu0
    %v2133 = vadd.f32 %v1988, %v2132
    %v2134 = vpop.f32.mrf.mxu0
    %2135 = vmatprep.mubr.f32.mxu0 %v108
    %2136 = vmatmul.mubr.f32.gmra.mxu0 %v107
    %v2137 = vpop.f32.mrf.mxu0
    %v2138 = vadd.f32 %v1993, %v2137
    %v2139 = vpop.f32.mrf.mxu0
    %2140 = vmatprep.mubr.f32.mxu0 %v113
    %2141 = vmatmul.mubr.f32.gmra.mxu0 %v112
    %v2142 = vpop.f32.mrf.mxu0
    %v2143 = vadd.f32 %v1998, %v2142
    %v2144 = vpop.f32.mrf.mxu0
    %2145 = vdwg.mxu0
    %2146 = vmatprep.subr.mxu0 0.0
    %2147 = vmatpush1.msra.mxu0 0.0
    %2148 = vmatprep.subr.mxu0 0.0
    %2149 = vmatpush1.msra.mxu0 0.0
    %2150 = vmatprep.subr.mxu0 0.0
    %2151 = vmatpush1.msra.mxu0 0.0
    %2152 = vmatprep.subr.mxu0 0.0
    %2153 = vmatpush1.msra.mxu0 0.0
    %2154 = vmatprep.subr.mxu0 0.0
    %2155 = vmatpush1.msra.mxu0 0.0
    %2156 = vmatprep.subr.mxu0 0.0
    %2157 = vmatpush1.msra.mxu0 0.0
    %2158 = vmatprep.subr.mxu0 0.0
    %2159 = vmatpush1.msra.mxu0 0.0
    %2160 = vmatprep.subr.mxu0 0.0
    %2161 = vmatpush1.msra.mxu0 0.0
    %2162 = vmatprep.subr.mxu0 0.0
    %2163 = vmatpush1.msra.mxu0 %v1855
    %2164 = vmatprep.subr.mxu0 0.0
    %2165 = vmatpush1.msra.mxu0 %v1854
    %2166 = vmatprep.subr.mxu0 0.0
    %2167 = vmatpush1.msra.mxu0 %v1853
    %2168 = vmatprep.subr.mxu0 0.0
    %2169 = vmatpush1.msra.mxu0 %v1852
    %2170 = vmatprep.subr.mxu0 0.0
    %2171 = vmatpush1.msra.mxu0 %v1851
    %2172 = vmatprep.subr.mxu0 0.0
    %2173 = vmatpush1.msra.mxu0 %v1850
    %2174 = vmatprep.subr.mxu0 0.0
    %2175 = vmatpush1.msra.mxu0 %v1849
    %2176 = vmatprep.subr.mxu0 0.0
    %2177 = vmatpush1.msra.mxu0 %v1848
    %2178 = vmatprep.subr.mxu0 0.0
    %2179 = vmatpush2.msra.mxu0 0.0
    %2180 = vmatprep.subr.mxu0 0.0
    %2181 = vmatpush2.msra.mxu0 0.0
    %2182 = vmatprep.subr.mxu0 0.0
    %2183 = vmatpush2.msra.mxu0 0.0
    %2184 = vmatprep.subr.mxu0 0.0
    %2185 = vmatpush2.msra.mxu0 0.0
    %2186 = vmatprep.subr.mxu0 0.0
    %2187 = vmatpush2.msra.mxu0 0.0
    %2188 = vmatprep.subr.mxu0 0.0
    %2189 = vmatpush2.msra.mxu0 0.0
    %2190 = vmatprep.subr.mxu0 0.0
    %2191 = vmatpush2.msra.mxu0 0.0
    %2192 = vmatprep.subr.mxu0 0.0
    %2193 = vmatpush2.msra.mxu0 0.0
    %2194 = vmatprep.subr.mxu0 0.0
    %2195 = vmatpush2.msra.mxu0 0.0
    %2196 = vmatprep.subr.mxu0 0.0
    %2197 = vmatpush2.msra.mxu0 0.0
    %2198 = vmatprep.subr.mxu0 0.0
    %2199 = vmatpush2.msra.mxu0 0.0
    %2200 = vmatprep.subr.mxu0 0.0
    %2201 = vmatpush2.msra.mxu0 0.0
    %2202 = vmatprep.subr.mxu0 0.0
    %2203 = vmatpush2.msra.mxu0 0.0
    %2204 = vmatprep.subr.mxu0 0.0
    %2205 = vmatpush2.msra.mxu0 0.0
    %2206 = vmatprep.subr.mxu0 0.0
    %2207 = vmatpush2.msra.mxu0 0.0
    %2208 = vmatprep.subr.mxu0 0.0
    %2209 = vmatpush2.msra.mxu0 0.0
    %2210 = vmatprep.mubr.f32.mxu0 0.0
    %2211 = vmatmul.mubr.f32.gmra.mxu0 %v285
    %v2212 = vpop.f32.mrf.mxu0
    %v2213 = vadd.f32 %v2068, %v2212
    %v2214 = vpop.f32.mrf.mxu0
    %2215 = vmatprep.mubr.f32.mxu0 0.0
    %2216 = vmatmul.mubr.f32.gmra.mxu0 %v288
    %v2217 = vpop.f32.mrf.mxu0
    %v2218 = vadd.f32 %v2073, %v2217
    %v2219 = vpop.f32.mrf.mxu0
    %2220 = vmatprep.mubr.f32.mxu0 0.0
    %2221 = vmatmul.mubr.f32.gmra.mxu0 %v291
    %v2222 = vpop.f32.mrf.mxu0
    %v2223 = vadd.f32 %v2078, %v2222
    %v2224 = vpop.f32.mrf.mxu0
    %2225 = vmatprep.mubr.f32.mxu0 0.0
    %2226 = vmatmul.mubr.f32.gmra.mxu0 %v294
    %v2227 = vpop.f32.mrf.mxu0
    %v2228 = vadd.f32 %v2083, %v2227
    %v2229 = vpop.f32.mrf.mxu0
    %2230 = vmatprep.mubr.f32.mxu0 0.0
    %2231 = vmatmul.mubr.f32.gmra.mxu0 %v297
    %v2232 = vpop.f32.mrf.mxu0
    %v2233 = vadd.f32 %v2088, %v2232
    %v2234 = vpop.f32.mrf.mxu0
    %2235 = vmatprep.mubr.f32.mxu0 0.0
    %2236 = vmatmul.mubr.f32.gmra.mxu0 %v300
    %v2237 = vpop.f32.mrf.mxu0
    %v2238 = vadd.f32 %v2093, %v2237
    %v2239 = vpop.f32.mrf.mxu0
    %2240 = vmatprep.mubr.f32.mxu0 0.0
    %2241 = vmatmul.mubr.f32.gmra.mxu0 %v303
    %v2242 = vpop.f32.mrf.mxu0
    %v2243 = vadd.f32 %v2098, %v2242
    %v2244 = vpop.f32.mrf.mxu0
    %2245 = vmatprep.mubr.f32.mxu0 0.0
    %2246 = vmatmul.mubr.f32.gmra.mxu0 %v306
    %v2247 = vpop.f32.mrf.mxu0
    %v2248 = vadd.f32 %v2103, %v2247
    %v2249 = vpop.f32.mrf.mxu0
    %2250 = vmatprep.mubr.f32.mxu0 0.0
    %2251 = vmatmul.mubr.f32.gmra.mxu0 %v309
    %v2252 = vpop.f32.mrf.mxu0
    %v2253 = vadd.f32 %v2108, %v2252
    %v2254 = vpop.f32.mrf.mxu0
    %2255 = vmatprep.mubr.f32.mxu0 0.0
    %2256 = vmatmul.mubr.f32.gmra.mxu0 %v312
    %v2257 = vpop.f32.mrf.mxu0
    %v2258 = vadd.f32 %v2113, %v2257
    %v2259 = vpop.f32.mrf.mxu0
    %2260 = vmatprep.mubr.f32.mxu0 0.0
    %2261 = vmatmul.mubr.f32.gmra.mxu0 %v315
    %v2262 = vpop.f32.mrf.mxu0
    %v2263 = vadd.f32 %v2118, %v2262
    %v2264 = vpop.f32.mrf.mxu0
    %2265 = vmatprep.mubr.f32.mxu0 0.0
    %2266 = vmatmul.mubr.f32.gmra.mxu0 %v318
    %v2267 = vpop.f32.mrf.mxu0
    %v2268 = vadd.f32 %v2123, %v2267
    %v2269 = vpop.f32.mrf.mxu0
    %2270 = vmatprep.mubr.f32.mxu0 0.0
    %2271 = vmatmul.mubr.f32.gmra.mxu0 %v321
    %v2272 = vpop.f32.mrf.mxu0
    %v2273 = vadd.f32 %v2128, %v2272
    %v2274 = vpop.f32.mrf.mxu0
    %2275 = vmatprep.mubr.f32.mxu0 0.0
    %2276 = vmatmul.mubr.f32.gmra.mxu0 %v324
    %v2277 = vpop.f32.mrf.mxu0
    %v2278 = vadd.f32 %v2133, %v2277
    %v2279 = vpop.f32.mrf.mxu0
    %2280 = vmatprep.mubr.f32.mxu0 0.0
    %2281 = vmatmul.mubr.f32.gmra.mxu0 %v327
    %v2282 = vpop.f32.mrf.mxu0
    %v2283 = vadd.f32 %v2138, %v2282
    %v2284 = vpop.f32.mrf.mxu0
    %2285 = vmatprep.mubr.f32.mxu0 0.0
    %2286 = vmatmul.mubr.f32.gmra.mxu0 %v330
    %v2287 = vpop.f32.mrf.mxu0
    %v2288 = vadd.f32 %v2143, %v2287
    %v2289 = vpop.f32.mrf.mxu0
    %2290 = vdwg.mxu0
    %v2291 = vld [vmem:[%s1] sm:$0xff]
    %v2292 = vld [vmem:[%s1 + $0x8] sm:$0xff]
    %v2293 = vld [vmem:[%s1 + $0x10] sm:$0xff]
    %v2294 = vld [vmem:[%s1 + $0x18] sm:$0xff]
    %v2295 = vld [vmem:[%s1 + $0x20] sm:$0xff]
    %v2296 = vld [vmem:[%s1 + $0x28] sm:$0xff]
    %v2297 = vld [vmem:[%s1 + $0x30] sm:$0xff]
    %v2298 = vld [vmem:[%s1 + $0x38] sm:$0xff]
    %v2299 = vld [vmem:[%s1 + $0x40] sm:$0xff]
    %v2300 = vld [vmem:[%s1 + $0x48] sm:$0xff]
    %v2301 = vld [vmem:[%s1 + $0x50] sm:$0xff]
    %v2302 = vld [vmem:[%s1 + $0x58] sm:$0xff]
    %v2303 = vld [vmem:[%s1 + $0x60] sm:$0xff]
    %v2304 = vld [vmem:[%s1 + $0x68] sm:$0xff]
    %v2305 = vld [vmem:[%s1 + $0x70] sm:$0xff]
    %v2306 = vld [vmem:[%s1 + $0x78] sm:$0xff]
    %v2307 = vld [vmem:[%s1 + $0x80] sm:$0xff]
    %v2308 = vld [vmem:[%s1 + $0x88] sm:$0xff]
    %v2309 = vld [vmem:[%s1 + $0x90] sm:$0xff]
    %v2310 = vld [vmem:[%s1 + $0x98] sm:$0xff]
    %v2311 = vld [vmem:[%s1 + $0xa0] sm:$0xff]
    %v2312 = vld [vmem:[%s1 + $0xa8] sm:$0xff]
    %v2313 = vld [vmem:[%s1 + $0xb0] sm:$0xff]
    %v2314 = vld [vmem:[%s1 + $0xb8] sm:$0xff]
    %v2315 = vld [vmem:[%s1 + $0xc0] sm:$0xff]
    %v2316 = vld [vmem:[%s1 + $0xc8] sm:$0xff]
    %v2317 = vld [vmem:[%s1 + $0xd0] sm:$0xff]
    %v2318 = vld [vmem:[%s1 + $0xd8] sm:$0xff]
    %v2319 = vld [vmem:[%s1 + $0xe0] sm:$0xff]
    %v2320 = vld [vmem:[%s1 + $0xe8] sm:$0xff]
    %v2321 = vld [vmem:[%s1 + $0xf0] sm:$0xff]
    %v2322 = vld [vmem:[%s1 + $0xf8] sm:$0xff]
    %v2323 = vld [vmem:[%s1 + $0x100] sm:$0xff]
    %v2324 = vld [vmem:[%s1 + $0x108] sm:$0xff]
    %v2325 = vld [vmem:[%s1 + $0x110] sm:$0xff]
    %v2326 = vld [vmem:[%s1 + $0x118] sm:$0xff]
    %v2327 = vld [vmem:[%s1 + $0x120] sm:$0xff]
    %v2328 = vld [vmem:[%s1 + $0x128] sm:$0xff]
    %v2329 = vld [vmem:[%s1 + $0x130] sm:$0xff]
    %v2330 = vld [vmem:[%s1 + $0x138] sm:$0xff]
    %v2331 = vld [vmem:[%s1 + $0x140] sm:$0xff]
    %v2332 = vld [vmem:[%s1 + $0x148] sm:$0xff]
    %v2333 = vld [vmem:[%s1 + $0x150] sm:$0xff]
    %v2334 = vld [vmem:[%s1 + $0x158] sm:$0xff]
    %v2335 = vld [vmem:[%s1 + $0x160] sm:$0xff]
    %v2336 = vld [vmem:[%s1 + $0x168] sm:$0xff]
    %v2337 = vld [vmem:[%s1 + $0x170] sm:$0xff]
    %v2338 = vld [vmem:[%s1 + $0x178] sm:$0xff]
    %v2339 = vld [vmem:[%s1 + $0x180] sm:$0xff]
    %v2340 = vld [vmem:[%s1 + $0x188] sm:$0xff]
    %v2341 = vld [vmem:[%s1 + $0x190] sm:$0xff]
    %v2342 = vld [vmem:[%s1 + $0x198] sm:$0xff]
    %v2343 = vld [vmem:[%s1 + $0x1a0] sm:$0xff]
    %v2344 = vld [vmem:[%s1 + $0x1a8] sm:$0xff]
    %v2345 = vld [vmem:[%s1 + $0x1b0] sm:$0xff]
    %v2346 = vld [vmem:[%s1 + $0x1b8] sm:$0xff]
    %v2347 = vld [vmem:[%s1 + $0x1c0] sm:$0xff]
    %v2348 = vld [vmem:[%s1 + $0x1c8] sm:$0xff]
    %v2349 = vld [vmem:[%s1 + $0x1d0] sm:$0xff]
    %v2350 = vld [vmem:[%s1 + $0x1d8] sm:$0xff]
    %v2351 = vld [vmem:[%s1 + $0x1e0] sm:$0xff]
    %v2352 = vld [vmem:[%s1 + $0x1e8] sm:$0xff]
    %v2353 = vld [vmem:[%s1 + $0x1f0] sm:$0xff]
    %v2354 = vld [vmem:[%s1 + $0x1f8] sm:$0xff]
    %v2355 = vld [vmem:[%s1 + $0x200] sm:$0xff]
    %v2356 = vld [vmem:[%s1 + $0x208] sm:$0xff]
    %v2357 = vld [vmem:[%s1 + $0x210] sm:$0xff]
    %v2358 = vld [vmem:[%s1 + $0x218] sm:$0xff]
    %v2359 = vld [vmem:[%s1 + $0x220] sm:$0xff]
    %v2360 = vld [vmem:[%s1 + $0x228] sm:$0xff]
    %v2361 = vld [vmem:[%s1 + $0x230] sm:$0xff]
    %v2362 = vld [vmem:[%s1 + $0x238] sm:$0xff]
    %2363 = vmatprep.subr.mxu0 0.0
    %2364 = vmatpush1.msra.mxu0 %v2306
    %2365 = vmatprep.subr.mxu0 0.0
    %2366 = vmatpush1.msra.mxu0 %v2305
    %2367 = vmatprep.subr.mxu0 0.0
    %2368 = vmatpush1.msra.mxu0 %v2304
    %2369 = vmatprep.subr.mxu0 0.0
    %2370 = vmatpush1.msra.mxu0 %v2303
    %2371 = vmatprep.subr.mxu0 0.0
    %2372 = vmatpush1.msra.mxu0 %v2302
    %2373 = vmatprep.subr.mxu0 0.0
    %2374 = vmatpush1.msra.mxu0 %v2301
    %2375 = vmatprep.subr.mxu0 0.0
    %2376 = vmatpush1.msra.mxu0 %v2300
    %2377 = vmatprep.subr.mxu0 0.0
    %2378 = vmatpush1.msra.mxu0 %v2299
    %2379 = vmatprep.subr.mxu0 0.0
    %2380 = vmatpush1.msra.mxu0 %v2298
    %2381 = vmatprep.subr.mxu0 0.0
    %2382 = vmatpush1.msra.mxu0 %v2297
    %2383 = vmatprep.subr.mxu0 0.0
    %2384 = vmatpush1.msra.mxu0 %v2296
    %2385 = vmatprep.subr.mxu0 0.0
    %2386 = vmatpush1.msra.mxu0 %v2295
    %2387 = vmatprep.subr.mxu0 0.0
    %2388 = vmatpush1.msra.mxu0 %v2294
    %2389 = vmatprep.subr.mxu0 0.0
    %2390 = vmatpush1.msra.mxu0 %v2293
    %2391 = vmatprep.subr.mxu0 0.0
    %2392 = vmatpush1.msra.mxu0 %v2292
    %2393 = vmatprep.subr.mxu0 0.0
    %2394 = vmatpush1.msra.mxu0 %v2291
    %2395 = vmatprep.subr.mxu0 0.0
    %2396 = vmatpush2.msra.mxu0 %v2322
    %2397 = vmatprep.subr.mxu0 0.0
    %2398 = vmatpush2.msra.mxu0 %v2321
    %2399 = vmatprep.subr.mxu0 0.0
    %2400 = vmatpush2.msra.mxu0 %v2320
    %2401 = vmatprep.subr.mxu0 0.0
    %2402 = vmatpush2.msra.mxu0 %v2319
    %2403 = vmatprep.subr.mxu0 0.0
    %2404 = vmatpush2.msra.mxu0 %v2318
    %2405 = vmatprep.subr.mxu0 0.0
    %2406 = vmatpush2.msra.mxu0 %v2317
    %2407 = vmatprep.subr.mxu0 0.0
    %2408 = vmatpush2.msra.mxu0 %v2316
    %2409 = vmatprep.subr.mxu0 0.0
    %2410 = vmatpush2.msra.mxu0 %v2315
    %2411 = vmatprep.subr.mxu0 0.0
    %2412 = vmatpush2.msra.mxu0 %v2314
    %2413 = vmatprep.subr.mxu0 0.0
    %2414 = vmatpush2.msra.mxu0 %v2313
    %2415 = vmatprep.subr.mxu0 0.0
    %2416 = vmatpush2.msra.mxu0 %v2312
    %2417 = vmatprep.subr.mxu0 0.0
    %2418 = vmatpush2.msra.mxu0 %v2311
    %2419 = vmatprep.subr.mxu0 0.0
    %2420 = vmatpush2.msra.mxu0 %v2310
    %2421 = vmatprep.subr.mxu0 0.0
    %2422 = vmatpush2.msra.mxu0 %v2309
    %2423 = vmatprep.subr.mxu0 0.0
    %2424 = vmatpush2.msra.mxu0 %v2308
    %2425 = vmatprep.subr.mxu0 0.0
    %2426 = vmatpush2.msra.mxu0 %v2307
    %2427 = vmatprep.mubr.f32.mxu0 %v36
    %2428 = vmatmul.mubr.f32.gmra.mxu0 %v35
    %v2429 = vpop.f32.mrf.mxu0
    %v2430 = vadd.f32 %v206, %v2429
    %v2431 = vpop.f32.mrf.mxu0
    %2432 = vmatprep.mubr.f32.mxu0 %v41
    %2433 = vmatmul.mubr.f32.gmra.mxu0 %v40
    %v2434 = vpop.f32.mrf.mxu0
    %v2435 = vadd.f32 %v211, %v2434
    %v2436 = vpop.f32.mrf.mxu0
    %2437 = vmatprep.mubr.f32.mxu0 %v46
    %2438 = vmatmul.mubr.f32.gmra.mxu0 %v45
    %v2439 = vpop.f32.mrf.mxu0
    %v2440 = vadd.f32 %v216, %v2439
    %v2441 = vpop.f32.mrf.mxu0
    %2442 = vmatprep.mubr.f32.mxu0 %v51
    %2443 = vmatmul.mubr.f32.gmra.mxu0 %v50
    %v2444 = vpop.f32.mrf.mxu0
    %v2445 = vadd.f32 %v221, %v2444
    %v2446 = vpop.f32.mrf.mxu0
    %2447 = vmatprep.mubr.f32.mxu0 %v56
    %2448 = vmatmul.mubr.f32.gmra.mxu0 %v55
    %v2449 = vpop.f32.mrf.mxu0
    %v2450 = vadd.f32 %v226, %v2449
    %v2451 = vpop.f32.mrf.mxu0
    %2452 = vmatprep.mubr.f32.mxu0 %v61
    %2453 = vmatmul.mubr.f32.gmra.mxu0 %v60
    %v2454 = vpop.f32.mrf.mxu0
    %v2455 = vadd.f32 %v231, %v2454
    %v2456 = vpop.f32.mrf.mxu0
    %2457 = vmatprep.mubr.f32.mxu0 %v66
    %2458 = vmatmul.mubr.f32.gmra.mxu0 %v65
    %v2459 = vpop.f32.mrf.mxu0
    %v2460 = vadd.f32 %v236, %v2459
    %v2461 = vpop.f32.mrf.mxu0
    %2462 = vmatprep.mubr.f32.mxu0 %v71
    %2463 = vmatmul.mubr.f32.gmra.mxu0 %v70
    %v2464 = vpop.f32.mrf.mxu0
    %v2465 = vadd.f32 %v241, %v2464
    %v2466 = vpop.f32.mrf.mxu0
    %2467 = vmatprep.mubr.f32.mxu0 %v76
    %2468 = vmatmul.mubr.f32.gmra.mxu0 %v75
    %v2469 = vpop.f32.mrf.mxu0
    %v2470 = vadd.f32 %v246, %v2469
    %v2471 = vpop.f32.mrf.mxu0
    %2472 = vmatprep.mubr.f32.mxu0 %v81
    %2473 = vmatmul.mubr.f32.gmra.mxu0 %v80
    %v2474 = vpop.f32.mrf.mxu0
    %v2475 = vadd.f32 %v251, %v2474
    %v2476 = vpop.f32.mrf.mxu0
    %2477 = vmatprep.mubr.f32.mxu0 %v86
    %2478 = vmatmul.mubr.f32.gmra.mxu0 %v85
    %v2479 = vpop.f32.mrf.mxu0
    %v2480 = vadd.f32 %v256, %v2479
    %v2481 = vpop.f32.mrf.mxu0
    %2482 = vmatprep.mubr.f32.mxu0 %v91
    %2483 = vmatmul.mubr.f32.gmra.mxu0 %v90
    %v2484 = vpop.f32.mrf.mxu0
    %v2485 = vadd.f32 %v261, %v2484
    %v2486 = vpop.f32.mrf.mxu0
    %2487 = vmatprep.mubr.f32.mxu0 %v96
    %2488 = vmatmul.mubr.f32.gmra.mxu0 %v95
    %v2489 = vpop.f32.mrf.mxu0
    %v2490 = vadd.f32 %v266, %v2489
    %v2491 = vpop.f32.mrf.mxu0
    %2492 = vmatprep.mubr.f32.mxu0 %v101
    %2493 = vmatmul.mubr.f32.gmra.mxu0 %v100
    %v2494 = vpop.f32.mrf.mxu0
    %v2495 = vadd.f32 %v271, %v2494
    %v2496 = vpop.f32.mrf.mxu0
    %2497 = vmatprep.mubr.f32.mxu0 %v106
    %2498 = vmatmul.mubr.f32.gmra.mxu0 %v105
    %v2499 = vpop.f32.mrf.mxu0
    %v2500 = vadd.f32 %v276, %v2499
    %v2501 = vpop.f32.mrf.mxu0
    %2502 = vmatprep.mubr.f32.mxu0 %v111
    %2503 = vmatmul.mubr.f32.gmra.mxu0 %v110
    %v2504 = vpop.f32.mrf.mxu0
    %v2505 = vadd.f32 %v281, %v2504
    %v2506 = vpop.f32.mrf.mxu0
    %2507 = vdwg.mxu0
    %2508 = vmatprep.subr.mxu0 0.0
    %2509 = vmatpush1.msra.mxu0 %v2338
    %2510 = vmatprep.subr.mxu0 0.0
    %2511 = vmatpush1.msra.mxu0 %v2337
    %2512 = vmatprep.subr.mxu0 0.0
    %2513 = vmatpush1.msra.mxu0 %v2336
    %2514 = vmatprep.subr.mxu0 0.0
    %2515 = vmatpush1.msra.mxu0 %v2335
    %2516 = vmatprep.subr.mxu0 0.0
    %2517 = vmatpush1.msra.mxu0 %v2334
    %2518 = vmatprep.subr.mxu0 0.0
    %2519 = vmatpush1.msra.mxu0 %v2333
    %2520 = vmatprep.subr.mxu0 0.0
    %2521 = vmatpush1.msra.mxu0 %v2332
    %2522 = vmatprep.subr.mxu0 0.0
    %2523 = vmatpush1.msra.mxu0 %v2331
    %2524 = vmatprep.subr.mxu0 0.0
    %2525 = vmatpush1.msra.mxu0 %v2330
    %2526 = vmatprep.subr.mxu0 0.0
    %2527 = vmatpush1.msra.mxu0 %v2329
    %2528 = vmatprep.subr.mxu0 0.0
    %2529 = vmatpush1.msra.mxu0 %v2328
    %2530 = vmatprep.subr.mxu0 0.0
    %2531 = vmatpush1.msra.mxu0 %v2327
    %2532 = vmatprep.subr.mxu0 0.0
    %2533 = vmatpush1.msra.mxu0 %v2326
    %2534 = vmatprep.subr.mxu0 0.0
    %2535 = vmatpush1.msra.mxu0 %v2325
    %2536 = vmatprep.subr.mxu0 0.0
    %2537 = vmatpush1.msra.mxu0 %v2324
    %2538 = vmatprep.subr.mxu0 0.0
    %2539 = vmatpush1.msra.mxu0 %v2323
    %2540 = vmatprep.subr.mxu0 0.0
    %2541 = vmatpush2.msra.mxu0 %v2354
    %2542 = vmatprep.subr.mxu0 0.0
    %2543 = vmatpush2.msra.mxu0 %v2353
    %2544 = vmatprep.subr.mxu0 0.0
    %2545 = vmatpush2.msra.mxu0 %v2352
    %2546 = vmatprep.subr.mxu0 0.0
    %2547 = vmatpush2.msra.mxu0 %v2351
    %2548 = vmatprep.subr.mxu0 0.0
    %2549 = vmatpush2.msra.mxu0 %v2350
    %2550 = vmatprep.subr.mxu0 0.0
    %2551 = vmatpush2.msra.mxu0 %v2349
    %2552 = vmatprep.subr.mxu0 0.0
    %2553 = vmatpush2.msra.mxu0 %v2348
    %2554 = vmatprep.subr.mxu0 0.0
    %2555 = vmatpush2.msra.mxu0 %v2347
    %2556 = vmatprep.subr.mxu0 0.0
    %2557 = vmatpush2.msra.mxu0 %v2346
    %2558 = vmatprep.subr.mxu0 0.0
    %2559 = vmatpush2.msra.mxu0 %v2345
    %2560 = vmatprep.subr.mxu0 0.0
    %2561 = vmatpush2.msra.mxu0 %v2344
    %2562 = vmatprep.subr.mxu0 0.0
    %2563 = vmatpush2.msra.mxu0 %v2343
    %2564 = vmatprep.subr.mxu0 0.0
    %2565 = vmatpush2.msra.mxu0 %v2342
    %2566 = vmatprep.subr.mxu0 0.0
    %2567 = vmatpush2.msra.mxu0 %v2341
    %2568 = vmatprep.subr.mxu0 0.0
    %2569 = vmatpush2.msra.mxu0 %v2340
    %2570 = vmatprep.subr.mxu0 0.0
    %2571 = vmatpush2.msra.mxu0 %v2339
    %2572 = vmatprep.mubr.f32.mxu0 %v38
    %2573 = vmatmul.mubr.f32.gmra.mxu0 %v37
    %v2574 = vpop.f32.mrf.mxu0
    %v2575 = vadd.f32 %v2430, %v2574
    %v2576 = vpop.f32.mrf.mxu0
    %2577 = vmatprep.mubr.f32.mxu0 %v43
    %2578 = vmatmul.mubr.f32.gmra.mxu0 %v42
    %v2579 = vpop.f32.mrf.mxu0
    %v2580 = vadd.f32 %v2435, %v2579
    %v2581 = vpop.f32.mrf.mxu0
    %2582 = vmatprep.mubr.f32.mxu0 %v48
    %2583 = vmatmul.mubr.f32.gmra.mxu0 %v47
    %v2584 = vpop.f32.mrf.mxu0
    %v2585 = vadd.f32 %v2440, %v2584
    %v2586 = vpop.f32.mrf.mxu0
    %2587 = vmatprep.mubr.f32.mxu0 %v53
    %2588 = vmatmul.mubr.f32.gmra.mxu0 %v52
    %v2589 = vpop.f32.mrf.mxu0
    %v2590 = vadd.f32 %v2445, %v2589
    %v2591 = vpop.f32.mrf.mxu0
    %2592 = vmatprep.mubr.f32.mxu0 %v58
    %2593 = vmatmul.mubr.f32.gmra.mxu0 %v57
    %v2594 = vpop.f32.mrf.mxu0
    %v2595 = vadd.f32 %v2450, %v2594
    %v2596 = vpop.f32.mrf.mxu0
    %2597 = vmatprep.mubr.f32.mxu0 %v63
    %2598 = vmatmul.mubr.f32.gmra.mxu0 %v62
    %v2599 = vpop.f32.mrf.mxu0
    %v2600 = vadd.f32 %v2455, %v2599
    %v2601 = vpop.f32.mrf.mxu0
    %2602 = vmatprep.mubr.f32.mxu0 %v68
    %2603 = vmatmul.mubr.f32.gmra.mxu0 %v67
    %v2604 = vpop.f32.mrf.mxu0
    %v2605 = vadd.f32 %v2460, %v2604
    %v2606 = vpop.f32.mrf.mxu0
    %2607 = vmatprep.mubr.f32.mxu0 %v73
    %2608 = vmatmul.mubr.f32.gmra.mxu0 %v72
    %v2609 = vpop.f32.mrf.mxu0
    %v2610 = vadd.f32 %v2465, %v2609
    %v2611 = vpop.f32.mrf.mxu0
    %2612 = vmatprep.mubr.f32.mxu0 %v78
    %2613 = vmatmul.mubr.f32.gmra.mxu0 %v77
    %v2614 = vpop.f32.mrf.mxu0
    %v2615 = vadd.f32 %v2470, %v2614
    %v2616 = vpop.f32.mrf.mxu0
    %2617 = vmatprep.mubr.f32.mxu0 %v83
    %2618 = vmatmul.mubr.f32.gmra.mxu0 %v82
    %v2619 = vpop.f32.mrf.mxu0
    %v2620 = vadd.f32 %v2475, %v2619
    %v2621 = vpop.f32.mrf.mxu0
    %2622 = vmatprep.mubr.f32.mxu0 %v88
    %2623 = vmatmul.mubr.f32.gmra.mxu0 %v87
    %v2624 = vpop.f32.mrf.mxu0
    %v2625 = vadd.f32 %v2480, %v2624
    %v2626 = vpop.f32.mrf.mxu0
    %2627 = vmatprep.mubr.f32.mxu0 %v93
    %2628 = vmatmul.mubr.f32.gmra.mxu0 %v92
    %v2629 = vpop.f32.mrf.mxu0
    %v2630 = vadd.f32 %v2485, %v2629
    %v2631 = vpop.f32.mrf.mxu0
    %2632 = vmatprep.mubr.f32.mxu0 %v98
    %2633 = vmatmul.mubr.f32.gmra.mxu0 %v97
    %v2634 = vpop.f32.mrf.mxu0
    %v2635 = vadd.f32 %v2490, %v2634
    %v2636 = vpop.f32.mrf.mxu0
    %2637 = vmatprep.mubr.f32.mxu0 %v103
    %2638 = vmatmul.mubr.f32.gmra.mxu0 %v102
    %v2639 = vpop.f32.mrf.mxu0
    %v2640 = vadd.f32 %v2495, %v2639
    %v2641 = vpop.f32.mrf.mxu0
    %2642 = vmatprep.mubr.f32.mxu0 %v108
    %2643 = vmatmul.mubr.f32.gmra.mxu0 %v107
    %v2644 = vpop.f32.mrf.mxu0
    %v2645 = vadd.f32 %v2500, %v2644
    %v2646 = vpop.f32.mrf.mxu0
    %2647 = vmatprep.mubr.f32.mxu0 %v113
    %2648 = vmatmul.mubr.f32.gmra.mxu0 %v112
    %v2649 = vpop.f32.mrf.mxu0
    %v2650 = vadd.f32 %v2505, %v2649
    %v2651 = vpop.f32.mrf.mxu0
    %2652 = vdwg.mxu0
    %2653 = vmatprep.subr.mxu0 0.0
    %2654 = vmatpush1.msra.mxu0 0.0
    %2655 = vmatprep.subr.mxu0 0.0
    %2656 = vmatpush1.msra.mxu0 0.0
    %2657 = vmatprep.subr.mxu0 0.0
    %2658 = vmatpush1.msra.mxu0 0.0
    %2659 = vmatprep.subr.mxu0 0.0
    %2660 = vmatpush1.msra.mxu0 0.0
    %2661 = vmatprep.subr.mxu0 0.0
    %2662 = vmatpush1.msra.mxu0 0.0
    %2663 = vmatprep.subr.mxu0 0.0
    %2664 = vmatpush1.msra.mxu0 0.0
    %2665 = vmatprep.subr.mxu0 0.0
    %2666 = vmatpush1.msra.mxu0 0.0
    %2667 = vmatprep.subr.mxu0 0.0
    %2668 = vmatpush1.msra.mxu0 0.0
    %2669 = vmatprep.subr.mxu0 0.0
    %2670 = vmatpush1.msra.mxu0 %v2362
    %2671 = vmatprep.subr.mxu0 0.0
    %2672 = vmatpush1.msra.mxu0 %v2361
    %2673 = vmatprep.subr.mxu0 0.0
    %2674 = vmatpush1.msra.mxu0 %v2360
    %2675 = vmatprep.subr.mxu0 0.0
    %2676 = vmatpush1.msra.mxu0 %v2359
    %2677 = vmatprep.subr.mxu0 0.0
    %2678 = vmatpush1.msra.mxu0 %v2358
    %2679 = vmatprep.subr.mxu0 0.0
    %2680 = vmatpush1.msra.mxu0 %v2357
    %2681 = vmatprep.subr.mxu0 0.0
    %2682 = vmatpush1.msra.mxu0 %v2356
    %2683 = vmatprep.subr.mxu0 0.0
    %2684 = vmatpush1.msra.mxu0 %v2355
    %2685 = vmatprep.subr.mxu0 0.0
    %2686 = vmatpush2.msra.mxu0 0.0
    %2687 = vmatprep.subr.mxu0 0.0
    %2688 = vmatpush2.msra.mxu0 0.0
    %2689 = vmatprep.subr.mxu0 0.0
    %2690 = vmatpush2.msra.mxu0 0.0
    %2691 = vmatprep.subr.mxu0 0.0
    %2692 = vmatpush2.msra.mxu0 0.0
    %2693 = vmatprep.subr.mxu0 0.0
    %2694 = vmatpush2.msra.mxu0 0.0
    %2695 = vmatprep.subr.mxu0 0.0
    %2696 = vmatpush2.msra.mxu0 0.0
    %2697 = vmatprep.subr.mxu0 0.0
    %2698 = vmatpush2.msra.mxu0 0.0
    %2699 = vmatprep.subr.mxu0 0.0
    %2700 = vmatpush2.msra.mxu0 0.0
    %2701 = vmatprep.subr.mxu0 0.0
    %2702 = vmatpush2.msra.mxu0 0.0
    %2703 = vmatprep.subr.mxu0 0.0
    %2704 = vmatpush2.msra.mxu0 0.0
    %2705 = vmatprep.subr.mxu0 0.0
    %2706 = vmatpush2.msra.mxu0 0.0
    %2707 = vmatprep.subr.mxu0 0.0
    %2708 = vmatpush2.msra.mxu0 0.0
    %2709 = vmatprep.subr.mxu0 0.0
    %2710 = vmatpush2.msra.mxu0 0.0
    %2711 = vmatprep.subr.mxu0 0.0
    %2712 = vmatpush2.msra.mxu0 0.0
    %2713 = vmatprep.subr.mxu0 0.0
    %2714 = vmatpush2.msra.mxu0 0.0
    %2715 = vmatprep.subr.mxu0 0.0
    %2716 = vmatpush2.msra.mxu0 0.0
    %2717 = vmatprep.mubr.f32.mxu0 0.0
    %2718 = vmatmul.mubr.f32.gmra.mxu0 %v285
    %v2719 = vpop.f32.mrf.mxu0
    %v2720 = vadd.f32 %v2575, %v2719
    %v2721 = vpop.f32.mrf.mxu0
    %2722 = vmatprep.mubr.f32.mxu0 0.0
    %2723 = vmatmul.mubr.f32.gmra.mxu0 %v288
    %v2724 = vpop.f32.mrf.mxu0
    %v2725 = vadd.f32 %v2580, %v2724
    %v2726 = vpop.f32.mrf.mxu0
    %2727 = vmatprep.mubr.f32.mxu0 0.0
    %2728 = vmatmul.mubr.f32.gmra.mxu0 %v291
    %v2729 = vpop.f32.mrf.mxu0
    %v2730 = vadd.f32 %v2585, %v2729
    %v2731 = vpop.f32.mrf.mxu0
    %2732 = vmatprep.mubr.f32.mxu0 0.0
    %2733 = vmatmul.mubr.f32.gmra.mxu0 %v294
    %v2734 = vpop.f32.mrf.mxu0
    %v2735 = vadd.f32 %v2590, %v2734
    %v2736 = vpop.f32.mrf.mxu0
    %2737 = vmatprep.mubr.f32.mxu0 0.0
    %2738 = vmatmul.mubr.f32.gmra.mxu0 %v297
    %v2739 = vpop.f32.mrf.mxu0
    %v2740 = vadd.f32 %v2595, %v2739
    %v2741 = vpop.f32.mrf.mxu0
    %2742 = vmatprep.mubr.f32.mxu0 0.0
    %2743 = vmatmul.mubr.f32.gmra.mxu0 %v300
    %v2744 = vpop.f32.mrf.mxu0
    %v2745 = vadd.f32 %v2600, %v2744
    %v2746 = vpop.f32.mrf.mxu0
    %2747 = vmatprep.mubr.f32.mxu0 0.0
    %2748 = vmatmul.mubr.f32.gmra.mxu0 %v303
    %v2749 = vpop.f32.mrf.mxu0
    %v2750 = vadd.f32 %v2605, %v2749
    %v2751 = vpop.f32.mrf.mxu0
    %2752 = vmatprep.mubr.f32.mxu0 0.0
    %2753 = vmatmul.mubr.f32.gmra.mxu0 %v306
    %v2754 = vpop.f32.mrf.mxu0
    %v2755 = vadd.f32 %v2610, %v2754
    %v2756 = vpop.f32.mrf.mxu0
    %2757 = vmatprep.mubr.f32.mxu0 0.0
    %2758 = vmatmul.mubr.f32.gmra.mxu0 %v309
    %v2759 = vpop.f32.mrf.mxu0
    %v2760 = vadd.f32 %v2615, %v2759
    %v2761 = vpop.f32.mrf.mxu0
    %2762 = vmatprep.mubr.f32.mxu0 0.0
    %2763 = vmatmul.mubr.f32.gmra.mxu0 %v312
    %v2764 = vpop.f32.mrf.mxu0
    %v2765 = vadd.f32 %v2620, %v2764
    %v2766 = vpop.f32.mrf.mxu0
    %2767 = vmatprep.mubr.f32.mxu0 0.0
    %2768 = vmatmul.mubr.f32.gmra.mxu0 %v315
    %v2769 = vpop.f32.mrf.mxu0
    %v2770 = vadd.f32 %v2625, %v2769
    %v2771 = vpop.f32.mrf.mxu0
    %2772 = vmatprep.mubr.f32.mxu0 0.0
    %2773 = vmatmul.mubr.f32.gmra.mxu0 %v318
    %v2774 = vpop.f32.mrf.mxu0
    %v2775 = vadd.f32 %v2630, %v2774
    %v2776 = vpop.f32.mrf.mxu0
    %2777 = vmatprep.mubr.f32.mxu0 0.0
    %2778 = vmatmul.mubr.f32.gmra.mxu0 %v321
    %v2779 = vpop.f32.mrf.mxu0
    %v2780 = vadd.f32 %v2635, %v2779
    %v2781 = vpop.f32.mrf.mxu0
    %2782 = vmatprep.mubr.f32.mxu0 0.0
    %2783 = vmatmul.mubr.f32.gmra.mxu0 %v324
    %v2784 = vpop.f32.mrf.mxu0
    %v2785 = vadd.f32 %v2640, %v2784
    %v2786 = vpop.f32.mrf.mxu0
    %2787 = vmatprep.mubr.f32.mxu0 0.0
    %2788 = vmatmul.mubr.f32.gmra.mxu0 %v327
    %v2789 = vpop.f32.mrf.mxu0
    %v2790 = vadd.f32 %v2645, %v2789
    %v2791 = vpop.f32.mrf.mxu0
    %2792 = vmatprep.mubr.f32.mxu0 0.0
    %2793 = vmatmul.mubr.f32.gmra.mxu0 %v330
    %v2794 = vpop.f32.mrf.mxu0
    %v2795 = vadd.f32 %v2650, %v2794
    %v2796 = vpop.f32.mrf.mxu0
    %2797 = vdwg.mxu0
    %vm2798 = vcmask 48128
    %v2799 = vsel %vm2798, %v689, 0.0
    %2800 = vadd.xlane.f32.xlu0 %v2799
    %v2801 = vpop.xlane.xlu0 %2800
    %v2802 = vsel %vm2798, %v694, 0.0
    %2803 = vadd.xlane.f32.xlu0 %v2802
    %v2804 = vpop.xlane.xlu0 %2803
    %v2805 = vsel %vm2798, %v699, 0.0
    %2806 = vadd.xlane.f32.xlu0 %v2805
    %v2807 = vpop.xlane.xlu0 %2806
    %v2808 = vsel %vm2798, %v704, 0.0
    %2809 = vadd.xlane.f32.xlu0 %v2808
    %v2810 = vpop.xlane.xlu0 %2809
    %v2811 = vsel %vm2798, %v709, 0.0
    %2812 = vadd.xlane.f32.xlu0 %v2811
    %v2813 = vpop.xlane.xlu0 %2812
    %v2814 = vsel %vm2798, %v714, 0.0
    %2815 = vadd.xlane.f32.xlu0 %v2814
    %v2816 = vpop.xlane.xlu0 %2815
    %v2817 = vsel %vm2798, %v719, 0.0
    %2818 = vadd.xlane.f32.xlu0 %v2817
    %v2819 = vpop.xlane.xlu0 %2818
    %v2820 = vsel %vm2798, %v724, 0.0
    %2821 = vadd.xlane.f32.xlu0 %v2820
    %v2822 = vpop.xlane.xlu0 %2821
    %v2823 = vsel %vm2798, %v729, 0.0
    %2824 = vadd.xlane.f32.xlu0 %v2823
    %v2825 = vpop.xlane.xlu0 %2824
    %v2826 = vsel %vm2798, %v734, 0.0
    %2827 = vadd.xlane.f32.xlu0 %v2826
    %v2828 = vpop.xlane.xlu0 %2827
    %v2829 = vsel %vm2798, %v739, 0.0
    %2830 = vadd.xlane.f32.xlu0 %v2829
    %v2831 = vpop.xlane.xlu0 %2830
    %v2832 = vsel %vm2798, %v744, 0.0
    %2833 = vadd.xlane.f32.xlu0 %v2832
    %v2834 = vpop.xlane.xlu0 %2833
    %v2835 = vsel %vm2798, %v749, 0.0
    %2836 = vadd.xlane.f32.xlu0 %v2835
    %v2837 = vpop.xlane.xlu0 %2836
    %v2838 = vsel %vm2798, %v754, 0.0
    %2839 = vadd.xlane.f32.xlu0 %v2838
    %v2840 = vpop.xlane.xlu0 %2839
    %v2841 = vsel %vm2798, %v759, 0.0
    %2842 = vadd.xlane.f32.xlu0 %v2841
    %v2843 = vpop.xlane.xlu0 %2842
    %v2844 = vsel %vm2798, %v764, 0.0
    %2845 = vadd.xlane.f32.xlu0 %v2844
    %v2846 = vpop.xlane.xlu0 %2845
    %v2847 = vsel %vm2798, %v1197, 0.0
    %2848 = vadd.xlane.f32.xlu0 %v2847
    %v2849 = vpop.xlane.xlu0 %2848
    %v2850 = vsel %vm2798, %v1202, 0.0
    %2851 = vadd.xlane.f32.xlu0 %v2850
    %v2852 = vpop.xlane.xlu0 %2851
    %v2853 = vsel %vm2798, %v1207, 0.0
    %2854 = vadd.xlane.f32.xlu0 %v2853
    %v2855 = vpop.xlane.xlu0 %2854
    %v2856 = vsel %vm2798, %v1212, 0.0
    %2857 = vadd.xlane.f32.xlu0 %v2856
    %v2858 = vpop.xlane.xlu0 %2857
    %v2859 = vsel %vm2798, %v1217, 0.0
    %2860 = vadd.xlane.f32.xlu0 %v2859
    %v2861 = vpop.xlane.xlu0 %2860
    %v2862 = vsel %vm2798, %v1222, 0.0
    %2863 = vadd.xlane.f32.xlu0 %v2862
    %v2864 = vpop.xlane.xlu0 %2863
    %v2865 = vsel %vm2798, %v1227, 0.0
    %2866 = vadd.xlane.f32.xlu0 %v2865
    %v2867 = vpop.xlane.xlu0 %2866
    %v2868 = vsel %vm2798, %v1232, 0.0
    %2869 = vadd.xlane.f32.xlu0 %v2868
    %v2870 = vpop.xlane.xlu0 %2869
    %v2871 = vsel %vm2798, %v1237, 0.0
    %2872 = vadd.xlane.f32.xlu0 %v2871
    %v2873 = vpop.xlane.xlu0 %2872
    %v2874 = vsel %vm2798, %v1242, 0.0
    %2875 = vadd.xlane.f32.xlu0 %v2874
    %v2876 = vpop.xlane.xlu0 %2875
    %v2877 = vsel %vm2798, %v1247, 0.0
    %2878 = vadd.xlane.f32.xlu0 %v2877
    %v2879 = vpop.xlane.xlu0 %2878
    %v2880 = vsel %vm2798, %v1252, 0.0
    %2881 = vadd.xlane.f32.xlu0 %v2880
    %v2882 = vpop.xlane.xlu0 %2881
    %v2883 = vsel %vm2798, %v1257, 0.0
    %2884 = vadd.xlane.f32.xlu0 %v2883
    %v2885 = vpop.xlane.xlu0 %2884
    %v2886 = vsel %vm2798, %v1262, 0.0
    %2887 = vadd.xlane.f32.xlu0 %v2886
    %v2888 = vpop.xlane.xlu0 %2887
    %v2889 = vsel %vm2798, %v1267, 0.0
    %2890 = vadd.xlane.f32.xlu0 %v2889
    %v2891 = vpop.xlane.xlu0 %2890
    %v2892 = vsel %vm2798, %v1272, 0.0
    %2893 = vadd.xlane.f32.xlu0 %v2892
    %v2894 = vpop.xlane.xlu0 %2893
    %v2895 = vadd.f32 %v2801, %v2849
    %v2896 = vadd.f32 %v2804, %v2852
    %v2897 = vadd.f32 %v2807, %v2855
    %v2898 = vadd.f32 %v2810, %v2858
    %v2899 = vadd.f32 %v2813, %v2861
    %v2900 = vadd.f32 %v2816, %v2864
    %v2901 = vadd.f32 %v2819, %v2867
    %v2902 = vadd.f32 %v2822, %v2870
    %v2903 = vadd.f32 %v2825, %v2873
    %v2904 = vadd.f32 %v2828, %v2876
    %v2905 = vadd.f32 %v2831, %v2879
    %v2906 = vadd.f32 %v2834, %v2882
    %v2907 = vadd.f32 %v2837, %v2885
    %v2908 = vadd.f32 %v2840, %v2888
    %v2909 = vadd.f32 %v2843, %v2891
    %v2910 = vadd.f32 %v2846, %v2894
    %v2911 = vsel %vm2798, %v1705, 0.0
    %2912 = vadd.xlane.f32.xlu0 %v2911
    %v2913 = vpop.xlane.xlu0 %2912
    %v2914 = vsel %vm2798, %v1710, 0.0
    %2915 = vadd.xlane.f32.xlu0 %v2914
    %v2916 = vpop.xlane.xlu0 %2915
    %v2917 = vsel %vm2798, %v1715, 0.0
    %2918 = vadd.xlane.f32.xlu0 %v2917
    %v2919 = vpop.xlane.xlu0 %2918
    %v2920 = vsel %vm2798, %v1720, 0.0
    %2921 = vadd.xlane.f32.xlu0 %v2920
    %v2922 = vpop.xlane.xlu0 %2921
    %v2923 = vsel %vm2798, %v1725, 0.0
    %2924 = vadd.xlane.f32.xlu0 %v2923
    %v2925 = vpop.xlane.xlu0 %2924
    %v2926 = vsel %vm2798, %v1730, 0.0
    %2927 = vadd.xlane.f32.xlu0 %v2926
    %v2928 = vpop.xlane.xlu0 %2927
    %v2929 = vsel %vm2798, %v1735, 0.0
    %2930 = vadd.xlane.f32.xlu0 %v2929
    %v2931 = vpop.xlane.xlu0 %2930
    %v2932 = vsel %vm2798, %v1740, 0.0
    %2933 = vadd.xlane.f32.xlu0 %v2932
    %v2934 = vpop.xlane.xlu0 %2933
    %v2935 = vsel %vm2798, %v1745, 0.0
    %2936 = vadd.xlane.f32.xlu0 %v2935
    %v2937 = vpop.xlane.xlu0 %2936
    %v2938 = vsel %vm2798, %v1750, 0.0
    %2939 = vadd.xlane.f32.xlu0 %v2938
    %v2940 = vpop.xlane.xlu0 %2939
    %v2941 = vsel %vm2798, %v1755, 0.0
    %2942 = vadd.xlane.f32.xlu0 %v2941
    %v2943 = vpop.xlane.xlu0 %2942
    %v2944 = vsel %vm2798, %v1760, 0.0
    %2945 = vadd.xlane.f32.xlu0 %v2944
    %v2946 = vpop.xlane.xlu0 %2945
    %v2947 = vsel %vm2798, %v1765, 0.0
    %2948 = vadd.xlane.f32.xlu0 %v2947
    %v2949 = vpop.xlane.xlu0 %2948
    %v2950 = vsel %vm2798, %v1770, 0.0
    %2951 = vadd.xlane.f32.xlu0 %v2950
    %v2952 = vpop.xlane.xlu0 %2951
    %v2953 = vsel %vm2798, %v1775, 0.0
    %2954 = vadd.xlane.f32.xlu0 %v2953
    %v2955 = vpop.xlane.xlu0 %2954
    %v2956 = vsel %vm2798, %v1780, 0.0
    %2957 = vadd.xlane.f32.xlu0 %v2956
    %v2958 = vpop.xlane.xlu0 %2957
    %v2959 = vadd.f32 %v2895, %v2913
    %v2960 = vadd.f32 %v2896, %v2916
    %v2961 = vadd.f32 %v2897, %v2919
    %v2962 = vadd.f32 %v2898, %v2922
    %v2963 = vadd.f32 %v2899, %v2925
    %v2964 = vadd.f32 %v2900, %v2928
    %v2965 = vadd.f32 %v2901, %v2931
    %v2966 = vadd.f32 %v2902, %v2934
    %v2967 = vadd.f32 %v2903, %v2937
    %v2968 = vadd.f32 %v2904, %v2940
    %v2969 = vadd.f32 %v2905, %v2943
    %v2970 = vadd.f32 %v2906, %v2946
    %v2971 = vadd.f32 %v2907, %v2949
    %v2972 = vadd.f32 %v2908, %v2952
    %v2973 = vadd.f32 %v2909, %v2955
    %v2974 = vadd.f32 %v2910, %v2958
    %v2975 = vsel %vm2798, %v2213, 0.0
    %2976 = vadd.xlane.f32.xlu0 %v2975
    %v2977 = vpop.xlane.xlu0 %2976
    %v2978 = vsel %vm2798, %v2218, 0.0
    %2979 = vadd.xlane.f32.xlu0 %v2978
    %v2980 = vpop.xlane.xlu0 %2979
    %v2981 = vsel %vm2798, %v2223, 0.0
    %2982 = vadd.xlane.f32.xlu0 %v2981
    %v2983 = vpop.xlane.xlu0 %2982
    %v2984 = vsel %vm2798, %v2228, 0.0
    %2985 = vadd.xlane.f32.xlu0 %v2984
    %v2986 = vpop.xlane.xlu0 %2985
    %v2987 = vsel %vm2798, %v2233, 0.0
    %2988 = vadd.xlane.f32.xlu0 %v2987
    %v2989 = vpop.xlane.xlu0 %2988
    %v2990 = vsel %vm2798, %v2238, 0.0
    %2991 = vadd.xlane.f32.xlu0 %v2990
    %v2992 = vpop.xlane.xlu0 %2991
    %v2993 = vsel %vm2798, %v2243, 0.0
    %2994 = vadd.xlane.f32.xlu0 %v2993
    %v2995 = vpop.xlane.xlu0 %2994
    %v2996 = vsel %vm2798, %v2248, 0.0
    %2997 = vadd.xlane.f32.xlu0 %v2996
    %v2998 = vpop.xlane.xlu0 %2997
    %v2999 = vsel %vm2798, %v2253, 0.0
    %3000 = vadd.xlane.f32.xlu0 %v2999
    %v3001 = vpop.xlane.xlu0 %3000
    %v3002 = vsel %vm2798, %v2258, 0.0
    %3003 = vadd.xlane.f32.xlu0 %v3002
    %v3004 = vpop.xlane.xlu0 %3003
    %v3005 = vsel %vm2798, %v2263, 0.0
    %3006 = vadd.xlane.f32.xlu0 %v3005
    %v3007 = vpop.xlane.xlu0 %3006
    %v3008 = vsel %vm2798, %v2268, 0.0
    %3009 = vadd.xlane.f32.xlu0 %v3008
    %v3010 = vpop.xlane.xlu0 %3009
    %v3011 = vsel %vm2798, %v2273, 0.0
    %3012 = vadd.xlane.f32.xlu0 %v3011
    %v3013 = vpop.xlane.xlu0 %3012
    %v3014 = vsel %vm2798, %v2278, 0.0
    %3015 = vadd.xlane.f32.xlu0 %v3014
    %v3016 = vpop.xlane.xlu0 %3015
    %v3017 = vsel %vm2798, %v2283, 0.0
    %3018 = vadd.xlane.f32.xlu0 %v3017
    %v3019 = vpop.xlane.xlu0 %3018
    %v3020 = vsel %vm2798, %v2288, 0.0
    %3021 = vadd.xlane.f32.xlu0 %v3020
    %v3022 = vpop.xlane.xlu0 %3021
    %v3023 = vadd.f32 %v2959, %v2977
    %v3024 = vadd.f32 %v2960, %v2980
    %v3025 = vadd.f32 %v2961, %v2983
    %v3026 = vadd.f32 %v2962, %v2986
    %v3027 = vadd.f32 %v2963, %v2989
    %v3028 = vadd.f32 %v2964, %v2992
    %v3029 = vadd.f32 %v2965, %v2995
    %v3030 = vadd.f32 %v2966, %v2998
    %v3031 = vadd.f32 %v2967, %v3001
    %v3032 = vadd.f32 %v2968, %v3004
    %v3033 = vadd.f32 %v2969, %v3007
    %v3034 = vadd.f32 %v2970, %v3010
    %v3035 = vadd.f32 %v2971, %v3013
    %v3036 = vadd.f32 %v2972, %v3016
    %v3037 = vadd.f32 %v2973, %v3019
    %v3038 = vadd.f32 %v2974, %v3022
    %vm3039 = vcmask 31744
    %v3040 = vsel %vm3039, %v2720, 0.0
    %3041 = vadd.xlane.f32.xlu0 %v3040
    %v3042 = vpop.xlane.xlu0 %3041
    %v3043 = vsel %vm3039, %v2725, 0.0
    %3044 = vadd.xlane.f32.xlu0 %v3043
    %v3045 = vpop.xlane.xlu0 %3044
    %v3046 = vsel %vm3039, %v2730, 0.0
    %3047 = vadd.xlane.f32.xlu0 %v3046
    %v3048 = vpop.xlane.xlu0 %3047
    %v3049 = vsel %vm3039, %v2735, 0.0
    %3050 = vadd.xlane.f32.xlu0 %v3049
    %v3051 = vpop.xlane.xlu0 %3050
    %v3052 = vsel %vm3039, %v2740, 0.0
    %3053 = vadd.xlane.f32.xlu0 %v3052
    %v3054 = vpop.xlane.xlu0 %3053
    %v3055 = vsel %vm3039, %v2745, 0.0
    %3056 = vadd.xlane.f32.xlu0 %v3055
    %v3057 = vpop.xlane.xlu0 %3056
    %v3058 = vsel %vm3039, %v2750, 0.0
    %3059 = vadd.xlane.f32.xlu0 %v3058
    %v3060 = vpop.xlane.xlu0 %3059
    %v3061 = vsel %vm3039, %v2755, 0.0
    %3062 = vadd.xlane.f32.xlu0 %v3061
    %v3063 = vpop.xlane.xlu0 %3062
    %v3064 = vsel %vm3039, %v2760, 0.0
    %3065 = vadd.xlane.f32.xlu0 %v3064
    %v3066 = vpop.xlane.xlu0 %3065
    %v3067 = vsel %vm3039, %v2765, 0.0
    %3068 = vadd.xlane.f32.xlu0 %v3067
    %v3069 = vpop.xlane.xlu0 %3068
    %v3070 = vsel %vm3039, %v2770, 0.0
    %3071 = vadd.xlane.f32.xlu0 %v3070
    %v3072 = vpop.xlane.xlu0 %3071
    %v3073 = vsel %vm3039, %v2775, 0.0
    %3074 = vadd.xlane.f32.xlu0 %v3073
    %v3075 = vpop.xlane.xlu0 %3074
    %v3076 = vsel %vm3039, %v2780, 0.0
    %3077 = vadd.xlane.f32.xlu0 %v3076
    %v3078 = vpop.xlane.xlu0 %3077
    %v3079 = vsel %vm3039, %v2785, 0.0
    %3080 = vadd.xlane.f32.xlu0 %v3079
    %v3081 = vpop.xlane.xlu0 %3080
    %v3082 = vsel %vm3039, %v2790, 0.0
    %3083 = vadd.xlane.f32.xlu0 %v3082
    %v3084 = vpop.xlane.xlu0 %3083
    %v3085 = vsel %vm3039, %v2795, 0.0
    %3086 = vadd.xlane.f32.xlu0 %v3085
    %v3087 = vpop.xlane.xlu0 %3086
    %v3088 = vadd.f32 %v3023, %v3042
    %v3089 = vadd.f32 %v3024, %v3045
    %v3090 = vadd.f32 %v3025, %v3048
    %v3091 = vadd.f32 %v3026, %v3051
    %v3092 = vadd.f32 %v3027, %v3054
    %v3093 = vadd.f32 %v3028, %v3057
    %v3094 = vadd.f32 %v3029, %v3060
    %v3095 = vadd.f32 %v3030, %v3063
    %v3096 = vadd.f32 %v3031, %v3066
    %v3097 = vadd.f32 %v3032, %v3069
    %v3098 = vadd.f32 %v3033, %v3072
    %v3099 = vadd.f32 %v3034, %v3075
    %v3100 = vadd.f32 %v3035, %v3078
    %v3101 = vadd.f32 %v3036, %v3081
    %v3102 = vadd.f32 %v3037, %v3084
    %v3103 = vadd.f32 %v3038, %v3087
    %v3104 = vmul.f32 %v3088, 0.035714287
    %v3105 = vmul.f32 %v3089, 0.035714287
    %v3106 = vmul.f32 %v3090, 0.035714287
    %v3107 = vmul.f32 %v3091, 0.035714287
    %v3108 = vmul.f32 %v3092, 0.035714287
    %v3109 = vmul.f32 %v3093, 0.035714287
    %v3110 = vmul.f32 %v3094, 0.035714287
    %v3111 = vmul.f32 %v3095, 0.035714287
    %v3112 = vmul.f32 %v3096, 0.035714287
    %v3113 = vmul.f32 %v3097, 0.035714287
    %v3114 = vmul.f32 %v3098, 0.035714287
    %v3115 = vmul.f32 %v3099, 0.035714287
    %v3116 = vmul.f32 %v3100, 0.035714287
    %v3117 = vmul.f32 %v3101, 0.035714287
    %v3118 = vmul.f32 %v3102, 0.035714287
    %v3119 = vmul.f32 %v3103, 0.035714287
    %v3120 = vsub.f32 %v689, %v3104
    %v3121 = vsub.f32 %v694, %v3105
    %v3122 = vsub.f32 %v699, %v3106
    %v3123 = vsub.f32 %v704, %v3107
    %v3124 = vsub.f32 %v709, %v3108
    %v3125 = vsub.f32 %v714, %v3109
    %v3126 = vsub.f32 %v719, %v3110
    %v3127 = vsub.f32 %v724, %v3111
    %v3128 = vsub.f32 %v729, %v3112
    %v3129 = vsub.f32 %v734, %v3113
    %v3130 = vsub.f32 %v739, %v3114
    %v3131 = vsub.f32 %v744, %v3115
    %v3132 = vsub.f32 %v749, %v3116
    %v3133 = vsub.f32 %v754, %v3117
    %v3134 = vsub.f32 %v759, %v3118
    %v3135 = vsub.f32 %v764, %v3119
    %v3136 = vmul.f32 %v3120, %v3120
    %v3137 = vmul.f32 %v3121, %v3121
    %v3138 = vmul.f32 %v3122, %v3122
    %v3139 = vmul.f32 %v3123, %v3123
    %v3140 = vmul.f32 %v3124, %v3124
    %v3141 = vmul.f32 %v3125, %v3125
    %v3142 = vmul.f32 %v3126, %v3126
    %v3143 = vmul.f32 %v3127, %v3127
    %v3144 = vmul.f32 %v3128, %v3128
    %v3145 = vmul.f32 %v3129, %v3129
    %v3146 = vmul.f32 %v3130, %v3130
    %v3147 = vmul.f32 %v3131, %v3131
    %v3148 = vmul.f32 %v3132, %v3132
    %v3149 = vmul.f32 %v3133, %v3133
    %v3150 = vmul.f32 %v3134, %v3134
    %v3151 = vmul.f32 %v3135, %v3135
    %v3152 = vsel %vm2798, %v3136, 0.0
    %3153 = vadd.xlane.f32.xlu0 %v3152
    %v3154 = vpop.xlane.xlu0 %3153
    %v3155 = vsel %vm2798, %v3137, 0.0
    %3156 = vadd.xlane.f32.xlu0 %v3155
    %v3157 = vpop.xlane.xlu0 %3156
    %v3158 = vsel %vm2798, %v3138, 0.0
    %3159 = vadd.xlane.f32.xlu0 %v3158
    %v3160 = vpop.xlane.xlu0 %3159
    %v3161 = vsel %vm2798, %v3139, 0.0
    %3162 = vadd.xlane.f32.xlu0 %v3161
    %v3163 = vpop.xlane.xlu0 %3162
    %v3164 = vsel %vm2798, %v3140, 0.0
    %3165 = vadd.xlane.f32.xlu0 %v3164
    %v3166 = vpop.xlane.xlu0 %3165
    %v3167 = vsel %vm2798, %v3141, 0.0
    %3168 = vadd.xlane.f32.xlu0 %v3167
    %v3169 = vpop.xlane.xlu0 %3168
    %v3170 = vsel %vm2798, %v3142, 0.0
    %3171 = vadd.xlane.f32.xlu0 %v3170
    %v3172 = vpop.xlane.xlu0 %3171
    %v3173 = vsel %vm2798, %v3143, 0.0
    %3174 = vadd.xlane.f32.xlu0 %v3173
    %v3175 = vpop.xlane.xlu0 %3174
    %v3176 = vsel %vm2798, %v3144, 0.0
    %3177 = vadd.xlane.f32.xlu0 %v3176
    %v3178 = vpop.xlane.xlu0 %3177
    %v3179 = vsel %vm2798, %v3145, 0.0
    %3180 = vadd.xlane.f32.xlu0 %v3179
    %v3181 = vpop.xlane.xlu0 %3180
    %v3182 = vsel %vm2798, %v3146, 0.0
    %3183 = vadd.xlane.f32.xlu0 %v3182
    %v3184 = vpop.xlane.xlu0 %3183
    %v3185 = vsel %vm2798, %v3147, 0.0
    %3186 = vadd.xlane.f32.xlu0 %v3185
    %v3187 = vpop.xlane.xlu0 %3186
    %v3188 = vsel %vm2798, %v3148, 0.0
    %3189 = vadd.xlane.f32.xlu0 %v3188
    %v3190 = vpop.xlane.xlu0 %3189
    %v3191 = vsel %vm2798, %v3149, 0.0
    %3192 = vadd.xlane.f32.xlu0 %v3191
    %v3193 = vpop.xlane.xlu0 %3192
    %v3194 = vsel %vm2798, %v3150, 0.0
    %3195 = vadd.xlane.f32.xlu0 %v3194
    %v3196 = vpop.xlane.xlu0 %3195
    %v3197 = vsel %vm2798, %v3151, 0.0
    %3198 = vadd.xlane.f32.xlu0 %v3197
    %v3199 = vpop.xlane.xlu0 %3198
    %v3200 = vsub.f32 %v1197, %v3104
    %v3201 = vsub.f32 %v1202, %v3105
    %v3202 = vsub.f32 %v1207, %v3106
    %v3203 = vsub.f32 %v1212, %v3107
    %v3204 = vsub.f32 %v1217, %v3108
    %v3205 = vsub.f32 %v1222, %v3109
    %v3206 = vsub.f32 %v1227, %v3110
    %v3207 = vsub.f32 %v1232, %v3111
    %v3208 = vsub.f32 %v1237, %v3112
    %v3209 = vsub.f32 %v1242, %v3113
    %v3210 = vsub.f32 %v1247, %v3114
    %v3211 = vsub.f32 %v1252, %v3115
    %v3212 = vsub.f32 %v1257, %v3116
    %v3213 = vsub.f32 %v1262, %v3117
    %v3214 = vsub.f32 %v1267, %v3118
    %v3215 = vsub.f32 %v1272, %v3119
    %v3216 = vmul.f32 %v3200, %v3200
    %v3217 = vmul.f32 %v3201, %v3201
    %v3218 = vmul.f32 %v3202, %v3202
    %v3219 = vmul.f32 %v3203, %v3203
    %v3220 = vmul.f32 %v3204, %v3204
    %v3221 = vmul.f32 %v3205, %v3205
    %v3222 = vmul.f32 %v3206, %v3206
    %v3223 = vmul.f32 %v3207, %v3207
    %v3224 = vmul.f32 %v3208, %v3208
    %v3225 = vmul.f32 %v3209, %v3209
    %v3226 = vmul.f32 %v3210, %v3210
    %v3227 = vmul.f32 %v3211, %v3211
    %v3228 = vmul.f32 %v3212, %v3212
    %v3229 = vmul.f32 %v3213, %v3213
    %v3230 = vmul.f32 %v3214, %v3214
    %v3231 = vmul.f32 %v3215, %v3215
    %v3232 = vsel %vm2798, %v3216, 0.0
    %3233 = vadd.xlane.f32.xlu0 %v3232
    %v3234 = vpop.xlane.xlu0 %3233
    %v3235 = vsel %vm2798, %v3217, 0.0
    %3236 = vadd.xlane.f32.xlu0 %v3235
    %v3237 = vpop.xlane.xlu0 %3236
    %v3238 = vsel %vm2798, %v3218, 0.0
    %3239 = vadd.xlane.f32.xlu0 %v3238
    %v3240 = vpop.xlane.xlu0 %3239
    %v3241 = vsel %vm2798, %v3219, 0.0
    %3242 = vadd.xlane.f32.xlu0 %v3241
    %v3243 = vpop.xlane.xlu0 %3242
    %v3244 = vsel %vm2798, %v3220, 0.0
    %3245 = vadd.xlane.f32.xlu0 %v3244
    %v3246 = vpop.xlane.xlu0 %3245
    %v3247 = vsel %vm2798, %v3221, 0.0
    %3248 = vadd.xlane.f32.xlu0 %v3247
    %v3249 = vpop.xlane.xlu0 %3248
    %v3250 = vsel %vm2798, %v3222, 0.0
    %3251 = vadd.xlane.f32.xlu0 %v3250
    %v3252 = vpop.xlane.xlu0 %3251
    %v3253 = vsel %vm2798, %v3223, 0.0
    %3254 = vadd.xlane.f32.xlu0 %v3253
    %v3255 = vpop.xlane.xlu0 %3254
    %v3256 = vsel %vm2798, %v3224, 0.0
    %3257 = vadd.xlane.f32.xlu0 %v3256
    %v3258 = vpop.xlane.xlu0 %3257
    %v3259 = vsel %vm2798, %v3225, 0.0
    %3260 = vadd.xlane.f32.xlu0 %v3259
    %v3261 = vpop.xlane.xlu0 %3260
    %v3262 = vsel %vm2798, %v3226, 0.0
    %3263 = vadd.xlane.f32.xlu0 %v3262
    %v3264 = vpop.xlane.xlu0 %3263
    %v3265 = vsel %vm2798, %v3227, 0.0
    %3266 = vadd.xlane.f32.xlu0 %v3265
    %v3267 = vpop.xlane.xlu0 %3266
    %v3268 = vsel %vm2798, %v3228, 0.0
    %3269 = vadd.xlane.f32.xlu0 %v3268
    %v3270 = vpop.xlane.xlu0 %3269
    %v3271 = vsel %vm2798, %v3229, 0.0
    %3272 = vadd.xlane.f32.xlu0 %v3271
    %v3273 = vpop.xlane.xlu0 %3272
    %v3274 = vsel %vm2798, %v3230, 0.0
    %3275 = vadd.xlane.f32.xlu0 %v3274
    %v3276 = vpop.xlane.xlu0 %3275
    %v3277 = vsel %vm2798, %v3231, 0.0
    %3278 = vadd.xlane.f32.xlu0 %v3277
    %v3279 = vpop.xlane.xlu0 %3278
    %v3280 = vadd.f32 %v3154, %v3234
    %v3281 = vadd.f32 %v3157, %v3237
    %v3282 = vadd.f32 %v3160, %v3240
    %v3283 = vadd.f32 %v3163, %v3243
    %v3284 = vadd.f32 %v3166, %v3246
    %v3285 = vadd.f32 %v3169, %v3249
    %v3286 = vadd.f32 %v3172, %v3252
    %v3287 = vadd.f32 %v3175, %v3255
    %v3288 = vadd.f32 %v3178, %v3258
    %v3289 = vadd.f32 %v3181, %v3261
    %v3290 = vadd.f32 %v3184, %v3264
    %v3291 = vadd.f32 %v3187, %v3267
    %v3292 = vadd.f32 %v3190, %v3270
    %v3293 = vadd.f32 %v3193, %v3273
    %v3294 = vadd.f32 %v3196, %v3276
    %v3295 = vadd.f32 %v3199, %v3279
    %v3296 = vsub.f32 %v1705, %v3104
    %v3297 = vsub.f32 %v1710, %v3105
    %v3298 = vsub.f32 %v1715, %v3106
    %v3299 = vsub.f32 %v1720, %v3107
    %v3300 = vsub.f32 %v1725, %v3108
    %v3301 = vsub.f32 %v1730, %v3109
    %v3302 = vsub.f32 %v1735, %v3110
    %v3303 = vsub.f32 %v1740, %v3111
    %v3304 = vsub.f32 %v1745, %v3112
    %v3305 = vsub.f32 %v1750, %v3113
    %v3306 = vsub.f32 %v1755, %v3114
    %v3307 = vsub.f32 %v1760, %v3115
    %v3308 = vsub.f32 %v1765, %v3116
    %v3309 = vsub.f32 %v1770, %v3117
    %v3310 = vsub.f32 %v1775, %v3118
    %v3311 = vsub.f32 %v1780, %v3119
    %v3312 = vmul.f32 %v3296, %v3296
    %v3313 = vmul.f32 %v3297, %v3297
    %v3314 = vmul.f32 %v3298, %v3298
    %v3315 = vmul.f32 %v3299, %v3299
    %v3316 = vmul.f32 %v3300, %v3300
    %v3317 = vmul.f32 %v3301, %v3301
    %v3318 = vmul.f32 %v3302, %v3302
    %v3319 = vmul.f32 %v3303, %v3303
    %v3320 = vmul.f32 %v3304, %v3304
    %v3321 = vmul.f32 %v3305, %v3305
    %v3322 = vmul.f32 %v3306, %v3306
    %v3323 = vmul.f32 %v3307, %v3307
    %v3324 = vmul.f32 %v3308, %v3308
    %v3325 = vmul.f32 %v3309, %v3309
    %v3326 = vmul.f32 %v3310, %v3310
    %v3327 = vmul.f32 %v3311, %v3311
    %v3328 = vsel %vm2798, %v3312, 0.0
    %3329 = vadd.xlane.f32.xlu0 %v3328
    %v3330 = vpop.xlane.xlu0 %3329
    %v3331 = vsel %vm2798, %v3313, 0.0
    %3332 = vadd.xlane.f32.xlu0 %v3331
    %v3333 = vpop.xlane.xlu0 %3332
    %v3334 = vsel %vm2798, %v3314, 0.0
    %3335 = vadd.xlane.f32.xlu0 %v3334
    %v3336 = vpop.xlane.xlu0 %3335
    %v3337 = vsel %vm2798, %v3315, 0.0
    %3338 = vadd.xlane.f32.xlu0 %v3337
    %v3339 = vpop.xlane.xlu0 %3338
    %v3340 = vsel %vm2798, %v3316, 0.0
    %3341 = vadd.xlane.f32.xlu0 %v3340
    %v3342 = vpop.xlane.xlu0 %3341
    %v3343 = vsel %vm2798, %v3317, 0.0
    %3344 = vadd.xlane.f32.xlu0 %v3343
    %v3345 = vpop.xlane.xlu0 %3344
    %v3346 = vsel %vm2798, %v3318, 0.0
    %3347 = vadd.xlane.f32.xlu0 %v3346
    %v3348 = vpop.xlane.xlu0 %3347
    %v3349 = vsel %vm2798, %v3319, 0.0
    %3350 = vadd.xlane.f32.xlu0 %v3349
    %v3351 = vpop.xlane.xlu0 %3350
    %v3352 = vsel %vm2798, %v3320, 0.0
    %3353 = vadd.xlane.f32.xlu0 %v3352
    %v3354 = vpop.xlane.xlu0 %3353
    %v3355 = vsel %vm2798, %v3321, 0.0
    %3356 = vadd.xlane.f32.xlu0 %v3355
    %v3357 = vpop.xlane.xlu0 %3356
    %v3358 = vsel %vm2798, %v3322, 0.0
    %3359 = vadd.xlane.f32.xlu0 %v3358
    %v3360 = vpop.xlane.xlu0 %3359
    %v3361 = vsel %vm2798, %v3323, 0.0
    %3362 = vadd.xlane.f32.xlu0 %v3361
    %v3363 = vpop.xlane.xlu0 %3362
    %v3364 = vsel %vm2798, %v3324, 0.0
    %3365 = vadd.xlane.f32.xlu0 %v3364
    %v3366 = vpop.xlane.xlu0 %3365
    %v3367 = vsel %vm2798, %v3325, 0.0
    %3368 = vadd.xlane.f32.xlu0 %v3367
    %v3369 = vpop.xlane.xlu0 %3368
    %v3370 = vsel %vm2798, %v3326, 0.0
    %3371 = vadd.xlane.f32.xlu0 %v3370
    %v3372 = vpop.xlane.xlu0 %3371
    %v3373 = vsel %vm2798, %v3327, 0.0
    %3374 = vadd.xlane.f32.xlu0 %v3373
    %v3375 = vpop.xlane.xlu0 %3374
    %v3376 = vadd.f32 %v3280, %v3330
    %v3377 = vadd.f32 %v3281, %v3333
    %v3378 = vadd.f32 %v3282, %v3336
    %v3379 = vadd.f32 %v3283, %v3339
    %v3380 = vadd.f32 %v3284, %v3342
    %v3381 = vadd.f32 %v3285, %v3345
    %v3382 = vadd.f32 %v3286, %v3348
    %v3383 = vadd.f32 %v3287, %v3351
    %v3384 = vadd.f32 %v3288, %v3354
    %v3385 = vadd.f32 %v3289, %v3357
    %v3386 = vadd.f32 %v3290, %v3360
    %v3387 = vadd.f32 %v3291, %v3363
    %v3388 = vadd.f32 %v3292, %v3366
    %v3389 = vadd.f32 %v3293, %v3369
    %v3390 = vadd.f32 %v3294, %v3372
    %v3391 = vadd.f32 %v3295, %v3375
    %v3392 = vsub.f32 %v2213, %v3104
    %v3393 = vsub.f32 %v2218, %v3105
    %v3394 = vsub.f32 %v2223, %v3106
    %v3395 = vsub.f32 %v2228, %v3107
    %v3396 = vsub.f32 %v2233, %v3108
    %v3397 = vsub.f32 %v2238, %v3109
    %v3398 = vsub.f32 %v2243, %v3110
    %v3399 = vsub.f32 %v2248, %v3111
    %v3400 = vsub.f32 %v2253, %v3112
    %v3401 = vsub.f32 %v2258, %v3113
    %v3402 = vsub.f32 %v2263, %v3114
    %v3403 = vsub.f32 %v2268, %v3115
    %v3404 = vsub.f32 %v2273, %v3116
    %v3405 = vsub.f32 %v2278, %v3117
    %v3406 = vsub.f32 %v2283, %v3118
    %v3407 = vsub.f32 %v2288, %v3119
    %v3408 = vmul.f32 %v3392, %v3392
    %v3409 = vmul.f32 %v3393, %v3393
    %v3410 = vmul.f32 %v3394, %v3394
    %v3411 = vmul.f32 %v3395, %v3395
    %v3412 = vmul.f32 %v3396, %v3396
    %v3413 = vmul.f32 %v3397, %v3397
    %v3414 = vmul.f32 %v3398, %v3398
    %v3415 = vmul.f32 %v3399, %v3399
    %v3416 = vmul.f32 %v3400, %v3400
    %v3417 = vmul.f32 %v3401, %v3401
    %v3418 = vmul.f32 %v3402, %v3402
    %v3419 = vmul.f32 %v3403, %v3403
    %v3420 = vmul.f32 %v3404, %v3404
    %v3421 = vmul.f32 %v3405, %v3405
    %v3422 = vmul.f32 %v3406, %v3406
    %v3423 = vmul.f32 %v3407, %v3407
    %v3424 = vsel %vm2798, %v3408, 0.0
    %3425 = vadd.xlane.f32.xlu0 %v3424
    %v3426 = vpop.xlane.xlu0 %3425
    %v3427 = vsel %vm2798, %v3409, 0.0
    %3428 = vadd.xlane.f32.xlu0 %v3427
    %v3429 = vpop.xlane.xlu0 %3428
    %v3430 = vsel %vm2798, %v3410, 0.0
    %3431 = vadd.xlane.f32.xlu0 %v3430
    %v3432 = vpop.xlane.xlu0 %3431
    %v3433 = vsel %vm2798, %v3411, 0.0
    %3434 = vadd.xlane.f32.xlu0 %v3433
    %v3435 = vpop.xlane.xlu0 %3434
    %v3436 = vsel %vm2798, %v3412, 0.0
    %3437 = vadd.xlane.f32.xlu0 %v3436
    %v3438 = vpop.xlane.xlu0 %3437
    %v3439 = vsel %vm2798, %v3413, 0.0
    %3440 = vadd.xlane.f32.xlu0 %v3439
    %v3441 = vpop.xlane.xlu0 %3440
    %v3442 = vsel %vm2798, %v3414, 0.0
    %3443 = vadd.xlane.f32.xlu0 %v3442
    %v3444 = vpop.xlane.xlu0 %3443
    %v3445 = vsel %vm2798, %v3415, 0.0
    %3446 = vadd.xlane.f32.xlu0 %v3445
    %v3447 = vpop.xlane.xlu0 %3446
    %v3448 = vsel %vm2798, %v3416, 0.0
    %3449 = vadd.xlane.f32.xlu0 %v3448
    %v3450 = vpop.xlane.xlu0 %3449
    %v3451 = vsel %vm2798, %v3417, 0.0
    %3452 = vadd.xlane.f32.xlu0 %v3451
    %v3453 = vpop.xlane.xlu0 %3452
    %v3454 = vsel %vm2798, %v3418, 0.0
    %3455 = vadd.xlane.f32.xlu0 %v3454
    %v3456 = vpop.xlane.xlu0 %3455
    %v3457 = vsel %vm2798, %v3419, 0.0
    %3458 = vadd.xlane.f32.xlu0 %v3457
    %v3459 = vpop.xlane.xlu0 %3458
    %v3460 = vsel %vm2798, %v3420, 0.0
    %3461 = vadd.xlane.f32.xlu0 %v3460
    %v3462 = vpop.xlane.xlu0 %3461
    %v3463 = vsel %vm2798, %v3421, 0.0
    %3464 = vadd.xlane.f32.xlu0 %v3463
    %v3465 = vpop.xlane.xlu0 %3464
    %v3466 = vsel %vm2798, %v3422, 0.0
    %3467 = vadd.xlane.f32.xlu0 %v3466
    %v3468 = vpop.xlane.xlu0 %3467
    %v3469 = vsel %vm2798, %v3423, 0.0
    %3470 = vadd.xlane.f32.xlu0 %v3469
    %v3471 = vpop.xlane.xlu0 %3470
    %v3472 = vadd.f32 %v3376, %v3426
    %v3473 = vadd.f32 %v3377, %v3429
    %v3474 = vadd.f32 %v3378, %v3432
    %v3475 = vadd.f32 %v3379, %v3435
    %v3476 = vadd.f32 %v3380, %v3438
    %v3477 = vadd.f32 %v3381, %v3441
    %v3478 = vadd.f32 %v3382, %v3444
    %v3479 = vadd.f32 %v3383, %v3447
    %v3480 = vadd.f32 %v3384, %v3450
    %v3481 = vadd.f32 %v3385, %v3453
    %v3482 = vadd.f32 %v3386, %v3456
    %v3483 = vadd.f32 %v3387, %v3459
    %v3484 = vadd.f32 %v3388, %v3462
    %v3485 = vadd.f32 %v3389, %v3465
    %v3486 = vadd.f32 %v3390, %v3468
    %v3487 = vadd.f32 %v3391, %v3471
    %v3488 = vsub.f32 %v2720, %v3104
    %v3489 = vsub.f32 %v2725, %v3105
    %v3490 = vsub.f32 %v2730, %v3106
    %v3491 = vsub.f32 %v2735, %v3107
    %v3492 = vsub.f32 %v2740, %v3108
    %v3493 = vsub.f32 %v2745, %v3109
    %v3494 = vsub.f32 %v2750, %v3110
    %v3495 = vsub.f32 %v2755, %v3111
    %v3496 = vsub.f32 %v2760, %v3112
    %v3497 = vsub.f32 %v2765, %v3113
    %v3498 = vsub.f32 %v2770, %v3114
    %v3499 = vsub.f32 %v2775, %v3115
    %v3500 = vsub.f32 %v2780, %v3116
    %v3501 = vsub.f32 %v2785, %v3117
    %v3502 = vsub.f32 %v2790, %v3118
    %v3503 = vsub.f32 %v2795, %v3119
    %v3504 = vmul.f32 %v3488, %v3488
    %v3505 = vmul.f32 %v3489, %v3489
    %v3506 = vmul.f32 %v3490, %v3490
    %v3507 = vmul.f32 %v3491, %v3491
    %v3508 = vmul.f32 %v3492, %v3492
    %v3509 = vmul.f32 %v3493, %v3493
    %v3510 = vmul.f32 %v3494, %v3494
    %v3511 = vmul.f32 %v3495, %v3495
    %v3512 = vmul.f32 %v3496, %v3496
    %v3513 = vmul.f32 %v3497, %v3497
    %v3514 = vmul.f32 %v3498, %v3498
    %v3515 = vmul.f32 %v3499, %v3499
    %v3516 = vmul.f32 %v3500, %v3500
    %v3517 = vmul.f32 %v3501, %v3501
    %v3518 = vmul.f32 %v3502, %v3502
    %v3519 = vmul.f32 %v3503, %v3503
    %v3520 = vsel %vm3039, %v3504, 0.0
    %3521 = vadd.xlane.f32.xlu0 %v3520
    %v3522 = vpop.xlane.xlu0 %3521
    %v3523 = vsel %vm3039, %v3505, 0.0
    %3524 = vadd.xlane.f32.xlu0 %v3523
    %v3525 = vpop.xlane.xlu0 %3524
    %v3526 = vsel %vm3039, %v3506, 0.0
    %3527 = vadd.xlane.f32.xlu0 %v3526
    %v3528 = vpop.xlane.xlu0 %3527
    %v3529 = vsel %vm3039, %v3507, 0.0
    %3530 = vadd.xlane.f32.xlu0 %v3529
    %v3531 = vpop.xlane.xlu0 %3530
    %v3532 = vsel %vm3039, %v3508, 0.0
    %3533 = vadd.xlane.f32.xlu0 %v3532
    %v3534 = vpop.xlane.xlu0 %3533
    %v3535 = vsel %vm3039, %v3509, 0.0
    %3536 = vadd.xlane.f32.xlu0 %v3535
    %v3537 = vpop.xlane.xlu0 %3536
    %v3538 = vsel %vm3039, %v3510, 0.0
    %3539 = vadd.xlane.f32.xlu0 %v3538
    %v3540 = vpop.xlane.xlu0 %3539
    %v3541 = vsel %vm3039, %v3511, 0.0
    %3542 = vadd.xlane.f32.xlu0 %v3541
    %v3543 = vpop.xlane.xlu0 %3542
    %v3544 = vsel %vm3039, %v3512, 0.0
    %3545 = vadd.xlane.f32.xlu0 %v3544
    %v3546 = vpop.xlane.xlu0 %3545
    %v3547 = vsel %vm3039, %v3513, 0.0
    %3548 = vadd.xlane.f32.xlu0 %v3547
    %v3549 = vpop.xlane.xlu0 %3548
    %v3550 = vsel %vm3039, %v3514, 0.0
    %3551 = vadd.xlane.f32.xlu0 %v3550
    %v3552 = vpop.xlane.xlu0 %3551
    %v3553 = vsel %vm3039, %v3515, 0.0
    %3554 = vadd.xlane.f32.xlu0 %v3553
    %v3555 = vpop.xlane.xlu0 %3554
    %v3556 = vsel %vm3039, %v3516, 0.0
    %3557 = vadd.xlane.f32.xlu0 %v3556
    %v3558 = vpop.xlane.xlu0 %3557
    %v3559 = vsel %vm3039, %v3517, 0.0
    %3560 = vadd.xlane.f32.xlu0 %v3559
    %v3561 = vpop.xlane.xlu0 %3560
    %v3562 = vsel %vm3039, %v3518, 0.0
    %3563 = vadd.xlane.f32.xlu0 %v3562
    %v3564 = vpop.xlane.xlu0 %3563
    %v3565 = vsel %vm3039, %v3519, 0.0
    %3566 = vadd.xlane.f32.xlu0 %v3565
    %v3567 = vpop.xlane.xlu0 %3566
    %v3568 = vadd.f32 %v3472, %v3522
    %v3569 = vadd.f32 %v3473, %v3525
    %v3570 = vadd.f32 %v3474, %v3528
    %v3571 = vadd.f32 %v3475, %v3531
    %v3572 = vadd.f32 %v3476, %v3534
    %v3573 = vadd.f32 %v3477, %v3537
    %v3574 = vadd.f32 %v3478, %v3540
    %v3575 = vadd.f32 %v3479, %v3543
    %v3576 = vadd.f32 %v3480, %v3546
    %v3577 = vadd.f32 %v3481, %v3549
    %v3578 = vadd.f32 %v3482, %v3552
    %v3579 = vadd.f32 %v3483, %v3555
    %v3580 = vadd.f32 %v3484, %v3558
    %v3581 = vadd.f32 %v3485, %v3561
    %v3582 = vadd.f32 %v3486, %v3564
    %v3583 = vadd.f32 %v3487, %v3567
    %v3584 = vmul.f32 %v3568, 0.035714287
    %v3585 = vmul.f32 %v3569, 0.035714287
    %v3586 = vmul.f32 %v3570, 0.035714287
    %v3587 = vmul.f32 %v3571, 0.035714287
    %v3588 = vmul.f32 %v3572, 0.035714287
    %v3589 = vmul.f32 %v3573, 0.035714287
    %v3590 = vmul.f32 %v3574, 0.035714287
    %v3591 = vmul.f32 %v3575, 0.035714287
    %v3592 = vmul.f32 %v3576, 0.035714287
    %v3593 = vmul.f32 %v3577, 0.035714287
    %v3594 = vmul.f32 %v3578, 0.035714287
    %v3595 = vmul.f32 %v3579, 0.035714287
    %v3596 = vmul.f32 %v3580, 0.035714287
    %v3597 = vmul.f32 %v3581, 0.035714287
    %v3598 = vmul.f32 %v3582, 0.035714287
    %v3599 = vmul.f32 %v3583, 0.035714287
    %v3600 = vld [vmem:[%s4] sm:$0xff]
    %v3601 = vld [vmem:[%s4 + $0x8] sm:$0xff]
    %v3602 = vld [vmem:[%s4 + $0x10] sm:$0xff]
    %v3603 = vld [vmem:[%s4 + $0x18] sm:$0xff]
    %v3604 = vld [vmem:[%s4 + $0x20] sm:$0xff]
    %v3605 = vld [vmem:[%s4 + $0x28] sm:$0xff]
    %v3606 = vld [vmem:[%s4 + $0x30] sm:$0xff]
    %v3607 = vld [vmem:[%s4 + $0x38] sm:$0xff]
    %v3608 = vld [vmem:[%s4 + $0x40] sm:$0xff]
    %v3609 = vld [vmem:[%s4 + $0x48] sm:$0xff]
    %v3610 = vld [vmem:[%s4 + $0x50] sm:$0xff]
    %v3611 = vld [vmem:[%s4 + $0x58] sm:$0xff]
    %v3612 = vld [vmem:[%s4 + $0x60] sm:$0xff]
    %v3613 = vld [vmem:[%s4 + $0x68] sm:$0xff]
    %v3614 = vld [vmem:[%s4 + $0x70] sm:$0xff]
    %v3615 = vld [vmem:[%s4 + $0x78] sm:$0xff]
    %v3616 = vadd.f32 %v3584, 1e-05
    %v3617 = vadd.f32 %v3585, 1e-05
    %v3618 = vadd.f32 %v3586, 1e-05
    %v3619 = vadd.f32 %v3587, 1e-05
    %v3620 = vadd.f32 %v3588, 1e-05
    %v3621 = vadd.f32 %v3589, 1e-05
    %v3622 = vadd.f32 %v3590, 1e-05
    %v3623 = vadd.f32 %v3591, 1e-05
    %v3624 = vadd.f32 %v3592, 1e-05
    %v3625 = vadd.f32 %v3593, 1e-05
    %v3626 = vadd.f32 %v3594, 1e-05
    %v3627 = vadd.f32 %v3595, 1e-05
    %v3628 = vadd.f32 %v3596, 1e-05
    %v3629 = vadd.f32 %v3597, 1e-05
    %v3630 = vadd.f32 %v3598, 1e-05
    %v3631 = vadd.f32 %v3599, 1e-05
    %v3632 = vrsqrt.pop %v3616
    %v3633 = vrsqrt.pop %v3617
    %v3634 = vrsqrt.pop %v3618
    %v3635 = vrsqrt.pop %v3619
    %v3636 = vrsqrt.pop %v3620
    %v3637 = vrsqrt.pop %v3621
    %v3638 = vrsqrt.pop %v3622
    %v3639 = vrsqrt.pop %v3623
    %v3640 = vrsqrt.pop %v3624
    %v3641 = vrsqrt.pop %v3625
    %v3642 = vrsqrt.pop %v3626
    %v3643 = vrsqrt.pop %v3627
    %v3644 = vrsqrt.pop %v3628
    %v3645 = vrsqrt.pop %v3629
    %v3646 = vrsqrt.pop %v3630
    %v3647 = vrsqrt.pop %v3631
    %v3648 = vmul.f32 %v3600, %v3632
    %v3649 = vmul.f32 %v3601, %v3633
    %v3650 = vmul.f32 %v3602, %v3634
    %v3651 = vmul.f32 %v3603, %v3635
    %v3652 = vmul.f32 %v3604, %v3636
    %v3653 = vmul.f32 %v3605, %v3637
    %v3654 = vmul.f32 %v3606, %v3638
    %v3655 = vmul.f32 %v3607, %v3639
    %v3656 = vmul.f32 %v3608, %v3640
    %v3657 = vmul.f32 %v3609, %v3641
    %v3658 = vmul.f32 %v3610, %v3642
    %v3659 = vmul.f32 %v3611, %v3643
    %v3660 = vmul.f32 %v3612, %v3644
    %v3661 = vmul.f32 %v3613, %v3645
    %v3662 = vmul.f32 %v3614, %v3646
    %v3663 = vmul.f32 %v3615, %v3647
    %v3664 = vld [vmem:[%s5] sm:$0xff]
    %v3665 = vld [vmem:[%s5 + $0x8] sm:$0xff]
    %v3666 = vld [vmem:[%s5 + $0x10] sm:$0xff]
    %v3667 = vld [vmem:[%s5 + $0x18] sm:$0xff]
    %v3668 = vld [vmem:[%s5 + $0x20] sm:$0xff]
    %v3669 = vld [vmem:[%s5 + $0x28] sm:$0xff]
    %v3670 = vld [vmem:[%s5 + $0x30] sm:$0xff]
    %v3671 = vld [vmem:[%s5 + $0x38] sm:$0xff]
    %v3672 = vld [vmem:[%s5 + $0x40] sm:$0xff]
    %v3673 = vld [vmem:[%s5 + $0x48] sm:$0xff]
    %v3674 = vld [vmem:[%s5 + $0x50] sm:$0xff]
    %v3675 = vld [vmem:[%s5 + $0x58] sm:$0xff]
    %v3676 = vld [vmem:[%s5 + $0x60] sm:$0xff]
    %v3677 = vld [vmem:[%s5 + $0x68] sm:$0xff]
    %v3678 = vld [vmem:[%s5 + $0x70] sm:$0xff]
    %v3679 = vld [vmem:[%s5 + $0x78] sm:$0xff]
    %v3680 = vmul.f32 %v3104, %v3648
    %v3681 = vmul.f32 %v3105, %v3649
    %v3682 = vmul.f32 %v3106, %v3650
    %v3683 = vmul.f32 %v3107, %v3651
    %v3684 = vmul.f32 %v3108, %v3652
    %v3685 = vmul.f32 %v3109, %v3653
    %v3686 = vmul.f32 %v3110, %v3654
    %v3687 = vmul.f32 %v3111, %v3655
    %v3688 = vmul.f32 %v3112, %v3656
    %v3689 = vmul.f32 %v3113, %v3657
    %v3690 = vmul.f32 %v3114, %v3658
    %v3691 = vmul.f32 %v3115, %v3659
    %v3692 = vmul.f32 %v3116, %v3660
    %v3693 = vmul.f32 %v3117, %v3661
    %v3694 = vmul.f32 %v3118, %v3662
    %v3695 = vmul.f32 %v3119, %v3663
    %v3696 = vsub.f32 %v3664, %v3680
    %v3697 = vsub.f32 %v3665, %v3681
    %v3698 = vsub.f32 %v3666, %v3682
    %v3699 = vsub.f32 %v3667, %v3683
    %v3700 = vsub.f32 %v3668, %v3684
    %v3701 = vsub.f32 %v3669, %v3685
    %v3702 = vsub.f32 %v3670, %v3686
    %v3703 = vsub.f32 %v3671, %v3687
    %v3704 = vsub.f32 %v3672, %v3688
    %v3705 = vsub.f32 %v3673, %v3689
    %v3706 = vsub.f32 %v3674, %v3690
    %v3707 = vsub.f32 %v3675, %v3691
    %v3708 = vsub.f32 %v3676, %v3692
    %v3709 = vsub.f32 %v3677, %v3693
    %v3710 = vsub.f32 %v3678, %v3694
    %v3711 = vsub.f32 %v3679, %v3695
    %v3712 = vadd.f32 %v689, %v1197
    %v3713 = vadd.f32 %v694, %v1202
    %v3714 = vadd.f32 %v699, %v1207
    %v3715 = vadd.f32 %v704, %v1212
    %v3716 = vadd.f32 %v709, %v1217
    %v3717 = vadd.f32 %v714, %v1222
    %v3718 = vadd.f32 %v719, %v1227
    %v3719 = vadd.f32 %v724, %v1232
    %v3720 = vadd.f32 %v729, %v1237
    %v3721 = vadd.f32 %v734, %v1242
    %v3722 = vadd.f32 %v739, %v1247
    %v3723 = vadd.f32 %v744, %v1252
    %v3724 = vadd.f32 %v749, %v1257
    %v3725 = vadd.f32 %v754, %v1262
    %v3726 = vadd.f32 %v759, %v1267
    %v3727 = vadd.f32 %v764, %v1272
    %v3728 = vadd.f32 %v3712, %v1705
    %v3729 = vadd.f32 %v3713, %v1710
    %v3730 = vadd.f32 %v3714, %v1715
    %v3731 = vadd.f32 %v3715, %v1720
    %v3732 = vadd.f32 %v3716, %v1725
    %v3733 = vadd.f32 %v3717, %v1730
    %v3734 = vadd.f32 %v3718, %v1735
    %v3735 = vadd.f32 %v3719, %v1740
    %v3736 = vadd.f32 %v3720, %v1745
    %v3737 = vadd.f32 %v3721, %v1750
    %v3738 = vadd.f32 %v3722, %v1755
    %v3739 = vadd.f32 %v3723, %v1760
    %v3740 = vadd.f32 %v3724, %v1765
    %v3741 = vadd.f32 %v3725, %v1770
    %v3742 = vadd.f32 %v3726, %v1775
    %v3743 = vadd.f32 %v3727, %v1780
    %v3744 = vadd.f32 %v3728, %v2213
    %v3745 = vadd.f32 %v3729, %v2218
    %v3746 = vadd.f32 %v3730, %v2223
    %v3747 = vadd.f32 %v3731, %v2228
    %v3748 = vadd.f32 %v3732, %v2233
    %v3749 = vadd.f32 %v3733, %v2238
    %v3750 = vadd.f32 %v3734, %v2243
    %v3751 = vadd.f32 %v3735, %v2248
    %v3752 = vadd.f32 %v3736, %v2253
    %v3753 = vadd.f32 %v3737, %v2258
    %v3754 = vadd.f32 %v3738, %v2263
    %v3755 = vadd.f32 %v3739, %v2268
    %v3756 = vadd.f32 %v3740, %v2273
    %v3757 = vadd.f32 %v3741, %v2278
    %v3758 = vadd.f32 %v3742, %v2283
    %v3759 = vadd.f32 %v3743, %v2288
    %v3760 = vmul.f32 %v3744, 0.25
    %v3761 = vmul.f32 %v3745, 0.25
    %v3762 = vmul.f32 %v3746, 0.25
    %v3763 = vmul.f32 %v3747, 0.25
    %v3764 = vmul.f32 %v3748, 0.25
    %v3765 = vmul.f32 %v3749, 0.25
    %v3766 = vmul.f32 %v3750, 0.25
    %v3767 = vmul.f32 %v3751, 0.25
    %v3768 = vmul.f32 %v3752, 0.25
    %v3769 = vmul.f32 %v3753, 0.25
    %v3770 = vmul.f32 %v3754, 0.25
    %v3771 = vmul.f32 %v3755, 0.25
    %v3772 = vmul.f32 %v3756, 0.25
    %v3773 = vmul.f32 %v3757, 0.25
    %v3774 = vmul.f32 %v3758, 0.25
    %v3775 = vmul.f32 %v3759, 0.25
    %3777 = vset.pattern.permute.xlu0 0
    %3778 = vperm.xlu0 %3777, %v3648
    %v3779 = vpop.permute.xlu0 %3778
    %3782 = vset.pattern.permute.xlu0 0
    %3783 = vperm.xlu0 %3782, %v3649
    %v3784 = vpop.permute.xlu0 %3783
    %3787 = vset.pattern.permute.xlu0 0
    %3788 = vperm.xlu0 %3787, %v3650
    %v3789 = vpop.permute.xlu0 %3788
    %3792 = vset.pattern.permute.xlu0 0
    %3793 = vperm.xlu0 %3792, %v3651
    %v3794 = vpop.permute.xlu0 %3793
    %3797 = vset.pattern.permute.xlu0 0
    %3798 = vperm.xlu0 %3797, %v3652
    %v3799 = vpop.permute.xlu0 %3798
    %3802 = vset.pattern.permute.xlu0 0
    %3803 = vperm.xlu0 %3802, %v3653
    %v3804 = vpop.permute.xlu0 %3803
    %3807 = vset.pattern.permute.xlu0 0
    %3808 = vperm.xlu0 %3807, %v3654
    %v3809 = vpop.permute.xlu0 %3808
    %3812 = vset.pattern.permute.xlu0 0
    %3813 = vperm.xlu0 %3812, %v3655
    %v3814 = vpop.permute.xlu0 %3813
    %3817 = vset.pattern.permute.xlu0 0
    %3818 = vperm.xlu0 %3817, %v3656
    %v3819 = vpop.permute.xlu0 %3818
    %3822 = vset.pattern.permute.xlu0 0
    %3823 = vperm.xlu0 %3822, %v3657
    %v3824 = vpop.permute.xlu0 %3823
    %3827 = vset.pattern.permute.xlu0 0
    %3828 = vperm.xlu0 %3827, %v3658
    %v3829 = vpop.permute.xlu0 %3828
    %3832 = vset.pattern.permute.xlu0 0
    %3833 = vperm.xlu0 %3832, %v3659
    %v3834 = vpop.permute.xlu0 %3833
    %3837 = vset.pattern.permute.xlu0 0
    %3838 = vperm.xlu0 %3837, %v3660
    %v3839 = vpop.permute.xlu0 %3838
    %3842 = vset.pattern.permute.xlu0 0
    %3843 = vperm.xlu0 %3842, %v3661
    %v3844 = vpop.permute.xlu0 %3843
    %3847 = vset.pattern.permute.xlu0 0
    %3848 = vperm.xlu0 %3847, %v3662
    %v3849 = vpop.permute.xlu0 %3848
    %3852 = vset.pattern.permute.xlu0 0
    %3853 = vperm.xlu0 %3852, %v3663
    %v3854 = vpop.permute.xlu0 %3853
    %v3856 = vmul.f32 %v3760, %v3779
    %v3857 = vmul.f32 %v3761, %v3784
    %v3858 = vmul.f32 %v3762, %v3789
    %v3859 = vmul.f32 %v3763, %v3794
    %v3860 = vmul.f32 %v3764, %v3799
    %v3861 = vmul.f32 %v3765, %v3804
    %v3862 = vmul.f32 %v3766, %v3809
    %v3863 = vmul.f32 %v3767, %v3814
    %v3864 = vmul.f32 %v3768, %v3819
    %v3865 = vmul.f32 %v3769, %v3824
    %v3866 = vmul.f32 %v3770, %v3829
    %v3867 = vmul.f32 %v3771, %v3834
    %v3868 = vmul.f32 %v3772, %v3839
    %v3869 = vmul.f32 %v3773, %v3844
    %v3870 = vmul.f32 %v3774, %v3849
    %v3871 = vmul.f32 %v3775, %v3854
    %3873 = vset.pattern.permute.xlu0 0
    %3874 = vperm.xlu0 %3873, %v3696
    %v3875 = vpop.permute.xlu0 %3874
    %3878 = vset.pattern.permute.xlu0 0
    %3879 = vperm.xlu0 %3878, %v3697
    %v3880 = vpop.permute.xlu0 %3879
    %3883 = vset.pattern.permute.xlu0 0
    %3884 = vperm.xlu0 %3883, %v3698
    %v3885 = vpop.permute.xlu0 %3884
    %3888 = vset.pattern.permute.xlu0 0
    %3889 = vperm.xlu0 %3888, %v3699
    %v3890 = vpop.permute.xlu0 %3889
    %3893 = vset.pattern.permute.xlu0 0
    %3894 = vperm.xlu0 %3893, %v3700
    %v3895 = vpop.permute.xlu0 %3894
    %3898 = vset.pattern.permute.xlu0 0
    %3899 = vperm.xlu0 %3898, %v3701
    %v3900 = vpop.permute.xlu0 %3899
    %3903 = vset.pattern.permute.xlu0 0
    %3904 = vperm.xlu0 %3903, %v3702
    %v3905 = vpop.permute.xlu0 %3904
    %3908 = vset.pattern.permute.xlu0 0
    %3909 = vperm.xlu0 %3908, %v3703
    %v3910 = vpop.permute.xlu0 %3909
    %3913 = vset.pattern.permute.xlu0 0
    %3914 = vperm.xlu0 %3913, %v3704
    %v3915 = vpop.permute.xlu0 %3914
    %3918 = vset.pattern.permute.xlu0 0
    %3919 = vperm.xlu0 %3918, %v3705
    %v3920 = vpop.permute.xlu0 %3919
    %3923 = vset.pattern.permute.xlu0 0
    %3924 = vperm.xlu0 %3923, %v3706
    %v3925 = vpop.permute.xlu0 %3924
    %3928 = vset.pattern.permute.xlu0 0
    %3929 = vperm.xlu0 %3928, %v3707
    %v3930 = vpop.permute.xlu0 %3929
    %3933 = vset.pattern.permute.xlu0 0
    %3934 = vperm.xlu0 %3933, %v3708
    %v3935 = vpop.permute.xlu0 %3934
    %3938 = vset.pattern.permute.xlu0 0
    %3939 = vperm.xlu0 %3938, %v3709
    %v3940 = vpop.permute.xlu0 %3939
    %3943 = vset.pattern.permute.xlu0 0
    %3944 = vperm.xlu0 %3943, %v3710
    %v3945 = vpop.permute.xlu0 %3944
    %3948 = vset.pattern.permute.xlu0 0
    %3949 = vperm.xlu0 %3948, %v3711
    %v3950 = vpop.permute.xlu0 %3949
    %v3952 = vadd.f32 %v3856, %v3875
    %v3953 = vadd.f32 %v3857, %v3880
    %v3954 = vadd.f32 %v3858, %v3885
    %v3955 = vadd.f32 %v3859, %v3890
    %v3956 = vadd.f32 %v3860, %v3895
    %v3957 = vadd.f32 %v3861, %v3900
    %v3958 = vadd.f32 %v3862, %v3905
    %v3959 = vadd.f32 %v3863, %v3910
    %v3960 = vadd.f32 %v3864, %v3915
    %v3961 = vadd.f32 %v3865, %v3920
    %v3962 = vadd.f32 %v3866, %v3925
    %v3963 = vadd.f32 %v3867, %v3930
    %v3964 = vadd.f32 %v3868, %v3935
    %v3965 = vadd.f32 %v3869, %v3940
    %v3966 = vadd.f32 %v3870, %v3945
    %v3967 = vadd.f32 %v3871, %v3950
    %vm3968 = vcmp.gt.f32.partialorder %v3952, 0.0
    %vm3969 = vcmp.gt.f32.partialorder %v3953, 0.0
    %vm3970 = vcmp.gt.f32.partialorder %v3954, 0.0
    %vm3971 = vcmp.gt.f32.partialorder %v3955, 0.0
    %vm3972 = vcmp.gt.f32.partialorder %v3956, 0.0
    %vm3973 = vcmp.gt.f32.partialorder %v3957, 0.0
    %vm3974 = vcmp.gt.f32.partialorder %v3958, 0.0
    %vm3975 = vcmp.gt.f32.partialorder %v3959, 0.0
    %vm3976 = vcmp.gt.f32.partialorder %v3960, 0.0
    %vm3977 = vcmp.gt.f32.partialorder %v3961, 0.0
    %vm3978 = vcmp.gt.f32.partialorder %v3962, 0.0
    %vm3979 = vcmp.gt.f32.partialorder %v3963, 0.0
    %vm3980 = vcmp.gt.f32.partialorder %v3964, 0.0
    %vm3981 = vcmp.gt.f32.partialorder %v3965, 0.0
    %vm3982 = vcmp.gt.f32.partialorder %v3966, 0.0
    %vm3983 = vcmp.gt.f32.partialorder %v3967, 0.0
    %v3984 = vmul.f32 %v3952, 0.2
    %v3985 = vmul.f32 %v3953, 0.2
    %v3986 = vmul.f32 %v3954, 0.2
    %v3987 = vmul.f32 %v3955, 0.2
    %v3988 = vmul.f32 %v3956, 0.2
    %v3989 = vmul.f32 %v3957, 0.2
    %v3990 = vmul.f32 %v3958, 0.2
    %v3991 = vmul.f32 %v3959, 0.2
    %v3992 = vmul.f32 %v3960, 0.2
    %v3993 = vmul.f32 %v3961, 0.2
    %v3994 = vmul.f32 %v3962, 0.2
    %v3995 = vmul.f32 %v3963, 0.2
    %v3996 = vmul.f32 %v3964, 0.2
    %v3997 = vmul.f32 %v3965, 0.2
    %v3998 = vmul.f32 %v3966, 0.2
    %v3999 = vmul.f32 %v3967, 0.2
    %v4000 = vsel %vm3968, %v3952, %v3984
    %v4001 = vsel %vm3969, %v3953, %v3985
    %v4002 = vsel %vm3970, %v3954, %v3986
    %v4003 = vsel %vm3971, %v3955, %v3987
    %v4004 = vsel %vm3972, %v3956, %v3988
    %v4005 = vsel %vm3973, %v3957, %v3989
    %v4006 = vsel %vm3974, %v3958, %v3990
    %v4007 = vsel %vm3975, %v3959, %v3991
    %v4008 = vsel %vm3976, %v3960, %v3992
    %v4009 = vsel %vm3977, %v3961, %v3993
    %v4010 = vsel %vm3978, %v3962, %v3994
    %v4011 = vsel %vm3979, %v3963, %v3995
    %v4012 = vsel %vm3980, %v3964, %v3996
    %v4013 = vsel %vm3981, %v3965, %v3997
    %v4014 = vsel %vm3982, %v3966, %v3998
    %v4015 = vsel %vm3983, %v3967, %v3999
    %v4016 = vld [vmem:[%s6] sm:$0xff]
    %v4017 = vld [vmem:[%s6 + $0x8] sm:$0xff]
    %v4018 = vld [vmem:[%s6 + $0x10] sm:$0xff]
    %v4019 = vld [vmem:[%s6 + $0x18] sm:$0xff]
    %v4020 = vld [vmem:[%s6 + $0x20] sm:$0xff]
    %v4021 = vld [vmem:[%s6 + $0x28] sm:$0xff]
    %v4022 = vld [vmem:[%s6 + $0x30] sm:$0xff]
    %v4023 = vld [vmem:[%s6 + $0x38] sm:$0xff]
    %v4024 = vld [vmem:[%s6 + $0x40] sm:$0xff]
    %v4025 = vld [vmem:[%s6 + $0x48] sm:$0xff]
    %v4026 = vld [vmem:[%s6 + $0x50] sm:$0xff]
    %v4027 = vld [vmem:[%s6 + $0x58] sm:$0xff]
    %v4028 = vld [vmem:[%s6 + $0x60] sm:$0xff]
    %v4029 = vld [vmem:[%s6 + $0x68] sm:$0xff]
    %v4030 = vld [vmem:[%s6 + $0x70] sm:$0xff]
    %v4031 = vld [vmem:[%s6 + $0x78] sm:$0xff]
    %v4032 = vmul.f32 %v4000, %v4016
    %v4033 = vmul.f32 %v4001, %v4017
    %v4034 = vmul.f32 %v4002, %v4018
    %v4035 = vmul.f32 %v4003, %v4019
    %v4036 = vmul.f32 %v4004, %v4020
    %v4037 = vmul.f32 %v4005, %v4021
    %v4038 = vmul.f32 %v4006, %v4022
    %v4039 = vmul.f32 %v4007, %v4023
    %v4040 = vmul.f32 %v4008, %v4024
    %v4041 = vmul.f32 %v4009, %v4025
    %v4042 = vmul.f32 %v4010, %v4026
    %v4043 = vmul.f32 %v4011, %v4027
    %v4044 = vmul.f32 %v4012, %v4028
    %v4045 = vmul.f32 %v4013, %v4029
    %v4046 = vmul.f32 %v4014, %v4030
    %v4047 = vmul.f32 %v4015, %v4031
    %v4048 = vld [vmem:[%s7] sm:$0x3f]
    %v4050 = vsel %vm2798, %v4032, 0
    %v4053 = vsel %vm2798, %v4033, 0
    %v4056 = vsel %vm2798, %v4034, 0
    %v4059 = vsel %vm2798, %v4035, 0
    %v4062 = vsel %vm2798, %v4036, 0
    %v4065 = vsel %vm2798, %v4037, 0
    %v4068 = vsel %vm2798, %v4038, 0
    %v4071 = vsel %vm2798, %v4039, 0
    %v4074 = vsel %vm2798, %v4040, 0
    %v4077 = vsel %vm2798, %v4041, 0
    %v4080 = vsel %vm2798, %v4042, 0
    %v4083 = vsel %vm2798, %v4043, 0
    %v4086 = vsel %vm2798, %v4044, 0
    %v4089 = vsel %vm2798, %v4045, 0
    %v4092 = vsel %vm2798, %v4046, 0
    %v4095 = vsel %vm2798, %v4047, 0
    %vm4097 = vcmask 1045504
    %v4099 = vsel %vm4097, %v4048, 0
    %4101 = vmatprep.subr.mxu0 0.0
    %4102 = vmatpush1.msra.mxu0 0.0
    %4103 = vmatprep.subr.mxu0 0.0
    %4104 = vmatpush1.msra.mxu0 0.0
    %4105 = vmatprep.subr.mxu0 0.0
    %4106 = vmatpush1.msra.mxu0 0.0
    %4107 = vmatprep.subr.mxu0 0.0
    %4108 = vmatpush1.msra.mxu0 0.0
    %4109 = vmatprep.subr.mxu0 0.0
    %4110 = vmatpush1.msra.mxu0 0.0
    %4111 = vmatprep.subr.mxu0 0.0
    %4112 = vmatpush1.msra.mxu0 0.0
    %4113 = vmatprep.subr.mxu0 0.0
    %4114 = vmatpush1.msra.mxu0 0.0
    %4115 = vmatprep.subr.mxu0 0.0
    %4116 = vmatpush1.msra.mxu0 0.0
    %4117 = vmatprep.subr.mxu0 0.0
    %4118 = vmatpush1.msra.mxu0 0.0
    %4119 = vmatprep.subr.mxu0 0.0
    %4120 = vmatpush1.msra.mxu0 0.0
    %4121 = vmatprep.subr.mxu0 0.0
    %4122 = vmatpush1.msra.mxu0 0.0
    %4123 = vmatprep.subr.mxu0 0.0
    %4124 = vmatpush1.msra.mxu0 0.0
    %4125 = vmatprep.subr.mxu0 0.0
    %4126 = vmatpush1.msra.mxu0 0.0
    %4127 = vmatprep.subr.mxu0 0.0
    %4128 = vmatpush1.msra.mxu0 0.0
    %4129 = vmatprep.subr.mxu0 0.0
    %4130 = vmatpush1.msra.mxu0 0.0
    %4131 = vmatprep.subr.mxu0 0.0
    %4132 = vmatpush1.msra.mxu0 %v4099
    %4133 = vmatprep.subr.mxu0 0.0
    %4134 = vmatpush2.msra.mxu0 0.0
    %4135 = vmatprep.subr.mxu0 0.0
    %4136 = vmatpush2.msra.mxu0 0.0
    %4137 = vmatprep.subr.mxu0 0.0
    %4138 = vmatpush2.msra.mxu0 0.0
    %4139 = vmatprep.subr.mxu0 0.0
    %4140 = vmatpush2.msra.mxu0 0.0
    %4141 = vmatprep.subr.mxu0 0.0
    %4142 = vmatpush2.msra.mxu0 0.0
    %4143 = vmatprep.subr.mxu0 0.0
    %4144 = vmatpush2.msra.mxu0 0.0
    %4145 = vmatprep.subr.mxu0 0.0
    %4146 = vmatpush2.msra.mxu0 0.0
    %4147 = vmatprep.subr.mxu0 0.0
    %4148 = vmatpush2.msra.mxu0 0.0
    %4149 = vmatprep.subr.mxu0 0.0
    %4150 = vmatpush2.msra.mxu0 0.0
    %4151 = vmatprep.subr.mxu0 0.0
    %4152 = vmatpush2.msra.mxu0 0.0
    %4153 = vmatprep.subr.mxu0 0.0
    %4154 = vmatpush2.msra.mxu0 0.0
    %4155 = vmatprep.subr.mxu0 0.0
    %4156 = vmatpush2.msra.mxu0 0.0
    %4157 = vmatprep.subr.mxu0 0.0
    %4158 = vmatpush2.msra.mxu0 0.0
    %4159 = vmatprep.subr.mxu0 0.0
    %4160 = vmatpush2.msra.mxu0 0.0
    %4161 = vmatprep.subr.mxu0 0.0
    %4162 = vmatpush2.msra.mxu0 0.0
    %4163 = vmatprep.subr.mxu0 0.0
    %4164 = vmatpush2.msra.mxu0 0.0
    %4165 = vmatprep.mubr.f32.mxu0 0.0
    %4166 = vmatmul.mubr.f32.gmra.mxu0 %v4050
    %v4167 = vpop.f32.mrf.mxu0
    %v4168 = vadd.f32 0.0, %v4167
    %v4169 = vpop.f32.mrf.mxu0
    %4170 = vmatprep.mubr.f32.mxu0 0.0
    %4171 = vmatmul.mubr.f32.gmra.mxu0 %v4053
    %v4172 = vpop.f32.mrf.mxu0
    %v4173 = vadd.f32 0.0, %v4172
    %v4174 = vpop.f32.mrf.mxu0
    %4175 = vmatprep.mubr.f32.mxu0 0.0
    %4176 = vmatmul.mubr.f32.gmra.mxu0 %v4056
    %v4177 = vpop.f32.mrf.mxu0
    %v4178 = vadd.f32 0.0, %v4177
    %v4179 = vpop.f32.mrf.mxu0
    %4180 = vmatprep.mubr.f32.mxu0 0.0
    %4181 = vmatmul.mubr.f32.gmra.mxu0 %v4059
    %v4182 = vpop.f32.mrf.mxu0
    %v4183 = vadd.f32 0.0, %v4182
    %v4184 = vpop.f32.mrf.mxu0
    %4185 = vmatprep.mubr.f32.mxu0 0.0
    %4186 = vmatmul.mubr.f32.gmra.mxu0 %v4062
    %v4187 = vpop.f32.mrf.mxu0
    %v4188 = vadd.f32 0.0, %v4187
    %v4189 = vpop.f32.mrf.mxu0
    %4190 = vmatprep.mubr.f32.mxu0 0.0
    %4191 = vmatmul.mubr.f32.gmra.mxu0 %v4065
    %v4192 = vpop.f32.mrf.mxu0
    %v4193 = vadd.f32 0.0, %v4192
    %v4194 = vpop.f32.mrf.mxu0
    %4195 = vmatprep.mubr.f32.mxu0 0.0
    %4196 = vmatmul.mubr.f32.gmra.mxu0 %v4068
    %v4197 = vpop.f32.mrf.mxu0
    %v4198 = vadd.f32 0.0, %v4197
    %v4199 = vpop.f32.mrf.mxu0
    %4200 = vmatprep.mubr.f32.mxu0 0.0
    %4201 = vmatmul.mubr.f32.gmra.mxu0 %v4071
    %v4202 = vpop.f32.mrf.mxu0
    %v4203 = vadd.f32 0.0, %v4202
    %v4204 = vpop.f32.mrf.mxu0
    %4205 = vmatprep.mubr.f32.mxu0 0.0
    %4206 = vmatmul.mubr.f32.gmra.mxu0 %v4074
    %v4207 = vpop.f32.mrf.mxu0
    %v4208 = vadd.f32 0.0, %v4207
    %v4209 = vpop.f32.mrf.mxu0
    %4210 = vmatprep.mubr.f32.mxu0 0.0
    %4211 = vmatmul.mubr.f32.gmra.mxu0 %v4077
    %v4212 = vpop.f32.mrf.mxu0
    %v4213 = vadd.f32 0.0, %v4212
    %v4214 = vpop.f32.mrf.mxu0
    %4215 = vmatprep.mubr.f32.mxu0 0.0
    %4216 = vmatmul.mubr.f32.gmra.mxu0 %v4080
    %v4217 = vpop.f32.mrf.mxu0
    %v4218 = vadd.f32 0.0, %v4217
    %v4219 = vpop.f32.mrf.mxu0
    %4220 = vmatprep.mubr.f32.mxu0 0.0
    %4221 = vmatmul.mubr.f32.gmra.mxu0 %v4083
    %v4222 = vpop.f32.mrf.mxu0
    %v4223 = vadd.f32 0.0, %v4222
    %v4224 = vpop.f32.mrf.mxu0
    %4225 = vmatprep.mubr.f32.mxu0 0.0
    %4226 = vmatmul.mubr.f32.gmra.mxu0 %v4086
    %v4227 = vpop.f32.mrf.mxu0
    %v4228 = vadd.f32 0.0, %v4227
    %v4229 = vpop.f32.mrf.mxu0
    %4230 = vmatprep.mubr.f32.mxu0 0.0
    %4231 = vmatmul.mubr.f32.gmra.mxu0 %v4089
    %v4232 = vpop.f32.mrf.mxu0
    %v4233 = vadd.f32 0.0, %v4232
    %v4234 = vpop.f32.mrf.mxu0
    %4235 = vmatprep.mubr.f32.mxu0 0.0
    %4236 = vmatmul.mubr.f32.gmra.mxu0 %v4092
    %v4237 = vpop.f32.mrf.mxu0
    %v4238 = vadd.f32 0.0, %v4237
    %v4239 = vpop.f32.mrf.mxu0
    %4240 = vmatprep.mubr.f32.mxu0 0.0
    %4241 = vmatmul.mubr.f32.gmra.mxu0 %v4095
    %v4242 = vpop.f32.mrf.mxu0
    %v4243 = vadd.f32 0.0, %v4242
    %v4244 = vpop.f32.mrf.mxu0
    %4245 = vdwg.mxu0
    %vm4246 = vcmask 15360
    %v4247 = vsel %vm4246, %v4168, 0.0
    %v4248 = vsel %vm4246, %v4173, 0.0
    %v4249 = vadd.f32 %v4247, %v4248
    %v4250 = vsel %vm4246, %v4178, 0.0
    %v4251 = vadd.f32 %v4249, %v4250
    %v4252 = vsel %vm4246, %v4183, 0.0
    %v4253 = vadd.f32 %v4251, %v4252
    %v4254 = vsel %vm4246, %v4188, 0.0
    %v4255 = vadd.f32 %v4253, %v4254
    %v4256 = vsel %vm4246, %v4193, 0.0
    %v4257 = vadd.f32 %v4255, %v4256
    %v4258 = vsel %vm4246, %v4198, 0.0
    %v4259 = vadd.f32 %v4257, %v4258
    %v4260 = vsel %vm4246, %v4203, 0.0
    %v4261 = vadd.f32 %v4259, %v4260
    %v4262 = vsel %vm4246, %v4208, 0.0
    %v4263 = vadd.f32 %v4261, %v4262
    %v4264 = vsel %vm4246, %v4213, 0.0
    %v4265 = vadd.f32 %v4263, %v4264
    %v4266 = vsel %vm4246, %v4218, 0.0
    %v4267 = vadd.f32 %v4265, %v4266
    %v4268 = vsel %vm4246, %v4223, 0.0
    %v4269 = vadd.f32 %v4267, %v4268
    %v4270 = vsel %vm4246, %v4228, 0.0
    %v4271 = vadd.f32 %v4269, %v4270
    %v4272 = vsel %vm4246, %v4233, 0.0
    %v4273 = vadd.f32 %v4271, %v4272
    %v4274 = vsel %vm4246, %v4238, 0.0
    %v4275 = vadd.f32 %v4273, %v4274
    %v4276 = vsel %vm4246, %v4243, 0.0
    %v4277 = vadd.f32 %v4275, %v4276
    %v4278 = vrot.slane %v4277, 4
    %v4279 = vadd.f32 %v4277, %v4278
    %v4280 = vrot.slane %v4279, 2
    %v4281 = vadd.f32 %v4279, %v4280
    %v4282 = vrot.slane %v4281, 1
    %v4283 = vadd.f32 %v4281, %v4282
    %v4284 = vld [vmem:[#allocation2] sm:$0x1]
    %4286 = vset.pattern.permute.xlu0 0
    %4287 = vperm.xlu0 %4286, %v4284
    %v4288 = vpop.permute.xlu0 %4287
    %v4290 = vlaneseq
    %v4291 = vshrl.u32 %v4290, 7
    %v4292 = vsub.s32 0, %v4291
    %v4293 = vrot.slane %v4288, %v4292
    %v4294 = vadd.f32 %v4283, %v4293
    %v4295 = vsub.f32 0.0, %v4294
    %v4296 = vmul.f32 %v4295, 1.442695
    %v4297 = vpow.pop %v4296
    %v4298 = vadd.f32 %v4297, 1.0
    %v4299 = vrcp.pop %v4298
    %v4300 = vmul.f32 1.0, %v4299
    %vm4301 = vcmask 8192
    %4302 = vst.msk [vmem:[#allocation3] sm:$0x1] %vm4301, %v4300
    // Predicated region
    $region38: #{_lambda_.9} parent=1 // pred_check
      _
    $region39: #{_lambda_.9} parent=1 // pred_check_branch
      %4304 = sbr.rel (0) target = $region41
    $region40: #{_lambda_.9} parent=1 // pred_region
      %s4306 = ssub.s32 16, 16
      %4307 = vsyncadd [#allocation4], %s4306
      %s4309 = sshll.u32 [#allocation3], 4
      %s4310 = int_to_ptr.vmem [resolvable:$true] %s4309
      %4312 = dma.vmem_to_hbm [thread:$0]  %s4310, 16, %s9, [#allocation4]
    $region41: #{_lambda_.9} parent=1 // pred_fallthru
      _
    // Predicated region
    $region42: #{_lambda_.9} parent=1 // pred_check
      _
    $region43: #{_lambda_.9} parent=1 // pred_check_branch
      %4314 = sbr.rel (0) target = $region45
    $region44: #{_lambda_.9} parent=1 // pred_region
      %4315 = dma.done [#allocation4], 16
    $region45: #{_lambda_.9} parent=1 // pred_fallthru
      _
    %4316 = vsyncpa [#allocation4], 1

</llo_original>
